<compile_context>
chip_gen: v6e
topology: v6e:2x2x1
jax: 0.10.0
libtpu: 0.0.40
codegen_flags: <defaults>
</compile_context>

<pallas_src>
import functools

import jax
import jax.numpy as jnp
from jax import lax
from jax.experimental import pallas as pl
from jax.experimental.pallas import tpu as pltpu

LANES = 128      # vreg lane width
STRIP = 64       # rows per strip (8 vregs of idx / frac live at a time)
MAX_TR = 1024    # max rows per grid block -> 512 KiB f32 block


def _cdiv(a, b):
    return -(-a // b)


def _round_up(a, b):
    return _cdiv(a, b) * b


def _hist_kernel(scale_ref, x_ref, out_ref, *, n_bins, rows_total, tr, n_strips, cps):
    # scale_ref : SMEM (2,) f32   -> [min_, n_bins / (max_ - min_)]
    # x_ref     : VMEM (tr, 128) f32 raw similarities (row-major flattening)
    # out_ref   : VMEM (B, 8, 128) f32 per-slice partial histogram accumulator
    B = n_bins + 1
    s_id = pl.program_id(0)     # slice (parallel across TensorCores on v7x)
    c_id = pl.program_id(1)     # chunk within slice (arbitrary / carried)

    @pl.when(c_id == 0)
    def _init():
        out_ref[...] = jnp.zeros_like(out_ref)

    min_ = scale_ref[0]
    c = scale_ref[1]

    # Logical (unclamped) chunk start row; phantom chunks (>= rows_total) and the
    # ragged tail of the last real chunk are masked below.
    base_row = (s_id * cps + c_id) * tr

    ones_lhs = jnp.ones((8, STRIP), jnp.float32)   # MXU reduction operand

    def strip_body(st, accs):
        r0 = pl.multiple_of(st * STRIP, STRIP)
        xs = x_ref[pl.ds(r0, STRIP), :]                       # (STRIP, 128)
        rows_left = rows_total - (base_row + st * STRIP)
        row_iota = lax.broadcasted_iota(jnp.int32, (STRIP, LANES), 0)
        # Invalid rows (ragged tail / phantom chunks / undefined edge-block rows)
        # are forced to idx == 0 -> exactly integer -> zero weight (and any NaN
        # garbage is discarded by the where).
        idx = jnp.where(row_iota < rows_left, (xs - min_) * c, 0.0)
        # Exactly-integer indices (global min/max, exact bin edges, padding) get
        # zero weight, matching torch's delta_u = delta_l = 0 behaviour.
        frac = (idx != jnp.floor(idx)).astype(jnp.float32)

        new_accs = []
        for b in range(B):
            contrib = jnp.maximum(frac - jnp.abs(idx - float(b)), 0.0)  # (STRIP,128)
            # Sublane reduction on the MXU (idle otherwise); all 8 result rows
            # equal the per-lane column sum -> divided by 8 in the wrapper.
            red = jnp.dot(ones_lhs, contrib,
                          preferred_element_type=jnp.float32,
                          precision=jax.lax.Precision.HIGHEST)           # (8,128)
            new_accs.append(accs[b] + red)
        return tuple(new_accs)

    init = tuple(jnp.zeros((8, LANES), jnp.float32) for _ in range(B))
    accs = lax.fori_loop(0, n_strips, strip_body, init)

    # Single full-vreg RMW into the resident output block per chunk.
    out_ref[...] += jnp.stack(accs, axis=0)                   # (B, 8, 128)


def _partial_hist(x, scale, min_, n_bins):
    """Unnormalized soft histogram of a flat f32 array -> (n_bins+1,) f32."""
    n = x.shape[0]
    B = n_bins + 1
    rows = _cdiv(n, LANES)
    pad = rows * LANES - n
    if pad:
        # Tiny (<128 elem) pad with the global min: idx == 0 exactly -> zero weight.
        x = jnp.concatenate([x, jnp.broadcast_to(min_, (pad,)).astype(jnp.float32)])
    x2d = x.reshape(rows, LANES)

    tr = min(MAX_TR, _round_up(rows, STRIP))
    n_chunks = _cdiv(rows, tr)
    # v7x: split chunks across both TensorCores; harmless (serial) on v5e/v6e.
    nslices = 2 if n_chunks >= 2 else 1
    cps = _cdiv(n_chunks, nslices)

    kernel = functools.partial(
        _hist_kernel, n_bins=n_bins, rows_total=rows,
        tr=tr, n_strips=tr // STRIP, cps=cps)

    grid_spec = pltpu.PrefetchScalarGridSpec(
        num_scalar_prefetch=1,
        grid=(nslices, cps),
        in_specs=[pl.BlockSpec(
            (tr, LANES),
            # Clamp phantom blocks so the DMA stays in bounds; their rows are
            # masked out inside the kernel via the logical base_row.
            lambda s, i, sc: (jnp.minimum(s * cps + i, n_chunks - 1), 0))],
        out_specs=pl.BlockSpec(
            (None, B, 8, LANES),
            lambda s, i, sc: (s, 0, 0, 0)),
    )

    out = pl.pallas_call(
        kernel,
        out_shape=jax.ShapeDtypeStruct((nslices, B, 8, LANES), jnp.float32),
        grid_spec=grid_spec,
        compiler_params=pltpu.CompilerParams(
            dimension_semantics=("parallel", "arbitrary")),
        cost_estimate=pl.CostEstimate(
            flops=10 * B * max(n, 1),
            transcendentals=0,
            bytes_accessed=4 * max(n, 1) + nslices * B * 8 * LANES * 4),
    )(scale, x2d)

    # Finalize in XLA: reduce slices, redundant sublanes and lanes.
    # /8 removes the ones-(8, STRIP) LHS redundancy of the MXU reduction.
    return jnp.sum(out, axis=(0, 2, 3)) / 8.0


def histogram_loss(sim_pos, sim_neg, n_bins):
    """Pallas implementation of HistogramLoss.forward (forward only)."""
    n_bins = int(n_bins)
    sp = jnp.asarray(sim_pos, jnp.float32).reshape(-1)
    sn = jnp.asarray(sim_neg, jnp.float32).reshape(-1)
    n_pos = sp.shape[0]
    n_neg = sn.shape[0]

    # Joint min/max + fused scale hoisted to the wrapper (tiny XLA reduce).
    max_ = jnp.maximum(jnp.max(sp), jnp.max(sn))
    min_ = jnp.minimum(jnp.min(sp), jnp.min(sn))
    c = jnp.float32(n_bins) / (max_ - min_)           # idx = (sim - min_) * c
    scale = jnp.stack([min_, c]).astype(jnp.float32)  # (2,) -> SMEM scalars

    h_pos = _partial_hist(sp, scale, min_, n_bins)    # (B,) unnormalized
    h_neg = _partial_hist(sn, scale, min_, n_bins)

    # w = ones -> w_sum = N, exactly as in the reference module.
    pdf_pos = h_pos / jnp.float32(n_pos)
    pdf_neg = h_neg / jnp.float32(n_neg)
    return jnp.sum(jnp.cumsum(pdf_pos) * pdf_neg)


# ---- pure-JAX reference (mirrors the PyTorch module) for correctness check ----
def _reference_loss(sim_pos, sim_neg, n_bins):
    sp = jnp.asarray(sim_pos, jnp.float32).reshape(-1)
    sn = jnp.asarray(sim_neg, jnp.float32).reshape(-1)
    max_ = jnp.maximum(sp.max(), sn.max())
    min_ = jnp.minimum(sp.min(), sn.min())
    # Same fused scale as the kernel so kernel and reference agree sample-by-sample
    # at bin boundaries (up to fp rounding vs the torch two-step normalization).
    c = jnp.float32(n_bins) / (max_ - min_)

    def hist(s):
        idx = (s - min_) * c
        lower = jnp.floor(idx)
        upper = jnp.ceil(idx)
        du = idx - lower
        dl = upper - idx
        h = jnp.zeros(n_bins + 1, jnp.float32)
        h = h.at[upper.astype(jnp.int32)].add(du)   # OOB updates dropped
        h = h.at[lower.astype(jnp.int32)].add(dl)
        return h / s.shape[0]                       # w = ones -> w_sum = N

    pdf_pos = hist(sp)
    pdf_neg = hist(sn)
    return jnp.sum(jnp.cumsum(pdf_pos) * pdf_neg)


if __name__ == "__main__":
    key = jax.random.PRNGKey(0)
    k1, k2 = jax.random.split(key)
    # Small shapes consistent with the module: arbitrary similarity tensors, flattened.
    sim_pos = jax.random.uniform(k1, (8, 32), minval=-1.0, maxval=1.0)   # 256 pos sims
    sim_neg = jax.random.uniform(k2, (12, 32), minval=-1.0, maxval=1.0)  # 384 neg sims
    n_bins = 16

    loss = histogram_loss(sim_pos, sim_neg, n_bins)
    jax.block_until_ready(loss)

    ref = _reference_loss(sim_pos, sim_neg, n_bins)
    assert jnp.allclose(loss, ref, atol=5e-5, rtol=5e-5), (loss, ref)

    # TODO(synk): only the forward pass is implemented; the custom autograd backward
    # of Hist is not translated.
    print("KERNEL_OK")
</pallas_src>

<mosaic_0001>
module attributes {stable_mosaic.version = 11 : i64} {
  func.func @_hist_kernel(%arg0: i32, %arg1: i32, %arg2: memref<2xf32, #tpu.memory_space<smem>>, %arg3: memref<64x128xf32, #tpu.memory_space<vmem>>, %arg4: memref<1x17x8x128xf32, #tpu.memory_space<vmem>>) attributes {dimension_semantics = [#tpu.dimension_semantics<parallel>, #tpu.dimension_semantics<arbitrary>], iteration_bounds = array<i64: 1, 1>, scalar_prefetch = 1 : i64, scratch_operands = 0 : i64, tpu.core_type = #tpu.core_type<tc>, window_params = [{transform_indices = @transform_0, window_bounds = array<i64: 64, 128>}, {transform_indices = @transform_1, window_bounds = array<i64: 1, 17, 8, 128>}]} {
    %c0_i32 = arith.constant 0 : i32
    %0 = arith.cmpi eq, %arg1, %c0_i32 : i32
    %1 = arith.extui %0 : i1 to i32
    %c0_i32_0 = arith.constant 0 : i32
    %2 = arith.cmpi ne, %1, %c0_i32_0 : i32
    scf.if %2 {
      %cst_83 = arith.constant 0.000000e+00 : f32
      %207 = vector.broadcast %cst_83 : f32 to vector<17x8x128xf32>
      %c0_84 = arith.constant 0 : index
      %c0_85 = arith.constant 0 : index
      %c0_86 = arith.constant 0 : index
      %c0_87 = arith.constant 0 : index
      %208 = vector.load %arg4[%c0_84, %c0_85, %c0_86, %c0_87] : memref<1x17x8x128xf32, #tpu.memory_space<vmem>>, vector<1x17x8x128xf32>
      %209 = vector.shape_cast %208 : vector<1x17x8x128xf32> to vector<17x8x128xf32>
      %210 = vector.shape_cast %207 : vector<17x8x128xf32> to vector<1x17x8x128xf32>
      tpu.vector_store %arg4[%c0_84, %c0_85, %c0_86, %c0_87], %210 {strides = array<i32>} : memref<1x17x8x128xf32, #tpu.memory_space<vmem>>, vector<1x17x8x128xf32>,
    } else {
    }
    %c0 = arith.constant 0 : index
    %3 = memref.load %arg2[%c0] : memref<2xf32, #tpu.memory_space<smem>>
    %c1 = arith.constant 1 : index
    %4 = memref.load %arg2[%c1] : memref<2xf32, #tpu.memory_space<smem>>
    %c1_i32 = arith.constant 1 : i32
    %5 = arith.muli %arg0, %c1_i32 : i32
    %6 = arith.addi %5, %arg1 : i32
    %c64_i32 = arith.constant 64 : i32
    %7 = arith.muli %6, %c64_i32 : i32
    %cst = arith.constant 1.000000e+00 : f32
    %8 = vector.broadcast %cst : f32 to vector<8x64xf32>
    %cst_1 = arith.constant 0.000000e+00 : f32
    %9 = vector.broadcast %cst_1 : f32 to vector<8x128xf32>
    %cst_2 = arith.constant 0.000000e+00 : f32
    %10 = vector.broadcast %cst_2 : f32 to vector<8x128xf32>
    %cst_3 = arith.constant 0.000000e+00 : f32
    %11 = vector.broadcast %cst_3 : f32 to vector<8x128xf32>
    %cst_4 = arith.constant 0.000000e+00 : f32
    %12 = vector.broadcast %cst_4 : f32 to vector<8x128xf32>
    %cst_5 = arith.constant 0.000000e+00 : f32
    %13 = vector.broadcast %cst_5 : f32 to vector<8x128xf32>
    %cst_6 = arith.constant 0.000000e+00 : f32
    %14 = vector.broadcast %cst_6 : f32 to vector<8x128xf32>
    %cst_7 = arith.constant 0.000000e+00 : f32
    %15 = vector.broadcast %cst_7 : f32 to vector<8x128xf32>
    %cst_8 = arith.constant 0.000000e+00 : f32
    %16 = vector.broadcast %cst_8 : f32 to vector<8x128xf32>
    %cst_9 = arith.constant 0.000000e+00 : f32
    %17 = vector.broadcast %cst_9 : f32 to vector<8x128xf32>
    %cst_10 = arith.constant 0.000000e+00 : f32
    %18 = vector.broadcast %cst_10 : f32 to vector<8x128xf32>
    %cst_11 = arith.constant 0.000000e+00 : f32
    %19 = vector.broadcast %cst_11 : f32 to vector<8x128xf32>
    %cst_12 = arith.constant 0.000000e+00 : f32
    %20 = vector.broadcast %cst_12 : f32 to vector<8x128xf32>
    %cst_13 = arith.constant 0.000000e+00 : f32
    %21 = vector.broadcast %cst_13 : f32 to vector<8x128xf32>
    %cst_14 = arith.constant 0.000000e+00 : f32
    %22 = vector.broadcast %cst_14 : f32 to vector<8x128xf32>
    %cst_15 = arith.constant 0.000000e+00 : f32
    %23 = vector.broadcast %cst_15 : f32 to vector<8x128xf32>
    %cst_16 = arith.constant 0.000000e+00 : f32
    %24 = vector.broadcast %cst_16 : f32 to vector<8x128xf32>
    %cst_17 = arith.constant 0.000000e+00 : f32
    %25 = vector.broadcast %cst_17 : f32 to vector<8x128xf32>
    %c0_i32_18 = arith.constant 0 : i32
    %c64_i32_19 = arith.constant 64 : i32
    %26 = arith.muli %c0_i32_18, %c64_i32_19 : i32
    %27 = tpu.assume_multiple %26, 64 : i32
    %28 = arith.index_cast %27 : i32 to index
    %c0_20 = arith.constant 0 : index
    %29 = vector.load %arg3[%28, %c0_20] : memref<64x128xf32, #tpu.memory_space<vmem>>, vector<64x128xf32>
    %c64_i32_21 = arith.constant 64 : i32
    %30 = arith.muli %c0_i32_18, %c64_i32_21 : i32
    %31 = arith.addi %7, %30 : i32
    %c2_i32 = arith.constant 2 : i32
    %32 = arith.subi %c2_i32, %31 : i32
    %33 = tpu.iota {dimensions = array<i32: 0>} : vector<64x128xi32>
    %34 = vector.broadcast %32 : i32 to vector<64x128xi32>
    %35 = arith.cmpi slt, %33, %34 : vector<64x128xi32>
    %36 = vector.broadcast %3 : f32 to vector<64x128xf32>
    %37 = arith.subf %29, %36 : vector<64x128xf32>
    %38 = vector.broadcast %4 : f32 to vector<64x128xf32>
    %39 = arith.mulf %37, %38 : vector<64x128xf32>
    %cst_22 = arith.constant 0.000000e+00 : f32
    %40 = vector.broadcast %cst_22 : f32 to vector<64x128xf32>
    %41 = arith.select %35, %39, %40 : vector<64x128xi1>, vector<64x128xf32>
    %42 = math.floor %41 : vector<64x128xf32>
    %43 = arith.cmpf one, %41, %42 : vector<64x128xf32>
    %44 = arith.extui %43 : vector<64x128xi1> to vector<64x128xi32>
    %45 = arith.sitofp %44 : vector<64x128xi32> to vector<64x128xf32>
    %cst_23 = arith.constant 0.000000e+00 : f32
    %46 = vector.broadcast %cst_23 : f32 to vector<64x128xf32>
    %47 = arith.subf %41, %46 : vector<64x128xf32>
    %48 = math.absf %47 : vector<64x128xf32>
    %49 = arith.subf %45, %48 : vector<64x128xf32>
    %cst_24 = arith.constant 0.000000e+00 : f32
    %50 = vector.broadcast %cst_24 : f32 to vector<64x128xf32>
    %51 = arith.maximumf %49, %50 : vector<64x128xf32>
    %cst_25 = arith.constant dense<0.000000e+00> : vector<8x128xf32>
    %52 = tpu.matmul %8, %51, %cst_25 {dimension_numbers = #tpu.dot_dimension_numbers<[1], [0], [0], [1], [0, 0, 1, 1], [], []>, precision = #tpu.contract_precision<fp32>} : vector<8x64xf32>, vector<64x128xf32>, vector<8x128xf32> -> vector<8x128xf32>
    %53 = arith.addf %9, %52 : vector<8x128xf32>
    %cst_26 = arith.constant 1.000000e+00 : f32
    %54 = vector.broadcast %cst_26 : f32 to vector<64x128xf32>
    %55 = arith.subf %41, %54 : vector<64x128xf32>
    %56 = math.absf %55 : vector<64x128xf32>
    %57 = arith.subf %45, %56 : vector<64x128xf32>
    %cst_27 = arith.constant 0.000000e+00 : f32
    %58 = vector.broadcast %cst_27 : f32 to vector<64x128xf32>
    %59 = arith.maximumf %57, %58 : vector<64x128xf32>
    %cst_28 = arith.constant dense<0.000000e+00> : vector<8x128xf32>
    %60 = tpu.matmul %8, %59, %cst_28 {dimension_numbers = #tpu.dot_dimension_numbers<[1], [0], [0], [1], [0, 0, 1, 1], [], []>, precision = #tpu.contract_precision<fp32>} : vector<8x64xf32>, vector<64x128xf32>, vector<8x128xf32> -> vector<8x128xf32>
    %61 = arith.addf %10, %60 : vector<8x128xf32>
    %cst_29 = arith.constant 2.000000e+00 : f32
    %62 = vector.broadcast %cst_29 : f32 to vector<64x128xf32>
    %63 = arith.subf %41, %62 : vector<64x128xf32>
    %64 = math.absf %63 : vector<64x128xf32>
    %65 = arith.subf %45, %64 : vector<64x128xf32>
    %cst_30 = arith.constant 0.000000e+00 : f32
    %66 = vector.broadcast %cst_30 : f32 to vector<64x128xf32>
    %67 = arith.maximumf %65, %66 : vector<64x128xf32>
    %cst_31 = arith.constant dense<0.000000e+00> : vector<8x128xf32>
    %68 = tpu.matmul %8, %67, %cst_31 {dimension_numbers = #tpu.dot_dimension_numbers<[1], [0], [0], [1], [0, 0, 1, 1], [], []>, precision = #tpu.contract_precision<fp32>} : vector<8x64xf32>, vector<64x128xf32>, vector<8x128xf32> -> vector<8x128xf32>
    %69 = arith.addf %11, %68 : vector<8x128xf32>
    %cst_32 = arith.constant 3.000000e+00 : f32
    %70 = vector.broadcast %cst_32 : f32 to vector<64x128xf32>
    %71 = arith.subf %41, %70 : vector<64x128xf32>
    %72 = math.absf %71 : vector<64x128xf32>
    %73 = arith.subf %45, %72 : vector<64x128xf32>
    %cst_33 = arith.constant 0.000000e+00 : f32
    %74 = vector.broadcast %cst_33 : f32 to vector<64x128xf32>
    %75 = arith.maximumf %73, %74 : vector<64x128xf32>
    %cst_34 = arith.constant dense<0.000000e+00> : vector<8x128xf32>
    %76 = tpu.matmul %8, %75, %cst_34 {dimension_numbers = #tpu.dot_dimension_numbers<[1], [0], [0], [1], [0, 0, 1, 1], [], []>, precision = #tpu.contract_precision<fp32>} : vector<8x64xf32>, vector<64x128xf32>, vector<8x128xf32> -> vector<8x128xf32>
    %77 = arith.addf %12, %76 : vector<8x128xf32>
    %cst_35 = arith.constant 4.000000e+00 : f32
    %78 = vector.broadcast %cst_35 : f32 to vector<64x128xf32>
    %79 = arith.subf %41, %78 : vector<64x128xf32>
    %80 = math.absf %79 : vector<64x128xf32>
    %81 = arith.subf %45, %80 : vector<64x128xf32>
    %cst_36 = arith.constant 0.000000e+00 : f32
    %82 = vector.broadcast %cst_36 : f32 to vector<64x128xf32>
    %83 = arith.maximumf %81, %82 : vector<64x128xf32>
    %cst_37 = arith.constant dense<0.000000e+00> : vector<8x128xf32>
    %84 = tpu.matmul %8, %83, %cst_37 {dimension_numbers = #tpu.dot_dimension_numbers<[1], [0], [0], [1], [0, 0, 1, 1], [], []>, precision = #tpu.contract_precision<fp32>} : vector<8x64xf32>, vector<64x128xf32>, vector<8x128xf32> -> vector<8x128xf32>
    %85 = arith.addf %13, %84 : vector<8x128xf32>
    %cst_38 = arith.constant 5.000000e+00 : f32
    %86 = vector.broadcast %cst_38 : f32 to vector<64x128xf32>
    %87 = arith.subf %41, %86 : vector<64x128xf32>
    %88 = math.absf %87 : vector<64x128xf32>
    %89 = arith.subf %45, %88 : vector<64x128xf32>
    %cst_39 = arith.constant 0.000000e+00 : f32
    %90 = vector.broadcast %cst_39 : f32 to vector<64x128xf32>
    %91 = arith.maximumf %89, %90 : vector<64x128xf32>
    %cst_40 = arith.constant dense<0.000000e+00> : vector<8x128xf32>
    %92 = tpu.matmul %8, %91, %cst_40 {dimension_numbers = #tpu.dot_dimension_numbers<[1], [0], [0], [1], [0, 0, 1, 1], [], []>, precision = #tpu.contract_precision<fp32>} : vector<8x64xf32>, vector<64x128xf32>, vector<8x128xf32> -> vector<8x128xf32>
    %93 = arith.addf %14, %92 : vector<8x128xf32>
    %cst_41 = arith.constant 6.000000e+00 : f32
    %94 = vector.broadcast %cst_41 : f32 to vector<64x128xf32>
    %95 = arith.subf %41, %94 : vector<64x128xf32>
    %96 = math.absf %95 : vector<64x128xf32>
    %97 = arith.subf %45, %96 : vector<64x128xf32>
    %cst_42 = arith.constant 0.000000e+00 : f32
    %98 = vector.broadcast %cst_42 : f32 to vector<64x128xf32>
    %99 = arith.maximumf %97, %98 : vector<64x128xf32>
    %cst_43 = arith.constant dense<0.000000e+00> : vector<8x128xf32>
    %100 = tpu.matmul %8, %99, %cst_43 {dimension_numbers = #tpu.dot_dimension_numbers<[1], [0], [0], [1], [0, 0, 1, 1], [], []>, precision = #tpu.contract_precision<fp32>} : vector<8x64xf32>, vector<64x128xf32>, vector<8x128xf32> -> vector<8x128xf32>
    %101 = arith.addf %15, %100 : vector<8x128xf32>
    %cst_44 = arith.constant 7.000000e+00 : f32
    %102 = vector.broadcast %cst_44 : f32 to vector<64x128xf32>
    %103 = arith.subf %41, %102 : vector<64x128xf32>
    %104 = math.absf %103 : vector<64x128xf32>
    %105 = arith.subf %45, %104 : vector<64x128xf32>
    %cst_45 = arith.constant 0.000000e+00 : f32
    %106 = vector.broadcast %cst_45 : f32 to vector<64x128xf32>
    %107 = arith.maximumf %105, %106 : vector<64x128xf32>
    %cst_46 = arith.constant dense<0.000000e+00> : vector<8x128xf32>
    %108 = tpu.matmul %8, %107, %cst_46 {dimension_numbers = #tpu.dot_dimension_numbers<[1], [0], [0], [1], [0, 0, 1, 1], [], []>, precision = #tpu.contract_precision<fp32>} : vector<8x64xf32>, vector<64x128xf32>, vector<8x128xf32> -> vector<8x128xf32>
    %109 = arith.addf %16, %108 : vector<8x128xf32>
    %cst_47 = arith.constant 8.000000e+00 : f32
    %110 = vector.broadcast %cst_47 : f32 to vector<64x128xf32>
    %111 = arith.subf %41, %110 : vector<64x128xf32>
    %112 = math.absf %111 : vector<64x128xf32>
    %113 = arith.subf %45, %112 : vector<64x128xf32>
    %cst_48 = arith.constant 0.000000e+00 : f32
    %114 = vector.broadcast %cst_48 : f32 to vector<64x128xf32>
    %115 = arith.maximumf %113, %114 : vector<64x128xf32>
    %cst_49 = arith.constant dense<0.000000e+00> : vector<8x128xf32>
    %116 = tpu.matmul %8, %115, %cst_49 {dimension_numbers = #tpu.dot_dimension_numbers<[1], [0], [0], [1], [0, 0, 1, 1], [], []>, precision = #tpu.contract_precision<fp32>} : vector<8x64xf32>, vector<64x128xf32>, vector<8x128xf32> -> vector<8x128xf32>
    %117 = arith.addf %17, %116 : vector<8x128xf32>
    %cst_50 = arith.constant 9.000000e+00 : f32
    %118 = vector.broadcast %cst_50 : f32 to vector<64x128xf32>
    %119 = arith.subf %41, %118 : vector<64x128xf32>
    %120 = math.absf %119 : vector<64x128xf32>
    %121 = arith.subf %45, %120 : vector<64x128xf32>
    %cst_51 = arith.constant 0.000000e+00 : f32
    %122 = vector.broadcast %cst_51 : f32 to vector<64x128xf32>
    %123 = arith.maximumf %121, %122 : vector<64x128xf32>
    %cst_52 = arith.constant dense<0.000000e+00> : vector<8x128xf32>
    %124 = tpu.matmul %8, %123, %cst_52 {dimension_numbers = #tpu.dot_dimension_numbers<[1], [0], [0], [1], [0, 0, 1, 1], [], []>, precision = #tpu.contract_precision<fp32>} : vector<8x64xf32>, vector<64x128xf32>, vector<8x128xf32> -> vector<8x128xf32>
    %125 = arith.addf %18, %124 : vector<8x128xf32>
    %cst_53 = arith.constant 1.000000e+01 : f32
    %126 = vector.broadcast %cst_53 : f32 to vector<64x128xf32>
    %127 = arith.subf %41, %126 : vector<64x128xf32>
    %128 = math.absf %127 : vector<64x128xf32>
    %129 = arith.subf %45, %128 : vector<64x128xf32>
    %cst_54 = arith.constant 0.000000e+00 : f32
    %130 = vector.broadcast %cst_54 : f32 to vector<64x128xf32>
    %131 = arith.maximumf %129, %130 : vector<64x128xf32>
    %cst_55 = arith.constant dense<0.000000e+00> : vector<8x128xf32>
    %132 = tpu.matmul %8, %131, %cst_55 {dimension_numbers = #tpu.dot_dimension_numbers<[1], [0], [0], [1], [0, 0, 1, 1], [], []>, precision = #tpu.contract_precision<fp32>} : vector<8x64xf32>, vector<64x128xf32>, vector<8x128xf32> -> vector<8x128xf32>
    %133 = arith.addf %19, %132 : vector<8x128xf32>
    %cst_56 = arith.constant 1.100000e+01 : f32
    %134 = vector.broadcast %cst_56 : f32 to vector<64x128xf32>
    %135 = arith.subf %41, %134 : vector<64x128xf32>
    %136 = math.absf %135 : vector<64x128xf32>
    %137 = arith.subf %45, %136 : vector<64x128xf32>
    %cst_57 = arith.constant 0.000000e+00 : f32
    %138 = vector.broadcast %cst_57 : f32 to vector<64x128xf32>
    %139 = arith.maximumf %137, %138 : vector<64x128xf32>
    %cst_58 = arith.constant dense<0.000000e+00> : vector<8x128xf32>
    %140 = tpu.matmul %8, %139, %cst_58 {dimension_numbers = #tpu.dot_dimension_numbers<[1], [0], [0], [1], [0, 0, 1, 1], [], []>, precision = #tpu.contract_precision<fp32>} : vector<8x64xf32>, vector<64x128xf32>, vector<8x128xf32> -> vector<8x128xf32>
    %141 = arith.addf %20, %140 : vector<8x128xf32>
    %cst_59 = arith.constant 1.200000e+01 : f32
    %142 = vector.broadcast %cst_59 : f32 to vector<64x128xf32>
    %143 = arith.subf %41, %142 : vector<64x128xf32>
    %144 = math.absf %143 : vector<64x128xf32>
    %145 = arith.subf %45, %144 : vector<64x128xf32>
    %cst_60 = arith.constant 0.000000e+00 : f32
    %146 = vector.broadcast %cst_60 : f32 to vector<64x128xf32>
    %147 = arith.maximumf %145, %146 : vector<64x128xf32>
    %cst_61 = arith.constant dense<0.000000e+00> : vector<8x128xf32>
    %148 = tpu.matmul %8, %147, %cst_61 {dimension_numbers = #tpu.dot_dimension_numbers<[1], [0], [0], [1], [0, 0, 1, 1], [], []>, precision = #tpu.contract_precision<fp32>} : vector<8x64xf32>, vector<64x128xf32>, vector<8x128xf32> -> vector<8x128xf32>
    %149 = arith.addf %21, %148 : vector<8x128xf32>
    %cst_62 = arith.constant 1.300000e+01 : f32
    %150 = vector.broadcast %cst_62 : f32 to vector<64x128xf32>
    %151 = arith.subf %41, %150 : vector<64x128xf32>
    %152 = math.absf %151 : vector<64x128xf32>
    %153 = arith.subf %45, %152 : vector<64x128xf32>
    %cst_63 = arith.constant 0.000000e+00 : f32
    %154 = vector.broadcast %cst_63 : f32 to vector<64x128xf32>
    %155 = arith.maximumf %153, %154 : vector<64x128xf32>
    %cst_64 = arith.constant dense<0.000000e+00> : vector<8x128xf32>
    %156 = tpu.matmul %8, %155, %cst_64 {dimension_numbers = #tpu.dot_dimension_numbers<[1], [0], [0], [1], [0, 0, 1, 1], [], []>, precision = #tpu.contract_precision<fp32>} : vector<8x64xf32>, vector<64x128xf32>, vector<8x128xf32> -> vector<8x128xf32>
    %157 = arith.addf %22, %156 : vector<8x128xf32>
    %cst_65 = arith.constant 1.400000e+01 : f32
    %158 = vector.broadcast %cst_65 : f32 to vector<64x128xf32>
    %159 = arith.subf %41, %158 : vector<64x128xf32>
    %160 = math.absf %159 : vector<64x128xf32>
    %161 = arith.subf %45, %160 : vector<64x128xf32>
    %cst_66 = arith.constant 0.000000e+00 : f32
    %162 = vector.broadcast %cst_66 : f32 to vector<64x128xf32>
    %163 = arith.maximumf %161, %162 : vector<64x128xf32>
    %cst_67 = arith.constant dense<0.000000e+00> : vector<8x128xf32>
    %164 = tpu.matmul %8, %163, %cst_67 {dimension_numbers = #tpu.dot_dimension_numbers<[1], [0], [0], [1], [0, 0, 1, 1], [], []>, precision = #tpu.contract_precision<fp32>} : vector<8x64xf32>, vector<64x128xf32>, vector<8x128xf32> -> vector<8x128xf32>
    %165 = arith.addf %23, %164 : vector<8x128xf32>
    %cst_68 = arith.constant 1.500000e+01 : f32
    %166 = vector.broadcast %cst_68 : f32 to vector<64x128xf32>
    %167 = arith.subf %41, %166 : vector<64x128xf32>
    %168 = math.absf %167 : vector<64x128xf32>
    %169 = arith.subf %45, %168 : vector<64x128xf32>
    %cst_69 = arith.constant 0.000000e+00 : f32
    %170 = vector.broadcast %cst_69 : f32 to vector<64x128xf32>
    %171 = arith.maximumf %169, %170 : vector<64x128xf32>
    %cst_70 = arith.constant dense<0.000000e+00> : vector<8x128xf32>
    %172 = tpu.matmul %8, %171, %cst_70 {dimension_numbers = #tpu.dot_dimension_numbers<[1], [0], [0], [1], [0, 0, 1, 1], [], []>, precision = #tpu.contract_precision<fp32>} : vector<8x64xf32>, vector<64x128xf32>, vector<8x128xf32> -> vector<8x128xf32>
    %173 = arith.addf %24, %172 : vector<8x128xf32>
    %cst_71 = arith.constant 1.600000e+01 : f32
    %174 = vector.broadcast %cst_71 : f32 to vector<64x128xf32>
    %175 = arith.subf %41, %174 : vector<64x128xf32>
    %176 = math.absf %175 : vector<64x128xf32>
    %177 = arith.subf %45, %176 : vector<64x128xf32>
    %cst_72 = arith.constant 0.000000e+00 : f32
    %178 = vector.broadcast %cst_72 : f32 to vector<64x128xf32>
    %179 = arith.maximumf %177, %178 : vector<64x128xf32>
    %cst_73 = arith.constant dense<0.000000e+00> : vector<8x128xf32>
    %180 = tpu.matmul %8, %179, %cst_73 {dimension_numbers = #tpu.dot_dimension_numbers<[1], [0], [0], [1], [0, 0, 1, 1], [], []>, precision = #tpu.contract_precision<fp32>} : vector<8x64xf32>, vector<64x128xf32>, vector<8x128xf32> -> vector<8x128xf32>
    %181 = arith.addf %25, %180 : vector<8x128xf32>
    %c1_i32_74 = arith.constant 1 : i32
    %c0_75 = arith.constant 0 : index
    %c0_76 = arith.constant 0 : index
    %c0_77 = arith.constant 0 : index
    %c0_78 = arith.constant 0 : index
    %182 = vector.load %arg4[%c0_75, %c0_76, %c0_77, %c0_78] : memref<1x17x8x128xf32, #tpu.memory_space<vmem>>, vector<1x17x8x128xf32>
    %183 = vector.shape_cast %182 : vector<1x17x8x128xf32> to vector<17x8x128xf32>
    %184 = vector.shape_cast %53 : vector<8x128xf32> to vector<1x8x128xf32>
    %185 = vector.shape_cast %61 : vector<8x128xf32> to vector<1x8x128xf32>
    %186 = vector.shape_cast %69 : vector<8x128xf32> to vector<1x8x128xf32>
    %187 = vector.shape_cast %77 : vector<8x128xf32> to vector<1x8x128xf32>
    %188 = vector.shape_cast %85 : vector<8x128xf32> to vector<1x8x128xf32>
    %189 = vector.shape_cast %93 : vector<8x128xf32> to vector<1x8x128xf32>
    %190 = vector.shape_cast %101 : vector<8x128xf32> to vector<1x8x128xf32>
    %191 = vector.shape_cast %109 : vector<8x128xf32> to vector<1x8x128xf32>
    %192 = vector.shape_cast %117 : vector<8x128xf32> to vector<1x8x128xf32>
    %193 = vector.shape_cast %125 : vector<8x128xf32> to vector<1x8x128xf32>
    %194 = vector.shape_cast %133 : vector<8x128xf32> to vector<1x8x128xf32>
    %195 = vector.shape_cast %141 : vector<8x128xf32> to vector<1x8x128xf32>
    %196 = vector.shape_cast %149 : vector<8x128xf32> to vector<1x8x128xf32>
    %197 = vector.shape_cast %157 : vector<8x128xf32> to vector<1x8x128xf32>
    %198 = vector.shape_cast %165 : vector<8x128xf32> to vector<1x8x128xf32>
    %199 = vector.shape_cast %173 : vector<8x128xf32> to vector<1x8x128xf32>
    %200 = vector.shape_cast %181 : vector<8x128xf32> to vector<1x8x128xf32>
    %201 = tpu.concatenate %184, %185, %186, %187, %188, %189, %190, %191, %192, %193, %194, %195, %196, %197, %198, %199 in 0 : vector<1x8x128xf32>, vector<1x8x128xf32>, vector<1x8x128xf32>, vector<1x8x128xf32>, vector<1x8x128xf32>, vector<1x8x128xf32>, vector<1x8x128xf32>, vector<1x8x128xf32>, vector<1x8x128xf32>, vector<1x8x128xf32>, vector<1x8x128xf32>, vector<1x8x128xf32>, vector<1x8x128xf32>, vector<1x8x128xf32>, vector<1x8x128xf32>, vector<1x8x128xf32> -> vector<16x8x128xf32>
    %202 = tpu.concatenate %201, %200 in 0 : vector<16x8x128xf32>, vector<1x8x128xf32> -> vector<17x8x128xf32>
    %203 = arith.addf %183, %202 : vector<17x8x128xf32>
    %c0_79 = arith.constant 0 : index
    %c0_80 = arith.constant 0 : index
    %c0_81 = arith.constant 0 : index
    %c0_82 = arith.constant 0 : index
    %204 = vector.load %arg4[%c0_79, %c0_80, %c0_81, %c0_82] : memref<1x17x8x128xf32, #tpu.memory_space<vmem>>, vector<1x17x8x128xf32>
    %205 = vector.shape_cast %204 : vector<1x17x8x128xf32> to vector<17x8x128xf32>
    %206 = vector.shape_cast %203 : vector<17x8x128xf32> to vector<1x17x8x128xf32>
    tpu.vector_store %arg4[%c0_79, %c0_80, %c0_81, %c0_82], %206 {strides = array<i32>} : memref<1x17x8x128xf32, #tpu.memory_space<vmem>>, vector<1x17x8x128xf32>,
    return
  }
  func.func @transform_0(%arg0: i32, %arg1: i32, %arg2: memref<2xf32, #tpu.memory_space<smem>>) -> (i32, i32) {
    %c1_i32 = arith.constant 1 : i32
    %0 = arith.muli %arg0, %c1_i32 : i32
    %1 = arith.addi %0, %arg1 : i32
    %c0_i32 = arith.constant 0 : i32
    %2 = arith.minsi %1, %c0_i32 : i32
    %c0_i32_0 = arith.constant 0 : i32
    %c0_i32_1 = arith.constant 0 : i32
    return %2, %c0_i32_0 : i32, i32
  }
  func.func @transform_1(%arg0: i32, %arg1: i32, %arg2: memref<2xf32, #tpu.memory_space<smem>>) -> (i32, i32, i32, i32) {
    %c0_i32 = arith.constant 0 : i32
    %c0_i32_0 = arith.constant 0 : i32
    %c0_i32_1 = arith.constant 0 : i32
    %c0_i32_2 = arith.constant 0 : i32
    return %arg0, %c0_i32, %c0_i32_0, %c0_i32_1 : i32, i32, i32, i32
  }
}

</mosaic_0001>

<llo_original>
// kernel: tpu_custom_call.1
$region0: #{tpu_custom_call.1}
  #allocation0 [shape = 'u32[]', space=smem, size = 0x4, offset = 0x4, fixed_abs, tag = 'smem constant byte address 0x4 - core index']
  #allocation1 [shape = 'u32[144,128]{1,0:T(1,128)}', space=vmem, size = 0x12000, scoped, tag = 'internal scratch']
  #allocation2 [shape = 's32[1]{0}', space=sflag, size = 0x4, scoped, tag = 'scoped memory for tpu_custom_call.1']
  #allocation3 [shape = 'u8[512]{0}', space=smem, size = 0x200, scoped, tag = 'prefetched SMEM operand 0']
  %s0 = inlined_call_operand.hbm [shape: f32[2], index: 0, kind: input, shape index: {}]
  %s1 = inlined_call_operand.hbm [shape: f32[2,128], index: 1, kind: input, shape index: {}]
  %s2 = inlined_call_operand.hbm [shape: f32[1,17,8,128], index: 2, kind: output, shape index: {}]
  %s3 = sld [smem:[#allocation0]]
  $region22: #{tpu_custom_call.1} parent=0
    _
  %s5 = ssub.s32 1, %s3
  %s6 = scalar_select 0, %s5, %s3
  %8 = dma.hbm_to_smem %s0, 16, [#allocation3], [#allocation2]
  %9 = dma.done [#allocation2], 16
  %10 = sfence
  $region1: #{tpu_custom_call.1} parent=0
    #allocation4 [shape = 'u8[32768]{0}', space=vmem, size = 0x8000, scoped, tag = 'input window, operand 1, single buffered']
    #allocation5 [shape = 's32[1]{0}', space=sflag, size = 0x4, scoped, tag = 'scoped memory for tpu_custom_call.1']
    #allocation6 [shape = 's32[1]{0}', space=sflag, size = 0x4, scoped, tag = 'scoped memory for tpu_custom_call.1']
    #allocation7 [shape = 'u8[69632]{0}', space=vmem, size = 0x11000, scoped, tag = 'output window, operand 0, single buffered']
    %11 = vsyncpa [#allocation5], 0
    %12 = vsyncpa [#allocation6], 0
    // Predicated region
    $region2: #{tpu_custom_call.1} parent=1 // pred_check
      _
    $region3: #{tpu_custom_call.1} parent=1 // pred_check_branch
      %14 = sbr.rel (0) target = $region5
    $region4: #{tpu_custom_call.1} parent=1 // pred_region
      %s15 = sadd.s32 0, 0
      %p16 = scmp.lt.s32.totalorder %s15, 0
      %s17 = scalar_select %p16, %s15, 0
      %s18 = smul.u32 32, %s17
      %s19 = ssub.s32 1, %s18
      %s20 = smul.u32 32, %s19
      %s22 = ssub.s32 1024, %s20
      %23 = vsyncadd [#allocation5], %s22
      %p24 = scmp.ne.s32.totalorder 0, %s20
      %s25 = smul.addr %s18, 32
      %s26 = scalar_lea.hbm %s1, %s25
      %s27 = smul.u32 2, %s19
      %s28 = sshll.u32 [#allocation4], 4
      %s29 = int_to_ptr.vmem [resolvable:$true] %s28
      %s30 = sshll.u32 %s27, 4
      %34 = dma.hbm_to_vmem [thread:$0]  (%p24), %s26, %s30, %s29, [#allocation5], 32, 32, 2
    $region5: #{tpu_custom_call.1} parent=1 // pred_fallthru
      _
    // Predicated region
    $region6: #{tpu_custom_call.1} parent=1 // pred_check
      _
    $region7: #{tpu_custom_call.1} parent=1 // pred_check_branch
      %36 = sbr.rel (0) target = $region9
    $region8: #{tpu_custom_call.1} parent=1 // pred_region
      %37 = dma.done [#allocation5], 1024
    $region9: #{tpu_custom_call.1} parent=1 // pred_fallthru
      _
    %s38 = sadd.s32 0, 0
    %p39 = scmp.lt.s32.totalorder %s38, 0
    %s40 = scalar_select %p39, %s38, 0
    %s41 = smul.u32 32, %s40
    %s42 = ssub.s32 1, %s41
    %s43 = smul.u32 32, %s42
    %p44 = scmp.eq.s32.totalorder 0, 0
    // Predicated region
    $region10: #{tpu_custom_call.1} parent=1 // pred_check
      %p45 = pneg %p44
    $region11: #{tpu_custom_call.1} parent=1 // pred_check_branch
      %47 = sbr.rel (%p45) target = $region13
    $region12: #{tpu_custom_call.1} parent=1 // pred_region
      %48 = vst [vmem:[#allocation7] sm:$0xff] 0.0
      %49 = vst [vmem:[#allocation7 + $0x8] sm:$0xff] 0.0
      %50 = vst [vmem:[#allocation7 + $0x10] sm:$0xff] 0.0
      %51 = vst [vmem:[#allocation7 + $0x18] sm:$0xff] 0.0
      %52 = vst [vmem:[#allocation7 + $0x20] sm:$0xff] 0.0
      %53 = vst [vmem:[#allocation7 + $0x28] sm:$0xff] 0.0
      %54 = vst [vmem:[#allocation7 + $0x30] sm:$0xff] 0.0
      %55 = vst [vmem:[#allocation7 + $0x38] sm:$0xff] 0.0
      %56 = vst [vmem:[#allocation7 + $0x40] sm:$0xff] 0.0
      %57 = vst [vmem:[#allocation7 + $0x48] sm:$0xff] 0.0
      %58 = vst [vmem:[#allocation7 + $0x50] sm:$0xff] 0.0
      %59 = vst [vmem:[#allocation7 + $0x58] sm:$0xff] 0.0
      %60 = vst [vmem:[#allocation7 + $0x60] sm:$0xff] 0.0
      %61 = vst [vmem:[#allocation7 + $0x68] sm:$0xff] 0.0
      %62 = vst [vmem:[#allocation7 + $0x70] sm:$0xff] 0.0
      %63 = vst [vmem:[#allocation7 + $0x78] sm:$0xff] 0.0
      %64 = vst [vmem:[#allocation7 + $0x80] sm:$0xff] 0.0
    $region13: #{tpu_custom_call.1} parent=1 // pred_fallthru
      _
    %s65 = sld [smem:[#allocation3]]
    %s66 = sld [smem:[#allocation3 + $0x1]]
    %s67 = sadd.s32 0, 0
    %s68 = smul.u32 %s67, 64
    %v69 = vld [vmem:[#allocation4] sm:$0xff]
    %v70 = vld [vmem:[#allocation4 + $0x8] sm:$0xff]
    %v71 = vld [vmem:[#allocation4 + $0x10] sm:$0xff]
    %v72 = vld [vmem:[#allocation4 + $0x18] sm:$0xff]
    %v73 = vld [vmem:[#allocation4 + $0x20] sm:$0xff]
    %v74 = vld [vmem:[#allocation4 + $0x28] sm:$0xff]
    %v75 = vld [vmem:[#allocation4 + $0x30] sm:$0xff]
    %v76 = vld [vmem:[#allocation4 + $0x38] sm:$0xff]
    %s77 = ssub.s32 2, %s68
    %v78 = vlaneseq
    %v79 = vshrl.u32 %v78, 7
    %v80 = vadd.s32 %v79, 8
    %v81 = vadd.s32 %v79, 16
    %v82 = vadd.s32 %v79, 24
    %v83 = vadd.s32 %v79, 32
    %v84 = vadd.s32 %v79, 40
    %v85 = vadd.s32 %v79, 48
    %v86 = vadd.s32 %v79, 56
    %v87 = vstv %s77
    %vm88 = vcmp.lt.s32.totalorder %v79, %v87
    %vm89 = vcmp.lt.s32.totalorder %v80, %v87
    %vm90 = vcmp.lt.s32.totalorder %v81, %v87
    %vm91 = vcmp.lt.s32.totalorder %v82, %v87
    %vm92 = vcmp.lt.s32.totalorder %v83, %v87
    %vm93 = vcmp.lt.s32.totalorder %v84, %v87
    %vm94 = vcmp.lt.s32.totalorder %v85, %v87
    %vm95 = vcmp.lt.s32.totalorder %v86, %v87
    %v96 = vstv %s65
    %v97 = vsub.f32 %v69, %v96
    %v98 = vsub.f32 %v70, %v96
    %v99 = vsub.f32 %v71, %v96
    %v100 = vsub.f32 %v72, %v96
    %v101 = vsub.f32 %v73, %v96
    %v102 = vsub.f32 %v74, %v96
    %v103 = vsub.f32 %v75, %v96
    %v104 = vsub.f32 %v76, %v96
    %v105 = vstv %s66
    %v106 = vmul.f32 %v97, %v105
    %v107 = vmul.f32 %v98, %v105
    %v108 = vmul.f32 %v99, %v105
    %v109 = vmul.f32 %v100, %v105
    %v110 = vmul.f32 %v101, %v105
    %v111 = vmul.f32 %v102, %v105
    %v112 = vmul.f32 %v103, %v105
    %v113 = vmul.f32 %v104, %v105
    %v114 = vsel %vm88, %v106, 0.0
    %v115 = vsel %vm89, %v107, 0.0
    %v116 = vsel %vm90, %v108, 0.0
    %v117 = vsel %vm91, %v109, 0.0
    %v118 = vsel %vm92, %v110, 0.0
    %v119 = vsel %vm93, %v111, 0.0
    %v120 = vsel %vm94, %v112, 0.0
    %v121 = vsel %vm95, %v113, 0.0
    %v122 = vfloor.f32 %v114
    %v123 = vfloor.f32 %v115
    %v124 = vfloor.f32 %v116
    %v125 = vfloor.f32 %v117
    %v126 = vfloor.f32 %v118
    %v127 = vfloor.f32 %v119
    %v128 = vfloor.f32 %v120
    %v129 = vfloor.f32 %v121
    %vm130 = vcmp.ne.f32.partialorder %v114, %v122
    %vm131 = vcmp.ne.f32.partialorder %v115, %v123
    %vm132 = vcmp.ne.f32.partialorder %v116, %v124
    %vm133 = vcmp.ne.f32.partialorder %v117, %v125
    %vm134 = vcmp.ne.f32.partialorder %v118, %v126
    %vm135 = vcmp.ne.f32.partialorder %v119, %v127
    %vm136 = vcmp.ne.f32.partialorder %v120, %v128
    %vm137 = vcmp.ne.f32.partialorder %v121, %v129
    %v138 = vsel %vm130, 1, 0
    %v139 = vsel %vm131, 1, 0
    %v140 = vsel %vm132, 1, 0
    %v141 = vsel %vm133, 1, 0
    %v142 = vsel %vm134, 1, 0
    %v143 = vsel %vm135, 1, 0
    %v144 = vsel %vm136, 1, 0
    %v145 = vsel %vm137, 1, 0
    %v146 = vcvt.s32.f32 %v138
    %v147 = vcvt.s32.f32 %v139
    %v148 = vcvt.s32.f32 %v140
    %v149 = vcvt.s32.f32 %v141
    %v150 = vcvt.s32.f32 %v142
    %v151 = vcvt.s32.f32 %v143
    %v152 = vcvt.s32.f32 %v144
    %v153 = vcvt.s32.f32 %v145
    %v154 = vand.u32 2147483647, %v114
    %v155 = vand.u32 2147483647, %v115
    %v156 = vand.u32 2147483647, %v116
    %v157 = vand.u32 2147483647, %v117
    %v158 = vand.u32 2147483647, %v118
    %v159 = vand.u32 2147483647, %v119
    %v160 = vand.u32 2147483647, %v120
    %v161 = vand.u32 2147483647, %v121
    %v162 = vsub.f32 %v146, %v154
    %v163 = vsub.f32 %v147, %v155
    %v164 = vsub.f32 %v148, %v156
    %v165 = vsub.f32 %v149, %v157
    %v166 = vsub.f32 %v150, %v158
    %v167 = vsub.f32 %v151, %v159
    %v168 = vsub.f32 %v152, %v160
    %v169 = vsub.f32 %v153, %v161
    %v170 = vmax.f32 %v162, 0.0
    %v171 = vmax.f32 %v163, 0.0
    %v172 = vmax.f32 %v164, 0.0
    %v173 = vmax.f32 %v165, 0.0
    %v174 = vmax.f32 %v166, 0.0
    %v175 = vmax.f32 %v167, 0.0
    %v176 = vmax.f32 %v168, 0.0
    %v177 = vmax.f32 %v169, 0.0
    %vm178 = vcmask 523264
    %v180 = vsel %vm178, 1.0, 0
    %182 = vmatprep.subr.mxu0 0.0
    %183 = vmatpush1.msra.mxu0 0.0
    %184 = vmatprep.subr.mxu0 0.0
    %185 = vmatpush1.msra.mxu0 0.0
    %186 = vmatprep.subr.mxu0 0.0
    %187 = vmatpush1.msra.mxu0 0.0
    %188 = vmatprep.subr.mxu0 0.0
    %189 = vmatpush1.msra.mxu0 0.0
    %190 = vmatprep.subr.mxu0 0.0
    %191 = vmatpush1.msra.mxu0 0.0
    %192 = vmatprep.subr.mxu0 0.0
    %193 = vmatpush1.msra.mxu0 0.0
    %194 = vmatprep.subr.mxu0 0.0
    %195 = vmatpush1.msra.mxu0 0.0
    %196 = vmatprep.subr.mxu0 0.0
    %197 = vmatpush1.msra.mxu0 0.0
    %198 = vmatprep.subr.mxu0 0.0
    %v199 = vand.u32 %v177, 4294901760
    %200 = vmatpush1.msra.mxu0 %v199
    %201 = vmatprep.subr.mxu0 0.0
    %v202 = vand.u32 %v176, 4294901760
    %203 = vmatpush1.msra.mxu0 %v202
    %204 = vmatprep.subr.mxu0 0.0
    %v205 = vand.u32 %v175, 4294901760
    %206 = vmatpush1.msra.mxu0 %v205
    %207 = vmatprep.subr.mxu0 0.0
    %v208 = vand.u32 %v174, 4294901760
    %209 = vmatpush1.msra.mxu0 %v208
    %210 = vmatprep.subr.mxu0 0.0
    %v211 = vand.u32 %v173, 4294901760
    %212 = vmatpush1.msra.mxu0 %v211
    %213 = vmatprep.subr.mxu0 0.0
    %v214 = vand.u32 %v172, 4294901760
    %215 = vmatpush1.msra.mxu0 %v214
    %216 = vmatprep.subr.mxu0 0.0
    %v217 = vand.u32 %v171, 4294901760
    %218 = vmatpush1.msra.mxu0 %v217
    %219 = vmatprep.subr.mxu0 0.0
    %v220 = vand.u32 %v170, 4294901760
    %221 = vmatpush1.msra.mxu0 %v220
    %222 = vmatprep.subr.mxu0 0.0
    %223 = vmatpush2.msra.mxu0 0.0
    %224 = vmatprep.subr.mxu0 0.0
    %225 = vmatpush2.msra.mxu0 0.0
    %226 = vmatprep.subr.mxu0 0.0
    %227 = vmatpush2.msra.mxu0 0.0
    %228 = vmatprep.subr.mxu0 0.0
    %229 = vmatpush2.msra.mxu0 0.0
    %230 = vmatprep.subr.mxu0 0.0
    %231 = vmatpush2.msra.mxu0 0.0
    %232 = vmatprep.subr.mxu0 0.0
    %233 = vmatpush2.msra.mxu0 0.0
    %234 = vmatprep.subr.mxu0 0.0
    %235 = vmatpush2.msra.mxu0 0.0
    %236 = vmatprep.subr.mxu0 0.0
    %237 = vmatpush2.msra.mxu0 0.0
    %238 = vmatprep.subr.mxu0 0.0
    %239 = vmatpush2.msra.mxu0 0.0
    %240 = vmatprep.subr.mxu0 0.0
    %241 = vmatpush2.msra.mxu0 0.0
    %242 = vmatprep.subr.mxu0 0.0
    %243 = vmatpush2.msra.mxu0 0.0
    %244 = vmatprep.subr.mxu0 0.0
    %245 = vmatpush2.msra.mxu0 0.0
    %246 = vmatprep.subr.mxu0 0.0
    %247 = vmatpush2.msra.mxu0 0.0
    %248 = vmatprep.subr.mxu0 0.0
    %249 = vmatpush2.msra.mxu0 0.0
    %250 = vmatprep.subr.mxu0 0.0
    %251 = vmatpush2.msra.mxu0 0.0
    %252 = vmatprep.subr.mxu0 0.0
    %253 = vmatpush2.msra.mxu0 0.0
    %254 = vmatprep.mubr.f32.mxu0 0.0
    %v255 = vand.u32 %v180, 4294901760
    %v256 = vsub.f32 %v180, %v255
    %v257 = vand.u32 %v256, 4294901760
    %v258 = vsub.f32 %v256, %v257
    %v259 = vand.u32 %v258, 4294901760
    %260 = vmatmul.mubr.f32.gmra.mxu0 %v259
    %v261 = vpop.f32.mrf.mxu0
    %v262 = vadd.f32 0.0, %v261
    %v263 = vpop.f32.mrf.mxu0
    %264 = vdwg.mxu0
    %265 = vmatprep.subr.mxu0 0.0
    %266 = vmatpush1.msra.mxu0 0.0
    %267 = vmatprep.subr.mxu0 0.0
    %268 = vmatpush1.msra.mxu0 0.0
    %269 = vmatprep.subr.mxu0 0.0
    %270 = vmatpush1.msra.mxu0 0.0
    %271 = vmatprep.subr.mxu0 0.0
    %272 = vmatpush1.msra.mxu0 0.0
    %273 = vmatprep.subr.mxu0 0.0
    %274 = vmatpush1.msra.mxu0 0.0
    %275 = vmatprep.subr.mxu0 0.0
    %276 = vmatpush1.msra.mxu0 0.0
    %277 = vmatprep.subr.mxu0 0.0
    %278 = vmatpush1.msra.mxu0 0.0
    %279 = vmatprep.subr.mxu0 0.0
    %280 = vmatpush1.msra.mxu0 0.0
    %281 = vmatprep.subr.mxu0 0.0
    %v282 = vand.u32 %v177, 4294901760
    %v283 = vsub.f32 %v177, %v282
    %v284 = vand.u32 %v283, 4294901760
    %v285 = vsub.f32 %v283, %v284
    %v286 = vand.u32 %v285, 4294901760
    %287 = vmatpush1.msra.mxu0 %v286
    %288 = vmatprep.subr.mxu0 0.0
    %v289 = vand.u32 %v176, 4294901760
    %v290 = vsub.f32 %v176, %v289
    %v291 = vand.u32 %v290, 4294901760
    %v292 = vsub.f32 %v290, %v291
    %v293 = vand.u32 %v292, 4294901760
    %294 = vmatpush1.msra.mxu0 %v293
    %295 = vmatprep.subr.mxu0 0.0
    %v296 = vand.u32 %v175, 4294901760
    %v297 = vsub.f32 %v175, %v296
    %v298 = vand.u32 %v297, 4294901760
    %v299 = vsub.f32 %v297, %v298
    %v300 = vand.u32 %v299, 4294901760
    %301 = vmatpush1.msra.mxu0 %v300
    %302 = vmatprep.subr.mxu0 0.0
    %v303 = vand.u32 %v174, 4294901760
    %v304 = vsub.f32 %v174, %v303
    %v305 = vand.u32 %v304, 4294901760
    %v306 = vsub.f32 %v304, %v305
    %v307 = vand.u32 %v306, 4294901760
    %308 = vmatpush1.msra.mxu0 %v307
    %309 = vmatprep.subr.mxu0 0.0
    %v310 = vand.u32 %v173, 4294901760
    %v311 = vsub.f32 %v173, %v310
    %v312 = vand.u32 %v311, 4294901760
    %v313 = vsub.f32 %v311, %v312
    %v314 = vand.u32 %v313, 4294901760
    %315 = vmatpush1.msra.mxu0 %v314
    %316 = vmatprep.subr.mxu0 0.0
    %v317 = vand.u32 %v172, 4294901760
    %v318 = vsub.f32 %v172, %v317
    %v319 = vand.u32 %v318, 4294901760
    %v320 = vsub.f32 %v318, %v319
    %v321 = vand.u32 %v320, 4294901760
    %322 = vmatpush1.msra.mxu0 %v321
    %323 = vmatprep.subr.mxu0 0.0
    %v324 = vand.u32 %v171, 4294901760
    %v325 = vsub.f32 %v171, %v324
    %v326 = vand.u32 %v325, 4294901760
    %v327 = vsub.f32 %v325, %v326
    %v328 = vand.u32 %v327, 4294901760
    %329 = vmatpush1.msra.mxu0 %v328
    %330 = vmatprep.subr.mxu0 0.0
    %v331 = vand.u32 %v170, 4294901760
    %v332 = vsub.f32 %v170, %v331
    %v333 = vand.u32 %v332, 4294901760
    %v334 = vsub.f32 %v332, %v333
    %v335 = vand.u32 %v334, 4294901760
    %336 = vmatpush1.msra.mxu0 %v335
    %337 = vmatprep.subr.mxu0 0.0
    %338 = vmatpush2.msra.mxu0 0.0
    %339 = vmatprep.subr.mxu0 0.0
    %340 = vmatpush2.msra.mxu0 0.0
    %341 = vmatprep.subr.mxu0 0.0
    %342 = vmatpush2.msra.mxu0 0.0
    %343 = vmatprep.subr.mxu0 0.0
    %344 = vmatpush2.msra.mxu0 0.0
    %345 = vmatprep.subr.mxu0 0.0
    %346 = vmatpush2.msra.mxu0 0.0
    %347 = vmatprep.subr.mxu0 0.0
    %348 = vmatpush2.msra.mxu0 0.0
    %349 = vmatprep.subr.mxu0 0.0
    %350 = vmatpush2.msra.mxu0 0.0
    %351 = vmatprep.subr.mxu0 0.0
    %352 = vmatpush2.msra.mxu0 0.0
    %353 = vmatprep.subr.mxu0 0.0
    %354 = vmatpush2.msra.mxu0 0.0
    %355 = vmatprep.subr.mxu0 0.0
    %356 = vmatpush2.msra.mxu0 0.0
    %357 = vmatprep.subr.mxu0 0.0
    %358 = vmatpush2.msra.mxu0 0.0
    %359 = vmatprep.subr.mxu0 0.0
    %360 = vmatpush2.msra.mxu0 0.0
    %361 = vmatprep.subr.mxu0 0.0
    %362 = vmatpush2.msra.mxu0 0.0
    %363 = vmatprep.subr.mxu0 0.0
    %364 = vmatpush2.msra.mxu0 0.0
    %365 = vmatprep.subr.mxu0 0.0
    %366 = vmatpush2.msra.mxu0 0.0
    %367 = vmatprep.subr.mxu0 0.0
    %368 = vmatpush2.msra.mxu0 0.0
    %369 = vmatprep.mubr.f32.mxu0 0.0
    %v370 = vand.u32 %v180, 4294901760
    %371 = vmatmul.mubr.f32.gmra.mxu0 %v370
    %v372 = vpop.f32.mrf.mxu0
    %v373 = vadd.f32 %v262, %v372
    %v374 = vpop.f32.mrf.mxu0
    %375 = vdwg.mxu0
    %376 = vmatprep.subr.mxu0 0.0
    %377 = vmatpush1.msra.mxu0 0.0
    %378 = vmatprep.subr.mxu0 0.0
    %379 = vmatpush1.msra.mxu0 0.0
    %380 = vmatprep.subr.mxu0 0.0
    %381 = vmatpush1.msra.mxu0 0.0
    %382 = vmatprep.subr.mxu0 0.0
    %383 = vmatpush1.msra.mxu0 0.0
    %384 = vmatprep.subr.mxu0 0.0
    %385 = vmatpush1.msra.mxu0 0.0
    %386 = vmatprep.subr.mxu0 0.0
    %387 = vmatpush1.msra.mxu0 0.0
    %388 = vmatprep.subr.mxu0 0.0
    %389 = vmatpush1.msra.mxu0 0.0
    %390 = vmatprep.subr.mxu0 0.0
    %391 = vmatpush1.msra.mxu0 0.0
    %392 = vmatprep.subr.mxu0 0.0
    %v393 = vand.u32 %v177, 4294901760
    %v394 = vsub.f32 %v177, %v393
    %395 = vmatpush1.msra.mxu0 %v394
    %396 = vmatprep.subr.mxu0 0.0
    %v397 = vand.u32 %v176, 4294901760
    %v398 = vsub.f32 %v176, %v397
    %399 = vmatpush1.msra.mxu0 %v398
    %400 = vmatprep.subr.mxu0 0.0
    %v401 = vand.u32 %v175, 4294901760
    %v402 = vsub.f32 %v175, %v401
    %403 = vmatpush1.msra.mxu0 %v402
    %404 = vmatprep.subr.mxu0 0.0
    %v405 = vand.u32 %v174, 4294901760
    %v406 = vsub.f32 %v174, %v405
    %407 = vmatpush1.msra.mxu0 %v406
    %408 = vmatprep.subr.mxu0 0.0
    %v409 = vand.u32 %v173, 4294901760
    %v410 = vsub.f32 %v173, %v409
    %411 = vmatpush1.msra.mxu0 %v410
    %412 = vmatprep.subr.mxu0 0.0
    %v413 = vand.u32 %v172, 4294901760
    %v414 = vsub.f32 %v172, %v413
    %415 = vmatpush1.msra.mxu0 %v414
    %416 = vmatprep.subr.mxu0 0.0
    %v417 = vand.u32 %v171, 4294901760
    %v418 = vsub.f32 %v171, %v417
    %419 = vmatpush1.msra.mxu0 %v418
    %420 = vmatprep.subr.mxu0 0.0
    %v421 = vand.u32 %v170, 4294901760
    %v422 = vsub.f32 %v170, %v421
    %423 = vmatpush1.msra.mxu0 %v422
    %424 = vmatprep.subr.mxu0 0.0
    %425 = vmatpush2.msra.mxu0 0.0
    %426 = vmatprep.subr.mxu0 0.0
    %427 = vmatpush2.msra.mxu0 0.0
    %428 = vmatprep.subr.mxu0 0.0
    %429 = vmatpush2.msra.mxu0 0.0
    %430 = vmatprep.subr.mxu0 0.0
    %431 = vmatpush2.msra.mxu0 0.0
    %432 = vmatprep.subr.mxu0 0.0
    %433 = vmatpush2.msra.mxu0 0.0
    %434 = vmatprep.subr.mxu0 0.0
    %435 = vmatpush2.msra.mxu0 0.0
    %436 = vmatprep.subr.mxu0 0.0
    %437 = vmatpush2.msra.mxu0 0.0
    %438 = vmatprep.subr.mxu0 0.0
    %439 = vmatpush2.msra.mxu0 0.0
    %440 = vmatprep.subr.mxu0 0.0
    %441 = vmatpush2.msra.mxu0 0.0
    %442 = vmatprep.subr.mxu0 0.0
    %443 = vmatpush2.msra.mxu0 0.0
    %444 = vmatprep.subr.mxu0 0.0
    %445 = vmatpush2.msra.mxu0 0.0
    %446 = vmatprep.subr.mxu0 0.0
    %447 = vmatpush2.msra.mxu0 0.0
    %448 = vmatprep.subr.mxu0 0.0
    %449 = vmatpush2.msra.mxu0 0.0
    %450 = vmatprep.subr.mxu0 0.0
    %451 = vmatpush2.msra.mxu0 0.0
    %452 = vmatprep.subr.mxu0 0.0
    %453 = vmatpush2.msra.mxu0 0.0
    %454 = vmatprep.subr.mxu0 0.0
    %455 = vmatpush2.msra.mxu0 0.0
    %456 = vmatprep.mubr.f32.mxu0 0.0
    %v457 = vand.u32 %v180, 4294901760
    %v458 = vsub.f32 %v180, %v457
    %459 = vmatmul.mubr.f32.gmra.mxu0 %v458
    %v460 = vpop.f32.mrf.mxu0
    %v461 = vadd.f32 %v373, %v460
    %v462 = vpop.f32.mrf.mxu0
    %463 = vdwg.mxu0
    %464 = vmatprep.subr.mxu0 0.0
    %465 = vmatpush1.msra.mxu0 0.0
    %466 = vmatprep.subr.mxu0 0.0
    %467 = vmatpush1.msra.mxu0 0.0
    %468 = vmatprep.subr.mxu0 0.0
    %469 = vmatpush1.msra.mxu0 0.0
    %470 = vmatprep.subr.mxu0 0.0
    %471 = vmatpush1.msra.mxu0 0.0
    %472 = vmatprep.subr.mxu0 0.0
    %473 = vmatpush1.msra.mxu0 0.0
    %474 = vmatprep.subr.mxu0 0.0
    %475 = vmatpush1.msra.mxu0 0.0
    %476 = vmatprep.subr.mxu0 0.0
    %477 = vmatpush1.msra.mxu0 0.0
    %478 = vmatprep.subr.mxu0 0.0
    %479 = vmatpush1.msra.mxu0 0.0
    %480 = vmatprep.subr.mxu0 0.0
    %v481 = vand.u32 %v177, 4294901760
    %482 = vmatpush1.msra.mxu0 %v481
    %483 = vmatprep.subr.mxu0 0.0
    %v484 = vand.u32 %v176, 4294901760
    %485 = vmatpush1.msra.mxu0 %v484
    %486 = vmatprep.subr.mxu0 0.0
    %v487 = vand.u32 %v175, 4294901760
    %488 = vmatpush1.msra.mxu0 %v487
    %489 = vmatprep.subr.mxu0 0.0
    %v490 = vand.u32 %v174, 4294901760
    %491 = vmatpush1.msra.mxu0 %v490
    %492 = vmatprep.subr.mxu0 0.0
    %v493 = vand.u32 %v173, 4294901760
    %494 = vmatpush1.msra.mxu0 %v493
    %495 = vmatprep.subr.mxu0 0.0
    %v496 = vand.u32 %v172, 4294901760
    %497 = vmatpush1.msra.mxu0 %v496
    %498 = vmatprep.subr.mxu0 0.0
    %v499 = vand.u32 %v171, 4294901760
    %500 = vmatpush1.msra.mxu0 %v499
    %501 = vmatprep.subr.mxu0 0.0
    %v502 = vand.u32 %v170, 4294901760
    %503 = vmatpush1.msra.mxu0 %v502
    %504 = vmatprep.subr.mxu0 0.0
    %505 = vmatpush2.msra.mxu0 0.0
    %506 = vmatprep.subr.mxu0 0.0
    %507 = vmatpush2.msra.mxu0 0.0
    %508 = vmatprep.subr.mxu0 0.0
    %509 = vmatpush2.msra.mxu0 0.0
    %510 = vmatprep.subr.mxu0 0.0
    %511 = vmatpush2.msra.mxu0 0.0
    %512 = vmatprep.subr.mxu0 0.0
    %513 = vmatpush2.msra.mxu0 0.0
    %514 = vmatprep.subr.mxu0 0.0
    %515 = vmatpush2.msra.mxu0 0.0
    %516 = vmatprep.subr.mxu0 0.0
    %517 = vmatpush2.msra.mxu0 0.0
    %518 = vmatprep.subr.mxu0 0.0
    %519 = vmatpush2.msra.mxu0 0.0
    %520 = vmatprep.subr.mxu0 0.0
    %521 = vmatpush2.msra.mxu0 0.0
    %522 = vmatprep.subr.mxu0 0.0
    %523 = vmatpush2.msra.mxu0 0.0
    %524 = vmatprep.subr.mxu0 0.0
    %525 = vmatpush2.msra.mxu0 0.0
    %526 = vmatprep.subr.mxu0 0.0
    %527 = vmatpush2.msra.mxu0 0.0
    %528 = vmatprep.subr.mxu0 0.0
    %529 = vmatpush2.msra.mxu0 0.0
    %530 = vmatprep.subr.mxu0 0.0
    %531 = vmatpush2.msra.mxu0 0.0
    %532 = vmatprep.subr.mxu0 0.0
    %533 = vmatpush2.msra.mxu0 0.0
    %534 = vmatprep.subr.mxu0 0.0
    %535 = vmatpush2.msra.mxu0 0.0
    %536 = vmatprep.mubr.f32.mxu0 0.0
    %v537 = vand.u32 %v180, 4294901760
    %v538 = vsub.f32 %v180, %v537
    %v539 = vand.u32 %v538, 4294901760
    %540 = vmatmul.mubr.f32.gmra.mxu0 %v539
    %v541 = vpop.f32.mrf.mxu0
    %v542 = vadd.f32 %v461, %v541
    %v543 = vpop.f32.mrf.mxu0
    %544 = vdwg.mxu0
    %545 = vmatprep.subr.mxu0 0.0
    %546 = vmatpush1.msra.mxu0 0.0
    %547 = vmatprep.subr.mxu0 0.0
    %548 = vmatpush1.msra.mxu0 0.0
    %549 = vmatprep.subr.mxu0 0.0
    %550 = vmatpush1.msra.mxu0 0.0
    %551 = vmatprep.subr.mxu0 0.0
    %552 = vmatpush1.msra.mxu0 0.0
    %553 = vmatprep.subr.mxu0 0.0
    %554 = vmatpush1.msra.mxu0 0.0
    %555 = vmatprep.subr.mxu0 0.0
    %556 = vmatpush1.msra.mxu0 0.0
    %557 = vmatprep.subr.mxu0 0.0
    %558 = vmatpush1.msra.mxu0 0.0
    %559 = vmatprep.subr.mxu0 0.0
    %560 = vmatpush1.msra.mxu0 0.0
    %561 = vmatprep.subr.mxu0 0.0
    %v562 = vand.u32 %v177, 4294901760
    %v563 = vsub.f32 %v177, %v562
    %v564 = vand.u32 %v563, 4294901760
    %565 = vmatpush1.msra.mxu0 %v564
    %566 = vmatprep.subr.mxu0 0.0
    %v567 = vand.u32 %v176, 4294901760
    %v568 = vsub.f32 %v176, %v567
    %v569 = vand.u32 %v568, 4294901760
    %570 = vmatpush1.msra.mxu0 %v569
    %571 = vmatprep.subr.mxu0 0.0
    %v572 = vand.u32 %v175, 4294901760
    %v573 = vsub.f32 %v175, %v572
    %v574 = vand.u32 %v573, 4294901760
    %575 = vmatpush1.msra.mxu0 %v574
    %576 = vmatprep.subr.mxu0 0.0
    %v577 = vand.u32 %v174, 4294901760
    %v578 = vsub.f32 %v174, %v577
    %v579 = vand.u32 %v578, 4294901760
    %580 = vmatpush1.msra.mxu0 %v579
    %581 = vmatprep.subr.mxu0 0.0
    %v582 = vand.u32 %v173, 4294901760
    %v583 = vsub.f32 %v173, %v582
    %v584 = vand.u32 %v583, 4294901760
    %585 = vmatpush1.msra.mxu0 %v584
    %586 = vmatprep.subr.mxu0 0.0
    %v587 = vand.u32 %v172, 4294901760
    %v588 = vsub.f32 %v172, %v587
    %v589 = vand.u32 %v588, 4294901760
    %590 = vmatpush1.msra.mxu0 %v589
    %591 = vmatprep.subr.mxu0 0.0
    %v592 = vand.u32 %v171, 4294901760
    %v593 = vsub.f32 %v171, %v592
    %v594 = vand.u32 %v593, 4294901760
    %595 = vmatpush1.msra.mxu0 %v594
    %596 = vmatprep.subr.mxu0 0.0
    %v597 = vand.u32 %v170, 4294901760
    %v598 = vsub.f32 %v170, %v597
    %v599 = vand.u32 %v598, 4294901760
    %600 = vmatpush1.msra.mxu0 %v599
    %601 = vmatprep.subr.mxu0 0.0
    %602 = vmatpush2.msra.mxu0 0.0
    %603 = vmatprep.subr.mxu0 0.0
    %604 = vmatpush2.msra.mxu0 0.0
    %605 = vmatprep.subr.mxu0 0.0
    %606 = vmatpush2.msra.mxu0 0.0
    %607 = vmatprep.subr.mxu0 0.0
    %608 = vmatpush2.msra.mxu0 0.0
    %609 = vmatprep.subr.mxu0 0.0
    %610 = vmatpush2.msra.mxu0 0.0
    %611 = vmatprep.subr.mxu0 0.0
    %612 = vmatpush2.msra.mxu0 0.0
    %613 = vmatprep.subr.mxu0 0.0
    %614 = vmatpush2.msra.mxu0 0.0
    %615 = vmatprep.subr.mxu0 0.0
    %616 = vmatpush2.msra.mxu0 0.0
    %617 = vmatprep.subr.mxu0 0.0
    %618 = vmatpush2.msra.mxu0 0.0
    %619 = vmatprep.subr.mxu0 0.0
    %620 = vmatpush2.msra.mxu0 0.0
    %621 = vmatprep.subr.mxu0 0.0
    %622 = vmatpush2.msra.mxu0 0.0
    %623 = vmatprep.subr.mxu0 0.0
    %624 = vmatpush2.msra.mxu0 0.0
    %625 = vmatprep.subr.mxu0 0.0
    %626 = vmatpush2.msra.mxu0 0.0
    %627 = vmatprep.subr.mxu0 0.0
    %628 = vmatpush2.msra.mxu0 0.0
    %629 = vmatprep.subr.mxu0 0.0
    %630 = vmatpush2.msra.mxu0 0.0
    %631 = vmatprep.subr.mxu0 0.0
    %632 = vmatpush2.msra.mxu0 0.0
    %633 = vmatprep.mubr.f32.mxu0 0.0
    %v634 = vand.u32 %v180, 4294901760
    %635 = vmatmul.mubr.f32.gmra.mxu0 %v634
    %v636 = vpop.f32.mrf.mxu0
    %v637 = vadd.f32 %v542, %v636
    %v638 = vpop.f32.mrf.mxu0
    %639 = vdwg.mxu0
    %640 = vmatprep.subr.mxu0 0.0
    %641 = vmatpush1.msra.mxu0 0.0
    %642 = vmatprep.subr.mxu0 0.0
    %643 = vmatpush1.msra.mxu0 0.0
    %644 = vmatprep.subr.mxu0 0.0
    %645 = vmatpush1.msra.mxu0 0.0
    %646 = vmatprep.subr.mxu0 0.0
    %647 = vmatpush1.msra.mxu0 0.0
    %648 = vmatprep.subr.mxu0 0.0
    %649 = vmatpush1.msra.mxu0 0.0
    %650 = vmatprep.subr.mxu0 0.0
    %651 = vmatpush1.msra.mxu0 0.0
    %652 = vmatprep.subr.mxu0 0.0
    %653 = vmatpush1.msra.mxu0 0.0
    %654 = vmatprep.subr.mxu0 0.0
    %655 = vmatpush1.msra.mxu0 0.0
    %656 = vmatprep.subr.mxu0 0.0
    %v657 = vand.u32 %v177, 4294901760
    %658 = vmatpush1.msra.mxu0 %v657
    %659 = vmatprep.subr.mxu0 0.0
    %v660 = vand.u32 %v176, 4294901760
    %661 = vmatpush1.msra.mxu0 %v660
    %662 = vmatprep.subr.mxu0 0.0
    %v663 = vand.u32 %v175, 4294901760
    %664 = vmatpush1.msra.mxu0 %v663
    %665 = vmatprep.subr.mxu0 0.0
    %v666 = vand.u32 %v174, 4294901760
    %667 = vmatpush1.msra.mxu0 %v666
    %668 = vmatprep.subr.mxu0 0.0
    %v669 = vand.u32 %v173, 4294901760
    %670 = vmatpush1.msra.mxu0 %v669
    %671 = vmatprep.subr.mxu0 0.0
    %v672 = vand.u32 %v172, 4294901760
    %673 = vmatpush1.msra.mxu0 %v672
    %674 = vmatprep.subr.mxu0 0.0
    %v675 = vand.u32 %v171, 4294901760
    %676 = vmatpush1.msra.mxu0 %v675
    %677 = vmatprep.subr.mxu0 0.0
    %v678 = vand.u32 %v170, 4294901760
    %679 = vmatpush1.msra.mxu0 %v678
    %680 = vmatprep.subr.mxu0 0.0
    %681 = vmatpush2.msra.mxu0 0.0
    %682 = vmatprep.subr.mxu0 0.0
    %683 = vmatpush2.msra.mxu0 0.0
    %684 = vmatprep.subr.mxu0 0.0
    %685 = vmatpush2.msra.mxu0 0.0
    %686 = vmatprep.subr.mxu0 0.0
    %687 = vmatpush2.msra.mxu0 0.0
    %688 = vmatprep.subr.mxu0 0.0
    %689 = vmatpush2.msra.mxu0 0.0
    %690 = vmatprep.subr.mxu0 0.0
    %691 = vmatpush2.msra.mxu0 0.0
    %692 = vmatprep.subr.mxu0 0.0
    %693 = vmatpush2.msra.mxu0 0.0
    %694 = vmatprep.subr.mxu0 0.0
    %695 = vmatpush2.msra.mxu0 0.0
    %696 = vmatprep.subr.mxu0 0.0
    %697 = vmatpush2.msra.mxu0 0.0
    %698 = vmatprep.subr.mxu0 0.0
    %699 = vmatpush2.msra.mxu0 0.0
    %700 = vmatprep.subr.mxu0 0.0
    %701 = vmatpush2.msra.mxu0 0.0
    %702 = vmatprep.subr.mxu0 0.0
    %703 = vmatpush2.msra.mxu0 0.0
    %704 = vmatprep.subr.mxu0 0.0
    %705 = vmatpush2.msra.mxu0 0.0
    %706 = vmatprep.subr.mxu0 0.0
    %707 = vmatpush2.msra.mxu0 0.0
    %708 = vmatprep.subr.mxu0 0.0
    %709 = vmatpush2.msra.mxu0 0.0
    %710 = vmatprep.subr.mxu0 0.0
    %711 = vmatpush2.msra.mxu0 0.0
    %712 = vmatprep.mubr.f32.mxu0 0.0
    %v713 = vand.u32 %v180, 4294901760
    %714 = vmatmul.mubr.f32.gmra.mxu0 %v713
    %v715 = vpop.f32.mrf.mxu0
    %v716 = vadd.f32 %v637, %v715
    %v717 = vpop.f32.mrf.mxu0
    %718 = vdwg.mxu0
    %v719 = vsub.f32 %v114, 1.0
    %v720 = vsub.f32 %v115, 1.0
    %v721 = vsub.f32 %v116, 1.0
    %v722 = vsub.f32 %v117, 1.0
    %v723 = vsub.f32 %v118, 1.0
    %v724 = vsub.f32 %v119, 1.0
    %v725 = vsub.f32 %v120, 1.0
    %v726 = vsub.f32 %v121, 1.0
    %v727 = vand.u32 2147483647, %v719
    %v728 = vand.u32 2147483647, %v720
    %v729 = vand.u32 2147483647, %v721
    %v730 = vand.u32 2147483647, %v722
    %v731 = vand.u32 2147483647, %v723
    %v732 = vand.u32 2147483647, %v724
    %v733 = vand.u32 2147483647, %v725
    %v734 = vand.u32 2147483647, %v726
    %v735 = vsub.f32 %v146, %v727
    %v736 = vsub.f32 %v147, %v728
    %v737 = vsub.f32 %v148, %v729
    %v738 = vsub.f32 %v149, %v730
    %v739 = vsub.f32 %v150, %v731
    %v740 = vsub.f32 %v151, %v732
    %v741 = vsub.f32 %v152, %v733
    %v742 = vsub.f32 %v153, %v734
    %v743 = vmax.f32 %v735, 0.0
    %v744 = vmax.f32 %v736, 0.0
    %v745 = vmax.f32 %v737, 0.0
    %v746 = vmax.f32 %v738, 0.0
    %v747 = vmax.f32 %v739, 0.0
    %v748 = vmax.f32 %v740, 0.0
    %v749 = vmax.f32 %v741, 0.0
    %v750 = vmax.f32 %v742, 0.0
    %751 = vmatprep.subr.mxu0 0.0
    %752 = vmatpush1.msra.mxu0 0.0
    %753 = vmatprep.subr.mxu0 0.0
    %754 = vmatpush1.msra.mxu0 0.0
    %755 = vmatprep.subr.mxu0 0.0
    %756 = vmatpush1.msra.mxu0 0.0
    %757 = vmatprep.subr.mxu0 0.0
    %758 = vmatpush1.msra.mxu0 0.0
    %759 = vmatprep.subr.mxu0 0.0
    %760 = vmatpush1.msra.mxu0 0.0
    %761 = vmatprep.subr.mxu0 0.0
    %762 = vmatpush1.msra.mxu0 0.0
    %763 = vmatprep.subr.mxu0 0.0
    %764 = vmatpush1.msra.mxu0 0.0
    %765 = vmatprep.subr.mxu0 0.0
    %766 = vmatpush1.msra.mxu0 0.0
    %767 = vmatprep.subr.mxu0 0.0
    %v768 = vand.u32 %v750, 4294901760
    %769 = vmatpush1.msra.mxu0 %v768
    %770 = vmatprep.subr.mxu0 0.0
    %v771 = vand.u32 %v749, 4294901760
    %772 = vmatpush1.msra.mxu0 %v771
    %773 = vmatprep.subr.mxu0 0.0
    %v774 = vand.u32 %v748, 4294901760
    %775 = vmatpush1.msra.mxu0 %v774
    %776 = vmatprep.subr.mxu0 0.0
    %v777 = vand.u32 %v747, 4294901760
    %778 = vmatpush1.msra.mxu0 %v777
    %779 = vmatprep.subr.mxu0 0.0
    %v780 = vand.u32 %v746, 4294901760
    %781 = vmatpush1.msra.mxu0 %v780
    %782 = vmatprep.subr.mxu0 0.0
    %v783 = vand.u32 %v745, 4294901760
    %784 = vmatpush1.msra.mxu0 %v783
    %785 = vmatprep.subr.mxu0 0.0
    %v786 = vand.u32 %v744, 4294901760
    %787 = vmatpush1.msra.mxu0 %v786
    %788 = vmatprep.subr.mxu0 0.0
    %v789 = vand.u32 %v743, 4294901760
    %790 = vmatpush1.msra.mxu0 %v789
    %791 = vmatprep.subr.mxu0 0.0
    %792 = vmatpush2.msra.mxu0 0.0
    %793 = vmatprep.subr.mxu0 0.0
    %794 = vmatpush2.msra.mxu0 0.0
    %795 = vmatprep.subr.mxu0 0.0
    %796 = vmatpush2.msra.mxu0 0.0
    %797 = vmatprep.subr.mxu0 0.0
    %798 = vmatpush2.msra.mxu0 0.0
    %799 = vmatprep.subr.mxu0 0.0
    %800 = vmatpush2.msra.mxu0 0.0
    %801 = vmatprep.subr.mxu0 0.0
    %802 = vmatpush2.msra.mxu0 0.0
    %803 = vmatprep.subr.mxu0 0.0
    %804 = vmatpush2.msra.mxu0 0.0
    %805 = vmatprep.subr.mxu0 0.0
    %806 = vmatpush2.msra.mxu0 0.0
    %807 = vmatprep.subr.mxu0 0.0
    %808 = vmatpush2.msra.mxu0 0.0
    %809 = vmatprep.subr.mxu0 0.0
    %810 = vmatpush2.msra.mxu0 0.0
    %811 = vmatprep.subr.mxu0 0.0
    %812 = vmatpush2.msra.mxu0 0.0
    %813 = vmatprep.subr.mxu0 0.0
    %814 = vmatpush2.msra.mxu0 0.0
    %815 = vmatprep.subr.mxu0 0.0
    %816 = vmatpush2.msra.mxu0 0.0
    %817 = vmatprep.subr.mxu0 0.0
    %818 = vmatpush2.msra.mxu0 0.0
    %819 = vmatprep.subr.mxu0 0.0
    %820 = vmatpush2.msra.mxu0 0.0
    %821 = vmatprep.subr.mxu0 0.0
    %822 = vmatpush2.msra.mxu0 0.0
    %823 = vmatprep.mubr.f32.mxu0 0.0
    %v824 = vand.u32 %v180, 4294901760
    %v825 = vsub.f32 %v180, %v824
    %v826 = vand.u32 %v825, 4294901760
    %v827 = vsub.f32 %v825, %v826
    %v828 = vand.u32 %v827, 4294901760
    %829 = vmatmul.mubr.f32.gmra.mxu0 %v828
    %v830 = vpop.f32.mrf.mxu0
    %v831 = vadd.f32 0.0, %v830
    %v832 = vpop.f32.mrf.mxu0
    %833 = vdwg.mxu0
    %834 = vmatprep.subr.mxu0 0.0
    %835 = vmatpush1.msra.mxu0 0.0
    %836 = vmatprep.subr.mxu0 0.0
    %837 = vmatpush1.msra.mxu0 0.0
    %838 = vmatprep.subr.mxu0 0.0
    %839 = vmatpush1.msra.mxu0 0.0
    %840 = vmatprep.subr.mxu0 0.0
    %841 = vmatpush1.msra.mxu0 0.0
    %842 = vmatprep.subr.mxu0 0.0
    %843 = vmatpush1.msra.mxu0 0.0
    %844 = vmatprep.subr.mxu0 0.0
    %845 = vmatpush1.msra.mxu0 0.0
    %846 = vmatprep.subr.mxu0 0.0
    %847 = vmatpush1.msra.mxu0 0.0
    %848 = vmatprep.subr.mxu0 0.0
    %849 = vmatpush1.msra.mxu0 0.0
    %850 = vmatprep.subr.mxu0 0.0
    %v851 = vand.u32 %v750, 4294901760
    %v852 = vsub.f32 %v750, %v851
    %v853 = vand.u32 %v852, 4294901760
    %v854 = vsub.f32 %v852, %v853
    %v855 = vand.u32 %v854, 4294901760
    %856 = vmatpush1.msra.mxu0 %v855
    %857 = vmatprep.subr.mxu0 0.0
    %v858 = vand.u32 %v749, 4294901760
    %v859 = vsub.f32 %v749, %v858
    %v860 = vand.u32 %v859, 4294901760
    %v861 = vsub.f32 %v859, %v860
    %v862 = vand.u32 %v861, 4294901760
    %863 = vmatpush1.msra.mxu0 %v862
    %864 = vmatprep.subr.mxu0 0.0
    %v865 = vand.u32 %v748, 4294901760
    %v866 = vsub.f32 %v748, %v865
    %v867 = vand.u32 %v866, 4294901760
    %v868 = vsub.f32 %v866, %v867
    %v869 = vand.u32 %v868, 4294901760
    %870 = vmatpush1.msra.mxu0 %v869
    %871 = vmatprep.subr.mxu0 0.0
    %v872 = vand.u32 %v747, 4294901760
    %v873 = vsub.f32 %v747, %v872
    %v874 = vand.u32 %v873, 4294901760
    %v875 = vsub.f32 %v873, %v874
    %v876 = vand.u32 %v875, 4294901760
    %877 = vmatpush1.msra.mxu0 %v876
    %878 = vmatprep.subr.mxu0 0.0
    %v879 = vand.u32 %v746, 4294901760
    %v880 = vsub.f32 %v746, %v879
    %v881 = vand.u32 %v880, 4294901760
    %v882 = vsub.f32 %v880, %v881
    %v883 = vand.u32 %v882, 4294901760
    %884 = vmatpush1.msra.mxu0 %v883
    %885 = vmatprep.subr.mxu0 0.0
    %v886 = vand.u32 %v745, 4294901760
    %v887 = vsub.f32 %v745, %v886
    %v888 = vand.u32 %v887, 4294901760
    %v889 = vsub.f32 %v887, %v888
    %v890 = vand.u32 %v889, 4294901760
    %891 = vmatpush1.msra.mxu0 %v890
    %892 = vmatprep.subr.mxu0 0.0
    %v893 = vand.u32 %v744, 4294901760
    %v894 = vsub.f32 %v744, %v893
    %v895 = vand.u32 %v894, 4294901760
    %v896 = vsub.f32 %v894, %v895
    %v897 = vand.u32 %v896, 4294901760
    %898 = vmatpush1.msra.mxu0 %v897
    %899 = vmatprep.subr.mxu0 0.0
    %v900 = vand.u32 %v743, 4294901760
    %v901 = vsub.f32 %v743, %v900
    %v902 = vand.u32 %v901, 4294901760
    %v903 = vsub.f32 %v901, %v902
    %v904 = vand.u32 %v903, 4294901760
    %905 = vmatpush1.msra.mxu0 %v904
    %906 = vmatprep.subr.mxu0 0.0
    %907 = vmatpush2.msra.mxu0 0.0
    %908 = vmatprep.subr.mxu0 0.0
    %909 = vmatpush2.msra.mxu0 0.0
    %910 = vmatprep.subr.mxu0 0.0
    %911 = vmatpush2.msra.mxu0 0.0
    %912 = vmatprep.subr.mxu0 0.0
    %913 = vmatpush2.msra.mxu0 0.0
    %914 = vmatprep.subr.mxu0 0.0
    %915 = vmatpush2.msra.mxu0 0.0
    %916 = vmatprep.subr.mxu0 0.0
    %917 = vmatpush2.msra.mxu0 0.0
    %918 = vmatprep.subr.mxu0 0.0
    %919 = vmatpush2.msra.mxu0 0.0
    %920 = vmatprep.subr.mxu0 0.0
    %921 = vmatpush2.msra.mxu0 0.0
    %922 = vmatprep.subr.mxu0 0.0
    %923 = vmatpush2.msra.mxu0 0.0
    %924 = vmatprep.subr.mxu0 0.0
    %925 = vmatpush2.msra.mxu0 0.0
    %926 = vmatprep.subr.mxu0 0.0
    %927 = vmatpush2.msra.mxu0 0.0
    %928 = vmatprep.subr.mxu0 0.0
    %929 = vmatpush2.msra.mxu0 0.0
    %930 = vmatprep.subr.mxu0 0.0
    %931 = vmatpush2.msra.mxu0 0.0
    %932 = vmatprep.subr.mxu0 0.0
    %933 = vmatpush2.msra.mxu0 0.0
    %934 = vmatprep.subr.mxu0 0.0
    %935 = vmatpush2.msra.mxu0 0.0
    %936 = vmatprep.subr.mxu0 0.0
    %937 = vmatpush2.msra.mxu0 0.0
    %938 = vmatprep.mubr.f32.mxu0 0.0
    %v939 = vand.u32 %v180, 4294901760
    %940 = vmatmul.mubr.f32.gmra.mxu0 %v939
    %v941 = vpop.f32.mrf.mxu0
    %v942 = vadd.f32 %v831, %v941
    %v943 = vpop.f32.mrf.mxu0
    %944 = vdwg.mxu0
    %945 = vmatprep.subr.mxu0 0.0
    %946 = vmatpush1.msra.mxu0 0.0
    %947 = vmatprep.subr.mxu0 0.0
    %948 = vmatpush1.msra.mxu0 0.0
    %949 = vmatprep.subr.mxu0 0.0
    %950 = vmatpush1.msra.mxu0 0.0
    %951 = vmatprep.subr.mxu0 0.0
    %952 = vmatpush1.msra.mxu0 0.0
    %953 = vmatprep.subr.mxu0 0.0
    %954 = vmatpush1.msra.mxu0 0.0
    %955 = vmatprep.subr.mxu0 0.0
    %956 = vmatpush1.msra.mxu0 0.0
    %957 = vmatprep.subr.mxu0 0.0
    %958 = vmatpush1.msra.mxu0 0.0
    %959 = vmatprep.subr.mxu0 0.0
    %960 = vmatpush1.msra.mxu0 0.0
    %961 = vmatprep.subr.mxu0 0.0
    %v962 = vand.u32 %v750, 4294901760
    %v963 = vsub.f32 %v750, %v962
    %964 = vmatpush1.msra.mxu0 %v963
    %965 = vmatprep.subr.mxu0 0.0
    %v966 = vand.u32 %v749, 4294901760
    %v967 = vsub.f32 %v749, %v966
    %968 = vmatpush1.msra.mxu0 %v967
    %969 = vmatprep.subr.mxu0 0.0
    %v970 = vand.u32 %v748, 4294901760
    %v971 = vsub.f32 %v748, %v970
    %972 = vmatpush1.msra.mxu0 %v971
    %973 = vmatprep.subr.mxu0 0.0
    %v974 = vand.u32 %v747, 4294901760
    %v975 = vsub.f32 %v747, %v974
    %976 = vmatpush1.msra.mxu0 %v975
    %977 = vmatprep.subr.mxu0 0.0
    %v978 = vand.u32 %v746, 4294901760
    %v979 = vsub.f32 %v746, %v978
    %980 = vmatpush1.msra.mxu0 %v979
    %981 = vmatprep.subr.mxu0 0.0
    %v982 = vand.u32 %v745, 4294901760
    %v983 = vsub.f32 %v745, %v982
    %984 = vmatpush1.msra.mxu0 %v983
    %985 = vmatprep.subr.mxu0 0.0
    %v986 = vand.u32 %v744, 4294901760
    %v987 = vsub.f32 %v744, %v986
    %988 = vmatpush1.msra.mxu0 %v987
    %989 = vmatprep.subr.mxu0 0.0
    %v990 = vand.u32 %v743, 4294901760
    %v991 = vsub.f32 %v743, %v990
    %992 = vmatpush1.msra.mxu0 %v991
    %993 = vmatprep.subr.mxu0 0.0
    %994 = vmatpush2.msra.mxu0 0.0
    %995 = vmatprep.subr.mxu0 0.0
    %996 = vmatpush2.msra.mxu0 0.0
    %997 = vmatprep.subr.mxu0 0.0
    %998 = vmatpush2.msra.mxu0 0.0
    %999 = vmatprep.subr.mxu0 0.0
    %1000 = vmatpush2.msra.mxu0 0.0
    %1001 = vmatprep.subr.mxu0 0.0
    %1002 = vmatpush2.msra.mxu0 0.0
    %1003 = vmatprep.subr.mxu0 0.0
    %1004 = vmatpush2.msra.mxu0 0.0
    %1005 = vmatprep.subr.mxu0 0.0
    %1006 = vmatpush2.msra.mxu0 0.0
    %1007 = vmatprep.subr.mxu0 0.0
    %1008 = vmatpush2.msra.mxu0 0.0
    %1009 = vmatprep.subr.mxu0 0.0
    %1010 = vmatpush2.msra.mxu0 0.0
    %1011 = vmatprep.subr.mxu0 0.0
    %1012 = vmatpush2.msra.mxu0 0.0
    %1013 = vmatprep.subr.mxu0 0.0
    %1014 = vmatpush2.msra.mxu0 0.0
    %1015 = vmatprep.subr.mxu0 0.0
    %1016 = vmatpush2.msra.mxu0 0.0
    %1017 = vmatprep.subr.mxu0 0.0
    %1018 = vmatpush2.msra.mxu0 0.0
    %1019 = vmatprep.subr.mxu0 0.0
    %1020 = vmatpush2.msra.mxu0 0.0
    %1021 = vmatprep.subr.mxu0 0.0
    %1022 = vmatpush2.msra.mxu0 0.0
    %1023 = vmatprep.subr.mxu0 0.0
    %1024 = vmatpush2.msra.mxu0 0.0
    %1025 = vmatprep.mubr.f32.mxu0 0.0
    %v1026 = vand.u32 %v180, 4294901760
    %v1027 = vsub.f32 %v180, %v1026
    %1028 = vmatmul.mubr.f32.gmra.mxu0 %v1027
    %v1029 = vpop.f32.mrf.mxu0
    %v1030 = vadd.f32 %v942, %v1029
    %v1031 = vpop.f32.mrf.mxu0
    %1032 = vdwg.mxu0
    %1033 = vmatprep.subr.mxu0 0.0
    %1034 = vmatpush1.msra.mxu0 0.0
    %1035 = vmatprep.subr.mxu0 0.0
    %1036 = vmatpush1.msra.mxu0 0.0
    %1037 = vmatprep.subr.mxu0 0.0
    %1038 = vmatpush1.msra.mxu0 0.0
    %1039 = vmatprep.subr.mxu0 0.0
    %1040 = vmatpush1.msra.mxu0 0.0
    %1041 = vmatprep.subr.mxu0 0.0
    %1042 = vmatpush1.msra.mxu0 0.0
    %1043 = vmatprep.subr.mxu0 0.0
    %1044 = vmatpush1.msra.mxu0 0.0
    %1045 = vmatprep.subr.mxu0 0.0
    %1046 = vmatpush1.msra.mxu0 0.0
    %1047 = vmatprep.subr.mxu0 0.0
    %1048 = vmatpush1.msra.mxu0 0.0
    %1049 = vmatprep.subr.mxu0 0.0
    %v1050 = vand.u32 %v750, 4294901760
    %1051 = vmatpush1.msra.mxu0 %v1050
    %1052 = vmatprep.subr.mxu0 0.0
    %v1053 = vand.u32 %v749, 4294901760
    %1054 = vmatpush1.msra.mxu0 %v1053
    %1055 = vmatprep.subr.mxu0 0.0
    %v1056 = vand.u32 %v748, 4294901760
    %1057 = vmatpush1.msra.mxu0 %v1056
    %1058 = vmatprep.subr.mxu0 0.0
    %v1059 = vand.u32 %v747, 4294901760
    %1060 = vmatpush1.msra.mxu0 %v1059
    %1061 = vmatprep.subr.mxu0 0.0
    %v1062 = vand.u32 %v746, 4294901760
    %1063 = vmatpush1.msra.mxu0 %v1062
    %1064 = vmatprep.subr.mxu0 0.0
    %v1065 = vand.u32 %v745, 4294901760
    %1066 = vmatpush1.msra.mxu0 %v1065
    %1067 = vmatprep.subr.mxu0 0.0
    %v1068 = vand.u32 %v744, 4294901760
    %1069 = vmatpush1.msra.mxu0 %v1068
    %1070 = vmatprep.subr.mxu0 0.0
    %v1071 = vand.u32 %v743, 4294901760
    %1072 = vmatpush1.msra.mxu0 %v1071
    %1073 = vmatprep.subr.mxu0 0.0
    %1074 = vmatpush2.msra.mxu0 0.0
    %1075 = vmatprep.subr.mxu0 0.0
    %1076 = vmatpush2.msra.mxu0 0.0
    %1077 = vmatprep.subr.mxu0 0.0
    %1078 = vmatpush2.msra.mxu0 0.0
    %1079 = vmatprep.subr.mxu0 0.0
    %1080 = vmatpush2.msra.mxu0 0.0
    %1081 = vmatprep.subr.mxu0 0.0
    %1082 = vmatpush2.msra.mxu0 0.0
    %1083 = vmatprep.subr.mxu0 0.0
    %1084 = vmatpush2.msra.mxu0 0.0
    %1085 = vmatprep.subr.mxu0 0.0
    %1086 = vmatpush2.msra.mxu0 0.0
    %1087 = vmatprep.subr.mxu0 0.0
    %1088 = vmatpush2.msra.mxu0 0.0
    %1089 = vmatprep.subr.mxu0 0.0
    %1090 = vmatpush2.msra.mxu0 0.0
    %1091 = vmatprep.subr.mxu0 0.0
    %1092 = vmatpush2.msra.mxu0 0.0
    %1093 = vmatprep.subr.mxu0 0.0
    %1094 = vmatpush2.msra.mxu0 0.0
    %1095 = vmatprep.subr.mxu0 0.0
    %1096 = vmatpush2.msra.mxu0 0.0
    %1097 = vmatprep.subr.mxu0 0.0
    %1098 = vmatpush2.msra.mxu0 0.0
    %1099 = vmatprep.subr.mxu0 0.0
    %1100 = vmatpush2.msra.mxu0 0.0
    %1101 = vmatprep.subr.mxu0 0.0
    %1102 = vmatpush2.msra.mxu0 0.0
    %1103 = vmatprep.subr.mxu0 0.0
    %1104 = vmatpush2.msra.mxu0 0.0
    %1105 = vmatprep.mubr.f32.mxu0 0.0
    %v1106 = vand.u32 %v180, 4294901760
    %v1107 = vsub.f32 %v180, %v1106
    %v1108 = vand.u32 %v1107, 4294901760
    %1109 = vmatmul.mubr.f32.gmra.mxu0 %v1108
    %v1110 = vpop.f32.mrf.mxu0
    %v1111 = vadd.f32 %v1030, %v1110
    %v1112 = vpop.f32.mrf.mxu0
    %1113 = vdwg.mxu0
    %1114 = vmatprep.subr.mxu0 0.0
    %1115 = vmatpush1.msra.mxu0 0.0
    %1116 = vmatprep.subr.mxu0 0.0
    %1117 = vmatpush1.msra.mxu0 0.0
    %1118 = vmatprep.subr.mxu0 0.0
    %1119 = vmatpush1.msra.mxu0 0.0
    %1120 = vmatprep.subr.mxu0 0.0
    %1121 = vmatpush1.msra.mxu0 0.0
    %1122 = vmatprep.subr.mxu0 0.0
    %1123 = vmatpush1.msra.mxu0 0.0
    %1124 = vmatprep.subr.mxu0 0.0
    %1125 = vmatpush1.msra.mxu0 0.0
    %1126 = vmatprep.subr.mxu0 0.0
    %1127 = vmatpush1.msra.mxu0 0.0
    %1128 = vmatprep.subr.mxu0 0.0
    %1129 = vmatpush1.msra.mxu0 0.0
    %1130 = vmatprep.subr.mxu0 0.0
    %v1131 = vand.u32 %v750, 4294901760
    %v1132 = vsub.f32 %v750, %v1131
    %v1133 = vand.u32 %v1132, 4294901760
    %1134 = vmatpush1.msra.mxu0 %v1133
    %1135 = vmatprep.subr.mxu0 0.0
    %v1136 = vand.u32 %v749, 4294901760
    %v1137 = vsub.f32 %v749, %v1136
    %v1138 = vand.u32 %v1137, 4294901760
    %1139 = vmatpush1.msra.mxu0 %v1138
    %1140 = vmatprep.subr.mxu0 0.0
    %v1141 = vand.u32 %v748, 4294901760
    %v1142 = vsub.f32 %v748, %v1141
    %v1143 = vand.u32 %v1142, 4294901760
    %1144 = vmatpush1.msra.mxu0 %v1143
    %1145 = vmatprep.subr.mxu0 0.0
    %v1146 = vand.u32 %v747, 4294901760
    %v1147 = vsub.f32 %v747, %v1146
    %v1148 = vand.u32 %v1147, 4294901760
    %1149 = vmatpush1.msra.mxu0 %v1148
    %1150 = vmatprep.subr.mxu0 0.0
    %v1151 = vand.u32 %v746, 4294901760
    %v1152 = vsub.f32 %v746, %v1151
    %v1153 = vand.u32 %v1152, 4294901760
    %1154 = vmatpush1.msra.mxu0 %v1153
    %1155 = vmatprep.subr.mxu0 0.0
    %v1156 = vand.u32 %v745, 4294901760
    %v1157 = vsub.f32 %v745, %v1156
    %v1158 = vand.u32 %v1157, 4294901760
    %1159 = vmatpush1.msra.mxu0 %v1158
    %1160 = vmatprep.subr.mxu0 0.0
    %v1161 = vand.u32 %v744, 4294901760
    %v1162 = vsub.f32 %v744, %v1161
    %v1163 = vand.u32 %v1162, 4294901760
    %1164 = vmatpush1.msra.mxu0 %v1163
    %1165 = vmatprep.subr.mxu0 0.0
    %v1166 = vand.u32 %v743, 4294901760
    %v1167 = vsub.f32 %v743, %v1166
    %v1168 = vand.u32 %v1167, 4294901760
    %1169 = vmatpush1.msra.mxu0 %v1168
    %1170 = vmatprep.subr.mxu0 0.0
    %1171 = vmatpush2.msra.mxu0 0.0
    %1172 = vmatprep.subr.mxu0 0.0
    %1173 = vmatpush2.msra.mxu0 0.0
    %1174 = vmatprep.subr.mxu0 0.0
    %1175 = vmatpush2.msra.mxu0 0.0
    %1176 = vmatprep.subr.mxu0 0.0
    %1177 = vmatpush2.msra.mxu0 0.0
    %1178 = vmatprep.subr.mxu0 0.0
    %1179 = vmatpush2.msra.mxu0 0.0
    %1180 = vmatprep.subr.mxu0 0.0
    %1181 = vmatpush2.msra.mxu0 0.0
    %1182 = vmatprep.subr.mxu0 0.0
    %1183 = vmatpush2.msra.mxu0 0.0
    %1184 = vmatprep.subr.mxu0 0.0
    %1185 = vmatpush2.msra.mxu0 0.0
    %1186 = vmatprep.subr.mxu0 0.0
    %1187 = vmatpush2.msra.mxu0 0.0
    %1188 = vmatprep.subr.mxu0 0.0
    %1189 = vmatpush2.msra.mxu0 0.0
    %1190 = vmatprep.subr.mxu0 0.0
    %1191 = vmatpush2.msra.mxu0 0.0
    %1192 = vmatprep.subr.mxu0 0.0
    %1193 = vmatpush2.msra.mxu0 0.0
    %1194 = vmatprep.subr.mxu0 0.0
    %1195 = vmatpush2.msra.mxu0 0.0
    %1196 = vmatprep.subr.mxu0 0.0
    %1197 = vmatpush2.msra.mxu0 0.0
    %1198 = vmatprep.subr.mxu0 0.0
    %1199 = vmatpush2.msra.mxu0 0.0
    %1200 = vmatprep.subr.mxu0 0.0
    %1201 = vmatpush2.msra.mxu0 0.0
    %1202 = vmatprep.mubr.f32.mxu0 0.0
    %v1203 = vand.u32 %v180, 4294901760
    %1204 = vmatmul.mubr.f32.gmra.mxu0 %v1203
    %v1205 = vpop.f32.mrf.mxu0
    %v1206 = vadd.f32 %v1111, %v1205
    %v1207 = vpop.f32.mrf.mxu0
    %1208 = vdwg.mxu0
    %1209 = vmatprep.subr.mxu0 0.0
    %1210 = vmatpush1.msra.mxu0 0.0
    %1211 = vmatprep.subr.mxu0 0.0
    %1212 = vmatpush1.msra.mxu0 0.0
    %1213 = vmatprep.subr.mxu0 0.0
    %1214 = vmatpush1.msra.mxu0 0.0
    %1215 = vmatprep.subr.mxu0 0.0
    %1216 = vmatpush1.msra.mxu0 0.0
    %1217 = vmatprep.subr.mxu0 0.0
    %1218 = vmatpush1.msra.mxu0 0.0
    %1219 = vmatprep.subr.mxu0 0.0
    %1220 = vmatpush1.msra.mxu0 0.0
    %1221 = vmatprep.subr.mxu0 0.0
    %1222 = vmatpush1.msra.mxu0 0.0
    %1223 = vmatprep.subr.mxu0 0.0
    %1224 = vmatpush1.msra.mxu0 0.0
    %1225 = vmatprep.subr.mxu0 0.0
    %v1226 = vand.u32 %v750, 4294901760
    %1227 = vmatpush1.msra.mxu0 %v1226
    %1228 = vmatprep.subr.mxu0 0.0
    %v1229 = vand.u32 %v749, 4294901760
    %1230 = vmatpush1.msra.mxu0 %v1229
    %1231 = vmatprep.subr.mxu0 0.0
    %v1232 = vand.u32 %v748, 4294901760
    %1233 = vmatpush1.msra.mxu0 %v1232
    %1234 = vmatprep.subr.mxu0 0.0
    %v1235 = vand.u32 %v747, 4294901760
    %1236 = vmatpush1.msra.mxu0 %v1235
    %1237 = vmatprep.subr.mxu0 0.0
    %v1238 = vand.u32 %v746, 4294901760
    %1239 = vmatpush1.msra.mxu0 %v1238
    %1240 = vmatprep.subr.mxu0 0.0
    %v1241 = vand.u32 %v745, 4294901760
    %1242 = vmatpush1.msra.mxu0 %v1241
    %1243 = vmatprep.subr.mxu0 0.0
    %v1244 = vand.u32 %v744, 4294901760
    %1245 = vmatpush1.msra.mxu0 %v1244
    %1246 = vmatprep.subr.mxu0 0.0
    %v1247 = vand.u32 %v743, 4294901760
    %1248 = vmatpush1.msra.mxu0 %v1247
    %1249 = vmatprep.subr.mxu0 0.0
    %1250 = vmatpush2.msra.mxu0 0.0
    %1251 = vmatprep.subr.mxu0 0.0
    %1252 = vmatpush2.msra.mxu0 0.0
    %1253 = vmatprep.subr.mxu0 0.0
    %1254 = vmatpush2.msra.mxu0 0.0
    %1255 = vmatprep.subr.mxu0 0.0
    %1256 = vmatpush2.msra.mxu0 0.0
    %1257 = vmatprep.subr.mxu0 0.0
    %1258 = vmatpush2.msra.mxu0 0.0
    %1259 = vmatprep.subr.mxu0 0.0
    %1260 = vmatpush2.msra.mxu0 0.0
    %1261 = vmatprep.subr.mxu0 0.0
    %1262 = vmatpush2.msra.mxu0 0.0
    %1263 = vmatprep.subr.mxu0 0.0
    %1264 = vmatpush2.msra.mxu0 0.0
    %1265 = vmatprep.subr.mxu0 0.0
    %1266 = vmatpush2.msra.mxu0 0.0
    %1267 = vmatprep.subr.mxu0 0.0
    %1268 = vmatpush2.msra.mxu0 0.0
    %1269 = vmatprep.subr.mxu0 0.0
    %1270 = vmatpush2.msra.mxu0 0.0
    %1271 = vmatprep.subr.mxu0 0.0
    %1272 = vmatpush2.msra.mxu0 0.0
    %1273 = vmatprep.subr.mxu0 0.0
    %1274 = vmatpush2.msra.mxu0 0.0
    %1275 = vmatprep.subr.mxu0 0.0
    %1276 = vmatpush2.msra.mxu0 0.0
    %1277 = vmatprep.subr.mxu0 0.0
    %1278 = vmatpush2.msra.mxu0 0.0
    %1279 = vmatprep.subr.mxu0 0.0
    %1280 = vmatpush2.msra.mxu0 0.0
    %1281 = vmatprep.mubr.f32.mxu0 0.0
    %v1282 = vand.u32 %v180, 4294901760
    %1283 = vmatmul.mubr.f32.gmra.mxu0 %v1282
    %v1284 = vpop.f32.mrf.mxu0
    %v1285 = vadd.f32 %v1206, %v1284
    %v1286 = vpop.f32.mrf.mxu0
    %1287 = vdwg.mxu0
    %v1288 = vsub.f32 %v114, 2.0
    %v1289 = vsub.f32 %v115, 2.0
    %v1290 = vsub.f32 %v116, 2.0
    %v1291 = vsub.f32 %v117, 2.0
    %v1292 = vsub.f32 %v118, 2.0
    %v1293 = vsub.f32 %v119, 2.0
    %v1294 = vsub.f32 %v120, 2.0
    %v1295 = vsub.f32 %v121, 2.0
    %v1296 = vand.u32 2147483647, %v1288
    %v1297 = vand.u32 2147483647, %v1289
    %v1298 = vand.u32 2147483647, %v1290
    %v1299 = vand.u32 2147483647, %v1291
    %v1300 = vand.u32 2147483647, %v1292
    %v1301 = vand.u32 2147483647, %v1293
    %v1302 = vand.u32 2147483647, %v1294
    %v1303 = vand.u32 2147483647, %v1295
    %v1304 = vsub.f32 %v146, %v1296
    %v1305 = vsub.f32 %v147, %v1297
    %v1306 = vsub.f32 %v148, %v1298
    %v1307 = vsub.f32 %v149, %v1299
    %v1308 = vsub.f32 %v150, %v1300
    %v1309 = vsub.f32 %v151, %v1301
    %v1310 = vsub.f32 %v152, %v1302
    %v1311 = vsub.f32 %v153, %v1303
    %v1312 = vmax.f32 %v1304, 0.0
    %v1313 = vmax.f32 %v1305, 0.0
    %v1314 = vmax.f32 %v1306, 0.0
    %v1315 = vmax.f32 %v1307, 0.0
    %v1316 = vmax.f32 %v1308, 0.0
    %v1317 = vmax.f32 %v1309, 0.0
    %v1318 = vmax.f32 %v1310, 0.0
    %v1319 = vmax.f32 %v1311, 0.0
    %1320 = vmatprep.subr.mxu0 0.0
    %1321 = vmatpush1.msra.mxu0 0.0
    %1322 = vmatprep.subr.mxu0 0.0
    %1323 = vmatpush1.msra.mxu0 0.0
    %1324 = vmatprep.subr.mxu0 0.0
    %1325 = vmatpush1.msra.mxu0 0.0
    %1326 = vmatprep.subr.mxu0 0.0
    %1327 = vmatpush1.msra.mxu0 0.0
    %1328 = vmatprep.subr.mxu0 0.0
    %1329 = vmatpush1.msra.mxu0 0.0
    %1330 = vmatprep.subr.mxu0 0.0
    %1331 = vmatpush1.msra.mxu0 0.0
    %1332 = vmatprep.subr.mxu0 0.0
    %1333 = vmatpush1.msra.mxu0 0.0
    %1334 = vmatprep.subr.mxu0 0.0
    %1335 = vmatpush1.msra.mxu0 0.0
    %1336 = vmatprep.subr.mxu0 0.0
    %v1337 = vand.u32 %v1319, 4294901760
    %1338 = vmatpush1.msra.mxu0 %v1337
    %1339 = vmatprep.subr.mxu0 0.0
    %v1340 = vand.u32 %v1318, 4294901760
    %1341 = vmatpush1.msra.mxu0 %v1340
    %1342 = vmatprep.subr.mxu0 0.0
    %v1343 = vand.u32 %v1317, 4294901760
    %1344 = vmatpush1.msra.mxu0 %v1343
    %1345 = vmatprep.subr.mxu0 0.0
    %v1346 = vand.u32 %v1316, 4294901760
    %1347 = vmatpush1.msra.mxu0 %v1346
    %1348 = vmatprep.subr.mxu0 0.0
    %v1349 = vand.u32 %v1315, 4294901760
    %1350 = vmatpush1.msra.mxu0 %v1349
    %1351 = vmatprep.subr.mxu0 0.0
    %v1352 = vand.u32 %v1314, 4294901760
    %1353 = vmatpush1.msra.mxu0 %v1352
    %1354 = vmatprep.subr.mxu0 0.0
    %v1355 = vand.u32 %v1313, 4294901760
    %1356 = vmatpush1.msra.mxu0 %v1355
    %1357 = vmatprep.subr.mxu0 0.0
    %v1358 = vand.u32 %v1312, 4294901760
    %1359 = vmatpush1.msra.mxu0 %v1358
    %1360 = vmatprep.subr.mxu0 0.0
    %1361 = vmatpush2.msra.mxu0 0.0
    %1362 = vmatprep.subr.mxu0 0.0
    %1363 = vmatpush2.msra.mxu0 0.0
    %1364 = vmatprep.subr.mxu0 0.0
    %1365 = vmatpush2.msra.mxu0 0.0
    %1366 = vmatprep.subr.mxu0 0.0
    %1367 = vmatpush2.msra.mxu0 0.0
    %1368 = vmatprep.subr.mxu0 0.0
    %1369 = vmatpush2.msra.mxu0 0.0
    %1370 = vmatprep.subr.mxu0 0.0
    %1371 = vmatpush2.msra.mxu0 0.0
    %1372 = vmatprep.subr.mxu0 0.0
    %1373 = vmatpush2.msra.mxu0 0.0
    %1374 = vmatprep.subr.mxu0 0.0
    %1375 = vmatpush2.msra.mxu0 0.0
    %1376 = vmatprep.subr.mxu0 0.0
    %1377 = vmatpush2.msra.mxu0 0.0
    %1378 = vmatprep.subr.mxu0 0.0
    %1379 = vmatpush2.msra.mxu0 0.0
    %1380 = vmatprep.subr.mxu0 0.0
    %1381 = vmatpush2.msra.mxu0 0.0
    %1382 = vmatprep.subr.mxu0 0.0
    %1383 = vmatpush2.msra.mxu0 0.0
    %1384 = vmatprep.subr.mxu0 0.0
    %1385 = vmatpush2.msra.mxu0 0.0
    %1386 = vmatprep.subr.mxu0 0.0
    %1387 = vmatpush2.msra.mxu0 0.0
    %1388 = vmatprep.subr.mxu0 0.0
    %1389 = vmatpush2.msra.mxu0 0.0
    %1390 = vmatprep.subr.mxu0 0.0
    %1391 = vmatpush2.msra.mxu0 0.0
    %1392 = vmatprep.mubr.f32.mxu0 0.0
    %v1393 = vand.u32 %v180, 4294901760
    %v1394 = vsub.f32 %v180, %v1393
    %v1395 = vand.u32 %v1394, 4294901760
    %v1396 = vsub.f32 %v1394, %v1395
    %v1397 = vand.u32 %v1396, 4294901760
    %1398 = vmatmul.mubr.f32.gmra.mxu0 %v1397
    %v1399 = vpop.f32.mrf.mxu0
    %v1400 = vadd.f32 0.0, %v1399
    %v1401 = vpop.f32.mrf.mxu0
    %1402 = vdwg.mxu0
    %1403 = vmatprep.subr.mxu0 0.0
    %1404 = vmatpush1.msra.mxu0 0.0
    %1405 = vmatprep.subr.mxu0 0.0
    %1406 = vmatpush1.msra.mxu0 0.0
    %1407 = vmatprep.subr.mxu0 0.0
    %1408 = vmatpush1.msra.mxu0 0.0
    %1409 = vmatprep.subr.mxu0 0.0
    %1410 = vmatpush1.msra.mxu0 0.0
    %1411 = vmatprep.subr.mxu0 0.0
    %1412 = vmatpush1.msra.mxu0 0.0
    %1413 = vmatprep.subr.mxu0 0.0
    %1414 = vmatpush1.msra.mxu0 0.0
    %1415 = vmatprep.subr.mxu0 0.0
    %1416 = vmatpush1.msra.mxu0 0.0
    %1417 = vmatprep.subr.mxu0 0.0
    %1418 = vmatpush1.msra.mxu0 0.0
    %1419 = vmatprep.subr.mxu0 0.0
    %v1420 = vand.u32 %v1319, 4294901760
    %v1421 = vsub.f32 %v1319, %v1420
    %v1422 = vand.u32 %v1421, 4294901760
    %v1423 = vsub.f32 %v1421, %v1422
    %v1424 = vand.u32 %v1423, 4294901760
    %1425 = vmatpush1.msra.mxu0 %v1424
    %1426 = vmatprep.subr.mxu0 0.0
    %v1427 = vand.u32 %v1318, 4294901760
    %v1428 = vsub.f32 %v1318, %v1427
    %v1429 = vand.u32 %v1428, 4294901760
    %v1430 = vsub.f32 %v1428, %v1429
    %v1431 = vand.u32 %v1430, 4294901760
    %1432 = vmatpush1.msra.mxu0 %v1431
    %1433 = vmatprep.subr.mxu0 0.0
    %v1434 = vand.u32 %v1317, 4294901760
    %v1435 = vsub.f32 %v1317, %v1434
    %v1436 = vand.u32 %v1435, 4294901760
    %v1437 = vsub.f32 %v1435, %v1436
    %v1438 = vand.u32 %v1437, 4294901760
    %1439 = vmatpush1.msra.mxu0 %v1438
    %1440 = vmatprep.subr.mxu0 0.0
    %v1441 = vand.u32 %v1316, 4294901760
    %v1442 = vsub.f32 %v1316, %v1441
    %v1443 = vand.u32 %v1442, 4294901760
    %v1444 = vsub.f32 %v1442, %v1443
    %v1445 = vand.u32 %v1444, 4294901760
    %1446 = vmatpush1.msra.mxu0 %v1445
    %1447 = vmatprep.subr.mxu0 0.0
    %v1448 = vand.u32 %v1315, 4294901760
    %v1449 = vsub.f32 %v1315, %v1448
    %v1450 = vand.u32 %v1449, 4294901760
    %v1451 = vsub.f32 %v1449, %v1450
    %v1452 = vand.u32 %v1451, 4294901760
    %1453 = vmatpush1.msra.mxu0 %v1452
    %1454 = vmatprep.subr.mxu0 0.0
    %v1455 = vand.u32 %v1314, 4294901760
    %v1456 = vsub.f32 %v1314, %v1455
    %v1457 = vand.u32 %v1456, 4294901760
    %v1458 = vsub.f32 %v1456, %v1457
    %v1459 = vand.u32 %v1458, 4294901760
    %1460 = vmatpush1.msra.mxu0 %v1459
    %1461 = vmatprep.subr.mxu0 0.0
    %v1462 = vand.u32 %v1313, 4294901760
    %v1463 = vsub.f32 %v1313, %v1462
    %v1464 = vand.u32 %v1463, 4294901760
    %v1465 = vsub.f32 %v1463, %v1464
    %v1466 = vand.u32 %v1465, 4294901760
    %1467 = vmatpush1.msra.mxu0 %v1466
    %1468 = vmatprep.subr.mxu0 0.0
    %v1469 = vand.u32 %v1312, 4294901760
    %v1470 = vsub.f32 %v1312, %v1469
    %v1471 = vand.u32 %v1470, 4294901760
    %v1472 = vsub.f32 %v1470, %v1471
    %v1473 = vand.u32 %v1472, 4294901760
    %1474 = vmatpush1.msra.mxu0 %v1473
    %1475 = vmatprep.subr.mxu0 0.0
    %1476 = vmatpush2.msra.mxu0 0.0
    %1477 = vmatprep.subr.mxu0 0.0
    %1478 = vmatpush2.msra.mxu0 0.0
    %1479 = vmatprep.subr.mxu0 0.0
    %1480 = vmatpush2.msra.mxu0 0.0
    %1481 = vmatprep.subr.mxu0 0.0
    %1482 = vmatpush2.msra.mxu0 0.0
    %1483 = vmatprep.subr.mxu0 0.0
    %1484 = vmatpush2.msra.mxu0 0.0
    %1485 = vmatprep.subr.mxu0 0.0
    %1486 = vmatpush2.msra.mxu0 0.0
    %1487 = vmatprep.subr.mxu0 0.0
    %1488 = vmatpush2.msra.mxu0 0.0
    %1489 = vmatprep.subr.mxu0 0.0
    %1490 = vmatpush2.msra.mxu0 0.0
    %1491 = vmatprep.subr.mxu0 0.0
    %1492 = vmatpush2.msra.mxu0 0.0
    %1493 = vmatprep.subr.mxu0 0.0
    %1494 = vmatpush2.msra.mxu0 0.0
    %1495 = vmatprep.subr.mxu0 0.0
    %1496 = vmatpush2.msra.mxu0 0.0
    %1497 = vmatprep.subr.mxu0 0.0
    %1498 = vmatpush2.msra.mxu0 0.0
    %1499 = vmatprep.subr.mxu0 0.0
    %1500 = vmatpush2.msra.mxu0 0.0
    %1501 = vmatprep.subr.mxu0 0.0
    %1502 = vmatpush2.msra.mxu0 0.0
    %1503 = vmatprep.subr.mxu0 0.0
    %1504 = vmatpush2.msra.mxu0 0.0
    %1505 = vmatprep.subr.mxu0 0.0
    %1506 = vmatpush2.msra.mxu0 0.0
    %1507 = vmatprep.mubr.f32.mxu0 0.0
    %v1508 = vand.u32 %v180, 4294901760
    %1509 = vmatmul.mubr.f32.gmra.mxu0 %v1508
    %v1510 = vpop.f32.mrf.mxu0
    %v1511 = vadd.f32 %v1400, %v1510
    %v1512 = vpop.f32.mrf.mxu0
    %1513 = vdwg.mxu0
    %1514 = vmatprep.subr.mxu0 0.0
    %1515 = vmatpush1.msra.mxu0 0.0
    %1516 = vmatprep.subr.mxu0 0.0
    %1517 = vmatpush1.msra.mxu0 0.0
    %1518 = vmatprep.subr.mxu0 0.0
    %1519 = vmatpush1.msra.mxu0 0.0
    %1520 = vmatprep.subr.mxu0 0.0
    %1521 = vmatpush1.msra.mxu0 0.0
    %1522 = vmatprep.subr.mxu0 0.0
    %1523 = vmatpush1.msra.mxu0 0.0
    %1524 = vmatprep.subr.mxu0 0.0
    %1525 = vmatpush1.msra.mxu0 0.0
    %1526 = vmatprep.subr.mxu0 0.0
    %1527 = vmatpush1.msra.mxu0 0.0
    %1528 = vmatprep.subr.mxu0 0.0
    %1529 = vmatpush1.msra.mxu0 0.0
    %1530 = vmatprep.subr.mxu0 0.0
    %v1531 = vand.u32 %v1319, 4294901760
    %v1532 = vsub.f32 %v1319, %v1531
    %1533 = vmatpush1.msra.mxu0 %v1532
    %1534 = vmatprep.subr.mxu0 0.0
    %v1535 = vand.u32 %v1318, 4294901760
    %v1536 = vsub.f32 %v1318, %v1535
    %1537 = vmatpush1.msra.mxu0 %v1536
    %1538 = vmatprep.subr.mxu0 0.0
    %v1539 = vand.u32 %v1317, 4294901760
    %v1540 = vsub.f32 %v1317, %v1539
    %1541 = vmatpush1.msra.mxu0 %v1540
    %1542 = vmatprep.subr.mxu0 0.0
    %v1543 = vand.u32 %v1316, 4294901760
    %v1544 = vsub.f32 %v1316, %v1543
    %1545 = vmatpush1.msra.mxu0 %v1544
    %1546 = vmatprep.subr.mxu0 0.0
    %v1547 = vand.u32 %v1315, 4294901760
    %v1548 = vsub.f32 %v1315, %v1547
    %1549 = vmatpush1.msra.mxu0 %v1548
    %1550 = vmatprep.subr.mxu0 0.0
    %v1551 = vand.u32 %v1314, 4294901760
    %v1552 = vsub.f32 %v1314, %v1551
    %1553 = vmatpush1.msra.mxu0 %v1552
    %1554 = vmatprep.subr.mxu0 0.0
    %v1555 = vand.u32 %v1313, 4294901760
    %v1556 = vsub.f32 %v1313, %v1555
    %1557 = vmatpush1.msra.mxu0 %v1556
    %1558 = vmatprep.subr.mxu0 0.0
    %v1559 = vand.u32 %v1312, 4294901760
    %v1560 = vsub.f32 %v1312, %v1559
    %1561 = vmatpush1.msra.mxu0 %v1560
    %1562 = vmatprep.subr.mxu0 0.0
    %1563 = vmatpush2.msra.mxu0 0.0
    %1564 = vmatprep.subr.mxu0 0.0
    %1565 = vmatpush2.msra.mxu0 0.0
    %1566 = vmatprep.subr.mxu0 0.0
    %1567 = vmatpush2.msra.mxu0 0.0
    %1568 = vmatprep.subr.mxu0 0.0
    %1569 = vmatpush2.msra.mxu0 0.0
    %1570 = vmatprep.subr.mxu0 0.0
    %1571 = vmatpush2.msra.mxu0 0.0
    %1572 = vmatprep.subr.mxu0 0.0
    %1573 = vmatpush2.msra.mxu0 0.0
    %1574 = vmatprep.subr.mxu0 0.0
    %1575 = vmatpush2.msra.mxu0 0.0
    %1576 = vmatprep.subr.mxu0 0.0
    %1577 = vmatpush2.msra.mxu0 0.0
    %1578 = vmatprep.subr.mxu0 0.0
    %1579 = vmatpush2.msra.mxu0 0.0
    %1580 = vmatprep.subr.mxu0 0.0
    %1581 = vmatpush2.msra.mxu0 0.0
    %1582 = vmatprep.subr.mxu0 0.0
    %1583 = vmatpush2.msra.mxu0 0.0
    %1584 = vmatprep.subr.mxu0 0.0
    %1585 = vmatpush2.msra.mxu0 0.0
    %1586 = vmatprep.subr.mxu0 0.0
    %1587 = vmatpush2.msra.mxu0 0.0
    %1588 = vmatprep.subr.mxu0 0.0
    %1589 = vmatpush2.msra.mxu0 0.0
    %1590 = vmatprep.subr.mxu0 0.0
    %1591 = vmatpush2.msra.mxu0 0.0
    %1592 = vmatprep.subr.mxu0 0.0
    %1593 = vmatpush2.msra.mxu0 0.0
    %1594 = vmatprep.mubr.f32.mxu0 0.0
    %v1595 = vand.u32 %v180, 4294901760
    %v1596 = vsub.f32 %v180, %v1595
    %1597 = vmatmul.mubr.f32.gmra.mxu0 %v1596
    %v1598 = vpop.f32.mrf.mxu0
    %v1599 = vadd.f32 %v1511, %v1598
    %v1600 = vpop.f32.mrf.mxu0
    %1601 = vdwg.mxu0
    %1602 = vmatprep.subr.mxu0 0.0
    %1603 = vmatpush1.msra.mxu0 0.0
    %1604 = vmatprep.subr.mxu0 0.0
    %1605 = vmatpush1.msra.mxu0 0.0
    %1606 = vmatprep.subr.mxu0 0.0
    %1607 = vmatpush1.msra.mxu0 0.0
    %1608 = vmatprep.subr.mxu0 0.0
    %1609 = vmatpush1.msra.mxu0 0.0
    %1610 = vmatprep.subr.mxu0 0.0
    %1611 = vmatpush1.msra.mxu0 0.0
    %1612 = vmatprep.subr.mxu0 0.0
    %1613 = vmatpush1.msra.mxu0 0.0
    %1614 = vmatprep.subr.mxu0 0.0
    %1615 = vmatpush1.msra.mxu0 0.0
    %1616 = vmatprep.subr.mxu0 0.0
    %1617 = vmatpush1.msra.mxu0 0.0
    %1618 = vmatprep.subr.mxu0 0.0
    %v1619 = vand.u32 %v1319, 4294901760
    %1620 = vmatpush1.msra.mxu0 %v1619
    %1621 = vmatprep.subr.mxu0 0.0
    %v1622 = vand.u32 %v1318, 4294901760
    %1623 = vmatpush1.msra.mxu0 %v1622
    %1624 = vmatprep.subr.mxu0 0.0
    %v1625 = vand.u32 %v1317, 4294901760
    %1626 = vmatpush1.msra.mxu0 %v1625
    %1627 = vmatprep.subr.mxu0 0.0
    %v1628 = vand.u32 %v1316, 4294901760
    %1629 = vmatpush1.msra.mxu0 %v1628
    %1630 = vmatprep.subr.mxu0 0.0
    %v1631 = vand.u32 %v1315, 4294901760
    %1632 = vmatpush1.msra.mxu0 %v1631
    %1633 = vmatprep.subr.mxu0 0.0
    %v1634 = vand.u32 %v1314, 4294901760
    %1635 = vmatpush1.msra.mxu0 %v1634
    %1636 = vmatprep.subr.mxu0 0.0
    %v1637 = vand.u32 %v1313, 4294901760
    %1638 = vmatpush1.msra.mxu0 %v1637
    %1639 = vmatprep.subr.mxu0 0.0
    %v1640 = vand.u32 %v1312, 4294901760
    %1641 = vmatpush1.msra.mxu0 %v1640
    %1642 = vmatprep.subr.mxu0 0.0
    %1643 = vmatpush2.msra.mxu0 0.0
    %1644 = vmatprep.subr.mxu0 0.0
    %1645 = vmatpush2.msra.mxu0 0.0
    %1646 = vmatprep.subr.mxu0 0.0
    %1647 = vmatpush2.msra.mxu0 0.0
    %1648 = vmatprep.subr.mxu0 0.0
    %1649 = vmatpush2.msra.mxu0 0.0
    %1650 = vmatprep.subr.mxu0 0.0
    %1651 = vmatpush2.msra.mxu0 0.0
    %1652 = vmatprep.subr.mxu0 0.0
    %1653 = vmatpush2.msra.mxu0 0.0
    %1654 = vmatprep.subr.mxu0 0.0
    %1655 = vmatpush2.msra.mxu0 0.0
    %1656 = vmatprep.subr.mxu0 0.0
    %1657 = vmatpush2.msra.mxu0 0.0
    %1658 = vmatprep.subr.mxu0 0.0
    %1659 = vmatpush2.msra.mxu0 0.0
    %1660 = vmatprep.subr.mxu0 0.0
    %1661 = vmatpush2.msra.mxu0 0.0
    %1662 = vmatprep.subr.mxu0 0.0
    %1663 = vmatpush2.msra.mxu0 0.0
    %1664 = vmatprep.subr.mxu0 0.0
    %1665 = vmatpush2.msra.mxu0 0.0
    %1666 = vmatprep.subr.mxu0 0.0
    %1667 = vmatpush2.msra.mxu0 0.0
    %1668 = vmatprep.subr.mxu0 0.0
    %1669 = vmatpush2.msra.mxu0 0.0
    %1670 = vmatprep.subr.mxu0 0.0
    %1671 = vmatpush2.msra.mxu0 0.0
    %1672 = vmatprep.subr.mxu0 0.0
    %1673 = vmatpush2.msra.mxu0 0.0
    %1674 = vmatprep.mubr.f32.mxu0 0.0
    %v1675 = vand.u32 %v180, 4294901760
    %v1676 = vsub.f32 %v180, %v1675
    %v1677 = vand.u32 %v1676, 4294901760
    %1678 = vmatmul.mubr.f32.gmra.mxu0 %v1677
    %v1679 = vpop.f32.mrf.mxu0
    %v1680 = vadd.f32 %v1599, %v1679
    %v1681 = vpop.f32.mrf.mxu0
    %1682 = vdwg.mxu0
    %1683 = vmatprep.subr.mxu0 0.0
    %1684 = vmatpush1.msra.mxu0 0.0
    %1685 = vmatprep.subr.mxu0 0.0
    %1686 = vmatpush1.msra.mxu0 0.0
    %1687 = vmatprep.subr.mxu0 0.0
    %1688 = vmatpush1.msra.mxu0 0.0
    %1689 = vmatprep.subr.mxu0 0.0
    %1690 = vmatpush1.msra.mxu0 0.0
    %1691 = vmatprep.subr.mxu0 0.0
    %1692 = vmatpush1.msra.mxu0 0.0
    %1693 = vmatprep.subr.mxu0 0.0
    %1694 = vmatpush1.msra.mxu0 0.0
    %1695 = vmatprep.subr.mxu0 0.0
    %1696 = vmatpush1.msra.mxu0 0.0
    %1697 = vmatprep.subr.mxu0 0.0
    %1698 = vmatpush1.msra.mxu0 0.0
    %1699 = vmatprep.subr.mxu0 0.0
    %v1700 = vand.u32 %v1319, 4294901760
    %v1701 = vsub.f32 %v1319, %v1700
    %v1702 = vand.u32 %v1701, 4294901760
    %1703 = vmatpush1.msra.mxu0 %v1702
    %1704 = vmatprep.subr.mxu0 0.0
    %v1705 = vand.u32 %v1318, 4294901760
    %v1706 = vsub.f32 %v1318, %v1705
    %v1707 = vand.u32 %v1706, 4294901760
    %1708 = vmatpush1.msra.mxu0 %v1707
    %1709 = vmatprep.subr.mxu0 0.0
    %v1710 = vand.u32 %v1317, 4294901760
    %v1711 = vsub.f32 %v1317, %v1710
    %v1712 = vand.u32 %v1711, 4294901760
    %1713 = vmatpush1.msra.mxu0 %v1712
    %1714 = vmatprep.subr.mxu0 0.0
    %v1715 = vand.u32 %v1316, 4294901760
    %v1716 = vsub.f32 %v1316, %v1715
    %v1717 = vand.u32 %v1716, 4294901760
    %1718 = vmatpush1.msra.mxu0 %v1717
    %1719 = vmatprep.subr.mxu0 0.0
    %v1720 = vand.u32 %v1315, 4294901760
    %v1721 = vsub.f32 %v1315, %v1720
    %v1722 = vand.u32 %v1721, 4294901760
    %1723 = vmatpush1.msra.mxu0 %v1722
    %1724 = vmatprep.subr.mxu0 0.0
    %v1725 = vand.u32 %v1314, 4294901760
    %v1726 = vsub.f32 %v1314, %v1725
    %v1727 = vand.u32 %v1726, 4294901760
    %1728 = vmatpush1.msra.mxu0 %v1727
    %1729 = vmatprep.subr.mxu0 0.0
    %v1730 = vand.u32 %v1313, 4294901760
    %v1731 = vsub.f32 %v1313, %v1730
    %v1732 = vand.u32 %v1731, 4294901760
    %1733 = vmatpush1.msra.mxu0 %v1732
    %1734 = vmatprep.subr.mxu0 0.0
    %v1735 = vand.u32 %v1312, 4294901760
    %v1736 = vsub.f32 %v1312, %v1735
    %v1737 = vand.u32 %v1736, 4294901760
    %1738 = vmatpush1.msra.mxu0 %v1737
    %1739 = vmatprep.subr.mxu0 0.0
    %1740 = vmatpush2.msra.mxu0 0.0
    %1741 = vmatprep.subr.mxu0 0.0
    %1742 = vmatpush2.msra.mxu0 0.0
    %1743 = vmatprep.subr.mxu0 0.0
    %1744 = vmatpush2.msra.mxu0 0.0
    %1745 = vmatprep.subr.mxu0 0.0
    %1746 = vmatpush2.msra.mxu0 0.0
    %1747 = vmatprep.subr.mxu0 0.0
    %1748 = vmatpush2.msra.mxu0 0.0
    %1749 = vmatprep.subr.mxu0 0.0
    %1750 = vmatpush2.msra.mxu0 0.0
    %1751 = vmatprep.subr.mxu0 0.0
    %1752 = vmatpush2.msra.mxu0 0.0
    %1753 = vmatprep.subr.mxu0 0.0
    %1754 = vmatpush2.msra.mxu0 0.0
    %1755 = vmatprep.subr.mxu0 0.0
    %1756 = vmatpush2.msra.mxu0 0.0
    %1757 = vmatprep.subr.mxu0 0.0
    %1758 = vmatpush2.msra.mxu0 0.0
    %1759 = vmatprep.subr.mxu0 0.0
    %1760 = vmatpush2.msra.mxu0 0.0
    %1761 = vmatprep.subr.mxu0 0.0
    %1762 = vmatpush2.msra.mxu0 0.0
    %1763 = vmatprep.subr.mxu0 0.0
    %1764 = vmatpush2.msra.mxu0 0.0
    %1765 = vmatprep.subr.mxu0 0.0
    %1766 = vmatpush2.msra.mxu0 0.0
    %1767 = vmatprep.subr.mxu0 0.0
    %1768 = vmatpush2.msra.mxu0 0.0
    %1769 = vmatprep.subr.mxu0 0.0
    %1770 = vmatpush2.msra.mxu0 0.0
    %1771 = vmatprep.mubr.f32.mxu0 0.0
    %v1772 = vand.u32 %v180, 4294901760
    %1773 = vmatmul.mubr.f32.gmra.mxu0 %v1772
    %v1774 = vpop.f32.mrf.mxu0
    %v1775 = vadd.f32 %v1680, %v1774
    %v1776 = vpop.f32.mrf.mxu0
    %1777 = vdwg.mxu0
    %1778 = vmatprep.subr.mxu0 0.0
    %1779 = vmatpush1.msra.mxu0 0.0
    %1780 = vmatprep.subr.mxu0 0.0
    %1781 = vmatpush1.msra.mxu0 0.0
    %1782 = vmatprep.subr.mxu0 0.0
    %1783 = vmatpush1.msra.mxu0 0.0
    %1784 = vmatprep.subr.mxu0 0.0
    %1785 = vmatpush1.msra.mxu0 0.0
    %1786 = vmatprep.subr.mxu0 0.0
    %1787 = vmatpush1.msra.mxu0 0.0
    %1788 = vmatprep.subr.mxu0 0.0
    %1789 = vmatpush1.msra.mxu0 0.0
    %1790 = vmatprep.subr.mxu0 0.0
    %1791 = vmatpush1.msra.mxu0 0.0
    %1792 = vmatprep.subr.mxu0 0.0
    %1793 = vmatpush1.msra.mxu0 0.0
    %1794 = vmatprep.subr.mxu0 0.0
    %v1795 = vand.u32 %v1319, 4294901760
    %1796 = vmatpush1.msra.mxu0 %v1795
    %1797 = vmatprep.subr.mxu0 0.0
    %v1798 = vand.u32 %v1318, 4294901760
    %1799 = vmatpush1.msra.mxu0 %v1798
    %1800 = vmatprep.subr.mxu0 0.0
    %v1801 = vand.u32 %v1317, 4294901760
    %1802 = vmatpush1.msra.mxu0 %v1801
    %1803 = vmatprep.subr.mxu0 0.0
    %v1804 = vand.u32 %v1316, 4294901760
    %1805 = vmatpush1.msra.mxu0 %v1804
    %1806 = vmatprep.subr.mxu0 0.0
    %v1807 = vand.u32 %v1315, 4294901760
    %1808 = vmatpush1.msra.mxu0 %v1807
    %1809 = vmatprep.subr.mxu0 0.0
    %v1810 = vand.u32 %v1314, 4294901760
    %1811 = vmatpush1.msra.mxu0 %v1810
    %1812 = vmatprep.subr.mxu0 0.0
    %v1813 = vand.u32 %v1313, 4294901760
    %1814 = vmatpush1.msra.mxu0 %v1813
    %1815 = vmatprep.subr.mxu0 0.0
    %v1816 = vand.u32 %v1312, 4294901760
    %1817 = vmatpush1.msra.mxu0 %v1816
    %1818 = vmatprep.subr.mxu0 0.0
    %1819 = vmatpush2.msra.mxu0 0.0
    %1820 = vmatprep.subr.mxu0 0.0
    %1821 = vmatpush2.msra.mxu0 0.0
    %1822 = vmatprep.subr.mxu0 0.0
    %1823 = vmatpush2.msra.mxu0 0.0
    %1824 = vmatprep.subr.mxu0 0.0
    %1825 = vmatpush2.msra.mxu0 0.0
    %1826 = vmatprep.subr.mxu0 0.0
    %1827 = vmatpush2.msra.mxu0 0.0
    %1828 = vmatprep.subr.mxu0 0.0
    %1829 = vmatpush2.msra.mxu0 0.0
    %1830 = vmatprep.subr.mxu0 0.0
    %1831 = vmatpush2.msra.mxu0 0.0
    %1832 = vmatprep.subr.mxu0 0.0
    %1833 = vmatpush2.msra.mxu0 0.0
    %1834 = vmatprep.subr.mxu0 0.0
    %1835 = vmatpush2.msra.mxu0 0.0
    %1836 = vmatprep.subr.mxu0 0.0
    %1837 = vmatpush2.msra.mxu0 0.0
    %1838 = vmatprep.subr.mxu0 0.0
    %1839 = vmatpush2.msra.mxu0 0.0
    %1840 = vmatprep.subr.mxu0 0.0
    %1841 = vmatpush2.msra.mxu0 0.0
    %1842 = vmatprep.subr.mxu0 0.0
    %1843 = vmatpush2.msra.mxu0 0.0
    %1844 = vmatprep.subr.mxu0 0.0
    %1845 = vmatpush2.msra.mxu0 0.0
    %1846 = vmatprep.subr.mxu0 0.0
    %1847 = vmatpush2.msra.mxu0 0.0
    %1848 = vmatprep.subr.mxu0 0.0
    %1849 = vmatpush2.msra.mxu0 0.0
    %1850 = vmatprep.mubr.f32.mxu0 0.0
    %v1851 = vand.u32 %v180, 4294901760
    %1852 = vmatmul.mubr.f32.gmra.mxu0 %v1851
    %v1853 = vpop.f32.mrf.mxu0
    %v1854 = vadd.f32 %v1775, %v1853
    %v1855 = vpop.f32.mrf.mxu0
    %1856 = vdwg.mxu0
    %v1857 = vsub.f32 %v114, 3.0
    %v1858 = vsub.f32 %v115, 3.0
    %v1859 = vsub.f32 %v116, 3.0
    %v1860 = vsub.f32 %v117, 3.0
    %v1861 = vsub.f32 %v118, 3.0
    %v1862 = vsub.f32 %v119, 3.0
    %v1863 = vsub.f32 %v120, 3.0
    %v1864 = vsub.f32 %v121, 3.0
    %v1865 = vand.u32 2147483647, %v1857
    %v1866 = vand.u32 2147483647, %v1858
    %v1867 = vand.u32 2147483647, %v1859
    %v1868 = vand.u32 2147483647, %v1860
    %v1869 = vand.u32 2147483647, %v1861
    %v1870 = vand.u32 2147483647, %v1862
    %v1871 = vand.u32 2147483647, %v1863
    %v1872 = vand.u32 2147483647, %v1864
    %v1873 = vsub.f32 %v146, %v1865
    %v1874 = vsub.f32 %v147, %v1866
    %v1875 = vsub.f32 %v148, %v1867
    %v1876 = vsub.f32 %v149, %v1868
    %v1877 = vsub.f32 %v150, %v1869
    %v1878 = vsub.f32 %v151, %v1870
    %v1879 = vsub.f32 %v152, %v1871
    %v1880 = vsub.f32 %v153, %v1872
    %v1881 = vmax.f32 %v1873, 0.0
    %v1882 = vmax.f32 %v1874, 0.0
    %v1883 = vmax.f32 %v1875, 0.0
    %v1884 = vmax.f32 %v1876, 0.0
    %v1885 = vmax.f32 %v1877, 0.0
    %v1886 = vmax.f32 %v1878, 0.0
    %v1887 = vmax.f32 %v1879, 0.0
    %v1888 = vmax.f32 %v1880, 0.0
    %1889 = vmatprep.subr.mxu0 0.0
    %1890 = vmatpush1.msra.mxu0 0.0
    %1891 = vmatprep.subr.mxu0 0.0
    %1892 = vmatpush1.msra.mxu0 0.0
    %1893 = vmatprep.subr.mxu0 0.0
    %1894 = vmatpush1.msra.mxu0 0.0
    %1895 = vmatprep.subr.mxu0 0.0
    %1896 = vmatpush1.msra.mxu0 0.0
    %1897 = vmatprep.subr.mxu0 0.0
    %1898 = vmatpush1.msra.mxu0 0.0
    %1899 = vmatprep.subr.mxu0 0.0
    %1900 = vmatpush1.msra.mxu0 0.0
    %1901 = vmatprep.subr.mxu0 0.0
    %1902 = vmatpush1.msra.mxu0 0.0
    %1903 = vmatprep.subr.mxu0 0.0
    %1904 = vmatpush1.msra.mxu0 0.0
    %1905 = vmatprep.subr.mxu0 0.0
    %v1906 = vand.u32 %v1888, 4294901760
    %1907 = vmatpush1.msra.mxu0 %v1906
    %1908 = vmatprep.subr.mxu0 0.0
    %v1909 = vand.u32 %v1887, 4294901760
    %1910 = vmatpush1.msra.mxu0 %v1909
    %1911 = vmatprep.subr.mxu0 0.0
    %v1912 = vand.u32 %v1886, 4294901760
    %1913 = vmatpush1.msra.mxu0 %v1912
    %1914 = vmatprep.subr.mxu0 0.0
    %v1915 = vand.u32 %v1885, 4294901760
    %1916 = vmatpush1.msra.mxu0 %v1915
    %1917 = vmatprep.subr.mxu0 0.0
    %v1918 = vand.u32 %v1884, 4294901760
    %1919 = vmatpush1.msra.mxu0 %v1918
    %1920 = vmatprep.subr.mxu0 0.0
    %v1921 = vand.u32 %v1883, 4294901760
    %1922 = vmatpush1.msra.mxu0 %v1921
    %1923 = vmatprep.subr.mxu0 0.0
    %v1924 = vand.u32 %v1882, 4294901760
    %1925 = vmatpush1.msra.mxu0 %v1924
    %1926 = vmatprep.subr.mxu0 0.0
    %v1927 = vand.u32 %v1881, 4294901760
    %1928 = vmatpush1.msra.mxu0 %v1927
    %1929 = vmatprep.subr.mxu0 0.0
    %1930 = vmatpush2.msra.mxu0 0.0
    %1931 = vmatprep.subr.mxu0 0.0
    %1932 = vmatpush2.msra.mxu0 0.0
    %1933 = vmatprep.subr.mxu0 0.0
    %1934 = vmatpush2.msra.mxu0 0.0
    %1935 = vmatprep.subr.mxu0 0.0
    %1936 = vmatpush2.msra.mxu0 0.0
    %1937 = vmatprep.subr.mxu0 0.0
    %1938 = vmatpush2.msra.mxu0 0.0
    %1939 = vmatprep.subr.mxu0 0.0
    %1940 = vmatpush2.msra.mxu0 0.0
    %1941 = vmatprep.subr.mxu0 0.0
    %1942 = vmatpush2.msra.mxu0 0.0
    %1943 = vmatprep.subr.mxu0 0.0
    %1944 = vmatpush2.msra.mxu0 0.0
    %1945 = vmatprep.subr.mxu0 0.0
    %1946 = vmatpush2.msra.mxu0 0.0
    %1947 = vmatprep.subr.mxu0 0.0
    %1948 = vmatpush2.msra.mxu0 0.0
    %1949 = vmatprep.subr.mxu0 0.0
    %1950 = vmatpush2.msra.mxu0 0.0
    %1951 = vmatprep.subr.mxu0 0.0
    %1952 = vmatpush2.msra.mxu0 0.0
    %1953 = vmatprep.subr.mxu0 0.0
    %1954 = vmatpush2.msra.mxu0 0.0
    %1955 = vmatprep.subr.mxu0 0.0
    %1956 = vmatpush2.msra.mxu0 0.0
    %1957 = vmatprep.subr.mxu0 0.0
    %1958 = vmatpush2.msra.mxu0 0.0
    %1959 = vmatprep.subr.mxu0 0.0
    %1960 = vmatpush2.msra.mxu0 0.0
    %1961 = vmatprep.mubr.f32.mxu0 0.0
    %v1962 = vand.u32 %v180, 4294901760
    %v1963 = vsub.f32 %v180, %v1962
    %v1964 = vand.u32 %v1963, 4294901760
    %v1965 = vsub.f32 %v1963, %v1964
    %v1966 = vand.u32 %v1965, 4294901760
    %1967 = vmatmul.mubr.f32.gmra.mxu0 %v1966
    %v1968 = vpop.f32.mrf.mxu0
    %v1969 = vadd.f32 0.0, %v1968
    %v1970 = vpop.f32.mrf.mxu0
    %1971 = vdwg.mxu0
    %1972 = vmatprep.subr.mxu0 0.0
    %1973 = vmatpush1.msra.mxu0 0.0
    %1974 = vmatprep.subr.mxu0 0.0
    %1975 = vmatpush1.msra.mxu0 0.0
    %1976 = vmatprep.subr.mxu0 0.0
    %1977 = vmatpush1.msra.mxu0 0.0
    %1978 = vmatprep.subr.mxu0 0.0
    %1979 = vmatpush1.msra.mxu0 0.0
    %1980 = vmatprep.subr.mxu0 0.0
    %1981 = vmatpush1.msra.mxu0 0.0
    %1982 = vmatprep.subr.mxu0 0.0
    %1983 = vmatpush1.msra.mxu0 0.0
    %1984 = vmatprep.subr.mxu0 0.0
    %1985 = vmatpush1.msra.mxu0 0.0
    %1986 = vmatprep.subr.mxu0 0.0
    %1987 = vmatpush1.msra.mxu0 0.0
    %1988 = vmatprep.subr.mxu0 0.0
    %v1989 = vand.u32 %v1888, 4294901760
    %v1990 = vsub.f32 %v1888, %v1989
    %v1991 = vand.u32 %v1990, 4294901760
    %v1992 = vsub.f32 %v1990, %v1991
    %v1993 = vand.u32 %v1992, 4294901760
    %1994 = vmatpush1.msra.mxu0 %v1993
    %1995 = vmatprep.subr.mxu0 0.0
    %v1996 = vand.u32 %v1887, 4294901760
    %v1997 = vsub.f32 %v1887, %v1996
    %v1998 = vand.u32 %v1997, 4294901760
    %v1999 = vsub.f32 %v1997, %v1998
    %v2000 = vand.u32 %v1999, 4294901760
    %2001 = vmatpush1.msra.mxu0 %v2000
    %2002 = vmatprep.subr.mxu0 0.0
    %v2003 = vand.u32 %v1886, 4294901760
    %v2004 = vsub.f32 %v1886, %v2003
    %v2005 = vand.u32 %v2004, 4294901760
    %v2006 = vsub.f32 %v2004, %v2005
    %v2007 = vand.u32 %v2006, 4294901760
    %2008 = vmatpush1.msra.mxu0 %v2007
    %2009 = vmatprep.subr.mxu0 0.0
    %v2010 = vand.u32 %v1885, 4294901760
    %v2011 = vsub.f32 %v1885, %v2010
    %v2012 = vand.u32 %v2011, 4294901760
    %v2013 = vsub.f32 %v2011, %v2012
    %v2014 = vand.u32 %v2013, 4294901760
    %2015 = vmatpush1.msra.mxu0 %v2014
    %2016 = vmatprep.subr.mxu0 0.0
    %v2017 = vand.u32 %v1884, 4294901760
    %v2018 = vsub.f32 %v1884, %v2017
    %v2019 = vand.u32 %v2018, 4294901760
    %v2020 = vsub.f32 %v2018, %v2019
    %v2021 = vand.u32 %v2020, 4294901760
    %2022 = vmatpush1.msra.mxu0 %v2021
    %2023 = vmatprep.subr.mxu0 0.0
    %v2024 = vand.u32 %v1883, 4294901760
    %v2025 = vsub.f32 %v1883, %v2024
    %v2026 = vand.u32 %v2025, 4294901760
    %v2027 = vsub.f32 %v2025, %v2026
    %v2028 = vand.u32 %v2027, 4294901760
    %2029 = vmatpush1.msra.mxu0 %v2028
    %2030 = vmatprep.subr.mxu0 0.0
    %v2031 = vand.u32 %v1882, 4294901760
    %v2032 = vsub.f32 %v1882, %v2031
    %v2033 = vand.u32 %v2032, 4294901760
    %v2034 = vsub.f32 %v2032, %v2033
    %v2035 = vand.u32 %v2034, 4294901760
    %2036 = vmatpush1.msra.mxu0 %v2035
    %2037 = vmatprep.subr.mxu0 0.0
    %v2038 = vand.u32 %v1881, 4294901760
    %v2039 = vsub.f32 %v1881, %v2038
    %v2040 = vand.u32 %v2039, 4294901760
    %v2041 = vsub.f32 %v2039, %v2040
    %v2042 = vand.u32 %v2041, 4294901760
    %2043 = vmatpush1.msra.mxu0 %v2042
    %2044 = vmatprep.subr.mxu0 0.0
    %2045 = vmatpush2.msra.mxu0 0.0
    %2046 = vmatprep.subr.mxu0 0.0
    %2047 = vmatpush2.msra.mxu0 0.0
    %2048 = vmatprep.subr.mxu0 0.0
    %2049 = vmatpush2.msra.mxu0 0.0
    %2050 = vmatprep.subr.mxu0 0.0
    %2051 = vmatpush2.msra.mxu0 0.0
    %2052 = vmatprep.subr.mxu0 0.0
    %2053 = vmatpush2.msra.mxu0 0.0
    %2054 = vmatprep.subr.mxu0 0.0
    %2055 = vmatpush2.msra.mxu0 0.0
    %2056 = vmatprep.subr.mxu0 0.0
    %2057 = vmatpush2.msra.mxu0 0.0
    %2058 = vmatprep.subr.mxu0 0.0
    %2059 = vmatpush2.msra.mxu0 0.0
    %2060 = vmatprep.subr.mxu0 0.0
    %2061 = vmatpush2.msra.mxu0 0.0
    %2062 = vmatprep.subr.mxu0 0.0
    %2063 = vmatpush2.msra.mxu0 0.0
    %2064 = vmatprep.subr.mxu0 0.0
    %2065 = vmatpush2.msra.mxu0 0.0
    %2066 = vmatprep.subr.mxu0 0.0
    %2067 = vmatpush2.msra.mxu0 0.0
    %2068 = vmatprep.subr.mxu0 0.0
    %2069 = vmatpush2.msra.mxu0 0.0
    %2070 = vmatprep.subr.mxu0 0.0
    %2071 = vmatpush2.msra.mxu0 0.0
    %2072 = vmatprep.subr.mxu0 0.0
    %2073 = vmatpush2.msra.mxu0 0.0
    %2074 = vmatprep.subr.mxu0 0.0
    %2075 = vmatpush2.msra.mxu0 0.0
    %2076 = vmatprep.mubr.f32.mxu0 0.0
    %v2077 = vand.u32 %v180, 4294901760
    %2078 = vmatmul.mubr.f32.gmra.mxu0 %v2077
    %v2079 = vpop.f32.mrf.mxu0
    %v2080 = vadd.f32 %v1969, %v2079
    %v2081 = vpop.f32.mrf.mxu0
    %2082 = vdwg.mxu0
    %2083 = vmatprep.subr.mxu0 0.0
    %2084 = vmatpush1.msra.mxu0 0.0
    %2085 = vmatprep.subr.mxu0 0.0
    %2086 = vmatpush1.msra.mxu0 0.0
    %2087 = vmatprep.subr.mxu0 0.0
    %2088 = vmatpush1.msra.mxu0 0.0
    %2089 = vmatprep.subr.mxu0 0.0
    %2090 = vmatpush1.msra.mxu0 0.0
    %2091 = vmatprep.subr.mxu0 0.0
    %2092 = vmatpush1.msra.mxu0 0.0
    %2093 = vmatprep.subr.mxu0 0.0
    %2094 = vmatpush1.msra.mxu0 0.0
    %2095 = vmatprep.subr.mxu0 0.0
    %2096 = vmatpush1.msra.mxu0 0.0
    %2097 = vmatprep.subr.mxu0 0.0
    %2098 = vmatpush1.msra.mxu0 0.0
    %2099 = vmatprep.subr.mxu0 0.0
    %v2100 = vand.u32 %v1888, 4294901760
    %v2101 = vsub.f32 %v1888, %v2100
    %2102 = vmatpush1.msra.mxu0 %v2101
    %2103 = vmatprep.subr.mxu0 0.0
    %v2104 = vand.u32 %v1887, 4294901760
    %v2105 = vsub.f32 %v1887, %v2104
    %2106 = vmatpush1.msra.mxu0 %v2105
    %2107 = vmatprep.subr.mxu0 0.0
    %v2108 = vand.u32 %v1886, 4294901760
    %v2109 = vsub.f32 %v1886, %v2108
    %2110 = vmatpush1.msra.mxu0 %v2109
    %2111 = vmatprep.subr.mxu0 0.0
    %v2112 = vand.u32 %v1885, 4294901760
    %v2113 = vsub.f32 %v1885, %v2112
    %2114 = vmatpush1.msra.mxu0 %v2113
    %2115 = vmatprep.subr.mxu0 0.0
    %v2116 = vand.u32 %v1884, 4294901760
    %v2117 = vsub.f32 %v1884, %v2116
    %2118 = vmatpush1.msra.mxu0 %v2117
    %2119 = vmatprep.subr.mxu0 0.0
    %v2120 = vand.u32 %v1883, 4294901760
    %v2121 = vsub.f32 %v1883, %v2120
    %2122 = vmatpush1.msra.mxu0 %v2121
    %2123 = vmatprep.subr.mxu0 0.0
    %v2124 = vand.u32 %v1882, 4294901760
    %v2125 = vsub.f32 %v1882, %v2124
    %2126 = vmatpush1.msra.mxu0 %v2125
    %2127 = vmatprep.subr.mxu0 0.0
    %v2128 = vand.u32 %v1881, 4294901760
    %v2129 = vsub.f32 %v1881, %v2128
    %2130 = vmatpush1.msra.mxu0 %v2129
    %2131 = vmatprep.subr.mxu0 0.0
    %2132 = vmatpush2.msra.mxu0 0.0
    %2133 = vmatprep.subr.mxu0 0.0
    %2134 = vmatpush2.msra.mxu0 0.0
    %2135 = vmatprep.subr.mxu0 0.0
    %2136 = vmatpush2.msra.mxu0 0.0
    %2137 = vmatprep.subr.mxu0 0.0
    %2138 = vmatpush2.msra.mxu0 0.0
    %2139 = vmatprep.subr.mxu0 0.0
    %2140 = vmatpush2.msra.mxu0 0.0
    %2141 = vmatprep.subr.mxu0 0.0
    %2142 = vmatpush2.msra.mxu0 0.0
    %2143 = vmatprep.subr.mxu0 0.0
    %2144 = vmatpush2.msra.mxu0 0.0
    %2145 = vmatprep.subr.mxu0 0.0
    %2146 = vmatpush2.msra.mxu0 0.0
    %2147 = vmatprep.subr.mxu0 0.0
    %2148 = vmatpush2.msra.mxu0 0.0
    %2149 = vmatprep.subr.mxu0 0.0
    %2150 = vmatpush2.msra.mxu0 0.0
    %2151 = vmatprep.subr.mxu0 0.0
    %2152 = vmatpush2.msra.mxu0 0.0
    %2153 = vmatprep.subr.mxu0 0.0
    %2154 = vmatpush2.msra.mxu0 0.0
    %2155 = vmatprep.subr.mxu0 0.0
    %2156 = vmatpush2.msra.mxu0 0.0
    %2157 = vmatprep.subr.mxu0 0.0
    %2158 = vmatpush2.msra.mxu0 0.0
    %2159 = vmatprep.subr.mxu0 0.0
    %2160 = vmatpush2.msra.mxu0 0.0
    %2161 = vmatprep.subr.mxu0 0.0
    %2162 = vmatpush2.msra.mxu0 0.0
    %2163 = vmatprep.mubr.f32.mxu0 0.0
    %v2164 = vand.u32 %v180, 4294901760
    %v2165 = vsub.f32 %v180, %v2164
    %2166 = vmatmul.mubr.f32.gmra.mxu0 %v2165
    %v2167 = vpop.f32.mrf.mxu0
    %v2168 = vadd.f32 %v2080, %v2167
    %v2169 = vpop.f32.mrf.mxu0
    %2170 = vdwg.mxu0
    %2171 = vmatprep.subr.mxu0 0.0
    %2172 = vmatpush1.msra.mxu0 0.0
    %2173 = vmatprep.subr.mxu0 0.0
    %2174 = vmatpush1.msra.mxu0 0.0
    %2175 = vmatprep.subr.mxu0 0.0
    %2176 = vmatpush1.msra.mxu0 0.0
    %2177 = vmatprep.subr.mxu0 0.0
    %2178 = vmatpush1.msra.mxu0 0.0
    %2179 = vmatprep.subr.mxu0 0.0
    %2180 = vmatpush1.msra.mxu0 0.0
    %2181 = vmatprep.subr.mxu0 0.0
    %2182 = vmatpush1.msra.mxu0 0.0
    %2183 = vmatprep.subr.mxu0 0.0
    %2184 = vmatpush1.msra.mxu0 0.0
    %2185 = vmatprep.subr.mxu0 0.0
    %2186 = vmatpush1.msra.mxu0 0.0
    %2187 = vmatprep.subr.mxu0 0.0
    %v2188 = vand.u32 %v1888, 4294901760
    %2189 = vmatpush1.msra.mxu0 %v2188
    %2190 = vmatprep.subr.mxu0 0.0
    %v2191 = vand.u32 %v1887, 4294901760
    %2192 = vmatpush1.msra.mxu0 %v2191
    %2193 = vmatprep.subr.mxu0 0.0
    %v2194 = vand.u32 %v1886, 4294901760
    %2195 = vmatpush1.msra.mxu0 %v2194
    %2196 = vmatprep.subr.mxu0 0.0
    %v2197 = vand.u32 %v1885, 4294901760
    %2198 = vmatpush1.msra.mxu0 %v2197
    %2199 = vmatprep.subr.mxu0 0.0
    %v2200 = vand.u32 %v1884, 4294901760
    %2201 = vmatpush1.msra.mxu0 %v2200
    %2202 = vmatprep.subr.mxu0 0.0
    %v2203 = vand.u32 %v1883, 4294901760
    %2204 = vmatpush1.msra.mxu0 %v2203
    %2205 = vmatprep.subr.mxu0 0.0
    %v2206 = vand.u32 %v1882, 4294901760
    %2207 = vmatpush1.msra.mxu0 %v2206
    %2208 = vmatprep.subr.mxu0 0.0
    %v2209 = vand.u32 %v1881, 4294901760
    %2210 = vmatpush1.msra.mxu0 %v2209
    %2211 = vmatprep.subr.mxu0 0.0
    %2212 = vmatpush2.msra.mxu0 0.0
    %2213 = vmatprep.subr.mxu0 0.0
    %2214 = vmatpush2.msra.mxu0 0.0
    %2215 = vmatprep.subr.mxu0 0.0
    %2216 = vmatpush2.msra.mxu0 0.0
    %2217 = vmatprep.subr.mxu0 0.0
    %2218 = vmatpush2.msra.mxu0 0.0
    %2219 = vmatprep.subr.mxu0 0.0
    %2220 = vmatpush2.msra.mxu0 0.0
    %2221 = vmatprep.subr.mxu0 0.0
    %2222 = vmatpush2.msra.mxu0 0.0
    %2223 = vmatprep.subr.mxu0 0.0
    %2224 = vmatpush2.msra.mxu0 0.0
    %2225 = vmatprep.subr.mxu0 0.0
    %2226 = vmatpush2.msra.mxu0 0.0
    %2227 = vmatprep.subr.mxu0 0.0
    %2228 = vmatpush2.msra.mxu0 0.0
    %2229 = vmatprep.subr.mxu0 0.0
    %2230 = vmatpush2.msra.mxu0 0.0
    %2231 = vmatprep.subr.mxu0 0.0
    %2232 = vmatpush2.msra.mxu0 0.0
    %2233 = vmatprep.subr.mxu0 0.0
    %2234 = vmatpush2.msra.mxu0 0.0
    %2235 = vmatprep.subr.mxu0 0.0
    %2236 = vmatpush2.msra.mxu0 0.0
    %2237 = vmatprep.subr.mxu0 0.0
    %2238 = vmatpush2.msra.mxu0 0.0
    %2239 = vmatprep.subr.mxu0 0.0
    %2240 = vmatpush2.msra.mxu0 0.0
    %2241 = vmatprep.subr.mxu0 0.0
    %2242 = vmatpush2.msra.mxu0 0.0
    %2243 = vmatprep.mubr.f32.mxu0 0.0
    %v2244 = vand.u32 %v180, 4294901760
    %v2245 = vsub.f32 %v180, %v2244
    %v2246 = vand.u32 %v2245, 4294901760
    %2247 = vmatmul.mubr.f32.gmra.mxu0 %v2246
    %v2248 = vpop.f32.mrf.mxu0
    %v2249 = vadd.f32 %v2168, %v2248
    %v2250 = vpop.f32.mrf.mxu0
    %2251 = vdwg.mxu0
    %2252 = vmatprep.subr.mxu0 0.0
    %2253 = vmatpush1.msra.mxu0 0.0
    %2254 = vmatprep.subr.mxu0 0.0
    %2255 = vmatpush1.msra.mxu0 0.0
    %2256 = vmatprep.subr.mxu0 0.0
    %2257 = vmatpush1.msra.mxu0 0.0
    %2258 = vmatprep.subr.mxu0 0.0
    %2259 = vmatpush1.msra.mxu0 0.0
    %2260 = vmatprep.subr.mxu0 0.0
    %2261 = vmatpush1.msra.mxu0 0.0
    %2262 = vmatprep.subr.mxu0 0.0
    %2263 = vmatpush1.msra.mxu0 0.0
    %2264 = vmatprep.subr.mxu0 0.0
    %2265 = vmatpush1.msra.mxu0 0.0
    %2266 = vmatprep.subr.mxu0 0.0
    %2267 = vmatpush1.msra.mxu0 0.0
    %2268 = vmatprep.subr.mxu0 0.0
    %v2269 = vand.u32 %v1888, 4294901760
    %v2270 = vsub.f32 %v1888, %v2269
    %v2271 = vand.u32 %v2270, 4294901760
    %2272 = vmatpush1.msra.mxu0 %v2271
    %2273 = vmatprep.subr.mxu0 0.0
    %v2274 = vand.u32 %v1887, 4294901760
    %v2275 = vsub.f32 %v1887, %v2274
    %v2276 = vand.u32 %v2275, 4294901760
    %2277 = vmatpush1.msra.mxu0 %v2276
    %2278 = vmatprep.subr.mxu0 0.0
    %v2279 = vand.u32 %v1886, 4294901760
    %v2280 = vsub.f32 %v1886, %v2279
    %v2281 = vand.u32 %v2280, 4294901760
    %2282 = vmatpush1.msra.mxu0 %v2281
    %2283 = vmatprep.subr.mxu0 0.0
    %v2284 = vand.u32 %v1885, 4294901760
    %v2285 = vsub.f32 %v1885, %v2284
    %v2286 = vand.u32 %v2285, 4294901760
    %2287 = vmatpush1.msra.mxu0 %v2286
    %2288 = vmatprep.subr.mxu0 0.0
    %v2289 = vand.u32 %v1884, 4294901760
    %v2290 = vsub.f32 %v1884, %v2289
    %v2291 = vand.u32 %v2290, 4294901760
    %2292 = vmatpush1.msra.mxu0 %v2291
    %2293 = vmatprep.subr.mxu0 0.0
    %v2294 = vand.u32 %v1883, 4294901760
    %v2295 = vsub.f32 %v1883, %v2294
    %v2296 = vand.u32 %v2295, 4294901760
    %2297 = vmatpush1.msra.mxu0 %v2296
    %2298 = vmatprep.subr.mxu0 0.0
    %v2299 = vand.u32 %v1882, 4294901760
    %v2300 = vsub.f32 %v1882, %v2299
    %v2301 = vand.u32 %v2300, 4294901760
    %2302 = vmatpush1.msra.mxu0 %v2301
    %2303 = vmatprep.subr.mxu0 0.0
    %v2304 = vand.u32 %v1881, 4294901760
    %v2305 = vsub.f32 %v1881, %v2304
    %v2306 = vand.u32 %v2305, 4294901760
    %2307 = vmatpush1.msra.mxu0 %v2306
    %2308 = vmatprep.subr.mxu0 0.0
    %2309 = vmatpush2.msra.mxu0 0.0
    %2310 = vmatprep.subr.mxu0 0.0
    %2311 = vmatpush2.msra.mxu0 0.0
    %2312 = vmatprep.subr.mxu0 0.0
    %2313 = vmatpush2.msra.mxu0 0.0
    %2314 = vmatprep.subr.mxu0 0.0
    %2315 = vmatpush2.msra.mxu0 0.0
    %2316 = vmatprep.subr.mxu0 0.0
    %2317 = vmatpush2.msra.mxu0 0.0
    %2318 = vmatprep.subr.mxu0 0.0
    %2319 = vmatpush2.msra.mxu0 0.0
    %2320 = vmatprep.subr.mxu0 0.0
    %2321 = vmatpush2.msra.mxu0 0.0
    %2322 = vmatprep.subr.mxu0 0.0
    %2323 = vmatpush2.msra.mxu0 0.0
    %2324 = vmatprep.subr.mxu0 0.0
    %2325 = vmatpush2.msra.mxu0 0.0
    %2326 = vmatprep.subr.mxu0 0.0
    %2327 = vmatpush2.msra.mxu0 0.0
    %2328 = vmatprep.subr.mxu0 0.0
    %2329 = vmatpush2.msra.mxu0 0.0
    %2330 = vmatprep.subr.mxu0 0.0
    %2331 = vmatpush2.msra.mxu0 0.0
    %2332 = vmatprep.subr.mxu0 0.0
    %2333 = vmatpush2.msra.mxu0 0.0
    %2334 = vmatprep.subr.mxu0 0.0
    %2335 = vmatpush2.msra.mxu0 0.0
    %2336 = vmatprep.subr.mxu0 0.0
    %2337 = vmatpush2.msra.mxu0 0.0
    %2338 = vmatprep.subr.mxu0 0.0
    %2339 = vmatpush2.msra.mxu0 0.0
    %2340 = vmatprep.mubr.f32.mxu0 0.0
    %v2341 = vand.u32 %v180, 4294901760
    %2342 = vmatmul.mubr.f32.gmra.mxu0 %v2341
    %v2343 = vpop.f32.mrf.mxu0
    %v2344 = vadd.f32 %v2249, %v2343
    %v2345 = vpop.f32.mrf.mxu0
    %2346 = vdwg.mxu0
    %2347 = vmatprep.subr.mxu0 0.0
    %2348 = vmatpush1.msra.mxu0 0.0
    %2349 = vmatprep.subr.mxu0 0.0
    %2350 = vmatpush1.msra.mxu0 0.0
    %2351 = vmatprep.subr.mxu0 0.0
    %2352 = vmatpush1.msra.mxu0 0.0
    %2353 = vmatprep.subr.mxu0 0.0
    %2354 = vmatpush1.msra.mxu0 0.0
    %2355 = vmatprep.subr.mxu0 0.0
    %2356 = vmatpush1.msra.mxu0 0.0
    %2357 = vmatprep.subr.mxu0 0.0
    %2358 = vmatpush1.msra.mxu0 0.0
    %2359 = vmatprep.subr.mxu0 0.0
    %2360 = vmatpush1.msra.mxu0 0.0
    %2361 = vmatprep.subr.mxu0 0.0
    %2362 = vmatpush1.msra.mxu0 0.0
    %2363 = vmatprep.subr.mxu0 0.0
    %v2364 = vand.u32 %v1888, 4294901760
    %2365 = vmatpush1.msra.mxu0 %v2364
    %2366 = vmatprep.subr.mxu0 0.0
    %v2367 = vand.u32 %v1887, 4294901760
    %2368 = vmatpush1.msra.mxu0 %v2367
    %2369 = vmatprep.subr.mxu0 0.0
    %v2370 = vand.u32 %v1886, 4294901760
    %2371 = vmatpush1.msra.mxu0 %v2370
    %2372 = vmatprep.subr.mxu0 0.0
    %v2373 = vand.u32 %v1885, 4294901760
    %2374 = vmatpush1.msra.mxu0 %v2373
    %2375 = vmatprep.subr.mxu0 0.0
    %v2376 = vand.u32 %v1884, 4294901760
    %2377 = vmatpush1.msra.mxu0 %v2376
    %2378 = vmatprep.subr.mxu0 0.0
    %v2379 = vand.u32 %v1883, 4294901760
    %2380 = vmatpush1.msra.mxu0 %v2379
    %2381 = vmatprep.subr.mxu0 0.0
    %v2382 = vand.u32 %v1882, 4294901760
    %2383 = vmatpush1.msra.mxu0 %v2382
    %2384 = vmatprep.subr.mxu0 0.0
    %v2385 = vand.u32 %v1881, 4294901760
    %2386 = vmatpush1.msra.mxu0 %v2385
    %2387 = vmatprep.subr.mxu0 0.0
    %2388 = vmatpush2.msra.mxu0 0.0
    %2389 = vmatprep.subr.mxu0 0.0
    %2390 = vmatpush2.msra.mxu0 0.0
    %2391 = vmatprep.subr.mxu0 0.0
    %2392 = vmatpush2.msra.mxu0 0.0
    %2393 = vmatprep.subr.mxu0 0.0
    %2394 = vmatpush2.msra.mxu0 0.0
    %2395 = vmatprep.subr.mxu0 0.0
    %2396 = vmatpush2.msra.mxu0 0.0
    %2397 = vmatprep.subr.mxu0 0.0
    %2398 = vmatpush2.msra.mxu0 0.0
    %2399 = vmatprep.subr.mxu0 0.0
    %2400 = vmatpush2.msra.mxu0 0.0
    %2401 = vmatprep.subr.mxu0 0.0
    %2402 = vmatpush2.msra.mxu0 0.0
    %2403 = vmatprep.subr.mxu0 0.0
    %2404 = vmatpush2.msra.mxu0 0.0
    %2405 = vmatprep.subr.mxu0 0.0
    %2406 = vmatpush2.msra.mxu0 0.0
    %2407 = vmatprep.subr.mxu0 0.0
    %2408 = vmatpush2.msra.mxu0 0.0
    %2409 = vmatprep.subr.mxu0 0.0
    %2410 = vmatpush2.msra.mxu0 0.0
    %2411 = vmatprep.subr.mxu0 0.0
    %2412 = vmatpush2.msra.mxu0 0.0
    %2413 = vmatprep.subr.mxu0 0.0
    %2414 = vmatpush2.msra.mxu0 0.0
    %2415 = vmatprep.subr.mxu0 0.0
    %2416 = vmatpush2.msra.mxu0 0.0
    %2417 = vmatprep.subr.mxu0 0.0
    %2418 = vmatpush2.msra.mxu0 0.0
    %2419 = vmatprep.mubr.f32.mxu0 0.0
    %v2420 = vand.u32 %v180, 4294901760
    %2421 = vmatmul.mubr.f32.gmra.mxu0 %v2420
    %v2422 = vpop.f32.mrf.mxu0
    %v2423 = vadd.f32 %v2344, %v2422
    %v2424 = vpop.f32.mrf.mxu0
    %2425 = vdwg.mxu0
    %v2426 = vsub.f32 %v114, 4.0
    %v2427 = vsub.f32 %v115, 4.0
    %v2428 = vsub.f32 %v116, 4.0
    %v2429 = vsub.f32 %v117, 4.0
    %v2430 = vsub.f32 %v118, 4.0
    %v2431 = vsub.f32 %v119, 4.0
    %v2432 = vsub.f32 %v120, 4.0
    %v2433 = vsub.f32 %v121, 4.0
    %v2434 = vand.u32 2147483647, %v2426
    %v2435 = vand.u32 2147483647, %v2427
    %v2436 = vand.u32 2147483647, %v2428
    %v2437 = vand.u32 2147483647, %v2429
    %v2438 = vand.u32 2147483647, %v2430
    %v2439 = vand.u32 2147483647, %v2431
    %v2440 = vand.u32 2147483647, %v2432
    %v2441 = vand.u32 2147483647, %v2433
    %v2442 = vsub.f32 %v146, %v2434
    %v2443 = vsub.f32 %v147, %v2435
    %v2444 = vsub.f32 %v148, %v2436
    %v2445 = vsub.f32 %v149, %v2437
    %v2446 = vsub.f32 %v150, %v2438
    %v2447 = vsub.f32 %v151, %v2439
    %v2448 = vsub.f32 %v152, %v2440
    %v2449 = vsub.f32 %v153, %v2441
    %v2450 = vmax.f32 %v2442, 0.0
    %v2451 = vmax.f32 %v2443, 0.0
    %v2452 = vmax.f32 %v2444, 0.0
    %v2453 = vmax.f32 %v2445, 0.0
    %v2454 = vmax.f32 %v2446, 0.0
    %v2455 = vmax.f32 %v2447, 0.0
    %v2456 = vmax.f32 %v2448, 0.0
    %v2457 = vmax.f32 %v2449, 0.0
    %2458 = vmatprep.subr.mxu0 0.0
    %2459 = vmatpush1.msra.mxu0 0.0
    %2460 = vmatprep.subr.mxu0 0.0
    %2461 = vmatpush1.msra.mxu0 0.0
    %2462 = vmatprep.subr.mxu0 0.0
    %2463 = vmatpush1.msra.mxu0 0.0
    %2464 = vmatprep.subr.mxu0 0.0
    %2465 = vmatpush1.msra.mxu0 0.0
    %2466 = vmatprep.subr.mxu0 0.0
    %2467 = vmatpush1.msra.mxu0 0.0
    %2468 = vmatprep.subr.mxu0 0.0
    %2469 = vmatpush1.msra.mxu0 0.0
    %2470 = vmatprep.subr.mxu0 0.0
    %2471 = vmatpush1.msra.mxu0 0.0
    %2472 = vmatprep.subr.mxu0 0.0
    %2473 = vmatpush1.msra.mxu0 0.0
    %2474 = vmatprep.subr.mxu0 0.0
    %v2475 = vand.u32 %v2457, 4294901760
    %2476 = vmatpush1.msra.mxu0 %v2475
    %2477 = vmatprep.subr.mxu0 0.0
    %v2478 = vand.u32 %v2456, 4294901760
    %2479 = vmatpush1.msra.mxu0 %v2478
    %2480 = vmatprep.subr.mxu0 0.0
    %v2481 = vand.u32 %v2455, 4294901760
    %2482 = vmatpush1.msra.mxu0 %v2481
    %2483 = vmatprep.subr.mxu0 0.0
    %v2484 = vand.u32 %v2454, 4294901760
    %2485 = vmatpush1.msra.mxu0 %v2484
    %2486 = vmatprep.subr.mxu0 0.0
    %v2487 = vand.u32 %v2453, 4294901760
    %2488 = vmatpush1.msra.mxu0 %v2487
    %2489 = vmatprep.subr.mxu0 0.0
    %v2490 = vand.u32 %v2452, 4294901760
    %2491 = vmatpush1.msra.mxu0 %v2490
    %2492 = vmatprep.subr.mxu0 0.0
    %v2493 = vand.u32 %v2451, 4294901760
    %2494 = vmatpush1.msra.mxu0 %v2493
    %2495 = vmatprep.subr.mxu0 0.0
    %v2496 = vand.u32 %v2450, 4294901760
    %2497 = vmatpush1.msra.mxu0 %v2496
    %2498 = vmatprep.subr.mxu0 0.0
    %2499 = vmatpush2.msra.mxu0 0.0
    %2500 = vmatprep.subr.mxu0 0.0
    %2501 = vmatpush2.msra.mxu0 0.0
    %2502 = vmatprep.subr.mxu0 0.0
    %2503 = vmatpush2.msra.mxu0 0.0
    %2504 = vmatprep.subr.mxu0 0.0
    %2505 = vmatpush2.msra.mxu0 0.0
    %2506 = vmatprep.subr.mxu0 0.0
    %2507 = vmatpush2.msra.mxu0 0.0
    %2508 = vmatprep.subr.mxu0 0.0
    %2509 = vmatpush2.msra.mxu0 0.0
    %2510 = vmatprep.subr.mxu0 0.0
    %2511 = vmatpush2.msra.mxu0 0.0
    %2512 = vmatprep.subr.mxu0 0.0
    %2513 = vmatpush2.msra.mxu0 0.0
    %2514 = vmatprep.subr.mxu0 0.0
    %2515 = vmatpush2.msra.mxu0 0.0
    %2516 = vmatprep.subr.mxu0 0.0
    %2517 = vmatpush2.msra.mxu0 0.0
    %2518 = vmatprep.subr.mxu0 0.0
    %2519 = vmatpush2.msra.mxu0 0.0
    %2520 = vmatprep.subr.mxu0 0.0
    %2521 = vmatpush2.msra.mxu0 0.0
    %2522 = vmatprep.subr.mxu0 0.0
    %2523 = vmatpush2.msra.mxu0 0.0
    %2524 = vmatprep.subr.mxu0 0.0
    %2525 = vmatpush2.msra.mxu0 0.0
    %2526 = vmatprep.subr.mxu0 0.0
    %2527 = vmatpush2.msra.mxu0 0.0
    %2528 = vmatprep.subr.mxu0 0.0
    %2529 = vmatpush2.msra.mxu0 0.0
    %2530 = vmatprep.mubr.f32.mxu0 0.0
    %v2531 = vand.u32 %v180, 4294901760
    %v2532 = vsub.f32 %v180, %v2531
    %v2533 = vand.u32 %v2532, 4294901760
    %v2534 = vsub.f32 %v2532, %v2533
    %v2535 = vand.u32 %v2534, 4294901760
    %2536 = vmatmul.mubr.f32.gmra.mxu0 %v2535
    %v2537 = vpop.f32.mrf.mxu0
    %v2538 = vadd.f32 0.0, %v2537
    %v2539 = vpop.f32.mrf.mxu0
    %2540 = vdwg.mxu0
    %2541 = vmatprep.subr.mxu0 0.0
    %2542 = vmatpush1.msra.mxu0 0.0
    %2543 = vmatprep.subr.mxu0 0.0
    %2544 = vmatpush1.msra.mxu0 0.0
    %2545 = vmatprep.subr.mxu0 0.0
    %2546 = vmatpush1.msra.mxu0 0.0
    %2547 = vmatprep.subr.mxu0 0.0
    %2548 = vmatpush1.msra.mxu0 0.0
    %2549 = vmatprep.subr.mxu0 0.0
    %2550 = vmatpush1.msra.mxu0 0.0
    %2551 = vmatprep.subr.mxu0 0.0
    %2552 = vmatpush1.msra.mxu0 0.0
    %2553 = vmatprep.subr.mxu0 0.0
    %2554 = vmatpush1.msra.mxu0 0.0
    %2555 = vmatprep.subr.mxu0 0.0
    %2556 = vmatpush1.msra.mxu0 0.0
    %2557 = vmatprep.subr.mxu0 0.0
    %v2558 = vand.u32 %v2457, 4294901760
    %v2559 = vsub.f32 %v2457, %v2558
    %v2560 = vand.u32 %v2559, 4294901760
    %v2561 = vsub.f32 %v2559, %v2560
    %v2562 = vand.u32 %v2561, 4294901760
    %2563 = vmatpush1.msra.mxu0 %v2562
    %2564 = vmatprep.subr.mxu0 0.0
    %v2565 = vand.u32 %v2456, 4294901760
    %v2566 = vsub.f32 %v2456, %v2565
    %v2567 = vand.u32 %v2566, 4294901760
    %v2568 = vsub.f32 %v2566, %v2567
    %v2569 = vand.u32 %v2568, 4294901760
    %2570 = vmatpush1.msra.mxu0 %v2569
    %2571 = vmatprep.subr.mxu0 0.0
    %v2572 = vand.u32 %v2455, 4294901760
    %v2573 = vsub.f32 %v2455, %v2572
    %v2574 = vand.u32 %v2573, 4294901760
    %v2575 = vsub.f32 %v2573, %v2574
    %v2576 = vand.u32 %v2575, 4294901760
    %2577 = vmatpush1.msra.mxu0 %v2576
    %2578 = vmatprep.subr.mxu0 0.0
    %v2579 = vand.u32 %v2454, 4294901760
    %v2580 = vsub.f32 %v2454, %v2579
    %v2581 = vand.u32 %v2580, 4294901760
    %v2582 = vsub.f32 %v2580, %v2581
    %v2583 = vand.u32 %v2582, 4294901760
    %2584 = vmatpush1.msra.mxu0 %v2583
    %2585 = vmatprep.subr.mxu0 0.0
    %v2586 = vand.u32 %v2453, 4294901760
    %v2587 = vsub.f32 %v2453, %v2586
    %v2588 = vand.u32 %v2587, 4294901760
    %v2589 = vsub.f32 %v2587, %v2588
    %v2590 = vand.u32 %v2589, 4294901760
    %2591 = vmatpush1.msra.mxu0 %v2590
    %2592 = vmatprep.subr.mxu0 0.0
    %v2593 = vand.u32 %v2452, 4294901760
    %v2594 = vsub.f32 %v2452, %v2593
    %v2595 = vand.u32 %v2594, 4294901760
    %v2596 = vsub.f32 %v2594, %v2595
    %v2597 = vand.u32 %v2596, 4294901760
    %2598 = vmatpush1.msra.mxu0 %v2597
    %2599 = vmatprep.subr.mxu0 0.0
    %v2600 = vand.u32 %v2451, 4294901760
    %v2601 = vsub.f32 %v2451, %v2600
    %v2602 = vand.u32 %v2601, 4294901760
    %v2603 = vsub.f32 %v2601, %v2602
    %v2604 = vand.u32 %v2603, 4294901760
    %2605 = vmatpush1.msra.mxu0 %v2604
    %2606 = vmatprep.subr.mxu0 0.0
    %v2607 = vand.u32 %v2450, 4294901760
    %v2608 = vsub.f32 %v2450, %v2607
    %v2609 = vand.u32 %v2608, 4294901760
    %v2610 = vsub.f32 %v2608, %v2609
    %v2611 = vand.u32 %v2610, 4294901760
    %2612 = vmatpush1.msra.mxu0 %v2611
    %2613 = vmatprep.subr.mxu0 0.0
    %2614 = vmatpush2.msra.mxu0 0.0
    %2615 = vmatprep.subr.mxu0 0.0
    %2616 = vmatpush2.msra.mxu0 0.0
    %2617 = vmatprep.subr.mxu0 0.0
    %2618 = vmatpush2.msra.mxu0 0.0
    %2619 = vmatprep.subr.mxu0 0.0
    %2620 = vmatpush2.msra.mxu0 0.0
    %2621 = vmatprep.subr.mxu0 0.0
    %2622 = vmatpush2.msra.mxu0 0.0
    %2623 = vmatprep.subr.mxu0 0.0
    %2624 = vmatpush2.msra.mxu0 0.0
    %2625 = vmatprep.subr.mxu0 0.0
    %2626 = vmatpush2.msra.mxu0 0.0
    %2627 = vmatprep.subr.mxu0 0.0
    %2628 = vmatpush2.msra.mxu0 0.0
    %2629 = vmatprep.subr.mxu0 0.0
    %2630 = vmatpush2.msra.mxu0 0.0
    %2631 = vmatprep.subr.mxu0 0.0
    %2632 = vmatpush2.msra.mxu0 0.0
    %2633 = vmatprep.subr.mxu0 0.0
    %2634 = vmatpush2.msra.mxu0 0.0
    %2635 = vmatprep.subr.mxu0 0.0
    %2636 = vmatpush2.msra.mxu0 0.0
    %2637 = vmatprep.subr.mxu0 0.0
    %2638 = vmatpush2.msra.mxu0 0.0
    %2639 = vmatprep.subr.mxu0 0.0
    %2640 = vmatpush2.msra.mxu0 0.0
    %2641 = vmatprep.subr.mxu0 0.0
    %2642 = vmatpush2.msra.mxu0 0.0
    %2643 = vmatprep.subr.mxu0 0.0
    %2644 = vmatpush2.msra.mxu0 0.0
    %2645 = vmatprep.mubr.f32.mxu0 0.0
    %v2646 = vand.u32 %v180, 4294901760
    %2647 = vmatmul.mubr.f32.gmra.mxu0 %v2646
    %v2648 = vpop.f32.mrf.mxu0
    %v2649 = vadd.f32 %v2538, %v2648
    %v2650 = vpop.f32.mrf.mxu0
    %2651 = vdwg.mxu0
    %2652 = vmatprep.subr.mxu0 0.0
    %2653 = vmatpush1.msra.mxu0 0.0
    %2654 = vmatprep.subr.mxu0 0.0
    %2655 = vmatpush1.msra.mxu0 0.0
    %2656 = vmatprep.subr.mxu0 0.0
    %2657 = vmatpush1.msra.mxu0 0.0
    %2658 = vmatprep.subr.mxu0 0.0
    %2659 = vmatpush1.msra.mxu0 0.0
    %2660 = vmatprep.subr.mxu0 0.0
    %2661 = vmatpush1.msra.mxu0 0.0
    %2662 = vmatprep.subr.mxu0 0.0
    %2663 = vmatpush1.msra.mxu0 0.0
    %2664 = vmatprep.subr.mxu0 0.0
    %2665 = vmatpush1.msra.mxu0 0.0
    %2666 = vmatprep.subr.mxu0 0.0
    %2667 = vmatpush1.msra.mxu0 0.0
    %2668 = vmatprep.subr.mxu0 0.0
    %v2669 = vand.u32 %v2457, 4294901760
    %v2670 = vsub.f32 %v2457, %v2669
    %2671 = vmatpush1.msra.mxu0 %v2670
    %2672 = vmatprep.subr.mxu0 0.0
    %v2673 = vand.u32 %v2456, 4294901760
    %v2674 = vsub.f32 %v2456, %v2673
    %2675 = vmatpush1.msra.mxu0 %v2674
    %2676 = vmatprep.subr.mxu0 0.0
    %v2677 = vand.u32 %v2455, 4294901760
    %v2678 = vsub.f32 %v2455, %v2677
    %2679 = vmatpush1.msra.mxu0 %v2678
    %2680 = vmatprep.subr.mxu0 0.0
    %v2681 = vand.u32 %v2454, 4294901760
    %v2682 = vsub.f32 %v2454, %v2681
    %2683 = vmatpush1.msra.mxu0 %v2682
    %2684 = vmatprep.subr.mxu0 0.0
    %v2685 = vand.u32 %v2453, 4294901760
    %v2686 = vsub.f32 %v2453, %v2685
    %2687 = vmatpush1.msra.mxu0 %v2686
    %2688 = vmatprep.subr.mxu0 0.0
    %v2689 = vand.u32 %v2452, 4294901760
    %v2690 = vsub.f32 %v2452, %v2689
    %2691 = vmatpush1.msra.mxu0 %v2690
    %2692 = vmatprep.subr.mxu0 0.0
    %v2693 = vand.u32 %v2451, 4294901760
    %v2694 = vsub.f32 %v2451, %v2693
    %2695 = vmatpush1.msra.mxu0 %v2694
    %2696 = vmatprep.subr.mxu0 0.0
    %v2697 = vand.u32 %v2450, 4294901760
    %v2698 = vsub.f32 %v2450, %v2697
    %2699 = vmatpush1.msra.mxu0 %v2698
    %2700 = vmatprep.subr.mxu0 0.0
    %2701 = vmatpush2.msra.mxu0 0.0
    %2702 = vmatprep.subr.mxu0 0.0
    %2703 = vmatpush2.msra.mxu0 0.0
    %2704 = vmatprep.subr.mxu0 0.0
    %2705 = vmatpush2.msra.mxu0 0.0
    %2706 = vmatprep.subr.mxu0 0.0
    %2707 = vmatpush2.msra.mxu0 0.0
    %2708 = vmatprep.subr.mxu0 0.0
    %2709 = vmatpush2.msra.mxu0 0.0
    %2710 = vmatprep.subr.mxu0 0.0
    %2711 = vmatpush2.msra.mxu0 0.0
    %2712 = vmatprep.subr.mxu0 0.0
    %2713 = vmatpush2.msra.mxu0 0.0
    %2714 = vmatprep.subr.mxu0 0.0
    %2715 = vmatpush2.msra.mxu0 0.0
    %2716 = vmatprep.subr.mxu0 0.0
    %2717 = vmatpush2.msra.mxu0 0.0
    %2718 = vmatprep.subr.mxu0 0.0
    %2719 = vmatpush2.msra.mxu0 0.0
    %2720 = vmatprep.subr.mxu0 0.0
    %2721 = vmatpush2.msra.mxu0 0.0
    %2722 = vmatprep.subr.mxu0 0.0
    %2723 = vmatpush2.msra.mxu0 0.0
    %2724 = vmatprep.subr.mxu0 0.0
    %2725 = vmatpush2.msra.mxu0 0.0
    %2726 = vmatprep.subr.mxu0 0.0
    %2727 = vmatpush2.msra.mxu0 0.0
    %2728 = vmatprep.subr.mxu0 0.0
    %2729 = vmatpush2.msra.mxu0 0.0
    %2730 = vmatprep.subr.mxu0 0.0
    %2731 = vmatpush2.msra.mxu0 0.0
    %2732 = vmatprep.mubr.f32.mxu0 0.0
    %v2733 = vand.u32 %v180, 4294901760
    %v2734 = vsub.f32 %v180, %v2733
    %2735 = vmatmul.mubr.f32.gmra.mxu0 %v2734
    %v2736 = vpop.f32.mrf.mxu0
    %v2737 = vadd.f32 %v2649, %v2736
    %v2738 = vpop.f32.mrf.mxu0
    %2739 = vdwg.mxu0
    %2740 = vmatprep.subr.mxu0 0.0
    %2741 = vmatpush1.msra.mxu0 0.0
    %2742 = vmatprep.subr.mxu0 0.0
    %2743 = vmatpush1.msra.mxu0 0.0
    %2744 = vmatprep.subr.mxu0 0.0
    %2745 = vmatpush1.msra.mxu0 0.0
    %2746 = vmatprep.subr.mxu0 0.0
    %2747 = vmatpush1.msra.mxu0 0.0
    %2748 = vmatprep.subr.mxu0 0.0
    %2749 = vmatpush1.msra.mxu0 0.0
    %2750 = vmatprep.subr.mxu0 0.0
    %2751 = vmatpush1.msra.mxu0 0.0
    %2752 = vmatprep.subr.mxu0 0.0
    %2753 = vmatpush1.msra.mxu0 0.0
    %2754 = vmatprep.subr.mxu0 0.0
    %2755 = vmatpush1.msra.mxu0 0.0
    %2756 = vmatprep.subr.mxu0 0.0
    %v2757 = vand.u32 %v2457, 4294901760
    %2758 = vmatpush1.msra.mxu0 %v2757
    %2759 = vmatprep.subr.mxu0 0.0
    %v2760 = vand.u32 %v2456, 4294901760
    %2761 = vmatpush1.msra.mxu0 %v2760
    %2762 = vmatprep.subr.mxu0 0.0
    %v2763 = vand.u32 %v2455, 4294901760
    %2764 = vmatpush1.msra.mxu0 %v2763
    %2765 = vmatprep.subr.mxu0 0.0
    %v2766 = vand.u32 %v2454, 4294901760
    %2767 = vmatpush1.msra.mxu0 %v2766
    %2768 = vmatprep.subr.mxu0 0.0
    %v2769 = vand.u32 %v2453, 4294901760
    %2770 = vmatpush1.msra.mxu0 %v2769
    %2771 = vmatprep.subr.mxu0 0.0
    %v2772 = vand.u32 %v2452, 4294901760
    %2773 = vmatpush1.msra.mxu0 %v2772
    %2774 = vmatprep.subr.mxu0 0.0
    %v2775 = vand.u32 %v2451, 4294901760
    %2776 = vmatpush1.msra.mxu0 %v2775
    %2777 = vmatprep.subr.mxu0 0.0
    %v2778 = vand.u32 %v2450, 4294901760
    %2779 = vmatpush1.msra.mxu0 %v2778
    %2780 = vmatprep.subr.mxu0 0.0
    %2781 = vmatpush2.msra.mxu0 0.0
    %2782 = vmatprep.subr.mxu0 0.0
    %2783 = vmatpush2.msra.mxu0 0.0
    %2784 = vmatprep.subr.mxu0 0.0
    %2785 = vmatpush2.msra.mxu0 0.0
    %2786 = vmatprep.subr.mxu0 0.0
    %2787 = vmatpush2.msra.mxu0 0.0
    %2788 = vmatprep.subr.mxu0 0.0
    %2789 = vmatpush2.msra.mxu0 0.0
    %2790 = vmatprep.subr.mxu0 0.0
    %2791 = vmatpush2.msra.mxu0 0.0
    %2792 = vmatprep.subr.mxu0 0.0
    %2793 = vmatpush2.msra.mxu0 0.0
    %2794 = vmatprep.subr.mxu0 0.0
    %2795 = vmatpush2.msra.mxu0 0.0
    %2796 = vmatprep.subr.mxu0 0.0
    %2797 = vmatpush2.msra.mxu0 0.0
    %2798 = vmatprep.subr.mxu0 0.0
    %2799 = vmatpush2.msra.mxu0 0.0
    %2800 = vmatprep.subr.mxu0 0.0
    %2801 = vmatpush2.msra.mxu0 0.0
    %2802 = vmatprep.subr.mxu0 0.0
    %2803 = vmatpush2.msra.mxu0 0.0
    %2804 = vmatprep.subr.mxu0 0.0
    %2805 = vmatpush2.msra.mxu0 0.0
    %2806 = vmatprep.subr.mxu0 0.0
    %2807 = vmatpush2.msra.mxu0 0.0
    %2808 = vmatprep.subr.mxu0 0.0
    %2809 = vmatpush2.msra.mxu0 0.0
    %2810 = vmatprep.subr.mxu0 0.0
    %2811 = vmatpush2.msra.mxu0 0.0
    %2812 = vmatprep.mubr.f32.mxu0 0.0
    %v2813 = vand.u32 %v180, 4294901760
    %v2814 = vsub.f32 %v180, %v2813
    %v2815 = vand.u32 %v2814, 4294901760
    %2816 = vmatmul.mubr.f32.gmra.mxu0 %v2815
    %v2817 = vpop.f32.mrf.mxu0
    %v2818 = vadd.f32 %v2737, %v2817
    %v2819 = vpop.f32.mrf.mxu0
    %2820 = vdwg.mxu0
    %2821 = vmatprep.subr.mxu0 0.0
    %2822 = vmatpush1.msra.mxu0 0.0
    %2823 = vmatprep.subr.mxu0 0.0
    %2824 = vmatpush1.msra.mxu0 0.0
    %2825 = vmatprep.subr.mxu0 0.0
    %2826 = vmatpush1.msra.mxu0 0.0
    %2827 = vmatprep.subr.mxu0 0.0
    %2828 = vmatpush1.msra.mxu0 0.0
    %2829 = vmatprep.subr.mxu0 0.0
    %2830 = vmatpush1.msra.mxu0 0.0
    %2831 = vmatprep.subr.mxu0 0.0
    %2832 = vmatpush1.msra.mxu0 0.0
    %2833 = vmatprep.subr.mxu0 0.0
    %2834 = vmatpush1.msra.mxu0 0.0
    %2835 = vmatprep.subr.mxu0 0.0
    %2836 = vmatpush1.msra.mxu0 0.0
    %2837 = vmatprep.subr.mxu0 0.0
    %v2838 = vand.u32 %v2457, 4294901760
    %v2839 = vsub.f32 %v2457, %v2838
    %v2840 = vand.u32 %v2839, 4294901760
    %2841 = vmatpush1.msra.mxu0 %v2840
    %2842 = vmatprep.subr.mxu0 0.0
    %v2843 = vand.u32 %v2456, 4294901760
    %v2844 = vsub.f32 %v2456, %v2843
    %v2845 = vand.u32 %v2844, 4294901760
    %2846 = vmatpush1.msra.mxu0 %v2845
    %2847 = vmatprep.subr.mxu0 0.0
    %v2848 = vand.u32 %v2455, 4294901760
    %v2849 = vsub.f32 %v2455, %v2848
    %v2850 = vand.u32 %v2849, 4294901760
    %2851 = vmatpush1.msra.mxu0 %v2850
    %2852 = vmatprep.subr.mxu0 0.0
    %v2853 = vand.u32 %v2454, 4294901760
    %v2854 = vsub.f32 %v2454, %v2853
    %v2855 = vand.u32 %v2854, 4294901760
    %2856 = vmatpush1.msra.mxu0 %v2855
    %2857 = vmatprep.subr.mxu0 0.0
    %v2858 = vand.u32 %v2453, 4294901760
    %v2859 = vsub.f32 %v2453, %v2858
    %v2860 = vand.u32 %v2859, 4294901760
    %2861 = vmatpush1.msra.mxu0 %v2860
    %2862 = vmatprep.subr.mxu0 0.0
    %v2863 = vand.u32 %v2452, 4294901760
    %v2864 = vsub.f32 %v2452, %v2863
    %v2865 = vand.u32 %v2864, 4294901760
    %2866 = vmatpush1.msra.mxu0 %v2865
    %2867 = vmatprep.subr.mxu0 0.0
    %v2868 = vand.u32 %v2451, 4294901760
    %v2869 = vsub.f32 %v2451, %v2868
    %v2870 = vand.u32 %v2869, 4294901760
    %2871 = vmatpush1.msra.mxu0 %v2870
    %2872 = vmatprep.subr.mxu0 0.0
    %v2873 = vand.u32 %v2450, 4294901760
    %v2874 = vsub.f32 %v2450, %v2873
    %v2875 = vand.u32 %v2874, 4294901760
    %2876 = vmatpush1.msra.mxu0 %v2875
    %2877 = vmatprep.subr.mxu0 0.0
    %2878 = vmatpush2.msra.mxu0 0.0
    %2879 = vmatprep.subr.mxu0 0.0
    %2880 = vmatpush2.msra.mxu0 0.0
    %2881 = vmatprep.subr.mxu0 0.0
    %2882 = vmatpush2.msra.mxu0 0.0
    %2883 = vmatprep.subr.mxu0 0.0
    %2884 = vmatpush2.msra.mxu0 0.0
    %2885 = vmatprep.subr.mxu0 0.0
    %2886 = vmatpush2.msra.mxu0 0.0
    %2887 = vmatprep.subr.mxu0 0.0
    %2888 = vmatpush2.msra.mxu0 0.0
    %2889 = vmatprep.subr.mxu0 0.0
    %2890 = vmatpush2.msra.mxu0 0.0
    %2891 = vmatprep.subr.mxu0 0.0
    %2892 = vmatpush2.msra.mxu0 0.0
    %2893 = vmatprep.subr.mxu0 0.0
    %2894 = vmatpush2.msra.mxu0 0.0
    %2895 = vmatprep.subr.mxu0 0.0
    %2896 = vmatpush2.msra.mxu0 0.0
    %2897 = vmatprep.subr.mxu0 0.0
    %2898 = vmatpush2.msra.mxu0 0.0
    %2899 = vmatprep.subr.mxu0 0.0
    %2900 = vmatpush2.msra.mxu0 0.0
    %2901 = vmatprep.subr.mxu0 0.0
    %2902 = vmatpush2.msra.mxu0 0.0
    %2903 = vmatprep.subr.mxu0 0.0
    %2904 = vmatpush2.msra.mxu0 0.0
    %2905 = vmatprep.subr.mxu0 0.0
    %2906 = vmatpush2.msra.mxu0 0.0
    %2907 = vmatprep.subr.mxu0 0.0
    %2908 = vmatpush2.msra.mxu0 0.0
    %2909 = vmatprep.mubr.f32.mxu0 0.0
    %v2910 = vand.u32 %v180, 4294901760
    %2911 = vmatmul.mubr.f32.gmra.mxu0 %v2910
    %v2912 = vpop.f32.mrf.mxu0
    %v2913 = vadd.f32 %v2818, %v2912
    %v2914 = vpop.f32.mrf.mxu0
    %2915 = vdwg.mxu0
    %2916 = vmatprep.subr.mxu0 0.0
    %2917 = vmatpush1.msra.mxu0 0.0
    %2918 = vmatprep.subr.mxu0 0.0
    %2919 = vmatpush1.msra.mxu0 0.0
    %2920 = vmatprep.subr.mxu0 0.0
    %2921 = vmatpush1.msra.mxu0 0.0
    %2922 = vmatprep.subr.mxu0 0.0
    %2923 = vmatpush1.msra.mxu0 0.0
    %2924 = vmatprep.subr.mxu0 0.0
    %2925 = vmatpush1.msra.mxu0 0.0
    %2926 = vmatprep.subr.mxu0 0.0
    %2927 = vmatpush1.msra.mxu0 0.0
    %2928 = vmatprep.subr.mxu0 0.0
    %2929 = vmatpush1.msra.mxu0 0.0
    %2930 = vmatprep.subr.mxu0 0.0
    %2931 = vmatpush1.msra.mxu0 0.0
    %2932 = vmatprep.subr.mxu0 0.0
    %v2933 = vand.u32 %v2457, 4294901760
    %2934 = vmatpush1.msra.mxu0 %v2933
    %2935 = vmatprep.subr.mxu0 0.0
    %v2936 = vand.u32 %v2456, 4294901760
    %2937 = vmatpush1.msra.mxu0 %v2936
    %2938 = vmatprep.subr.mxu0 0.0
    %v2939 = vand.u32 %v2455, 4294901760
    %2940 = vmatpush1.msra.mxu0 %v2939
    %2941 = vmatprep.subr.mxu0 0.0
    %v2942 = vand.u32 %v2454, 4294901760
    %2943 = vmatpush1.msra.mxu0 %v2942
    %2944 = vmatprep.subr.mxu0 0.0
    %v2945 = vand.u32 %v2453, 4294901760
    %2946 = vmatpush1.msra.mxu0 %v2945
    %2947 = vmatprep.subr.mxu0 0.0
    %v2948 = vand.u32 %v2452, 4294901760
    %2949 = vmatpush1.msra.mxu0 %v2948
    %2950 = vmatprep.subr.mxu0 0.0
    %v2951 = vand.u32 %v2451, 4294901760
    %2952 = vmatpush1.msra.mxu0 %v2951
    %2953 = vmatprep.subr.mxu0 0.0
    %v2954 = vand.u32 %v2450, 4294901760
    %2955 = vmatpush1.msra.mxu0 %v2954
    %2956 = vmatprep.subr.mxu0 0.0
    %2957 = vmatpush2.msra.mxu0 0.0
    %2958 = vmatprep.subr.mxu0 0.0
    %2959 = vmatpush2.msra.mxu0 0.0
    %2960 = vmatprep.subr.mxu0 0.0
    %2961 = vmatpush2.msra.mxu0 0.0
    %2962 = vmatprep.subr.mxu0 0.0
    %2963 = vmatpush2.msra.mxu0 0.0
    %2964 = vmatprep.subr.mxu0 0.0
    %2965 = vmatpush2.msra.mxu0 0.0
    %2966 = vmatprep.subr.mxu0 0.0
    %2967 = vmatpush2.msra.mxu0 0.0
    %2968 = vmatprep.subr.mxu0 0.0
    %2969 = vmatpush2.msra.mxu0 0.0
    %2970 = vmatprep.subr.mxu0 0.0
    %2971 = vmatpush2.msra.mxu0 0.0
    %2972 = vmatprep.subr.mxu0 0.0
    %2973 = vmatpush2.msra.mxu0 0.0
    %2974 = vmatprep.subr.mxu0 0.0
    %2975 = vmatpush2.msra.mxu0 0.0
    %2976 = vmatprep.subr.mxu0 0.0
    %2977 = vmatpush2.msra.mxu0 0.0
    %2978 = vmatprep.subr.mxu0 0.0
    %2979 = vmatpush2.msra.mxu0 0.0
    %2980 = vmatprep.subr.mxu0 0.0
    %2981 = vmatpush2.msra.mxu0 0.0
    %2982 = vmatprep.subr.mxu0 0.0
    %2983 = vmatpush2.msra.mxu0 0.0
    %2984 = vmatprep.subr.mxu0 0.0
    %2985 = vmatpush2.msra.mxu0 0.0
    %2986 = vmatprep.subr.mxu0 0.0
    %2987 = vmatpush2.msra.mxu0 0.0
    %2988 = vmatprep.mubr.f32.mxu0 0.0
    %v2989 = vand.u32 %v180, 4294901760
    %2990 = vmatmul.mubr.f32.gmra.mxu0 %v2989
    %v2991 = vpop.f32.mrf.mxu0
    %v2992 = vadd.f32 %v2913, %v2991
    %v2993 = vpop.f32.mrf.mxu0
    %2994 = vdwg.mxu0
    %v2995 = vsub.f32 %v114, 5.0
    %v2996 = vsub.f32 %v115, 5.0
    %v2997 = vsub.f32 %v116, 5.0
    %v2998 = vsub.f32 %v117, 5.0
    %v2999 = vsub.f32 %v118, 5.0
    %v3000 = vsub.f32 %v119, 5.0
    %v3001 = vsub.f32 %v120, 5.0
    %v3002 = vsub.f32 %v121, 5.0
    %v3003 = vand.u32 2147483647, %v2995
    %v3004 = vand.u32 2147483647, %v2996
    %v3005 = vand.u32 2147483647, %v2997
    %v3006 = vand.u32 2147483647, %v2998
    %v3007 = vand.u32 2147483647, %v2999
    %v3008 = vand.u32 2147483647, %v3000
    %v3009 = vand.u32 2147483647, %v3001
    %v3010 = vand.u32 2147483647, %v3002
    %v3011 = vsub.f32 %v146, %v3003
    %v3012 = vsub.f32 %v147, %v3004
    %v3013 = vsub.f32 %v148, %v3005
    %v3014 = vsub.f32 %v149, %v3006
    %v3015 = vsub.f32 %v150, %v3007
    %v3016 = vsub.f32 %v151, %v3008
    %v3017 = vsub.f32 %v152, %v3009
    %v3018 = vsub.f32 %v153, %v3010
    %v3019 = vmax.f32 %v3011, 0.0
    %v3020 = vmax.f32 %v3012, 0.0
    %v3021 = vmax.f32 %v3013, 0.0
    %v3022 = vmax.f32 %v3014, 0.0
    %v3023 = vmax.f32 %v3015, 0.0
    %v3024 = vmax.f32 %v3016, 0.0
    %v3025 = vmax.f32 %v3017, 0.0
    %v3026 = vmax.f32 %v3018, 0.0
    %3027 = vmatprep.subr.mxu0 0.0
    %3028 = vmatpush1.msra.mxu0 0.0
    %3029 = vmatprep.subr.mxu0 0.0
    %3030 = vmatpush1.msra.mxu0 0.0
    %3031 = vmatprep.subr.mxu0 0.0
    %3032 = vmatpush1.msra.mxu0 0.0
    %3033 = vmatprep.subr.mxu0 0.0
    %3034 = vmatpush1.msra.mxu0 0.0
    %3035 = vmatprep.subr.mxu0 0.0
    %3036 = vmatpush1.msra.mxu0 0.0
    %3037 = vmatprep.subr.mxu0 0.0
    %3038 = vmatpush1.msra.mxu0 0.0
    %3039 = vmatprep.subr.mxu0 0.0
    %3040 = vmatpush1.msra.mxu0 0.0
    %3041 = vmatprep.subr.mxu0 0.0
    %3042 = vmatpush1.msra.mxu0 0.0
    %3043 = vmatprep.subr.mxu0 0.0
    %v3044 = vand.u32 %v3026, 4294901760
    %3045 = vmatpush1.msra.mxu0 %v3044
    %3046 = vmatprep.subr.mxu0 0.0
    %v3047 = vand.u32 %v3025, 4294901760
    %3048 = vmatpush1.msra.mxu0 %v3047
    %3049 = vmatprep.subr.mxu0 0.0
    %v3050 = vand.u32 %v3024, 4294901760
    %3051 = vmatpush1.msra.mxu0 %v3050
    %3052 = vmatprep.subr.mxu0 0.0
    %v3053 = vand.u32 %v3023, 4294901760
    %3054 = vmatpush1.msra.mxu0 %v3053
    %3055 = vmatprep.subr.mxu0 0.0
    %v3056 = vand.u32 %v3022, 4294901760
    %3057 = vmatpush1.msra.mxu0 %v3056
    %3058 = vmatprep.subr.mxu0 0.0
    %v3059 = vand.u32 %v3021, 4294901760
    %3060 = vmatpush1.msra.mxu0 %v3059
    %3061 = vmatprep.subr.mxu0 0.0
    %v3062 = vand.u32 %v3020, 4294901760
    %3063 = vmatpush1.msra.mxu0 %v3062
    %3064 = vmatprep.subr.mxu0 0.0
    %v3065 = vand.u32 %v3019, 4294901760
    %3066 = vmatpush1.msra.mxu0 %v3065
    %3067 = vmatprep.subr.mxu0 0.0
    %3068 = vmatpush2.msra.mxu0 0.0
    %3069 = vmatprep.subr.mxu0 0.0
    %3070 = vmatpush2.msra.mxu0 0.0
    %3071 = vmatprep.subr.mxu0 0.0
    %3072 = vmatpush2.msra.mxu0 0.0
    %3073 = vmatprep.subr.mxu0 0.0
    %3074 = vmatpush2.msra.mxu0 0.0
    %3075 = vmatprep.subr.mxu0 0.0
    %3076 = vmatpush2.msra.mxu0 0.0
    %3077 = vmatprep.subr.mxu0 0.0
    %3078 = vmatpush2.msra.mxu0 0.0
    %3079 = vmatprep.subr.mxu0 0.0
    %3080 = vmatpush2.msra.mxu0 0.0
    %3081 = vmatprep.subr.mxu0 0.0
    %3082 = vmatpush2.msra.mxu0 0.0
    %3083 = vmatprep.subr.mxu0 0.0
    %3084 = vmatpush2.msra.mxu0 0.0
    %3085 = vmatprep.subr.mxu0 0.0
    %3086 = vmatpush2.msra.mxu0 0.0
    %3087 = vmatprep.subr.mxu0 0.0
    %3088 = vmatpush2.msra.mxu0 0.0
    %3089 = vmatprep.subr.mxu0 0.0
    %3090 = vmatpush2.msra.mxu0 0.0
    %3091 = vmatprep.subr.mxu0 0.0
    %3092 = vmatpush2.msra.mxu0 0.0
    %3093 = vmatprep.subr.mxu0 0.0
    %3094 = vmatpush2.msra.mxu0 0.0
    %3095 = vmatprep.subr.mxu0 0.0
    %3096 = vmatpush2.msra.mxu0 0.0
    %3097 = vmatprep.subr.mxu0 0.0
    %3098 = vmatpush2.msra.mxu0 0.0
    %3099 = vmatprep.mubr.f32.mxu0 0.0
    %v3100 = vand.u32 %v180, 4294901760
    %v3101 = vsub.f32 %v180, %v3100
    %v3102 = vand.u32 %v3101, 4294901760
    %v3103 = vsub.f32 %v3101, %v3102
    %v3104 = vand.u32 %v3103, 4294901760
    %3105 = vmatmul.mubr.f32.gmra.mxu0 %v3104
    %v3106 = vpop.f32.mrf.mxu0
    %v3107 = vadd.f32 0.0, %v3106
    %v3108 = vpop.f32.mrf.mxu0
    %3109 = vdwg.mxu0
    %3110 = vmatprep.subr.mxu0 0.0
    %3111 = vmatpush1.msra.mxu0 0.0
    %3112 = vmatprep.subr.mxu0 0.0
    %3113 = vmatpush1.msra.mxu0 0.0
    %3114 = vmatprep.subr.mxu0 0.0
    %3115 = vmatpush1.msra.mxu0 0.0
    %3116 = vmatprep.subr.mxu0 0.0
    %3117 = vmatpush1.msra.mxu0 0.0
    %3118 = vmatprep.subr.mxu0 0.0
    %3119 = vmatpush1.msra.mxu0 0.0
    %3120 = vmatprep.subr.mxu0 0.0
    %3121 = vmatpush1.msra.mxu0 0.0
    %3122 = vmatprep.subr.mxu0 0.0
    %3123 = vmatpush1.msra.mxu0 0.0
    %3124 = vmatprep.subr.mxu0 0.0
    %3125 = vmatpush1.msra.mxu0 0.0
    %3126 = vmatprep.subr.mxu0 0.0
    %v3127 = vand.u32 %v3026, 4294901760
    %v3128 = vsub.f32 %v3026, %v3127
    %v3129 = vand.u32 %v3128, 4294901760
    %v3130 = vsub.f32 %v3128, %v3129
    %v3131 = vand.u32 %v3130, 4294901760
    %3132 = vmatpush1.msra.mxu0 %v3131
    %3133 = vmatprep.subr.mxu0 0.0
    %v3134 = vand.u32 %v3025, 4294901760
    %v3135 = vsub.f32 %v3025, %v3134
    %v3136 = vand.u32 %v3135, 4294901760
    %v3137 = vsub.f32 %v3135, %v3136
    %v3138 = vand.u32 %v3137, 4294901760
    %3139 = vmatpush1.msra.mxu0 %v3138
    %3140 = vmatprep.subr.mxu0 0.0
    %v3141 = vand.u32 %v3024, 4294901760
    %v3142 = vsub.f32 %v3024, %v3141
    %v3143 = vand.u32 %v3142, 4294901760
    %v3144 = vsub.f32 %v3142, %v3143
    %v3145 = vand.u32 %v3144, 4294901760
    %3146 = vmatpush1.msra.mxu0 %v3145
    %3147 = vmatprep.subr.mxu0 0.0
    %v3148 = vand.u32 %v3023, 4294901760
    %v3149 = vsub.f32 %v3023, %v3148
    %v3150 = vand.u32 %v3149, 4294901760
    %v3151 = vsub.f32 %v3149, %v3150
    %v3152 = vand.u32 %v3151, 4294901760
    %3153 = vmatpush1.msra.mxu0 %v3152
    %3154 = vmatprep.subr.mxu0 0.0
    %v3155 = vand.u32 %v3022, 4294901760
    %v3156 = vsub.f32 %v3022, %v3155
    %v3157 = vand.u32 %v3156, 4294901760
    %v3158 = vsub.f32 %v3156, %v3157
    %v3159 = vand.u32 %v3158, 4294901760
    %3160 = vmatpush1.msra.mxu0 %v3159
    %3161 = vmatprep.subr.mxu0 0.0
    %v3162 = vand.u32 %v3021, 4294901760
    %v3163 = vsub.f32 %v3021, %v3162
    %v3164 = vand.u32 %v3163, 4294901760
    %v3165 = vsub.f32 %v3163, %v3164
    %v3166 = vand.u32 %v3165, 4294901760
    %3167 = vmatpush1.msra.mxu0 %v3166
    %3168 = vmatprep.subr.mxu0 0.0
    %v3169 = vand.u32 %v3020, 4294901760
    %v3170 = vsub.f32 %v3020, %v3169
    %v3171 = vand.u32 %v3170, 4294901760
    %v3172 = vsub.f32 %v3170, %v3171
    %v3173 = vand.u32 %v3172, 4294901760
    %3174 = vmatpush1.msra.mxu0 %v3173
    %3175 = vmatprep.subr.mxu0 0.0
    %v3176 = vand.u32 %v3019, 4294901760
    %v3177 = vsub.f32 %v3019, %v3176
    %v3178 = vand.u32 %v3177, 4294901760
    %v3179 = vsub.f32 %v3177, %v3178
    %v3180 = vand.u32 %v3179, 4294901760
    %3181 = vmatpush1.msra.mxu0 %v3180
    %3182 = vmatprep.subr.mxu0 0.0
    %3183 = vmatpush2.msra.mxu0 0.0
    %3184 = vmatprep.subr.mxu0 0.0
    %3185 = vmatpush2.msra.mxu0 0.0
    %3186 = vmatprep.subr.mxu0 0.0
    %3187 = vmatpush2.msra.mxu0 0.0
    %3188 = vmatprep.subr.mxu0 0.0
    %3189 = vmatpush2.msra.mxu0 0.0
    %3190 = vmatprep.subr.mxu0 0.0
    %3191 = vmatpush2.msra.mxu0 0.0
    %3192 = vmatprep.subr.mxu0 0.0
    %3193 = vmatpush2.msra.mxu0 0.0
    %3194 = vmatprep.subr.mxu0 0.0
    %3195 = vmatpush2.msra.mxu0 0.0
    %3196 = vmatprep.subr.mxu0 0.0
    %3197 = vmatpush2.msra.mxu0 0.0
    %3198 = vmatprep.subr.mxu0 0.0
    %3199 = vmatpush2.msra.mxu0 0.0
    %3200 = vmatprep.subr.mxu0 0.0
    %3201 = vmatpush2.msra.mxu0 0.0
    %3202 = vmatprep.subr.mxu0 0.0
    %3203 = vmatpush2.msra.mxu0 0.0
    %3204 = vmatprep.subr.mxu0 0.0
    %3205 = vmatpush2.msra.mxu0 0.0
    %3206 = vmatprep.subr.mxu0 0.0
    %3207 = vmatpush2.msra.mxu0 0.0
    %3208 = vmatprep.subr.mxu0 0.0
    %3209 = vmatpush2.msra.mxu0 0.0
    %3210 = vmatprep.subr.mxu0 0.0
    %3211 = vmatpush2.msra.mxu0 0.0
    %3212 = vmatprep.subr.mxu0 0.0
    %3213 = vmatpush2.msra.mxu0 0.0
    %3214 = vmatprep.mubr.f32.mxu0 0.0
    %v3215 = vand.u32 %v180, 4294901760
    %3216 = vmatmul.mubr.f32.gmra.mxu0 %v3215
    %v3217 = vpop.f32.mrf.mxu0
    %v3218 = vadd.f32 %v3107, %v3217
    %v3219 = vpop.f32.mrf.mxu0
    %3220 = vdwg.mxu0
    %3221 = vmatprep.subr.mxu0 0.0
    %3222 = vmatpush1.msra.mxu0 0.0
    %3223 = vmatprep.subr.mxu0 0.0
    %3224 = vmatpush1.msra.mxu0 0.0
    %3225 = vmatprep.subr.mxu0 0.0
    %3226 = vmatpush1.msra.mxu0 0.0
    %3227 = vmatprep.subr.mxu0 0.0
    %3228 = vmatpush1.msra.mxu0 0.0
    %3229 = vmatprep.subr.mxu0 0.0
    %3230 = vmatpush1.msra.mxu0 0.0
    %3231 = vmatprep.subr.mxu0 0.0
    %3232 = vmatpush1.msra.mxu0 0.0
    %3233 = vmatprep.subr.mxu0 0.0
    %3234 = vmatpush1.msra.mxu0 0.0
    %3235 = vmatprep.subr.mxu0 0.0
    %3236 = vmatpush1.msra.mxu0 0.0
    %3237 = vmatprep.subr.mxu0 0.0
    %v3238 = vand.u32 %v3026, 4294901760
    %v3239 = vsub.f32 %v3026, %v3238
    %3240 = vmatpush1.msra.mxu0 %v3239
    %3241 = vmatprep.subr.mxu0 0.0
    %v3242 = vand.u32 %v3025, 4294901760
    %v3243 = vsub.f32 %v3025, %v3242
    %3244 = vmatpush1.msra.mxu0 %v3243
    %3245 = vmatprep.subr.mxu0 0.0
    %v3246 = vand.u32 %v3024, 4294901760
    %v3247 = vsub.f32 %v3024, %v3246
    %3248 = vmatpush1.msra.mxu0 %v3247
    %3249 = vmatprep.subr.mxu0 0.0
    %v3250 = vand.u32 %v3023, 4294901760
    %v3251 = vsub.f32 %v3023, %v3250
    %3252 = vmatpush1.msra.mxu0 %v3251
    %3253 = vmatprep.subr.mxu0 0.0
    %v3254 = vand.u32 %v3022, 4294901760
    %v3255 = vsub.f32 %v3022, %v3254
    %3256 = vmatpush1.msra.mxu0 %v3255
    %3257 = vmatprep.subr.mxu0 0.0
    %v3258 = vand.u32 %v3021, 4294901760
    %v3259 = vsub.f32 %v3021, %v3258
    %3260 = vmatpush1.msra.mxu0 %v3259
    %3261 = vmatprep.subr.mxu0 0.0
    %v3262 = vand.u32 %v3020, 4294901760
    %v3263 = vsub.f32 %v3020, %v3262
    %3264 = vmatpush1.msra.mxu0 %v3263
    %3265 = vmatprep.subr.mxu0 0.0
    %v3266 = vand.u32 %v3019, 4294901760
    %v3267 = vsub.f32 %v3019, %v3266
    %3268 = vmatpush1.msra.mxu0 %v3267
    %3269 = vmatprep.subr.mxu0 0.0
    %3270 = vmatpush2.msra.mxu0 0.0
    %3271 = vmatprep.subr.mxu0 0.0
    %3272 = vmatpush2.msra.mxu0 0.0
    %3273 = vmatprep.subr.mxu0 0.0
    %3274 = vmatpush2.msra.mxu0 0.0
    %3275 = vmatprep.subr.mxu0 0.0
    %3276 = vmatpush2.msra.mxu0 0.0
    %3277 = vmatprep.subr.mxu0 0.0
    %3278 = vmatpush2.msra.mxu0 0.0
    %3279 = vmatprep.subr.mxu0 0.0
    %3280 = vmatpush2.msra.mxu0 0.0
    %3281 = vmatprep.subr.mxu0 0.0
    %3282 = vmatpush2.msra.mxu0 0.0
    %3283 = vmatprep.subr.mxu0 0.0
    %3284 = vmatpush2.msra.mxu0 0.0
    %3285 = vmatprep.subr.mxu0 0.0
    %3286 = vmatpush2.msra.mxu0 0.0
    %3287 = vmatprep.subr.mxu0 0.0
    %3288 = vmatpush2.msra.mxu0 0.0
    %3289 = vmatprep.subr.mxu0 0.0
    %3290 = vmatpush2.msra.mxu0 0.0
    %3291 = vmatprep.subr.mxu0 0.0
    %3292 = vmatpush2.msra.mxu0 0.0
    %3293 = vmatprep.subr.mxu0 0.0
    %3294 = vmatpush2.msra.mxu0 0.0
    %3295 = vmatprep.subr.mxu0 0.0
    %3296 = vmatpush2.msra.mxu0 0.0
    %3297 = vmatprep.subr.mxu0 0.0
    %3298 = vmatpush2.msra.mxu0 0.0
    %3299 = vmatprep.subr.mxu0 0.0
    %3300 = vmatpush2.msra.mxu0 0.0
    %3301 = vmatprep.mubr.f32.mxu0 0.0
    %v3302 = vand.u32 %v180, 4294901760
    %v3303 = vsub.f32 %v180, %v3302
    %3304 = vmatmul.mubr.f32.gmra.mxu0 %v3303
    %v3305 = vpop.f32.mrf.mxu0
    %v3306 = vadd.f32 %v3218, %v3305
    %v3307 = vpop.f32.mrf.mxu0
    %3308 = vdwg.mxu0
    %3309 = vmatprep.subr.mxu0 0.0
    %3310 = vmatpush1.msra.mxu0 0.0
    %3311 = vmatprep.subr.mxu0 0.0
    %3312 = vmatpush1.msra.mxu0 0.0
    %3313 = vmatprep.subr.mxu0 0.0
    %3314 = vmatpush1.msra.mxu0 0.0
    %3315 = vmatprep.subr.mxu0 0.0
    %3316 = vmatpush1.msra.mxu0 0.0
    %3317 = vmatprep.subr.mxu0 0.0
    %3318 = vmatpush1.msra.mxu0 0.0
    %3319 = vmatprep.subr.mxu0 0.0
    %3320 = vmatpush1.msra.mxu0 0.0
    %3321 = vmatprep.subr.mxu0 0.0
    %3322 = vmatpush1.msra.mxu0 0.0
    %3323 = vmatprep.subr.mxu0 0.0
    %3324 = vmatpush1.msra.mxu0 0.0
    %3325 = vmatprep.subr.mxu0 0.0
    %v3326 = vand.u32 %v3026, 4294901760
    %3327 = vmatpush1.msra.mxu0 %v3326
    %3328 = vmatprep.subr.mxu0 0.0
    %v3329 = vand.u32 %v3025, 4294901760
    %3330 = vmatpush1.msra.mxu0 %v3329
    %3331 = vmatprep.subr.mxu0 0.0
    %v3332 = vand.u32 %v3024, 4294901760
    %3333 = vmatpush1.msra.mxu0 %v3332
    %3334 = vmatprep.subr.mxu0 0.0
    %v3335 = vand.u32 %v3023, 4294901760
    %3336 = vmatpush1.msra.mxu0 %v3335
    %3337 = vmatprep.subr.mxu0 0.0
    %v3338 = vand.u32 %v3022, 4294901760
    %3339 = vmatpush1.msra.mxu0 %v3338
    %3340 = vmatprep.subr.mxu0 0.0
    %v3341 = vand.u32 %v3021, 4294901760
    %3342 = vmatpush1.msra.mxu0 %v3341
    %3343 = vmatprep.subr.mxu0 0.0
    %v3344 = vand.u32 %v3020, 4294901760
    %3345 = vmatpush1.msra.mxu0 %v3344
    %3346 = vmatprep.subr.mxu0 0.0
    %v3347 = vand.u32 %v3019, 4294901760
    %3348 = vmatpush1.msra.mxu0 %v3347
    %3349 = vmatprep.subr.mxu0 0.0
    %3350 = vmatpush2.msra.mxu0 0.0
    %3351 = vmatprep.subr.mxu0 0.0
    %3352 = vmatpush2.msra.mxu0 0.0
    %3353 = vmatprep.subr.mxu0 0.0
    %3354 = vmatpush2.msra.mxu0 0.0
    %3355 = vmatprep.subr.mxu0 0.0
    %3356 = vmatpush2.msra.mxu0 0.0
    %3357 = vmatprep.subr.mxu0 0.0
    %3358 = vmatpush2.msra.mxu0 0.0
    %3359 = vmatprep.subr.mxu0 0.0
    %3360 = vmatpush2.msra.mxu0 0.0
    %3361 = vmatprep.subr.mxu0 0.0
    %3362 = vmatpush2.msra.mxu0 0.0
    %3363 = vmatprep.subr.mxu0 0.0
    %3364 = vmatpush2.msra.mxu0 0.0
    %3365 = vmatprep.subr.mxu0 0.0
    %3366 = vmatpush2.msra.mxu0 0.0
    %3367 = vmatprep.subr.mxu0 0.0
    %3368 = vmatpush2.msra.mxu0 0.0
    %3369 = vmatprep.subr.mxu0 0.0
    %3370 = vmatpush2.msra.mxu0 0.0
    %3371 = vmatprep.subr.mxu0 0.0
    %3372 = vmatpush2.msra.mxu0 0.0
    %3373 = vmatprep.subr.mxu0 0.0
    %3374 = vmatpush2.msra.mxu0 0.0
    %3375 = vmatprep.subr.mxu0 0.0
    %3376 = vmatpush2.msra.mxu0 0.0
    %3377 = vmatprep.subr.mxu0 0.0
    %3378 = vmatpush2.msra.mxu0 0.0
    %3379 = vmatprep.subr.mxu0 0.0
    %3380 = vmatpush2.msra.mxu0 0.0
    %3381 = vmatprep.mubr.f32.mxu0 0.0
    %v3382 = vand.u32 %v180, 4294901760
    %v3383 = vsub.f32 %v180, %v3382
    %v3384 = vand.u32 %v3383, 4294901760
    %3385 = vmatmul.mubr.f32.gmra.mxu0 %v3384
    %v3386 = vpop.f32.mrf.mxu0
    %v3387 = vadd.f32 %v3306, %v3386
    %v3388 = vpop.f32.mrf.mxu0
    %3389 = vdwg.mxu0
    %3390 = vmatprep.subr.mxu0 0.0
    %3391 = vmatpush1.msra.mxu0 0.0
    %3392 = vmatprep.subr.mxu0 0.0
    %3393 = vmatpush1.msra.mxu0 0.0
    %3394 = vmatprep.subr.mxu0 0.0
    %3395 = vmatpush1.msra.mxu0 0.0
    %3396 = vmatprep.subr.mxu0 0.0
    %3397 = vmatpush1.msra.mxu0 0.0
    %3398 = vmatprep.subr.mxu0 0.0
    %3399 = vmatpush1.msra.mxu0 0.0
    %3400 = vmatprep.subr.mxu0 0.0
    %3401 = vmatpush1.msra.mxu0 0.0
    %3402 = vmatprep.subr.mxu0 0.0
    %3403 = vmatpush1.msra.mxu0 0.0
    %3404 = vmatprep.subr.mxu0 0.0
    %3405 = vmatpush1.msra.mxu0 0.0
    %3406 = vmatprep.subr.mxu0 0.0
    %v3407 = vand.u32 %v3026, 4294901760
    %v3408 = vsub.f32 %v3026, %v3407
    %v3409 = vand.u32 %v3408, 4294901760
    %3410 = vmatpush1.msra.mxu0 %v3409
    %3411 = vmatprep.subr.mxu0 0.0
    %v3412 = vand.u32 %v3025, 4294901760
    %v3413 = vsub.f32 %v3025, %v3412
    %v3414 = vand.u32 %v3413, 4294901760
    %3415 = vmatpush1.msra.mxu0 %v3414
    %3416 = vmatprep.subr.mxu0 0.0
    %v3417 = vand.u32 %v3024, 4294901760
    %v3418 = vsub.f32 %v3024, %v3417
    %v3419 = vand.u32 %v3418, 4294901760
    %3420 = vmatpush1.msra.mxu0 %v3419
    %3421 = vmatprep.subr.mxu0 0.0
    %v3422 = vand.u32 %v3023, 4294901760
    %v3423 = vsub.f32 %v3023, %v3422
    %v3424 = vand.u32 %v3423, 4294901760
    %3425 = vmatpush1.msra.mxu0 %v3424
    %3426 = vmatprep.subr.mxu0 0.0
    %v3427 = vand.u32 %v3022, 4294901760
    %v3428 = vsub.f32 %v3022, %v3427
    %v3429 = vand.u32 %v3428, 4294901760
    %3430 = vmatpush1.msra.mxu0 %v3429
    %3431 = vmatprep.subr.mxu0 0.0
    %v3432 = vand.u32 %v3021, 4294901760
    %v3433 = vsub.f32 %v3021, %v3432
    %v3434 = vand.u32 %v3433, 4294901760
    %3435 = vmatpush1.msra.mxu0 %v3434
    %3436 = vmatprep.subr.mxu0 0.0
    %v3437 = vand.u32 %v3020, 4294901760
    %v3438 = vsub.f32 %v3020, %v3437
    %v3439 = vand.u32 %v3438, 4294901760
    %3440 = vmatpush1.msra.mxu0 %v3439
    %3441 = vmatprep.subr.mxu0 0.0
    %v3442 = vand.u32 %v3019, 4294901760
    %v3443 = vsub.f32 %v3019, %v3442
    %v3444 = vand.u32 %v3443, 4294901760
    %3445 = vmatpush1.msra.mxu0 %v3444
    %3446 = vmatprep.subr.mxu0 0.0
    %3447 = vmatpush2.msra.mxu0 0.0
    %3448 = vmatprep.subr.mxu0 0.0
    %3449 = vmatpush2.msra.mxu0 0.0
    %3450 = vmatprep.subr.mxu0 0.0
    %3451 = vmatpush2.msra.mxu0 0.0
    %3452 = vmatprep.subr.mxu0 0.0
    %3453 = vmatpush2.msra.mxu0 0.0
    %3454 = vmatprep.subr.mxu0 0.0
    %3455 = vmatpush2.msra.mxu0 0.0
    %3456 = vmatprep.subr.mxu0 0.0
    %3457 = vmatpush2.msra.mxu0 0.0
    %3458 = vmatprep.subr.mxu0 0.0
    %3459 = vmatpush2.msra.mxu0 0.0
    %3460 = vmatprep.subr.mxu0 0.0
    %3461 = vmatpush2.msra.mxu0 0.0
    %3462 = vmatprep.subr.mxu0 0.0
    %3463 = vmatpush2.msra.mxu0 0.0
    %3464 = vmatprep.subr.mxu0 0.0
    %3465 = vmatpush2.msra.mxu0 0.0
    %3466 = vmatprep.subr.mxu0 0.0
    %3467 = vmatpush2.msra.mxu0 0.0
    %3468 = vmatprep.subr.mxu0 0.0
    %3469 = vmatpush2.msra.mxu0 0.0
    %3470 = vmatprep.subr.mxu0 0.0
    %3471 = vmatpush2.msra.mxu0 0.0
    %3472 = vmatprep.subr.mxu0 0.0
    %3473 = vmatpush2.msra.mxu0 0.0
    %3474 = vmatprep.subr.mxu0 0.0
    %3475 = vmatpush2.msra.mxu0 0.0
    %3476 = vmatprep.subr.mxu0 0.0
    %3477 = vmatpush2.msra.mxu0 0.0
    %3478 = vmatprep.mubr.f32.mxu0 0.0
    %v3479 = vand.u32 %v180, 4294901760
    %3480 = vmatmul.mubr.f32.gmra.mxu0 %v3479
    %v3481 = vpop.f32.mrf.mxu0
    %v3482 = vadd.f32 %v3387, %v3481
    %v3483 = vpop.f32.mrf.mxu0
    %3484 = vdwg.mxu0
    %3485 = vmatprep.subr.mxu0 0.0
    %3486 = vmatpush1.msra.mxu0 0.0
    %3487 = vmatprep.subr.mxu0 0.0
    %3488 = vmatpush1.msra.mxu0 0.0
    %3489 = vmatprep.subr.mxu0 0.0
    %3490 = vmatpush1.msra.mxu0 0.0
    %3491 = vmatprep.subr.mxu0 0.0
    %3492 = vmatpush1.msra.mxu0 0.0
    %3493 = vmatprep.subr.mxu0 0.0
    %3494 = vmatpush1.msra.mxu0 0.0
    %3495 = vmatprep.subr.mxu0 0.0
    %3496 = vmatpush1.msra.mxu0 0.0
    %3497 = vmatprep.subr.mxu0 0.0
    %3498 = vmatpush1.msra.mxu0 0.0
    %3499 = vmatprep.subr.mxu0 0.0
    %3500 = vmatpush1.msra.mxu0 0.0
    %3501 = vmatprep.subr.mxu0 0.0
    %v3502 = vand.u32 %v3026, 4294901760
    %3503 = vmatpush1.msra.mxu0 %v3502
    %3504 = vmatprep.subr.mxu0 0.0
    %v3505 = vand.u32 %v3025, 4294901760
    %3506 = vmatpush1.msra.mxu0 %v3505
    %3507 = vmatprep.subr.mxu0 0.0
    %v3508 = vand.u32 %v3024, 4294901760
    %3509 = vmatpush1.msra.mxu0 %v3508
    %3510 = vmatprep.subr.mxu0 0.0
    %v3511 = vand.u32 %v3023, 4294901760
    %3512 = vmatpush1.msra.mxu0 %v3511
    %3513 = vmatprep.subr.mxu0 0.0
    %v3514 = vand.u32 %v3022, 4294901760
    %3515 = vmatpush1.msra.mxu0 %v3514
    %3516 = vmatprep.subr.mxu0 0.0
    %v3517 = vand.u32 %v3021, 4294901760
    %3518 = vmatpush1.msra.mxu0 %v3517
    %3519 = vmatprep.subr.mxu0 0.0
    %v3520 = vand.u32 %v3020, 4294901760
    %3521 = vmatpush1.msra.mxu0 %v3520
    %3522 = vmatprep.subr.mxu0 0.0
    %v3523 = vand.u32 %v3019, 4294901760
    %3524 = vmatpush1.msra.mxu0 %v3523
    %3525 = vmatprep.subr.mxu0 0.0
    %3526 = vmatpush2.msra.mxu0 0.0
    %3527 = vmatprep.subr.mxu0 0.0
    %3528 = vmatpush2.msra.mxu0 0.0
    %3529 = vmatprep.subr.mxu0 0.0
    %3530 = vmatpush2.msra.mxu0 0.0
    %3531 = vmatprep.subr.mxu0 0.0
    %3532 = vmatpush2.msra.mxu0 0.0
    %3533 = vmatprep.subr.mxu0 0.0
    %3534 = vmatpush2.msra.mxu0 0.0
    %3535 = vmatprep.subr.mxu0 0.0
    %3536 = vmatpush2.msra.mxu0 0.0
    %3537 = vmatprep.subr.mxu0 0.0
    %3538 = vmatpush2.msra.mxu0 0.0
    %3539 = vmatprep.subr.mxu0 0.0
    %3540 = vmatpush2.msra.mxu0 0.0
    %3541 = vmatprep.subr.mxu0 0.0
    %3542 = vmatpush2.msra.mxu0 0.0
    %3543 = vmatprep.subr.mxu0 0.0
    %3544 = vmatpush2.msra.mxu0 0.0
    %3545 = vmatprep.subr.mxu0 0.0
    %3546 = vmatpush2.msra.mxu0 0.0
    %3547 = vmatprep.subr.mxu0 0.0
    %3548 = vmatpush2.msra.mxu0 0.0
    %3549 = vmatprep.subr.mxu0 0.0
    %3550 = vmatpush2.msra.mxu0 0.0
    %3551 = vmatprep.subr.mxu0 0.0
    %3552 = vmatpush2.msra.mxu0 0.0
    %3553 = vmatprep.subr.mxu0 0.0
    %3554 = vmatpush2.msra.mxu0 0.0
    %3555 = vmatprep.subr.mxu0 0.0
    %3556 = vmatpush2.msra.mxu0 0.0
    %3557 = vmatprep.mubr.f32.mxu0 0.0
    %v3558 = vand.u32 %v180, 4294901760
    %3559 = vmatmul.mubr.f32.gmra.mxu0 %v3558
    %v3560 = vpop.f32.mrf.mxu0
    %v3561 = vadd.f32 %v3482, %v3560
    %v3562 = vpop.f32.mrf.mxu0
    %3563 = vdwg.mxu0
    %v3564 = vsub.f32 %v114, 6.0
    %v3565 = vsub.f32 %v115, 6.0
    %v3566 = vsub.f32 %v116, 6.0
    %v3567 = vsub.f32 %v117, 6.0
    %v3568 = vsub.f32 %v118, 6.0
    %v3569 = vsub.f32 %v119, 6.0
    %v3570 = vsub.f32 %v120, 6.0
    %v3571 = vsub.f32 %v121, 6.0
    %v3572 = vand.u32 2147483647, %v3564
    %v3573 = vand.u32 2147483647, %v3565
    %v3574 = vand.u32 2147483647, %v3566
    %v3575 = vand.u32 2147483647, %v3567
    %v3576 = vand.u32 2147483647, %v3568
    %v3577 = vand.u32 2147483647, %v3569
    %v3578 = vand.u32 2147483647, %v3570
    %v3579 = vand.u32 2147483647, %v3571
    %v3580 = vsub.f32 %v146, %v3572
    %v3581 = vsub.f32 %v147, %v3573
    %v3582 = vsub.f32 %v148, %v3574
    %v3583 = vsub.f32 %v149, %v3575
    %v3584 = vsub.f32 %v150, %v3576
    %v3585 = vsub.f32 %v151, %v3577
    %v3586 = vsub.f32 %v152, %v3578
    %v3587 = vsub.f32 %v153, %v3579
    %v3588 = vmax.f32 %v3580, 0.0
    %v3589 = vmax.f32 %v3581, 0.0
    %v3590 = vmax.f32 %v3582, 0.0
    %v3591 = vmax.f32 %v3583, 0.0
    %v3592 = vmax.f32 %v3584, 0.0
    %v3593 = vmax.f32 %v3585, 0.0
    %v3594 = vmax.f32 %v3586, 0.0
    %v3595 = vmax.f32 %v3587, 0.0
    %3596 = vmatprep.subr.mxu0 0.0
    %3597 = vmatpush1.msra.mxu0 0.0
    %3598 = vmatprep.subr.mxu0 0.0
    %3599 = vmatpush1.msra.mxu0 0.0
    %3600 = vmatprep.subr.mxu0 0.0
    %3601 = vmatpush1.msra.mxu0 0.0
    %3602 = vmatprep.subr.mxu0 0.0
    %3603 = vmatpush1.msra.mxu0 0.0
    %3604 = vmatprep.subr.mxu0 0.0
    %3605 = vmatpush1.msra.mxu0 0.0
    %3606 = vmatprep.subr.mxu0 0.0
    %3607 = vmatpush1.msra.mxu0 0.0
    %3608 = vmatprep.subr.mxu0 0.0
    %3609 = vmatpush1.msra.mxu0 0.0
    %3610 = vmatprep.subr.mxu0 0.0
    %3611 = vmatpush1.msra.mxu0 0.0
    %3612 = vmatprep.subr.mxu0 0.0
    %v3613 = vand.u32 %v3595, 4294901760
    %3614 = vmatpush1.msra.mxu0 %v3613
    %3615 = vmatprep.subr.mxu0 0.0
    %v3616 = vand.u32 %v3594, 4294901760
    %3617 = vmatpush1.msra.mxu0 %v3616
    %3618 = vmatprep.subr.mxu0 0.0
    %v3619 = vand.u32 %v3593, 4294901760
    %3620 = vmatpush1.msra.mxu0 %v3619
    %3621 = vmatprep.subr.mxu0 0.0
    %v3622 = vand.u32 %v3592, 4294901760
    %3623 = vmatpush1.msra.mxu0 %v3622
    %3624 = vmatprep.subr.mxu0 0.0
    %v3625 = vand.u32 %v3591, 4294901760
    %3626 = vmatpush1.msra.mxu0 %v3625
    %3627 = vmatprep.subr.mxu0 0.0
    %v3628 = vand.u32 %v3590, 4294901760
    %3629 = vmatpush1.msra.mxu0 %v3628
    %3630 = vmatprep.subr.mxu0 0.0
    %v3631 = vand.u32 %v3589, 4294901760
    %3632 = vmatpush1.msra.mxu0 %v3631
    %3633 = vmatprep.subr.mxu0 0.0
    %v3634 = vand.u32 %v3588, 4294901760
    %3635 = vmatpush1.msra.mxu0 %v3634
    %3636 = vmatprep.subr.mxu0 0.0
    %3637 = vmatpush2.msra.mxu0 0.0
    %3638 = vmatprep.subr.mxu0 0.0
    %3639 = vmatpush2.msra.mxu0 0.0
    %3640 = vmatprep.subr.mxu0 0.0
    %3641 = vmatpush2.msra.mxu0 0.0
    %3642 = vmatprep.subr.mxu0 0.0
    %3643 = vmatpush2.msra.mxu0 0.0
    %3644 = vmatprep.subr.mxu0 0.0
    %3645 = vmatpush2.msra.mxu0 0.0
    %3646 = vmatprep.subr.mxu0 0.0
    %3647 = vmatpush2.msra.mxu0 0.0
    %3648 = vmatprep.subr.mxu0 0.0
    %3649 = vmatpush2.msra.mxu0 0.0
    %3650 = vmatprep.subr.mxu0 0.0
    %3651 = vmatpush2.msra.mxu0 0.0
    %3652 = vmatprep.subr.mxu0 0.0
    %3653 = vmatpush2.msra.mxu0 0.0
    %3654 = vmatprep.subr.mxu0 0.0
    %3655 = vmatpush2.msra.mxu0 0.0
    %3656 = vmatprep.subr.mxu0 0.0
    %3657 = vmatpush2.msra.mxu0 0.0
    %3658 = vmatprep.subr.mxu0 0.0
    %3659 = vmatpush2.msra.mxu0 0.0
    %3660 = vmatprep.subr.mxu0 0.0
    %3661 = vmatpush2.msra.mxu0 0.0
    %3662 = vmatprep.subr.mxu0 0.0
    %3663 = vmatpush2.msra.mxu0 0.0
    %3664 = vmatprep.subr.mxu0 0.0
    %3665 = vmatpush2.msra.mxu0 0.0
    %3666 = vmatprep.subr.mxu0 0.0
    %3667 = vmatpush2.msra.mxu0 0.0
    %3668 = vmatprep.mubr.f32.mxu0 0.0
    %v3669 = vand.u32 %v180, 4294901760
    %v3670 = vsub.f32 %v180, %v3669
    %v3671 = vand.u32 %v3670, 4294901760
    %v3672 = vsub.f32 %v3670, %v3671
    %v3673 = vand.u32 %v3672, 4294901760
    %3674 = vmatmul.mubr.f32.gmra.mxu0 %v3673
    %v3675 = vpop.f32.mrf.mxu0
    %v3676 = vadd.f32 0.0, %v3675
    %v3677 = vpop.f32.mrf.mxu0
    %3678 = vdwg.mxu0
    %3679 = vmatprep.subr.mxu0 0.0
    %3680 = vmatpush1.msra.mxu0 0.0
    %3681 = vmatprep.subr.mxu0 0.0
    %3682 = vmatpush1.msra.mxu0 0.0
    %3683 = vmatprep.subr.mxu0 0.0
    %3684 = vmatpush1.msra.mxu0 0.0
    %3685 = vmatprep.subr.mxu0 0.0
    %3686 = vmatpush1.msra.mxu0 0.0
    %3687 = vmatprep.subr.mxu0 0.0
    %3688 = vmatpush1.msra.mxu0 0.0
    %3689 = vmatprep.subr.mxu0 0.0
    %3690 = vmatpush1.msra.mxu0 0.0
    %3691 = vmatprep.subr.mxu0 0.0
    %3692 = vmatpush1.msra.mxu0 0.0
    %3693 = vmatprep.subr.mxu0 0.0
    %3694 = vmatpush1.msra.mxu0 0.0
    %3695 = vmatprep.subr.mxu0 0.0
    %v3696 = vand.u32 %v3595, 4294901760
    %v3697 = vsub.f32 %v3595, %v3696
    %v3698 = vand.u32 %v3697, 4294901760
    %v3699 = vsub.f32 %v3697, %v3698
    %v3700 = vand.u32 %v3699, 4294901760
    %3701 = vmatpush1.msra.mxu0 %v3700
    %3702 = vmatprep.subr.mxu0 0.0
    %v3703 = vand.u32 %v3594, 4294901760
    %v3704 = vsub.f32 %v3594, %v3703
    %v3705 = vand.u32 %v3704, 4294901760
    %v3706 = vsub.f32 %v3704, %v3705
    %v3707 = vand.u32 %v3706, 4294901760
    %3708 = vmatpush1.msra.mxu0 %v3707
    %3709 = vmatprep.subr.mxu0 0.0
    %v3710 = vand.u32 %v3593, 4294901760
    %v3711 = vsub.f32 %v3593, %v3710
    %v3712 = vand.u32 %v3711, 4294901760
    %v3713 = vsub.f32 %v3711, %v3712
    %v3714 = vand.u32 %v3713, 4294901760
    %3715 = vmatpush1.msra.mxu0 %v3714
    %3716 = vmatprep.subr.mxu0 0.0
    %v3717 = vand.u32 %v3592, 4294901760
    %v3718 = vsub.f32 %v3592, %v3717
    %v3719 = vand.u32 %v3718, 4294901760
    %v3720 = vsub.f32 %v3718, %v3719
    %v3721 = vand.u32 %v3720, 4294901760
    %3722 = vmatpush1.msra.mxu0 %v3721
    %3723 = vmatprep.subr.mxu0 0.0
    %v3724 = vand.u32 %v3591, 4294901760
    %v3725 = vsub.f32 %v3591, %v3724
    %v3726 = vand.u32 %v3725, 4294901760
    %v3727 = vsub.f32 %v3725, %v3726
    %v3728 = vand.u32 %v3727, 4294901760
    %3729 = vmatpush1.msra.mxu0 %v3728
    %3730 = vmatprep.subr.mxu0 0.0
    %v3731 = vand.u32 %v3590, 4294901760
    %v3732 = vsub.f32 %v3590, %v3731
    %v3733 = vand.u32 %v3732, 4294901760
    %v3734 = vsub.f32 %v3732, %v3733
    %v3735 = vand.u32 %v3734, 4294901760
    %3736 = vmatpush1.msra.mxu0 %v3735
    %3737 = vmatprep.subr.mxu0 0.0
    %v3738 = vand.u32 %v3589, 4294901760
    %v3739 = vsub.f32 %v3589, %v3738
    %v3740 = vand.u32 %v3739, 4294901760
    %v3741 = vsub.f32 %v3739, %v3740
    %v3742 = vand.u32 %v3741, 4294901760
    %3743 = vmatpush1.msra.mxu0 %v3742
    %3744 = vmatprep.subr.mxu0 0.0
    %v3745 = vand.u32 %v3588, 4294901760
    %v3746 = vsub.f32 %v3588, %v3745
    %v3747 = vand.u32 %v3746, 4294901760
    %v3748 = vsub.f32 %v3746, %v3747
    %v3749 = vand.u32 %v3748, 4294901760
    %3750 = vmatpush1.msra.mxu0 %v3749
    %3751 = vmatprep.subr.mxu0 0.0
    %3752 = vmatpush2.msra.mxu0 0.0
    %3753 = vmatprep.subr.mxu0 0.0
    %3754 = vmatpush2.msra.mxu0 0.0
    %3755 = vmatprep.subr.mxu0 0.0
    %3756 = vmatpush2.msra.mxu0 0.0
    %3757 = vmatprep.subr.mxu0 0.0
    %3758 = vmatpush2.msra.mxu0 0.0
    %3759 = vmatprep.subr.mxu0 0.0
    %3760 = vmatpush2.msra.mxu0 0.0
    %3761 = vmatprep.subr.mxu0 0.0
    %3762 = vmatpush2.msra.mxu0 0.0
    %3763 = vmatprep.subr.mxu0 0.0
    %3764 = vmatpush2.msra.mxu0 0.0
    %3765 = vmatprep.subr.mxu0 0.0
    %3766 = vmatpush2.msra.mxu0 0.0
    %3767 = vmatprep.subr.mxu0 0.0
    %3768 = vmatpush2.msra.mxu0 0.0
    %3769 = vmatprep.subr.mxu0 0.0
    %3770 = vmatpush2.msra.mxu0 0.0
    %3771 = vmatprep.subr.mxu0 0.0
    %3772 = vmatpush2.msra.mxu0 0.0
    %3773 = vmatprep.subr.mxu0 0.0
    %3774 = vmatpush2.msra.mxu0 0.0
    %3775 = vmatprep.subr.mxu0 0.0
    %3776 = vmatpush2.msra.mxu0 0.0
    %3777 = vmatprep.subr.mxu0 0.0
    %3778 = vmatpush2.msra.mxu0 0.0
    %3779 = vmatprep.subr.mxu0 0.0
    %3780 = vmatpush2.msra.mxu0 0.0
    %3781 = vmatprep.subr.mxu0 0.0
    %3782 = vmatpush2.msra.mxu0 0.0
    %3783 = vmatprep.mubr.f32.mxu0 0.0
    %v3784 = vand.u32 %v180, 4294901760
    %3785 = vmatmul.mubr.f32.gmra.mxu0 %v3784
    %v3786 = vpop.f32.mrf.mxu0
    %v3787 = vadd.f32 %v3676, %v3786
    %v3788 = vpop.f32.mrf.mxu0
    %3789 = vdwg.mxu0
    %3790 = vmatprep.subr.mxu0 0.0
    %3791 = vmatpush1.msra.mxu0 0.0
    %3792 = vmatprep.subr.mxu0 0.0
    %3793 = vmatpush1.msra.mxu0 0.0
    %3794 = vmatprep.subr.mxu0 0.0
    %3795 = vmatpush1.msra.mxu0 0.0
    %3796 = vmatprep.subr.mxu0 0.0
    %3797 = vmatpush1.msra.mxu0 0.0
    %3798 = vmatprep.subr.mxu0 0.0
    %3799 = vmatpush1.msra.mxu0 0.0
    %3800 = vmatprep.subr.mxu0 0.0
    %3801 = vmatpush1.msra.mxu0 0.0
    %3802 = vmatprep.subr.mxu0 0.0
    %3803 = vmatpush1.msra.mxu0 0.0
    %3804 = vmatprep.subr.mxu0 0.0
    %3805 = vmatpush1.msra.mxu0 0.0
    %3806 = vmatprep.subr.mxu0 0.0
    %v3807 = vand.u32 %v3595, 4294901760
    %v3808 = vsub.f32 %v3595, %v3807
    %3809 = vmatpush1.msra.mxu0 %v3808
    %3810 = vmatprep.subr.mxu0 0.0
    %v3811 = vand.u32 %v3594, 4294901760
    %v3812 = vsub.f32 %v3594, %v3811
    %3813 = vmatpush1.msra.mxu0 %v3812
    %3814 = vmatprep.subr.mxu0 0.0
    %v3815 = vand.u32 %v3593, 4294901760
    %v3816 = vsub.f32 %v3593, %v3815
    %3817 = vmatpush1.msra.mxu0 %v3816
    %3818 = vmatprep.subr.mxu0 0.0
    %v3819 = vand.u32 %v3592, 4294901760
    %v3820 = vsub.f32 %v3592, %v3819
    %3821 = vmatpush1.msra.mxu0 %v3820
    %3822 = vmatprep.subr.mxu0 0.0
    %v3823 = vand.u32 %v3591, 4294901760
    %v3824 = vsub.f32 %v3591, %v3823
    %3825 = vmatpush1.msra.mxu0 %v3824
    %3826 = vmatprep.subr.mxu0 0.0
    %v3827 = vand.u32 %v3590, 4294901760
    %v3828 = vsub.f32 %v3590, %v3827
    %3829 = vmatpush1.msra.mxu0 %v3828
    %3830 = vmatprep.subr.mxu0 0.0
    %v3831 = vand.u32 %v3589, 4294901760
    %v3832 = vsub.f32 %v3589, %v3831
    %3833 = vmatpush1.msra.mxu0 %v3832
    %3834 = vmatprep.subr.mxu0 0.0
    %v3835 = vand.u32 %v3588, 4294901760
    %v3836 = vsub.f32 %v3588, %v3835
    %3837 = vmatpush1.msra.mxu0 %v3836
    %3838 = vmatprep.subr.mxu0 0.0
    %3839 = vmatpush2.msra.mxu0 0.0
    %3840 = vmatprep.subr.mxu0 0.0
    %3841 = vmatpush2.msra.mxu0 0.0
    %3842 = vmatprep.subr.mxu0 0.0
    %3843 = vmatpush2.msra.mxu0 0.0
    %3844 = vmatprep.subr.mxu0 0.0
    %3845 = vmatpush2.msra.mxu0 0.0
    %3846 = vmatprep.subr.mxu0 0.0
    %3847 = vmatpush2.msra.mxu0 0.0
    %3848 = vmatprep.subr.mxu0 0.0
    %3849 = vmatpush2.msra.mxu0 0.0
    %3850 = vmatprep.subr.mxu0 0.0
    %3851 = vmatpush2.msra.mxu0 0.0
    %3852 = vmatprep.subr.mxu0 0.0
    %3853 = vmatpush2.msra.mxu0 0.0
    %3854 = vmatprep.subr.mxu0 0.0
    %3855 = vmatpush2.msra.mxu0 0.0
    %3856 = vmatprep.subr.mxu0 0.0
    %3857 = vmatpush2.msra.mxu0 0.0
    %3858 = vmatprep.subr.mxu0 0.0
    %3859 = vmatpush2.msra.mxu0 0.0
    %3860 = vmatprep.subr.mxu0 0.0
    %3861 = vmatpush2.msra.mxu0 0.0
    %3862 = vmatprep.subr.mxu0 0.0
    %3863 = vmatpush2.msra.mxu0 0.0
    %3864 = vmatprep.subr.mxu0 0.0
    %3865 = vmatpush2.msra.mxu0 0.0
    %3866 = vmatprep.subr.mxu0 0.0
    %3867 = vmatpush2.msra.mxu0 0.0
    %3868 = vmatprep.subr.mxu0 0.0
    %3869 = vmatpush2.msra.mxu0 0.0
    %3870 = vmatprep.mubr.f32.mxu0 0.0
    %v3871 = vand.u32 %v180, 4294901760
    %v3872 = vsub.f32 %v180, %v3871
    %3873 = vmatmul.mubr.f32.gmra.mxu0 %v3872
    %v3874 = vpop.f32.mrf.mxu0
    %v3875 = vadd.f32 %v3787, %v3874
    %v3876 = vpop.f32.mrf.mxu0
    %3877 = vdwg.mxu0
    %3878 = vmatprep.subr.mxu0 0.0
    %3879 = vmatpush1.msra.mxu0 0.0
    %3880 = vmatprep.subr.mxu0 0.0
    %3881 = vmatpush1.msra.mxu0 0.0
    %3882 = vmatprep.subr.mxu0 0.0
    %3883 = vmatpush1.msra.mxu0 0.0
    %3884 = vmatprep.subr.mxu0 0.0
    %3885 = vmatpush1.msra.mxu0 0.0
    %3886 = vmatprep.subr.mxu0 0.0
    %3887 = vmatpush1.msra.mxu0 0.0
    %3888 = vmatprep.subr.mxu0 0.0
    %3889 = vmatpush1.msra.mxu0 0.0
    %3890 = vmatprep.subr.mxu0 0.0
    %3891 = vmatpush1.msra.mxu0 0.0
    %3892 = vmatprep.subr.mxu0 0.0
    %3893 = vmatpush1.msra.mxu0 0.0
    %3894 = vmatprep.subr.mxu0 0.0
    %v3895 = vand.u32 %v3595, 4294901760
    %3896 = vmatpush1.msra.mxu0 %v3895
    %3897 = vmatprep.subr.mxu0 0.0
    %v3898 = vand.u32 %v3594, 4294901760
    %3899 = vmatpush1.msra.mxu0 %v3898
    %3900 = vmatprep.subr.mxu0 0.0
    %v3901 = vand.u32 %v3593, 4294901760
    %3902 = vmatpush1.msra.mxu0 %v3901
    %3903 = vmatprep.subr.mxu0 0.0
    %v3904 = vand.u32 %v3592, 4294901760
    %3905 = vmatpush1.msra.mxu0 %v3904
    %3906 = vmatprep.subr.mxu0 0.0
    %v3907 = vand.u32 %v3591, 4294901760
    %3908 = vmatpush1.msra.mxu0 %v3907
    %3909 = vmatprep.subr.mxu0 0.0
    %v3910 = vand.u32 %v3590, 4294901760
    %3911 = vmatpush1.msra.mxu0 %v3910
    %3912 = vmatprep.subr.mxu0 0.0
    %v3913 = vand.u32 %v3589, 4294901760
    %3914 = vmatpush1.msra.mxu0 %v3913
    %3915 = vmatprep.subr.mxu0 0.0
    %v3916 = vand.u32 %v3588, 4294901760
    %3917 = vmatpush1.msra.mxu0 %v3916
    %3918 = vmatprep.subr.mxu0 0.0
    %3919 = vmatpush2.msra.mxu0 0.0
    %3920 = vmatprep.subr.mxu0 0.0
    %3921 = vmatpush2.msra.mxu0 0.0
    %3922 = vmatprep.subr.mxu0 0.0
    %3923 = vmatpush2.msra.mxu0 0.0
    %3924 = vmatprep.subr.mxu0 0.0
    %3925 = vmatpush2.msra.mxu0 0.0
    %3926 = vmatprep.subr.mxu0 0.0
    %3927 = vmatpush2.msra.mxu0 0.0
    %3928 = vmatprep.subr.mxu0 0.0
    %3929 = vmatpush2.msra.mxu0 0.0
    %3930 = vmatprep.subr.mxu0 0.0
    %3931 = vmatpush2.msra.mxu0 0.0
    %3932 = vmatprep.subr.mxu0 0.0
    %3933 = vmatpush2.msra.mxu0 0.0
    %3934 = vmatprep.subr.mxu0 0.0
    %3935 = vmatpush2.msra.mxu0 0.0
    %3936 = vmatprep.subr.mxu0 0.0
    %3937 = vmatpush2.msra.mxu0 0.0
    %3938 = vmatprep.subr.mxu0 0.0
    %3939 = vmatpush2.msra.mxu0 0.0
    %3940 = vmatprep.subr.mxu0 0.0
    %3941 = vmatpush2.msra.mxu0 0.0
    %3942 = vmatprep.subr.mxu0 0.0
    %3943 = vmatpush2.msra.mxu0 0.0
    %3944 = vmatprep.subr.mxu0 0.0
    %3945 = vmatpush2.msra.mxu0 0.0
    %3946 = vmatprep.subr.mxu0 0.0
    %3947 = vmatpush2.msra.mxu0 0.0
    %3948 = vmatprep.subr.mxu0 0.0
    %3949 = vmatpush2.msra.mxu0 0.0
    %3950 = vmatprep.mubr.f32.mxu0 0.0
    %v3951 = vand.u32 %v180, 4294901760
    %v3952 = vsub.f32 %v180, %v3951
    %v3953 = vand.u32 %v3952, 4294901760
    %3954 = vmatmul.mubr.f32.gmra.mxu0 %v3953
    %v3955 = vpop.f32.mrf.mxu0
    %v3956 = vadd.f32 %v3875, %v3955
    %v3957 = vpop.f32.mrf.mxu0
    %3958 = vdwg.mxu0
    %3959 = vmatprep.subr.mxu0 0.0
    %3960 = vmatpush1.msra.mxu0 0.0
    %3961 = vmatprep.subr.mxu0 0.0
    %3962 = vmatpush1.msra.mxu0 0.0
    %3963 = vmatprep.subr.mxu0 0.0
    %3964 = vmatpush1.msra.mxu0 0.0
    %3965 = vmatprep.subr.mxu0 0.0
    %3966 = vmatpush1.msra.mxu0 0.0
    %3967 = vmatprep.subr.mxu0 0.0
    %3968 = vmatpush1.msra.mxu0 0.0
    %3969 = vmatprep.subr.mxu0 0.0
    %3970 = vmatpush1.msra.mxu0 0.0
    %3971 = vmatprep.subr.mxu0 0.0
    %3972 = vmatpush1.msra.mxu0 0.0
    %3973 = vmatprep.subr.mxu0 0.0
    %3974 = vmatpush1.msra.mxu0 0.0
    %3975 = vmatprep.subr.mxu0 0.0
    %v3976 = vand.u32 %v3595, 4294901760
    %v3977 = vsub.f32 %v3595, %v3976
    %v3978 = vand.u32 %v3977, 4294901760
    %3979 = vmatpush1.msra.mxu0 %v3978
    %3980 = vmatprep.subr.mxu0 0.0
    %v3981 = vand.u32 %v3594, 4294901760
    %v3982 = vsub.f32 %v3594, %v3981
    %v3983 = vand.u32 %v3982, 4294901760
    %3984 = vmatpush1.msra.mxu0 %v3983
    %3985 = vmatprep.subr.mxu0 0.0
    %v3986 = vand.u32 %v3593, 4294901760
    %v3987 = vsub.f32 %v3593, %v3986
    %v3988 = vand.u32 %v3987, 4294901760
    %3989 = vmatpush1.msra.mxu0 %v3988
    %3990 = vmatprep.subr.mxu0 0.0
    %v3991 = vand.u32 %v3592, 4294901760
    %v3992 = vsub.f32 %v3592, %v3991
    %v3993 = vand.u32 %v3992, 4294901760
    %3994 = vmatpush1.msra.mxu0 %v3993
    %3995 = vmatprep.subr.mxu0 0.0
    %v3996 = vand.u32 %v3591, 4294901760
    %v3997 = vsub.f32 %v3591, %v3996
    %v3998 = vand.u32 %v3997, 4294901760
    %3999 = vmatpush1.msra.mxu0 %v3998
    %4000 = vmatprep.subr.mxu0 0.0
    %v4001 = vand.u32 %v3590, 4294901760
    %v4002 = vsub.f32 %v3590, %v4001
    %v4003 = vand.u32 %v4002, 4294901760
    %4004 = vmatpush1.msra.mxu0 %v4003
    %4005 = vmatprep.subr.mxu0 0.0
    %v4006 = vand.u32 %v3589, 4294901760
    %v4007 = vsub.f32 %v3589, %v4006
    %v4008 = vand.u32 %v4007, 4294901760
    %4009 = vmatpush1.msra.mxu0 %v4008
    %4010 = vmatprep.subr.mxu0 0.0
    %v4011 = vand.u32 %v3588, 4294901760
    %v4012 = vsub.f32 %v3588, %v4011
    %v4013 = vand.u32 %v4012, 4294901760
    %4014 = vmatpush1.msra.mxu0 %v4013
    %4015 = vmatprep.subr.mxu0 0.0
    %4016 = vmatpush2.msra.mxu0 0.0
    %4017 = vmatprep.subr.mxu0 0.0
    %4018 = vmatpush2.msra.mxu0 0.0
    %4019 = vmatprep.subr.mxu0 0.0
    %4020 = vmatpush2.msra.mxu0 0.0
    %4021 = vmatprep.subr.mxu0 0.0
    %4022 = vmatpush2.msra.mxu0 0.0
    %4023 = vmatprep.subr.mxu0 0.0
    %4024 = vmatpush2.msra.mxu0 0.0
    %4025 = vmatprep.subr.mxu0 0.0
    %4026 = vmatpush2.msra.mxu0 0.0
    %4027 = vmatprep.subr.mxu0 0.0
    %4028 = vmatpush2.msra.mxu0 0.0
    %4029 = vmatprep.subr.mxu0 0.0
    %4030 = vmatpush2.msra.mxu0 0.0
    %4031 = vmatprep.subr.mxu0 0.0
    %4032 = vmatpush2.msra.mxu0 0.0
    %4033 = vmatprep.subr.mxu0 0.0
    %4034 = vmatpush2.msra.mxu0 0.0
    %4035 = vmatprep.subr.mxu0 0.0
    %4036 = vmatpush2.msra.mxu0 0.0
    %4037 = vmatprep.subr.mxu0 0.0
    %4038 = vmatpush2.msra.mxu0 0.0
    %4039 = vmatprep.subr.mxu0 0.0
    %4040 = vmatpush2.msra.mxu0 0.0
    %4041 = vmatprep.subr.mxu0 0.0
    %4042 = vmatpush2.msra.mxu0 0.0
    %4043 = vmatprep.subr.mxu0 0.0
    %4044 = vmatpush2.msra.mxu0 0.0
    %4045 = vmatprep.subr.mxu0 0.0
    %4046 = vmatpush2.msra.mxu0 0.0
    %4047 = vmatprep.mubr.f32.mxu0 0.0
    %v4048 = vand.u32 %v180, 4294901760
    %4049 = vmatmul.mubr.f32.gmra.mxu0 %v4048
    %v4050 = vpop.f32.mrf.mxu0
    %v4051 = vadd.f32 %v3956, %v4050
    %v4052 = vpop.f32.mrf.mxu0
    %4053 = vdwg.mxu0
    %4054 = vmatprep.subr.mxu0 0.0
    %4055 = vmatpush1.msra.mxu0 0.0
    %4056 = vmatprep.subr.mxu0 0.0
    %4057 = vmatpush1.msra.mxu0 0.0
    %4058 = vmatprep.subr.mxu0 0.0
    %4059 = vmatpush1.msra.mxu0 0.0
    %4060 = vmatprep.subr.mxu0 0.0
    %4061 = vmatpush1.msra.mxu0 0.0
    %4062 = vmatprep.subr.mxu0 0.0
    %4063 = vmatpush1.msra.mxu0 0.0
    %4064 = vmatprep.subr.mxu0 0.0
    %4065 = vmatpush1.msra.mxu0 0.0
    %4066 = vmatprep.subr.mxu0 0.0
    %4067 = vmatpush1.msra.mxu0 0.0
    %4068 = vmatprep.subr.mxu0 0.0
    %4069 = vmatpush1.msra.mxu0 0.0
    %4070 = vmatprep.subr.mxu0 0.0
    %v4071 = vand.u32 %v3595, 4294901760
    %4072 = vmatpush1.msra.mxu0 %v4071
    %4073 = vmatprep.subr.mxu0 0.0
    %v4074 = vand.u32 %v3594, 4294901760
    %4075 = vmatpush1.msra.mxu0 %v4074
    %4076 = vmatprep.subr.mxu0 0.0
    %v4077 = vand.u32 %v3593, 4294901760
    %4078 = vmatpush1.msra.mxu0 %v4077
    %4079 = vmatprep.subr.mxu0 0.0
    %v4080 = vand.u32 %v3592, 4294901760
    %4081 = vmatpush1.msra.mxu0 %v4080
    %4082 = vmatprep.subr.mxu0 0.0
    %v4083 = vand.u32 %v3591, 4294901760
    %4084 = vmatpush1.msra.mxu0 %v4083
    %4085 = vmatprep.subr.mxu0 0.0
    %v4086 = vand.u32 %v3590, 4294901760
    %4087 = vmatpush1.msra.mxu0 %v4086
    %4088 = vmatprep.subr.mxu0 0.0
    %v4089 = vand.u32 %v3589, 4294901760
    %4090 = vmatpush1.msra.mxu0 %v4089
    %4091 = vmatprep.subr.mxu0 0.0
    %v4092 = vand.u32 %v3588, 4294901760
    %4093 = vmatpush1.msra.mxu0 %v4092
    %4094 = vmatprep.subr.mxu0 0.0
    %4095 = vmatpush2.msra.mxu0 0.0
    %4096 = vmatprep.subr.mxu0 0.0
    %4097 = vmatpush2.msra.mxu0 0.0
    %4098 = vmatprep.subr.mxu0 0.0
    %4099 = vmatpush2.msra.mxu0 0.0
    %4100 = vmatprep.subr.mxu0 0.0
    %4101 = vmatpush2.msra.mxu0 0.0
    %4102 = vmatprep.subr.mxu0 0.0
    %4103 = vmatpush2.msra.mxu0 0.0
    %4104 = vmatprep.subr.mxu0 0.0
    %4105 = vmatpush2.msra.mxu0 0.0
    %4106 = vmatprep.subr.mxu0 0.0
    %4107 = vmatpush2.msra.mxu0 0.0
    %4108 = vmatprep.subr.mxu0 0.0
    %4109 = vmatpush2.msra.mxu0 0.0
    %4110 = vmatprep.subr.mxu0 0.0
    %4111 = vmatpush2.msra.mxu0 0.0
    %4112 = vmatprep.subr.mxu0 0.0
    %4113 = vmatpush2.msra.mxu0 0.0
    %4114 = vmatprep.subr.mxu0 0.0
    %4115 = vmatpush2.msra.mxu0 0.0
    %4116 = vmatprep.subr.mxu0 0.0
    %4117 = vmatpush2.msra.mxu0 0.0
    %4118 = vmatprep.subr.mxu0 0.0
    %4119 = vmatpush2.msra.mxu0 0.0
    %4120 = vmatprep.subr.mxu0 0.0
    %4121 = vmatpush2.msra.mxu0 0.0
    %4122 = vmatprep.subr.mxu0 0.0
    %4123 = vmatpush2.msra.mxu0 0.0
    %4124 = vmatprep.subr.mxu0 0.0
    %4125 = vmatpush2.msra.mxu0 0.0
    %4126 = vmatprep.mubr.f32.mxu0 0.0
    %v4127 = vand.u32 %v180, 4294901760
    %4128 = vmatmul.mubr.f32.gmra.mxu0 %v4127
    %v4129 = vpop.f32.mrf.mxu0
    %v4130 = vadd.f32 %v4051, %v4129
    %v4131 = vpop.f32.mrf.mxu0
    %4132 = vdwg.mxu0
    %v4133 = vsub.f32 %v114, 7.0
    %v4134 = vsub.f32 %v115, 7.0
    %v4135 = vsub.f32 %v116, 7.0
    %v4136 = vsub.f32 %v117, 7.0
    %v4137 = vsub.f32 %v118, 7.0
    %v4138 = vsub.f32 %v119, 7.0
    %v4139 = vsub.f32 %v120, 7.0
    %v4140 = vsub.f32 %v121, 7.0
    %v4141 = vand.u32 2147483647, %v4133
    %v4142 = vand.u32 2147483647, %v4134
    %v4143 = vand.u32 2147483647, %v4135
    %v4144 = vand.u32 2147483647, %v4136
    %v4145 = vand.u32 2147483647, %v4137
    %v4146 = vand.u32 2147483647, %v4138
    %v4147 = vand.u32 2147483647, %v4139
    %v4148 = vand.u32 2147483647, %v4140
    %v4149 = vsub.f32 %v146, %v4141
    %v4150 = vsub.f32 %v147, %v4142
    %v4151 = vsub.f32 %v148, %v4143
    %v4152 = vsub.f32 %v149, %v4144
    %v4153 = vsub.f32 %v150, %v4145
    %v4154 = vsub.f32 %v151, %v4146
    %v4155 = vsub.f32 %v152, %v4147
    %v4156 = vsub.f32 %v153, %v4148
    %v4157 = vmax.f32 %v4149, 0.0
    %v4158 = vmax.f32 %v4150, 0.0
    %v4159 = vmax.f32 %v4151, 0.0
    %v4160 = vmax.f32 %v4152, 0.0
    %v4161 = vmax.f32 %v4153, 0.0
    %v4162 = vmax.f32 %v4154, 0.0
    %v4163 = vmax.f32 %v4155, 0.0
    %v4164 = vmax.f32 %v4156, 0.0
    %4165 = vmatprep.subr.mxu0 0.0
    %4166 = vmatpush1.msra.mxu0 0.0
    %4167 = vmatprep.subr.mxu0 0.0
    %4168 = vmatpush1.msra.mxu0 0.0
    %4169 = vmatprep.subr.mxu0 0.0
    %4170 = vmatpush1.msra.mxu0 0.0
    %4171 = vmatprep.subr.mxu0 0.0
    %4172 = vmatpush1.msra.mxu0 0.0
    %4173 = vmatprep.subr.mxu0 0.0
    %4174 = vmatpush1.msra.mxu0 0.0
    %4175 = vmatprep.subr.mxu0 0.0
    %4176 = vmatpush1.msra.mxu0 0.0
    %4177 = vmatprep.subr.mxu0 0.0
    %4178 = vmatpush1.msra.mxu0 0.0
    %4179 = vmatprep.subr.mxu0 0.0
    %4180 = vmatpush1.msra.mxu0 0.0
    %4181 = vmatprep.subr.mxu0 0.0
    %v4182 = vand.u32 %v4164, 4294901760
    %4183 = vmatpush1.msra.mxu0 %v4182
    %4184 = vmatprep.subr.mxu0 0.0
    %v4185 = vand.u32 %v4163, 4294901760
    %4186 = vmatpush1.msra.mxu0 %v4185
    %4187 = vmatprep.subr.mxu0 0.0
    %v4188 = vand.u32 %v4162, 4294901760
    %4189 = vmatpush1.msra.mxu0 %v4188
    %4190 = vmatprep.subr.mxu0 0.0
    %v4191 = vand.u32 %v4161, 4294901760
    %4192 = vmatpush1.msra.mxu0 %v4191
    %4193 = vmatprep.subr.mxu0 0.0
    %v4194 = vand.u32 %v4160, 4294901760
    %4195 = vmatpush1.msra.mxu0 %v4194
    %4196 = vmatprep.subr.mxu0 0.0
    %v4197 = vand.u32 %v4159, 4294901760
    %4198 = vmatpush1.msra.mxu0 %v4197
    %4199 = vmatprep.subr.mxu0 0.0
    %v4200 = vand.u32 %v4158, 4294901760
    %4201 = vmatpush1.msra.mxu0 %v4200
    %4202 = vmatprep.subr.mxu0 0.0
    %v4203 = vand.u32 %v4157, 4294901760
    %4204 = vmatpush1.msra.mxu0 %v4203
    %4205 = vmatprep.subr.mxu0 0.0
    %4206 = vmatpush2.msra.mxu0 0.0
    %4207 = vmatprep.subr.mxu0 0.0
    %4208 = vmatpush2.msra.mxu0 0.0
    %4209 = vmatprep.subr.mxu0 0.0
    %4210 = vmatpush2.msra.mxu0 0.0
    %4211 = vmatprep.subr.mxu0 0.0
    %4212 = vmatpush2.msra.mxu0 0.0
    %4213 = vmatprep.subr.mxu0 0.0
    %4214 = vmatpush2.msra.mxu0 0.0
    %4215 = vmatprep.subr.mxu0 0.0
    %4216 = vmatpush2.msra.mxu0 0.0
    %4217 = vmatprep.subr.mxu0 0.0
    %4218 = vmatpush2.msra.mxu0 0.0
    %4219 = vmatprep.subr.mxu0 0.0
    %4220 = vmatpush2.msra.mxu0 0.0
    %4221 = vmatprep.subr.mxu0 0.0
    %4222 = vmatpush2.msra.mxu0 0.0
    %4223 = vmatprep.subr.mxu0 0.0
    %4224 = vmatpush2.msra.mxu0 0.0
    %4225 = vmatprep.subr.mxu0 0.0
    %4226 = vmatpush2.msra.mxu0 0.0
    %4227 = vmatprep.subr.mxu0 0.0
    %4228 = vmatpush2.msra.mxu0 0.0
    %4229 = vmatprep.subr.mxu0 0.0
    %4230 = vmatpush2.msra.mxu0 0.0
    %4231 = vmatprep.subr.mxu0 0.0
    %4232 = vmatpush2.msra.mxu0 0.0
    %4233 = vmatprep.subr.mxu0 0.0
    %4234 = vmatpush2.msra.mxu0 0.0
    %4235 = vmatprep.subr.mxu0 0.0
    %4236 = vmatpush2.msra.mxu0 0.0
    %4237 = vmatprep.mubr.f32.mxu0 0.0
    %v4238 = vand.u32 %v180, 4294901760
    %v4239 = vsub.f32 %v180, %v4238
    %v4240 = vand.u32 %v4239, 4294901760
    %v4241 = vsub.f32 %v4239, %v4240
    %v4242 = vand.u32 %v4241, 4294901760
    %4243 = vmatmul.mubr.f32.gmra.mxu0 %v4242
    %v4244 = vpop.f32.mrf.mxu0
    %v4245 = vadd.f32 0.0, %v4244
    %v4246 = vpop.f32.mrf.mxu0
    %4247 = vdwg.mxu0
    %4248 = vmatprep.subr.mxu0 0.0
    %4249 = vmatpush1.msra.mxu0 0.0
    %4250 = vmatprep.subr.mxu0 0.0
    %4251 = vmatpush1.msra.mxu0 0.0
    %4252 = vmatprep.subr.mxu0 0.0
    %4253 = vmatpush1.msra.mxu0 0.0
    %4254 = vmatprep.subr.mxu0 0.0
    %4255 = vmatpush1.msra.mxu0 0.0
    %4256 = vmatprep.subr.mxu0 0.0
    %4257 = vmatpush1.msra.mxu0 0.0
    %4258 = vmatprep.subr.mxu0 0.0
    %4259 = vmatpush1.msra.mxu0 0.0
    %4260 = vmatprep.subr.mxu0 0.0
    %4261 = vmatpush1.msra.mxu0 0.0
    %4262 = vmatprep.subr.mxu0 0.0
    %4263 = vmatpush1.msra.mxu0 0.0
    %4264 = vmatprep.subr.mxu0 0.0
    %v4265 = vand.u32 %v4164, 4294901760
    %v4266 = vsub.f32 %v4164, %v4265
    %v4267 = vand.u32 %v4266, 4294901760
    %v4268 = vsub.f32 %v4266, %v4267
    %v4269 = vand.u32 %v4268, 4294901760
    %4270 = vmatpush1.msra.mxu0 %v4269
    %4271 = vmatprep.subr.mxu0 0.0
    %v4272 = vand.u32 %v4163, 4294901760
    %v4273 = vsub.f32 %v4163, %v4272
    %v4274 = vand.u32 %v4273, 4294901760
    %v4275 = vsub.f32 %v4273, %v4274
    %v4276 = vand.u32 %v4275, 4294901760
    %4277 = vmatpush1.msra.mxu0 %v4276
    %4278 = vmatprep.subr.mxu0 0.0
    %v4279 = vand.u32 %v4162, 4294901760
    %v4280 = vsub.f32 %v4162, %v4279
    %v4281 = vand.u32 %v4280, 4294901760
    %v4282 = vsub.f32 %v4280, %v4281
    %v4283 = vand.u32 %v4282, 4294901760
    %4284 = vmatpush1.msra.mxu0 %v4283
    %4285 = vmatprep.subr.mxu0 0.0
    %v4286 = vand.u32 %v4161, 4294901760
    %v4287 = vsub.f32 %v4161, %v4286
    %v4288 = vand.u32 %v4287, 4294901760
    %v4289 = vsub.f32 %v4287, %v4288
    %v4290 = vand.u32 %v4289, 4294901760
    %4291 = vmatpush1.msra.mxu0 %v4290
    %4292 = vmatprep.subr.mxu0 0.0
    %v4293 = vand.u32 %v4160, 4294901760
    %v4294 = vsub.f32 %v4160, %v4293
    %v4295 = vand.u32 %v4294, 4294901760
    %v4296 = vsub.f32 %v4294, %v4295
    %v4297 = vand.u32 %v4296, 4294901760
    %4298 = vmatpush1.msra.mxu0 %v4297
    %4299 = vmatprep.subr.mxu0 0.0
    %v4300 = vand.u32 %v4159, 4294901760
    %v4301 = vsub.f32 %v4159, %v4300
    %v4302 = vand.u32 %v4301, 4294901760
    %v4303 = vsub.f32 %v4301, %v4302
    %v4304 = vand.u32 %v4303, 4294901760
    %4305 = vmatpush1.msra.mxu0 %v4304
    %4306 = vmatprep.subr.mxu0 0.0
    %v4307 = vand.u32 %v4158, 4294901760
    %v4308 = vsub.f32 %v4158, %v4307
    %v4309 = vand.u32 %v4308, 4294901760
    %v4310 = vsub.f32 %v4308, %v4309
    %v4311 = vand.u32 %v4310, 4294901760
    %4312 = vmatpush1.msra.mxu0 %v4311
    %4313 = vmatprep.subr.mxu0 0.0
    %v4314 = vand.u32 %v4157, 4294901760
    %v4315 = vsub.f32 %v4157, %v4314
    %v4316 = vand.u32 %v4315, 4294901760
    %v4317 = vsub.f32 %v4315, %v4316
    %v4318 = vand.u32 %v4317, 4294901760
    %4319 = vmatpush1.msra.mxu0 %v4318
    %4320 = vmatprep.subr.mxu0 0.0
    %4321 = vmatpush2.msra.mxu0 0.0
    %4322 = vmatprep.subr.mxu0 0.0
    %4323 = vmatpush2.msra.mxu0 0.0
    %4324 = vmatprep.subr.mxu0 0.0
    %4325 = vmatpush2.msra.mxu0 0.0
    %4326 = vmatprep.subr.mxu0 0.0
    %4327 = vmatpush2.msra.mxu0 0.0
    %4328 = vmatprep.subr.mxu0 0.0
    %4329 = vmatpush2.msra.mxu0 0.0
    %4330 = vmatprep.subr.mxu0 0.0
    %4331 = vmatpush2.msra.mxu0 0.0
    %4332 = vmatprep.subr.mxu0 0.0
    %4333 = vmatpush2.msra.mxu0 0.0
    %4334 = vmatprep.subr.mxu0 0.0
    %4335 = vmatpush2.msra.mxu0 0.0
    %4336 = vmatprep.subr.mxu0 0.0
    %4337 = vmatpush2.msra.mxu0 0.0
    %4338 = vmatprep.subr.mxu0 0.0
    %4339 = vmatpush2.msra.mxu0 0.0
    %4340 = vmatprep.subr.mxu0 0.0
    %4341 = vmatpush2.msra.mxu0 0.0
    %4342 = vmatprep.subr.mxu0 0.0
    %4343 = vmatpush2.msra.mxu0 0.0
    %4344 = vmatprep.subr.mxu0 0.0
    %4345 = vmatpush2.msra.mxu0 0.0
    %4346 = vmatprep.subr.mxu0 0.0
    %4347 = vmatpush2.msra.mxu0 0.0
    %4348 = vmatprep.subr.mxu0 0.0
    %4349 = vmatpush2.msra.mxu0 0.0
    %4350 = vmatprep.subr.mxu0 0.0
    %4351 = vmatpush2.msra.mxu0 0.0
    %4352 = vmatprep.mubr.f32.mxu0 0.0
    %v4353 = vand.u32 %v180, 4294901760
    %4354 = vmatmul.mubr.f32.gmra.mxu0 %v4353
    %v4355 = vpop.f32.mrf.mxu0
    %v4356 = vadd.f32 %v4245, %v4355
    %v4357 = vpop.f32.mrf.mxu0
    %4358 = vdwg.mxu0
    %4359 = vmatprep.subr.mxu0 0.0
    %4360 = vmatpush1.msra.mxu0 0.0
    %4361 = vmatprep.subr.mxu0 0.0
    %4362 = vmatpush1.msra.mxu0 0.0
    %4363 = vmatprep.subr.mxu0 0.0
    %4364 = vmatpush1.msra.mxu0 0.0
    %4365 = vmatprep.subr.mxu0 0.0
    %4366 = vmatpush1.msra.mxu0 0.0
    %4367 = vmatprep.subr.mxu0 0.0
    %4368 = vmatpush1.msra.mxu0 0.0
    %4369 = vmatprep.subr.mxu0 0.0
    %4370 = vmatpush1.msra.mxu0 0.0
    %4371 = vmatprep.subr.mxu0 0.0
    %4372 = vmatpush1.msra.mxu0 0.0
    %4373 = vmatprep.subr.mxu0 0.0
    %4374 = vmatpush1.msra.mxu0 0.0
    %4375 = vmatprep.subr.mxu0 0.0
    %v4376 = vand.u32 %v4164, 4294901760
    %v4377 = vsub.f32 %v4164, %v4376
    %4378 = vmatpush1.msra.mxu0 %v4377
    %4379 = vmatprep.subr.mxu0 0.0
    %v4380 = vand.u32 %v4163, 4294901760
    %v4381 = vsub.f32 %v4163, %v4380
    %4382 = vmatpush1.msra.mxu0 %v4381
    %4383 = vmatprep.subr.mxu0 0.0
    %v4384 = vand.u32 %v4162, 4294901760
    %v4385 = vsub.f32 %v4162, %v4384
    %4386 = vmatpush1.msra.mxu0 %v4385
    %4387 = vmatprep.subr.mxu0 0.0
    %v4388 = vand.u32 %v4161, 4294901760
    %v4389 = vsub.f32 %v4161, %v4388
    %4390 = vmatpush1.msra.mxu0 %v4389
    %4391 = vmatprep.subr.mxu0 0.0
    %v4392 = vand.u32 %v4160, 4294901760
    %v4393 = vsub.f32 %v4160, %v4392
    %4394 = vmatpush1.msra.mxu0 %v4393
    %4395 = vmatprep.subr.mxu0 0.0
    %v4396 = vand.u32 %v4159, 4294901760
    %v4397 = vsub.f32 %v4159, %v4396
    %4398 = vmatpush1.msra.mxu0 %v4397
    %4399 = vmatprep.subr.mxu0 0.0
    %v4400 = vand.u32 %v4158, 4294901760
    %v4401 = vsub.f32 %v4158, %v4400
    %4402 = vmatpush1.msra.mxu0 %v4401
    %4403 = vmatprep.subr.mxu0 0.0
    %v4404 = vand.u32 %v4157, 4294901760
    %v4405 = vsub.f32 %v4157, %v4404
    %4406 = vmatpush1.msra.mxu0 %v4405
    %4407 = vmatprep.subr.mxu0 0.0
    %4408 = vmatpush2.msra.mxu0 0.0
    %4409 = vmatprep.subr.mxu0 0.0
    %4410 = vmatpush2.msra.mxu0 0.0
    %4411 = vmatprep.subr.mxu0 0.0
    %4412 = vmatpush2.msra.mxu0 0.0
    %4413 = vmatprep.subr.mxu0 0.0
    %4414 = vmatpush2.msra.mxu0 0.0
    %4415 = vmatprep.subr.mxu0 0.0
    %4416 = vmatpush2.msra.mxu0 0.0
    %4417 = vmatprep.subr.mxu0 0.0
    %4418 = vmatpush2.msra.mxu0 0.0
    %4419 = vmatprep.subr.mxu0 0.0
    %4420 = vmatpush2.msra.mxu0 0.0
    %4421 = vmatprep.subr.mxu0 0.0
    %4422 = vmatpush2.msra.mxu0 0.0
    %4423 = vmatprep.subr.mxu0 0.0
    %4424 = vmatpush2.msra.mxu0 0.0
    %4425 = vmatprep.subr.mxu0 0.0
    %4426 = vmatpush2.msra.mxu0 0.0
    %4427 = vmatprep.subr.mxu0 0.0
    %4428 = vmatpush2.msra.mxu0 0.0
    %4429 = vmatprep.subr.mxu0 0.0
    %4430 = vmatpush2.msra.mxu0 0.0
    %4431 = vmatprep.subr.mxu0 0.0
    %4432 = vmatpush2.msra.mxu0 0.0
    %4433 = vmatprep.subr.mxu0 0.0
    %4434 = vmatpush2.msra.mxu0 0.0
    %4435 = vmatprep.subr.mxu0 0.0
    %4436 = vmatpush2.msra.mxu0 0.0
    %4437 = vmatprep.subr.mxu0 0.0
    %4438 = vmatpush2.msra.mxu0 0.0
    %4439 = vmatprep.mubr.f32.mxu0 0.0
    %v4440 = vand.u32 %v180, 4294901760
    %v4441 = vsub.f32 %v180, %v4440
    %4442 = vmatmul.mubr.f32.gmra.mxu0 %v4441
    %v4443 = vpop.f32.mrf.mxu0
    %v4444 = vadd.f32 %v4356, %v4443
    %v4445 = vpop.f32.mrf.mxu0
    %4446 = vdwg.mxu0
    %4447 = vmatprep.subr.mxu0 0.0
    %4448 = vmatpush1.msra.mxu0 0.0
    %4449 = vmatprep.subr.mxu0 0.0
    %4450 = vmatpush1.msra.mxu0 0.0
    %4451 = vmatprep.subr.mxu0 0.0
    %4452 = vmatpush1.msra.mxu0 0.0
    %4453 = vmatprep.subr.mxu0 0.0
    %4454 = vmatpush1.msra.mxu0 0.0
    %4455 = vmatprep.subr.mxu0 0.0
    %4456 = vmatpush1.msra.mxu0 0.0
    %4457 = vmatprep.subr.mxu0 0.0
    %4458 = vmatpush1.msra.mxu0 0.0
    %4459 = vmatprep.subr.mxu0 0.0
    %4460 = vmatpush1.msra.mxu0 0.0
    %4461 = vmatprep.subr.mxu0 0.0
    %4462 = vmatpush1.msra.mxu0 0.0
    %4463 = vmatprep.subr.mxu0 0.0
    %v4464 = vand.u32 %v4164, 4294901760
    %4465 = vmatpush1.msra.mxu0 %v4464
    %4466 = vmatprep.subr.mxu0 0.0
    %v4467 = vand.u32 %v4163, 4294901760
    %4468 = vmatpush1.msra.mxu0 %v4467
    %4469 = vmatprep.subr.mxu0 0.0
    %v4470 = vand.u32 %v4162, 4294901760
    %4471 = vmatpush1.msra.mxu0 %v4470
    %4472 = vmatprep.subr.mxu0 0.0
    %v4473 = vand.u32 %v4161, 4294901760
    %4474 = vmatpush1.msra.mxu0 %v4473
    %4475 = vmatprep.subr.mxu0 0.0
    %v4476 = vand.u32 %v4160, 4294901760
    %4477 = vmatpush1.msra.mxu0 %v4476
    %4478 = vmatprep.subr.mxu0 0.0
    %v4479 = vand.u32 %v4159, 4294901760
    %4480 = vmatpush1.msra.mxu0 %v4479
    %4481 = vmatprep.subr.mxu0 0.0
    %v4482 = vand.u32 %v4158, 4294901760
    %4483 = vmatpush1.msra.mxu0 %v4482
    %4484 = vmatprep.subr.mxu0 0.0
    %v4485 = vand.u32 %v4157, 4294901760
    %4486 = vmatpush1.msra.mxu0 %v4485
    %4487 = vmatprep.subr.mxu0 0.0
    %4488 = vmatpush2.msra.mxu0 0.0
    %4489 = vmatprep.subr.mxu0 0.0
    %4490 = vmatpush2.msra.mxu0 0.0
    %4491 = vmatprep.subr.mxu0 0.0
    %4492 = vmatpush2.msra.mxu0 0.0
    %4493 = vmatprep.subr.mxu0 0.0
    %4494 = vmatpush2.msra.mxu0 0.0
    %4495 = vmatprep.subr.mxu0 0.0
    %4496 = vmatpush2.msra.mxu0 0.0
    %4497 = vmatprep.subr.mxu0 0.0
    %4498 = vmatpush2.msra.mxu0 0.0
    %4499 = vmatprep.subr.mxu0 0.0
    %4500 = vmatpush2.msra.mxu0 0.0
    %4501 = vmatprep.subr.mxu0 0.0
    %4502 = vmatpush2.msra.mxu0 0.0
    %4503 = vmatprep.subr.mxu0 0.0
    %4504 = vmatpush2.msra.mxu0 0.0
    %4505 = vmatprep.subr.mxu0 0.0
    %4506 = vmatpush2.msra.mxu0 0.0
    %4507 = vmatprep.subr.mxu0 0.0
    %4508 = vmatpush2.msra.mxu0 0.0
    %4509 = vmatprep.subr.mxu0 0.0
    %4510 = vmatpush2.msra.mxu0 0.0
    %4511 = vmatprep.subr.mxu0 0.0
    %4512 = vmatpush2.msra.mxu0 0.0
    %4513 = vmatprep.subr.mxu0 0.0
    %4514 = vmatpush2.msra.mxu0 0.0
    %4515 = vmatprep.subr.mxu0 0.0
    %4516 = vmatpush2.msra.mxu0 0.0
    %4517 = vmatprep.subr.mxu0 0.0
    %4518 = vmatpush2.msra.mxu0 0.0
    %4519 = vmatprep.mubr.f32.mxu0 0.0
    %v4520 = vand.u32 %v180, 4294901760
    %v4521 = vsub.f32 %v180, %v4520
    %v4522 = vand.u32 %v4521, 4294901760
    %4523 = vmatmul.mubr.f32.gmra.mxu0 %v4522
    %v4524 = vpop.f32.mrf.mxu0
    %v4525 = vadd.f32 %v4444, %v4524
    %v4526 = vpop.f32.mrf.mxu0
    %4527 = vdwg.mxu0
    %4528 = vmatprep.subr.mxu0 0.0
    %4529 = vmatpush1.msra.mxu0 0.0
    %4530 = vmatprep.subr.mxu0 0.0
    %4531 = vmatpush1.msra.mxu0 0.0
    %4532 = vmatprep.subr.mxu0 0.0
    %4533 = vmatpush1.msra.mxu0 0.0
    %4534 = vmatprep.subr.mxu0 0.0
    %4535 = vmatpush1.msra.mxu0 0.0
    %4536 = vmatprep.subr.mxu0 0.0
    %4537 = vmatpush1.msra.mxu0 0.0
    %4538 = vmatprep.subr.mxu0 0.0
    %4539 = vmatpush1.msra.mxu0 0.0
    %4540 = vmatprep.subr.mxu0 0.0
    %4541 = vmatpush1.msra.mxu0 0.0
    %4542 = vmatprep.subr.mxu0 0.0
    %4543 = vmatpush1.msra.mxu0 0.0
    %4544 = vmatprep.subr.mxu0 0.0
    %v4545 = vand.u32 %v4164, 4294901760
    %v4546 = vsub.f32 %v4164, %v4545
    %v4547 = vand.u32 %v4546, 4294901760
    %4548 = vmatpush1.msra.mxu0 %v4547
    %4549 = vmatprep.subr.mxu0 0.0
    %v4550 = vand.u32 %v4163, 4294901760
    %v4551 = vsub.f32 %v4163, %v4550
    %v4552 = vand.u32 %v4551, 4294901760
    %4553 = vmatpush1.msra.mxu0 %v4552
    %4554 = vmatprep.subr.mxu0 0.0
    %v4555 = vand.u32 %v4162, 4294901760
    %v4556 = vsub.f32 %v4162, %v4555
    %v4557 = vand.u32 %v4556, 4294901760
    %4558 = vmatpush1.msra.mxu0 %v4557
    %4559 = vmatprep.subr.mxu0 0.0
    %v4560 = vand.u32 %v4161, 4294901760
    %v4561 = vsub.f32 %v4161, %v4560
    %v4562 = vand.u32 %v4561, 4294901760
    %4563 = vmatpush1.msra.mxu0 %v4562
    %4564 = vmatprep.subr.mxu0 0.0
    %v4565 = vand.u32 %v4160, 4294901760
    %v4566 = vsub.f32 %v4160, %v4565
    %v4567 = vand.u32 %v4566, 4294901760
    %4568 = vmatpush1.msra.mxu0 %v4567
    %4569 = vmatprep.subr.mxu0 0.0
    %v4570 = vand.u32 %v4159, 4294901760
    %v4571 = vsub.f32 %v4159, %v4570
    %v4572 = vand.u32 %v4571, 4294901760
    %4573 = vmatpush1.msra.mxu0 %v4572
    %4574 = vmatprep.subr.mxu0 0.0
    %v4575 = vand.u32 %v4158, 4294901760
    %v4576 = vsub.f32 %v4158, %v4575
    %v4577 = vand.u32 %v4576, 4294901760
    %4578 = vmatpush1.msra.mxu0 %v4577
    %4579 = vmatprep.subr.mxu0 0.0
    %v4580 = vand.u32 %v4157, 4294901760
    %v4581 = vsub.f32 %v4157, %v4580
    %v4582 = vand.u32 %v4581, 4294901760
    %4583 = vmatpush1.msra.mxu0 %v4582
    %4584 = vmatprep.subr.mxu0 0.0
    %4585 = vmatpush2.msra.mxu0 0.0
    %4586 = vmatprep.subr.mxu0 0.0
    %4587 = vmatpush2.msra.mxu0 0.0
    %4588 = vmatprep.subr.mxu0 0.0
    %4589 = vmatpush2.msra.mxu0 0.0
    %4590 = vmatprep.subr.mxu0 0.0
    %4591 = vmatpush2.msra.mxu0 0.0
    %4592 = vmatprep.subr.mxu0 0.0
    %4593 = vmatpush2.msra.mxu0 0.0
    %4594 = vmatprep.subr.mxu0 0.0
    %4595 = vmatpush2.msra.mxu0 0.0
    %4596 = vmatprep.subr.mxu0 0.0
    %4597 = vmatpush2.msra.mxu0 0.0
    %4598 = vmatprep.subr.mxu0 0.0
    %4599 = vmatpush2.msra.mxu0 0.0
    %4600 = vmatprep.subr.mxu0 0.0
    %4601 = vmatpush2.msra.mxu0 0.0
    %4602 = vmatprep.subr.mxu0 0.0
    %4603 = vmatpush2.msra.mxu0 0.0
    %4604 = vmatprep.subr.mxu0 0.0
    %4605 = vmatpush2.msra.mxu0 0.0
    %4606 = vmatprep.subr.mxu0 0.0
    %4607 = vmatpush2.msra.mxu0 0.0
    %4608 = vmatprep.subr.mxu0 0.0
    %4609 = vmatpush2.msra.mxu0 0.0
    %4610 = vmatprep.subr.mxu0 0.0
    %4611 = vmatpush2.msra.mxu0 0.0
    %4612 = vmatprep.subr.mxu0 0.0
    %4613 = vmatpush2.msra.mxu0 0.0
    %4614 = vmatprep.subr.mxu0 0.0
    %4615 = vmatpush2.msra.mxu0 0.0
    %4616 = vmatprep.mubr.f32.mxu0 0.0
    %v4617 = vand.u32 %v180, 4294901760
    %4618 = vmatmul.mubr.f32.gmra.mxu0 %v4617
    %v4619 = vpop.f32.mrf.mxu0
    %v4620 = vadd.f32 %v4525, %v4619
    %v4621 = vpop.f32.mrf.mxu0
    %4622 = vdwg.mxu0
    %4623 = vmatprep.subr.mxu0 0.0
    %4624 = vmatpush1.msra.mxu0 0.0
    %4625 = vmatprep.subr.mxu0 0.0
    %4626 = vmatpush1.msra.mxu0 0.0
    %4627 = vmatprep.subr.mxu0 0.0
    %4628 = vmatpush1.msra.mxu0 0.0
    %4629 = vmatprep.subr.mxu0 0.0
    %4630 = vmatpush1.msra.mxu0 0.0
    %4631 = vmatprep.subr.mxu0 0.0
    %4632 = vmatpush1.msra.mxu0 0.0
    %4633 = vmatprep.subr.mxu0 0.0
    %4634 = vmatpush1.msra.mxu0 0.0
    %4635 = vmatprep.subr.mxu0 0.0
    %4636 = vmatpush1.msra.mxu0 0.0
    %4637 = vmatprep.subr.mxu0 0.0
    %4638 = vmatpush1.msra.mxu0 0.0
    %4639 = vmatprep.subr.mxu0 0.0
    %v4640 = vand.u32 %v4164, 4294901760
    %4641 = vmatpush1.msra.mxu0 %v4640
    %4642 = vmatprep.subr.mxu0 0.0
    %v4643 = vand.u32 %v4163, 4294901760
    %4644 = vmatpush1.msra.mxu0 %v4643
    %4645 = vmatprep.subr.mxu0 0.0
    %v4646 = vand.u32 %v4162, 4294901760
    %4647 = vmatpush1.msra.mxu0 %v4646
    %4648 = vmatprep.subr.mxu0 0.0
    %v4649 = vand.u32 %v4161, 4294901760
    %4650 = vmatpush1.msra.mxu0 %v4649
    %4651 = vmatprep.subr.mxu0 0.0
    %v4652 = vand.u32 %v4160, 4294901760
    %4653 = vmatpush1.msra.mxu0 %v4652
    %4654 = vmatprep.subr.mxu0 0.0
    %v4655 = vand.u32 %v4159, 4294901760
    %4656 = vmatpush1.msra.mxu0 %v4655
    %4657 = vmatprep.subr.mxu0 0.0
    %v4658 = vand.u32 %v4158, 4294901760
    %4659 = vmatpush1.msra.mxu0 %v4658
    %4660 = vmatprep.subr.mxu0 0.0
    %v4661 = vand.u32 %v4157, 4294901760
    %4662 = vmatpush1.msra.mxu0 %v4661
    %4663 = vmatprep.subr.mxu0 0.0
    %4664 = vmatpush2.msra.mxu0 0.0
    %4665 = vmatprep.subr.mxu0 0.0
    %4666 = vmatpush2.msra.mxu0 0.0
    %4667 = vmatprep.subr.mxu0 0.0
    %4668 = vmatpush2.msra.mxu0 0.0
    %4669 = vmatprep.subr.mxu0 0.0
    %4670 = vmatpush2.msra.mxu0 0.0
    %4671 = vmatprep.subr.mxu0 0.0
    %4672 = vmatpush2.msra.mxu0 0.0
    %4673 = vmatprep.subr.mxu0 0.0
    %4674 = vmatpush2.msra.mxu0 0.0
    %4675 = vmatprep.subr.mxu0 0.0
    %4676 = vmatpush2.msra.mxu0 0.0
    %4677 = vmatprep.subr.mxu0 0.0
    %4678 = vmatpush2.msra.mxu0 0.0
    %4679 = vmatprep.subr.mxu0 0.0
    %4680 = vmatpush2.msra.mxu0 0.0
    %4681 = vmatprep.subr.mxu0 0.0
    %4682 = vmatpush2.msra.mxu0 0.0
    %4683 = vmatprep.subr.mxu0 0.0
    %4684 = vmatpush2.msra.mxu0 0.0
    %4685 = vmatprep.subr.mxu0 0.0
    %4686 = vmatpush2.msra.mxu0 0.0
    %4687 = vmatprep.subr.mxu0 0.0
    %4688 = vmatpush2.msra.mxu0 0.0
    %4689 = vmatprep.subr.mxu0 0.0
    %4690 = vmatpush2.msra.mxu0 0.0
    %4691 = vmatprep.subr.mxu0 0.0
    %4692 = vmatpush2.msra.mxu0 0.0
    %4693 = vmatprep.subr.mxu0 0.0
    %4694 = vmatpush2.msra.mxu0 0.0
    %4695 = vmatprep.mubr.f32.mxu0 0.0
    %v4696 = vand.u32 %v180, 4294901760
    %4697 = vmatmul.mubr.f32.gmra.mxu0 %v4696
    %v4698 = vpop.f32.mrf.mxu0
    %v4699 = vadd.f32 %v4620, %v4698
    %v4700 = vpop.f32.mrf.mxu0
    %4701 = vdwg.mxu0
    %v4702 = vsub.f32 %v114, 8.0
    %v4703 = vsub.f32 %v115, 8.0
    %v4704 = vsub.f32 %v116, 8.0
    %v4705 = vsub.f32 %v117, 8.0
    %v4706 = vsub.f32 %v118, 8.0
    %v4707 = vsub.f32 %v119, 8.0
    %v4708 = vsub.f32 %v120, 8.0
    %v4709 = vsub.f32 %v121, 8.0
    %v4710 = vand.u32 2147483647, %v4702
    %v4711 = vand.u32 2147483647, %v4703
    %v4712 = vand.u32 2147483647, %v4704
    %v4713 = vand.u32 2147483647, %v4705
    %v4714 = vand.u32 2147483647, %v4706
    %v4715 = vand.u32 2147483647, %v4707
    %v4716 = vand.u32 2147483647, %v4708
    %v4717 = vand.u32 2147483647, %v4709
    %v4718 = vsub.f32 %v146, %v4710
    %v4719 = vsub.f32 %v147, %v4711
    %v4720 = vsub.f32 %v148, %v4712
    %v4721 = vsub.f32 %v149, %v4713
    %v4722 = vsub.f32 %v150, %v4714
    %v4723 = vsub.f32 %v151, %v4715
    %v4724 = vsub.f32 %v152, %v4716
    %v4725 = vsub.f32 %v153, %v4717
    %v4726 = vmax.f32 %v4718, 0.0
    %v4727 = vmax.f32 %v4719, 0.0
    %v4728 = vmax.f32 %v4720, 0.0
    %v4729 = vmax.f32 %v4721, 0.0
    %v4730 = vmax.f32 %v4722, 0.0
    %v4731 = vmax.f32 %v4723, 0.0
    %v4732 = vmax.f32 %v4724, 0.0
    %v4733 = vmax.f32 %v4725, 0.0
    %4734 = vmatprep.subr.mxu0 0.0
    %4735 = vmatpush1.msra.mxu0 0.0
    %4736 = vmatprep.subr.mxu0 0.0
    %4737 = vmatpush1.msra.mxu0 0.0
    %4738 = vmatprep.subr.mxu0 0.0
    %4739 = vmatpush1.msra.mxu0 0.0
    %4740 = vmatprep.subr.mxu0 0.0
    %4741 = vmatpush1.msra.mxu0 0.0
    %4742 = vmatprep.subr.mxu0 0.0
    %4743 = vmatpush1.msra.mxu0 0.0
    %4744 = vmatprep.subr.mxu0 0.0
    %4745 = vmatpush1.msra.mxu0 0.0
    %4746 = vmatprep.subr.mxu0 0.0
    %4747 = vmatpush1.msra.mxu0 0.0
    %4748 = vmatprep.subr.mxu0 0.0
    %4749 = vmatpush1.msra.mxu0 0.0
    %4750 = vmatprep.subr.mxu0 0.0
    %v4751 = vand.u32 %v4733, 4294901760
    %4752 = vmatpush1.msra.mxu0 %v4751
    %4753 = vmatprep.subr.mxu0 0.0
    %v4754 = vand.u32 %v4732, 4294901760
    %4755 = vmatpush1.msra.mxu0 %v4754
    %4756 = vmatprep.subr.mxu0 0.0
    %v4757 = vand.u32 %v4731, 4294901760
    %4758 = vmatpush1.msra.mxu0 %v4757
    %4759 = vmatprep.subr.mxu0 0.0
    %v4760 = vand.u32 %v4730, 4294901760
    %4761 = vmatpush1.msra.mxu0 %v4760
    %4762 = vmatprep.subr.mxu0 0.0
    %v4763 = vand.u32 %v4729, 4294901760
    %4764 = vmatpush1.msra.mxu0 %v4763
    %4765 = vmatprep.subr.mxu0 0.0
    %v4766 = vand.u32 %v4728, 4294901760
    %4767 = vmatpush1.msra.mxu0 %v4766
    %4768 = vmatprep.subr.mxu0 0.0
    %v4769 = vand.u32 %v4727, 4294901760
    %4770 = vmatpush1.msra.mxu0 %v4769
    %4771 = vmatprep.subr.mxu0 0.0
    %v4772 = vand.u32 %v4726, 4294901760
    %4773 = vmatpush1.msra.mxu0 %v4772
    %4774 = vmatprep.subr.mxu0 0.0
    %4775 = vmatpush2.msra.mxu0 0.0
    %4776 = vmatprep.subr.mxu0 0.0
    %4777 = vmatpush2.msra.mxu0 0.0
    %4778 = vmatprep.subr.mxu0 0.0
    %4779 = vmatpush2.msra.mxu0 0.0
    %4780 = vmatprep.subr.mxu0 0.0
    %4781 = vmatpush2.msra.mxu0 0.0
    %4782 = vmatprep.subr.mxu0 0.0
    %4783 = vmatpush2.msra.mxu0 0.0
    %4784 = vmatprep.subr.mxu0 0.0
    %4785 = vmatpush2.msra.mxu0 0.0
    %4786 = vmatprep.subr.mxu0 0.0
    %4787 = vmatpush2.msra.mxu0 0.0
    %4788 = vmatprep.subr.mxu0 0.0
    %4789 = vmatpush2.msra.mxu0 0.0
    %4790 = vmatprep.subr.mxu0 0.0
    %4791 = vmatpush2.msra.mxu0 0.0
    %4792 = vmatprep.subr.mxu0 0.0
    %4793 = vmatpush2.msra.mxu0 0.0
    %4794 = vmatprep.subr.mxu0 0.0
    %4795 = vmatpush2.msra.mxu0 0.0
    %4796 = vmatprep.subr.mxu0 0.0
    %4797 = vmatpush2.msra.mxu0 0.0
    %4798 = vmatprep.subr.mxu0 0.0
    %4799 = vmatpush2.msra.mxu0 0.0
    %4800 = vmatprep.subr.mxu0 0.0
    %4801 = vmatpush2.msra.mxu0 0.0
    %4802 = vmatprep.subr.mxu0 0.0
    %4803 = vmatpush2.msra.mxu0 0.0
    %4804 = vmatprep.subr.mxu0 0.0
    %4805 = vmatpush2.msra.mxu0 0.0
    %4806 = vmatprep.mubr.f32.mxu0 0.0
    %v4807 = vand.u32 %v180, 4294901760
    %v4808 = vsub.f32 %v180, %v4807
    %v4809 = vand.u32 %v4808, 4294901760
    %v4810 = vsub.f32 %v4808, %v4809
    %v4811 = vand.u32 %v4810, 4294901760
    %4812 = vmatmul.mubr.f32.gmra.mxu0 %v4811
    %v4813 = vpop.f32.mrf.mxu0
    %v4814 = vadd.f32 0.0, %v4813
    %v4815 = vpop.f32.mrf.mxu0
    %4816 = vdwg.mxu0
    %4817 = vmatprep.subr.mxu0 0.0
    %4818 = vmatpush1.msra.mxu0 0.0
    %4819 = vmatprep.subr.mxu0 0.0
    %4820 = vmatpush1.msra.mxu0 0.0
    %4821 = vmatprep.subr.mxu0 0.0
    %4822 = vmatpush1.msra.mxu0 0.0
    %4823 = vmatprep.subr.mxu0 0.0
    %4824 = vmatpush1.msra.mxu0 0.0
    %4825 = vmatprep.subr.mxu0 0.0
    %4826 = vmatpush1.msra.mxu0 0.0
    %4827 = vmatprep.subr.mxu0 0.0
    %4828 = vmatpush1.msra.mxu0 0.0
    %4829 = vmatprep.subr.mxu0 0.0
    %4830 = vmatpush1.msra.mxu0 0.0
    %4831 = vmatprep.subr.mxu0 0.0
    %4832 = vmatpush1.msra.mxu0 0.0
    %4833 = vmatprep.subr.mxu0 0.0
    %v4834 = vand.u32 %v4733, 4294901760
    %v4835 = vsub.f32 %v4733, %v4834
    %v4836 = vand.u32 %v4835, 4294901760
    %v4837 = vsub.f32 %v4835, %v4836
    %v4838 = vand.u32 %v4837, 4294901760
    %4839 = vmatpush1.msra.mxu0 %v4838
    %4840 = vmatprep.subr.mxu0 0.0
    %v4841 = vand.u32 %v4732, 4294901760
    %v4842 = vsub.f32 %v4732, %v4841
    %v4843 = vand.u32 %v4842, 4294901760
    %v4844 = vsub.f32 %v4842, %v4843
    %v4845 = vand.u32 %v4844, 4294901760
    %4846 = vmatpush1.msra.mxu0 %v4845
    %4847 = vmatprep.subr.mxu0 0.0
    %v4848 = vand.u32 %v4731, 4294901760
    %v4849 = vsub.f32 %v4731, %v4848
    %v4850 = vand.u32 %v4849, 4294901760
    %v4851 = vsub.f32 %v4849, %v4850
    %v4852 = vand.u32 %v4851, 4294901760
    %4853 = vmatpush1.msra.mxu0 %v4852
    %4854 = vmatprep.subr.mxu0 0.0
    %v4855 = vand.u32 %v4730, 4294901760
    %v4856 = vsub.f32 %v4730, %v4855
    %v4857 = vand.u32 %v4856, 4294901760
    %v4858 = vsub.f32 %v4856, %v4857
    %v4859 = vand.u32 %v4858, 4294901760
    %4860 = vmatpush1.msra.mxu0 %v4859
    %4861 = vmatprep.subr.mxu0 0.0
    %v4862 = vand.u32 %v4729, 4294901760
    %v4863 = vsub.f32 %v4729, %v4862
    %v4864 = vand.u32 %v4863, 4294901760
    %v4865 = vsub.f32 %v4863, %v4864
    %v4866 = vand.u32 %v4865, 4294901760
    %4867 = vmatpush1.msra.mxu0 %v4866
    %4868 = vmatprep.subr.mxu0 0.0
    %v4869 = vand.u32 %v4728, 4294901760
    %v4870 = vsub.f32 %v4728, %v4869
    %v4871 = vand.u32 %v4870, 4294901760
    %v4872 = vsub.f32 %v4870, %v4871
    %v4873 = vand.u32 %v4872, 4294901760
    %4874 = vmatpush1.msra.mxu0 %v4873
    %4875 = vmatprep.subr.mxu0 0.0
    %v4876 = vand.u32 %v4727, 4294901760
    %v4877 = vsub.f32 %v4727, %v4876
    %v4878 = vand.u32 %v4877, 4294901760
    %v4879 = vsub.f32 %v4877, %v4878
    %v4880 = vand.u32 %v4879, 4294901760
    %4881 = vmatpush1.msra.mxu0 %v4880
    %4882 = vmatprep.subr.mxu0 0.0
    %v4883 = vand.u32 %v4726, 4294901760
    %v4884 = vsub.f32 %v4726, %v4883
    %v4885 = vand.u32 %v4884, 4294901760
    %v4886 = vsub.f32 %v4884, %v4885
    %v4887 = vand.u32 %v4886, 4294901760
    %4888 = vmatpush1.msra.mxu0 %v4887
    %4889 = vmatprep.subr.mxu0 0.0
    %4890 = vmatpush2.msra.mxu0 0.0
    %4891 = vmatprep.subr.mxu0 0.0
    %4892 = vmatpush2.msra.mxu0 0.0
    %4893 = vmatprep.subr.mxu0 0.0
    %4894 = vmatpush2.msra.mxu0 0.0
    %4895 = vmatprep.subr.mxu0 0.0
    %4896 = vmatpush2.msra.mxu0 0.0
    %4897 = vmatprep.subr.mxu0 0.0
    %4898 = vmatpush2.msra.mxu0 0.0
    %4899 = vmatprep.subr.mxu0 0.0
    %4900 = vmatpush2.msra.mxu0 0.0
    %4901 = vmatprep.subr.mxu0 0.0
    %4902 = vmatpush2.msra.mxu0 0.0
    %4903 = vmatprep.subr.mxu0 0.0
    %4904 = vmatpush2.msra.mxu0 0.0
    %4905 = vmatprep.subr.mxu0 0.0
    %4906 = vmatpush2.msra.mxu0 0.0
    %4907 = vmatprep.subr.mxu0 0.0
    %4908 = vmatpush2.msra.mxu0 0.0
    %4909 = vmatprep.subr.mxu0 0.0
    %4910 = vmatpush2.msra.mxu0 0.0
    %4911 = vmatprep.subr.mxu0 0.0
    %4912 = vmatpush2.msra.mxu0 0.0
    %4913 = vmatprep.subr.mxu0 0.0
    %4914 = vmatpush2.msra.mxu0 0.0
    %4915 = vmatprep.subr.mxu0 0.0
    %4916 = vmatpush2.msra.mxu0 0.0
    %4917 = vmatprep.subr.mxu0 0.0
    %4918 = vmatpush2.msra.mxu0 0.0
    %4919 = vmatprep.subr.mxu0 0.0
    %4920 = vmatpush2.msra.mxu0 0.0
    %4921 = vmatprep.mubr.f32.mxu0 0.0
    %v4922 = vand.u32 %v180, 4294901760
    %4923 = vmatmul.mubr.f32.gmra.mxu0 %v4922
    %v4924 = vpop.f32.mrf.mxu0
    %v4925 = vadd.f32 %v4814, %v4924
    %v4926 = vpop.f32.mrf.mxu0
    %4927 = vdwg.mxu0
    %4928 = vmatprep.subr.mxu0 0.0
    %4929 = vmatpush1.msra.mxu0 0.0
    %4930 = vmatprep.subr.mxu0 0.0
    %4931 = vmatpush1.msra.mxu0 0.0
    %4932 = vmatprep.subr.mxu0 0.0
    %4933 = vmatpush1.msra.mxu0 0.0
    %4934 = vmatprep.subr.mxu0 0.0
    %4935 = vmatpush1.msra.mxu0 0.0
    %4936 = vmatprep.subr.mxu0 0.0
    %4937 = vmatpush1.msra.mxu0 0.0
    %4938 = vmatprep.subr.mxu0 0.0
    %4939 = vmatpush1.msra.mxu0 0.0
    %4940 = vmatprep.subr.mxu0 0.0
    %4941 = vmatpush1.msra.mxu0 0.0
    %4942 = vmatprep.subr.mxu0 0.0
    %4943 = vmatpush1.msra.mxu0 0.0
    %4944 = vmatprep.subr.mxu0 0.0
    %v4945 = vand.u32 %v4733, 4294901760
    %v4946 = vsub.f32 %v4733, %v4945
    %4947 = vmatpush1.msra.mxu0 %v4946
    %4948 = vmatprep.subr.mxu0 0.0
    %v4949 = vand.u32 %v4732, 4294901760
    %v4950 = vsub.f32 %v4732, %v4949
    %4951 = vmatpush1.msra.mxu0 %v4950
    %4952 = vmatprep.subr.mxu0 0.0
    %v4953 = vand.u32 %v4731, 4294901760
    %v4954 = vsub.f32 %v4731, %v4953
    %4955 = vmatpush1.msra.mxu0 %v4954
    %4956 = vmatprep.subr.mxu0 0.0
    %v4957 = vand.u32 %v4730, 4294901760
    %v4958 = vsub.f32 %v4730, %v4957
    %4959 = vmatpush1.msra.mxu0 %v4958
    %4960 = vmatprep.subr.mxu0 0.0
    %v4961 = vand.u32 %v4729, 4294901760
    %v4962 = vsub.f32 %v4729, %v4961
    %4963 = vmatpush1.msra.mxu0 %v4962
    %4964 = vmatprep.subr.mxu0 0.0
    %v4965 = vand.u32 %v4728, 4294901760
    %v4966 = vsub.f32 %v4728, %v4965
    %4967 = vmatpush1.msra.mxu0 %v4966
    %4968 = vmatprep.subr.mxu0 0.0
    %v4969 = vand.u32 %v4727, 4294901760
    %v4970 = vsub.f32 %v4727, %v4969
    %4971 = vmatpush1.msra.mxu0 %v4970
    %4972 = vmatprep.subr.mxu0 0.0
    %v4973 = vand.u32 %v4726, 4294901760
    %v4974 = vsub.f32 %v4726, %v4973
    %4975 = vmatpush1.msra.mxu0 %v4974
    %4976 = vmatprep.subr.mxu0 0.0
    %4977 = vmatpush2.msra.mxu0 0.0
    %4978 = vmatprep.subr.mxu0 0.0
    %4979 = vmatpush2.msra.mxu0 0.0
    %4980 = vmatprep.subr.mxu0 0.0
    %4981 = vmatpush2.msra.mxu0 0.0
    %4982 = vmatprep.subr.mxu0 0.0
    %4983 = vmatpush2.msra.mxu0 0.0
    %4984 = vmatprep.subr.mxu0 0.0
    %4985 = vmatpush2.msra.mxu0 0.0
    %4986 = vmatprep.subr.mxu0 0.0
    %4987 = vmatpush2.msra.mxu0 0.0
    %4988 = vmatprep.subr.mxu0 0.0
    %4989 = vmatpush2.msra.mxu0 0.0
    %4990 = vmatprep.subr.mxu0 0.0
    %4991 = vmatpush2.msra.mxu0 0.0
    %4992 = vmatprep.subr.mxu0 0.0
    %4993 = vmatpush2.msra.mxu0 0.0
    %4994 = vmatprep.subr.mxu0 0.0
    %4995 = vmatpush2.msra.mxu0 0.0
    %4996 = vmatprep.subr.mxu0 0.0
    %4997 = vmatpush2.msra.mxu0 0.0
    %4998 = vmatprep.subr.mxu0 0.0
    %4999 = vmatpush2.msra.mxu0 0.0
    %5000 = vmatprep.subr.mxu0 0.0
    %5001 = vmatpush2.msra.mxu0 0.0
    %5002 = vmatprep.subr.mxu0 0.0
    %5003 = vmatpush2.msra.mxu0 0.0
    %5004 = vmatprep.subr.mxu0 0.0
    %5005 = vmatpush2.msra.mxu0 0.0
    %5006 = vmatprep.subr.mxu0 0.0
    %5007 = vmatpush2.msra.mxu0 0.0
    %5008 = vmatprep.mubr.f32.mxu0 0.0
    %v5009 = vand.u32 %v180, 4294901760
    %v5010 = vsub.f32 %v180, %v5009
    %5011 = vmatmul.mubr.f32.gmra.mxu0 %v5010
    %v5012 = vpop.f32.mrf.mxu0
    %v5013 = vadd.f32 %v4925, %v5012
    %v5014 = vpop.f32.mrf.mxu0
    %5015 = vdwg.mxu0
    %5016 = vmatprep.subr.mxu0 0.0
    %5017 = vmatpush1.msra.mxu0 0.0
    %5018 = vmatprep.subr.mxu0 0.0
    %5019 = vmatpush1.msra.mxu0 0.0
    %5020 = vmatprep.subr.mxu0 0.0
    %5021 = vmatpush1.msra.mxu0 0.0
    %5022 = vmatprep.subr.mxu0 0.0
    %5023 = vmatpush1.msra.mxu0 0.0
    %5024 = vmatprep.subr.mxu0 0.0
    %5025 = vmatpush1.msra.mxu0 0.0
    %5026 = vmatprep.subr.mxu0 0.0
    %5027 = vmatpush1.msra.mxu0 0.0
    %5028 = vmatprep.subr.mxu0 0.0
    %5029 = vmatpush1.msra.mxu0 0.0
    %5030 = vmatprep.subr.mxu0 0.0
    %5031 = vmatpush1.msra.mxu0 0.0
    %5032 = vmatprep.subr.mxu0 0.0
    %v5033 = vand.u32 %v4733, 4294901760
    %5034 = vmatpush1.msra.mxu0 %v5033
    %5035 = vmatprep.subr.mxu0 0.0
    %v5036 = vand.u32 %v4732, 4294901760
    %5037 = vmatpush1.msra.mxu0 %v5036
    %5038 = vmatprep.subr.mxu0 0.0
    %v5039 = vand.u32 %v4731, 4294901760
    %5040 = vmatpush1.msra.mxu0 %v5039
    %5041 = vmatprep.subr.mxu0 0.0
    %v5042 = vand.u32 %v4730, 4294901760
    %5043 = vmatpush1.msra.mxu0 %v5042
    %5044 = vmatprep.subr.mxu0 0.0
    %v5045 = vand.u32 %v4729, 4294901760
    %5046 = vmatpush1.msra.mxu0 %v5045
    %5047 = vmatprep.subr.mxu0 0.0
    %v5048 = vand.u32 %v4728, 4294901760
    %5049 = vmatpush1.msra.mxu0 %v5048
    %5050 = vmatprep.subr.mxu0 0.0
    %v5051 = vand.u32 %v4727, 4294901760
    %5052 = vmatpush1.msra.mxu0 %v5051
    %5053 = vmatprep.subr.mxu0 0.0
    %v5054 = vand.u32 %v4726, 4294901760
    %5055 = vmatpush1.msra.mxu0 %v5054
    %5056 = vmatprep.subr.mxu0 0.0
    %5057 = vmatpush2.msra.mxu0 0.0
    %5058 = vmatprep.subr.mxu0 0.0
    %5059 = vmatpush2.msra.mxu0 0.0
    %5060 = vmatprep.subr.mxu0 0.0
    %5061 = vmatpush2.msra.mxu0 0.0
    %5062 = vmatprep.subr.mxu0 0.0
    %5063 = vmatpush2.msra.mxu0 0.0
    %5064 = vmatprep.subr.mxu0 0.0
    %5065 = vmatpush2.msra.mxu0 0.0
    %5066 = vmatprep.subr.mxu0 0.0
    %5067 = vmatpush2.msra.mxu0 0.0
    %5068 = vmatprep.subr.mxu0 0.0
    %5069 = vmatpush2.msra.mxu0 0.0
    %5070 = vmatprep.subr.mxu0 0.0
    %5071 = vmatpush2.msra.mxu0 0.0
    %5072 = vmatprep.subr.mxu0 0.0
    %5073 = vmatpush2.msra.mxu0 0.0
    %5074 = vmatprep.subr.mxu0 0.0
    %5075 = vmatpush2.msra.mxu0 0.0
    %5076 = vmatprep.subr.mxu0 0.0
    %5077 = vmatpush2.msra.mxu0 0.0
    %5078 = vmatprep.subr.mxu0 0.0
    %5079 = vmatpush2.msra.mxu0 0.0
    %5080 = vmatprep.subr.mxu0 0.0
    %5081 = vmatpush2.msra.mxu0 0.0
    %5082 = vmatprep.subr.mxu0 0.0
    %5083 = vmatpush2.msra.mxu0 0.0
    %5084 = vmatprep.subr.mxu0 0.0
    %5085 = vmatpush2.msra.mxu0 0.0
    %5086 = vmatprep.subr.mxu0 0.0
    %5087 = vmatpush2.msra.mxu0 0.0
    %5088 = vmatprep.mubr.f32.mxu0 0.0
    %v5089 = vand.u32 %v180, 4294901760
    %v5090 = vsub.f32 %v180, %v5089
    %v5091 = vand.u32 %v5090, 4294901760
    %5092 = vmatmul.mubr.f32.gmra.mxu0 %v5091
    %v5093 = vpop.f32.mrf.mxu0
    %v5094 = vadd.f32 %v5013, %v5093
    %v5095 = vpop.f32.mrf.mxu0
    %5096 = vdwg.mxu0
    %5097 = vmatprep.subr.mxu0 0.0
    %5098 = vmatpush1.msra.mxu0 0.0
    %5099 = vmatprep.subr.mxu0 0.0
    %5100 = vmatpush1.msra.mxu0 0.0
    %5101 = vmatprep.subr.mxu0 0.0
    %5102 = vmatpush1.msra.mxu0 0.0
    %5103 = vmatprep.subr.mxu0 0.0
    %5104 = vmatpush1.msra.mxu0 0.0
    %5105 = vmatprep.subr.mxu0 0.0
    %5106 = vmatpush1.msra.mxu0 0.0
    %5107 = vmatprep.subr.mxu0 0.0
    %5108 = vmatpush1.msra.mxu0 0.0
    %5109 = vmatprep.subr.mxu0 0.0
    %5110 = vmatpush1.msra.mxu0 0.0
    %5111 = vmatprep.subr.mxu0 0.0
    %5112 = vmatpush1.msra.mxu0 0.0
    %5113 = vmatprep.subr.mxu0 0.0
    %v5114 = vand.u32 %v4733, 4294901760
    %v5115 = vsub.f32 %v4733, %v5114
    %v5116 = vand.u32 %v5115, 4294901760
    %5117 = vmatpush1.msra.mxu0 %v5116
    %5118 = vmatprep.subr.mxu0 0.0
    %v5119 = vand.u32 %v4732, 4294901760
    %v5120 = vsub.f32 %v4732, %v5119
    %v5121 = vand.u32 %v5120, 4294901760
    %5122 = vmatpush1.msra.mxu0 %v5121
    %5123 = vmatprep.subr.mxu0 0.0
    %v5124 = vand.u32 %v4731, 4294901760
    %v5125 = vsub.f32 %v4731, %v5124
    %v5126 = vand.u32 %v5125, 4294901760
    %5127 = vmatpush1.msra.mxu0 %v5126
    %5128 = vmatprep.subr.mxu0 0.0
    %v5129 = vand.u32 %v4730, 4294901760
    %v5130 = vsub.f32 %v4730, %v5129
    %v5131 = vand.u32 %v5130, 4294901760
    %5132 = vmatpush1.msra.mxu0 %v5131
    %5133 = vmatprep.subr.mxu0 0.0
    %v5134 = vand.u32 %v4729, 4294901760
    %v5135 = vsub.f32 %v4729, %v5134
    %v5136 = vand.u32 %v5135, 4294901760
    %5137 = vmatpush1.msra.mxu0 %v5136
    %5138 = vmatprep.subr.mxu0 0.0
    %v5139 = vand.u32 %v4728, 4294901760
    %v5140 = vsub.f32 %v4728, %v5139
    %v5141 = vand.u32 %v5140, 4294901760
    %5142 = vmatpush1.msra.mxu0 %v5141
    %5143 = vmatprep.subr.mxu0 0.0
    %v5144 = vand.u32 %v4727, 4294901760
    %v5145 = vsub.f32 %v4727, %v5144
    %v5146 = vand.u32 %v5145, 4294901760
    %5147 = vmatpush1.msra.mxu0 %v5146
    %5148 = vmatprep.subr.mxu0 0.0
    %v5149 = vand.u32 %v4726, 4294901760
    %v5150 = vsub.f32 %v4726, %v5149
    %v5151 = vand.u32 %v5150, 4294901760
    %5152 = vmatpush1.msra.mxu0 %v5151
    %5153 = vmatprep.subr.mxu0 0.0
    %5154 = vmatpush2.msra.mxu0 0.0
    %5155 = vmatprep.subr.mxu0 0.0
    %5156 = vmatpush2.msra.mxu0 0.0
    %5157 = vmatprep.subr.mxu0 0.0
    %5158 = vmatpush2.msra.mxu0 0.0
    %5159 = vmatprep.subr.mxu0 0.0
    %5160 = vmatpush2.msra.mxu0 0.0
    %5161 = vmatprep.subr.mxu0 0.0
    %5162 = vmatpush2.msra.mxu0 0.0
    %5163 = vmatprep.subr.mxu0 0.0
    %5164 = vmatpush2.msra.mxu0 0.0
    %5165 = vmatprep.subr.mxu0 0.0
    %5166 = vmatpush2.msra.mxu0 0.0
    %5167 = vmatprep.subr.mxu0 0.0
    %5168 = vmatpush2.msra.mxu0 0.0
    %5169 = vmatprep.subr.mxu0 0.0
    %5170 = vmatpush2.msra.mxu0 0.0
    %5171 = vmatprep.subr.mxu0 0.0
    %5172 = vmatpush2.msra.mxu0 0.0
    %5173 = vmatprep.subr.mxu0 0.0
    %5174 = vmatpush2.msra.mxu0 0.0
    %5175 = vmatprep.subr.mxu0 0.0
    %5176 = vmatpush2.msra.mxu0 0.0
    %5177 = vmatprep.subr.mxu0 0.0
    %5178 = vmatpush2.msra.mxu0 0.0
    %5179 = vmatprep.subr.mxu0 0.0
    %5180 = vmatpush2.msra.mxu0 0.0
    %5181 = vmatprep.subr.mxu0 0.0
    %5182 = vmatpush2.msra.mxu0 0.0
    %5183 = vmatprep.subr.mxu0 0.0
    %5184 = vmatpush2.msra.mxu0 0.0
    %5185 = vmatprep.mubr.f32.mxu0 0.0
    %v5186 = vand.u32 %v180, 4294901760
    %5187 = vmatmul.mubr.f32.gmra.mxu0 %v5186
    %v5188 = vpop.f32.mrf.mxu0
    %v5189 = vadd.f32 %v5094, %v5188
    %v5190 = vpop.f32.mrf.mxu0
    %5191 = vdwg.mxu0
    %5192 = vmatprep.subr.mxu0 0.0
    %5193 = vmatpush1.msra.mxu0 0.0
    %5194 = vmatprep.subr.mxu0 0.0
    %5195 = vmatpush1.msra.mxu0 0.0
    %5196 = vmatprep.subr.mxu0 0.0
    %5197 = vmatpush1.msra.mxu0 0.0
    %5198 = vmatprep.subr.mxu0 0.0
    %5199 = vmatpush1.msra.mxu0 0.0
    %5200 = vmatprep.subr.mxu0 0.0
    %5201 = vmatpush1.msra.mxu0 0.0
    %5202 = vmatprep.subr.mxu0 0.0
    %5203 = vmatpush1.msra.mxu0 0.0
    %5204 = vmatprep.subr.mxu0 0.0
    %5205 = vmatpush1.msra.mxu0 0.0
    %5206 = vmatprep.subr.mxu0 0.0
    %5207 = vmatpush1.msra.mxu0 0.0
    %5208 = vmatprep.subr.mxu0 0.0
    %v5209 = vand.u32 %v4733, 4294901760
    %5210 = vmatpush1.msra.mxu0 %v5209
    %5211 = vmatprep.subr.mxu0 0.0
    %v5212 = vand.u32 %v4732, 4294901760
    %5213 = vmatpush1.msra.mxu0 %v5212
    %5214 = vmatprep.subr.mxu0 0.0
    %v5215 = vand.u32 %v4731, 4294901760
    %5216 = vmatpush1.msra.mxu0 %v5215
    %5217 = vmatprep.subr.mxu0 0.0
    %v5218 = vand.u32 %v4730, 4294901760
    %5219 = vmatpush1.msra.mxu0 %v5218
    %5220 = vmatprep.subr.mxu0 0.0
    %v5221 = vand.u32 %v4729, 4294901760
    %5222 = vmatpush1.msra.mxu0 %v5221
    %5223 = vmatprep.subr.mxu0 0.0
    %v5224 = vand.u32 %v4728, 4294901760
    %5225 = vmatpush1.msra.mxu0 %v5224
    %5226 = vmatprep.subr.mxu0 0.0
    %v5227 = vand.u32 %v4727, 4294901760
    %5228 = vmatpush1.msra.mxu0 %v5227
    %5229 = vmatprep.subr.mxu0 0.0
    %v5230 = vand.u32 %v4726, 4294901760
    %5231 = vmatpush1.msra.mxu0 %v5230
    %5232 = vmatprep.subr.mxu0 0.0
    %5233 = vmatpush2.msra.mxu0 0.0
    %5234 = vmatprep.subr.mxu0 0.0
    %5235 = vmatpush2.msra.mxu0 0.0
    %5236 = vmatprep.subr.mxu0 0.0
    %5237 = vmatpush2.msra.mxu0 0.0
    %5238 = vmatprep.subr.mxu0 0.0
    %5239 = vmatpush2.msra.mxu0 0.0
    %5240 = vmatprep.subr.mxu0 0.0
    %5241 = vmatpush2.msra.mxu0 0.0
    %5242 = vmatprep.subr.mxu0 0.0
    %5243 = vmatpush2.msra.mxu0 0.0
    %5244 = vmatprep.subr.mxu0 0.0
    %5245 = vmatpush2.msra.mxu0 0.0
    %5246 = vmatprep.subr.mxu0 0.0
    %5247 = vmatpush2.msra.mxu0 0.0
    %5248 = vmatprep.subr.mxu0 0.0
    %5249 = vmatpush2.msra.mxu0 0.0
    %5250 = vmatprep.subr.mxu0 0.0
    %5251 = vmatpush2.msra.mxu0 0.0
    %5252 = vmatprep.subr.mxu0 0.0
    %5253 = vmatpush2.msra.mxu0 0.0
    %5254 = vmatprep.subr.mxu0 0.0
    %5255 = vmatpush2.msra.mxu0 0.0
    %5256 = vmatprep.subr.mxu0 0.0
    %5257 = vmatpush2.msra.mxu0 0.0
    %5258 = vmatprep.subr.mxu0 0.0
    %5259 = vmatpush2.msra.mxu0 0.0
    %5260 = vmatprep.subr.mxu0 0.0
    %5261 = vmatpush2.msra.mxu0 0.0
    %5262 = vmatprep.subr.mxu0 0.0
    %5263 = vmatpush2.msra.mxu0 0.0
    %5264 = vmatprep.mubr.f32.mxu0 0.0
    %v5265 = vand.u32 %v180, 4294901760
    %5266 = vmatmul.mubr.f32.gmra.mxu0 %v5265
    %v5267 = vpop.f32.mrf.mxu0
    %v5268 = vadd.f32 %v5189, %v5267
    %v5269 = vpop.f32.mrf.mxu0
    %5270 = vdwg.mxu0
    %v5271 = vsub.f32 %v114, 9.0
    %v5272 = vsub.f32 %v115, 9.0
    %v5273 = vsub.f32 %v116, 9.0
    %v5274 = vsub.f32 %v117, 9.0
    %v5275 = vsub.f32 %v118, 9.0
    %v5276 = vsub.f32 %v119, 9.0
    %v5277 = vsub.f32 %v120, 9.0
    %v5278 = vsub.f32 %v121, 9.0
    %v5279 = vand.u32 2147483647, %v5271
    %v5280 = vand.u32 2147483647, %v5272
    %v5281 = vand.u32 2147483647, %v5273
    %v5282 = vand.u32 2147483647, %v5274
    %v5283 = vand.u32 2147483647, %v5275
    %v5284 = vand.u32 2147483647, %v5276
    %v5285 = vand.u32 2147483647, %v5277
    %v5286 = vand.u32 2147483647, %v5278
    %v5287 = vsub.f32 %v146, %v5279
    %v5288 = vsub.f32 %v147, %v5280
    %v5289 = vsub.f32 %v148, %v5281
    %v5290 = vsub.f32 %v149, %v5282
    %v5291 = vsub.f32 %v150, %v5283
    %v5292 = vsub.f32 %v151, %v5284
    %v5293 = vsub.f32 %v152, %v5285
    %v5294 = vsub.f32 %v153, %v5286
    %v5295 = vmax.f32 %v5287, 0.0
    %v5296 = vmax.f32 %v5288, 0.0
    %v5297 = vmax.f32 %v5289, 0.0
    %v5298 = vmax.f32 %v5290, 0.0
    %v5299 = vmax.f32 %v5291, 0.0
    %v5300 = vmax.f32 %v5292, 0.0
    %v5301 = vmax.f32 %v5293, 0.0
    %v5302 = vmax.f32 %v5294, 0.0
    %5303 = vmatprep.subr.mxu0 0.0
    %5304 = vmatpush1.msra.mxu0 0.0
    %5305 = vmatprep.subr.mxu0 0.0
    %5306 = vmatpush1.msra.mxu0 0.0
    %5307 = vmatprep.subr.mxu0 0.0
    %5308 = vmatpush1.msra.mxu0 0.0
    %5309 = vmatprep.subr.mxu0 0.0
    %5310 = vmatpush1.msra.mxu0 0.0
    %5311 = vmatprep.subr.mxu0 0.0
    %5312 = vmatpush1.msra.mxu0 0.0
    %5313 = vmatprep.subr.mxu0 0.0
    %5314 = vmatpush1.msra.mxu0 0.0
    %5315 = vmatprep.subr.mxu0 0.0
    %5316 = vmatpush1.msra.mxu0 0.0
    %5317 = vmatprep.subr.mxu0 0.0
    %5318 = vmatpush1.msra.mxu0 0.0
    %5319 = vmatprep.subr.mxu0 0.0
    %v5320 = vand.u32 %v5302, 4294901760
    %5321 = vmatpush1.msra.mxu0 %v5320
    %5322 = vmatprep.subr.mxu0 0.0
    %v5323 = vand.u32 %v5301, 4294901760
    %5324 = vmatpush1.msra.mxu0 %v5323
    %5325 = vmatprep.subr.mxu0 0.0
    %v5326 = vand.u32 %v5300, 4294901760
    %5327 = vmatpush1.msra.mxu0 %v5326
    %5328 = vmatprep.subr.mxu0 0.0
    %v5329 = vand.u32 %v5299, 4294901760
    %5330 = vmatpush1.msra.mxu0 %v5329
    %5331 = vmatprep.subr.mxu0 0.0
    %v5332 = vand.u32 %v5298, 4294901760
    %5333 = vmatpush1.msra.mxu0 %v5332
    %5334 = vmatprep.subr.mxu0 0.0
    %v5335 = vand.u32 %v5297, 4294901760
    %5336 = vmatpush1.msra.mxu0 %v5335
    %5337 = vmatprep.subr.mxu0 0.0
    %v5338 = vand.u32 %v5296, 4294901760
    %5339 = vmatpush1.msra.mxu0 %v5338
    %5340 = vmatprep.subr.mxu0 0.0
    %v5341 = vand.u32 %v5295, 4294901760
    %5342 = vmatpush1.msra.mxu0 %v5341
    %5343 = vmatprep.subr.mxu0 0.0
    %5344 = vmatpush2.msra.mxu0 0.0
    %5345 = vmatprep.subr.mxu0 0.0
    %5346 = vmatpush2.msra.mxu0 0.0
    %5347 = vmatprep.subr.mxu0 0.0
    %5348 = vmatpush2.msra.mxu0 0.0
    %5349 = vmatprep.subr.mxu0 0.0
    %5350 = vmatpush2.msra.mxu0 0.0
    %5351 = vmatprep.subr.mxu0 0.0
    %5352 = vmatpush2.msra.mxu0 0.0
    %5353 = vmatprep.subr.mxu0 0.0
    %5354 = vmatpush2.msra.mxu0 0.0
    %5355 = vmatprep.subr.mxu0 0.0
    %5356 = vmatpush2.msra.mxu0 0.0
    %5357 = vmatprep.subr.mxu0 0.0
    %5358 = vmatpush2.msra.mxu0 0.0
    %5359 = vmatprep.subr.mxu0 0.0
    %5360 = vmatpush2.msra.mxu0 0.0
    %5361 = vmatprep.subr.mxu0 0.0
    %5362 = vmatpush2.msra.mxu0 0.0
    %5363 = vmatprep.subr.mxu0 0.0
    %5364 = vmatpush2.msra.mxu0 0.0
    %5365 = vmatprep.subr.mxu0 0.0
    %5366 = vmatpush2.msra.mxu0 0.0
    %5367 = vmatprep.subr.mxu0 0.0
    %5368 = vmatpush2.msra.mxu0 0.0
    %5369 = vmatprep.subr.mxu0 0.0
    %5370 = vmatpush2.msra.mxu0 0.0
    %5371 = vmatprep.subr.mxu0 0.0
    %5372 = vmatpush2.msra.mxu0 0.0
    %5373 = vmatprep.subr.mxu0 0.0
    %5374 = vmatpush2.msra.mxu0 0.0
    %5375 = vmatprep.mubr.f32.mxu0 0.0
    %v5376 = vand.u32 %v180, 4294901760
    %v5377 = vsub.f32 %v180, %v5376
    %v5378 = vand.u32 %v5377, 4294901760
    %v5379 = vsub.f32 %v5377, %v5378
    %v5380 = vand.u32 %v5379, 4294901760
    %5381 = vmatmul.mubr.f32.gmra.mxu0 %v5380
    %v5382 = vpop.f32.mrf.mxu0
    %v5383 = vadd.f32 0.0, %v5382
    %v5384 = vpop.f32.mrf.mxu0
    %5385 = vdwg.mxu0
    %5386 = vmatprep.subr.mxu0 0.0
    %5387 = vmatpush1.msra.mxu0 0.0
    %5388 = vmatprep.subr.mxu0 0.0
    %5389 = vmatpush1.msra.mxu0 0.0
    %5390 = vmatprep.subr.mxu0 0.0
    %5391 = vmatpush1.msra.mxu0 0.0
    %5392 = vmatprep.subr.mxu0 0.0
    %5393 = vmatpush1.msra.mxu0 0.0
    %5394 = vmatprep.subr.mxu0 0.0
    %5395 = vmatpush1.msra.mxu0 0.0
    %5396 = vmatprep.subr.mxu0 0.0
    %5397 = vmatpush1.msra.mxu0 0.0
    %5398 = vmatprep.subr.mxu0 0.0
    %5399 = vmatpush1.msra.mxu0 0.0
    %5400 = vmatprep.subr.mxu0 0.0
    %5401 = vmatpush1.msra.mxu0 0.0
    %5402 = vmatprep.subr.mxu0 0.0
    %v5403 = vand.u32 %v5302, 4294901760
    %v5404 = vsub.f32 %v5302, %v5403
    %v5405 = vand.u32 %v5404, 4294901760
    %v5406 = vsub.f32 %v5404, %v5405
    %v5407 = vand.u32 %v5406, 4294901760
    %5408 = vmatpush1.msra.mxu0 %v5407
    %5409 = vmatprep.subr.mxu0 0.0
    %v5410 = vand.u32 %v5301, 4294901760
    %v5411 = vsub.f32 %v5301, %v5410
    %v5412 = vand.u32 %v5411, 4294901760
    %v5413 = vsub.f32 %v5411, %v5412
    %v5414 = vand.u32 %v5413, 4294901760
    %5415 = vmatpush1.msra.mxu0 %v5414
    %5416 = vmatprep.subr.mxu0 0.0
    %v5417 = vand.u32 %v5300, 4294901760
    %v5418 = vsub.f32 %v5300, %v5417
    %v5419 = vand.u32 %v5418, 4294901760
    %v5420 = vsub.f32 %v5418, %v5419
    %v5421 = vand.u32 %v5420, 4294901760
    %5422 = vmatpush1.msra.mxu0 %v5421
    %5423 = vmatprep.subr.mxu0 0.0
    %v5424 = vand.u32 %v5299, 4294901760
    %v5425 = vsub.f32 %v5299, %v5424
    %v5426 = vand.u32 %v5425, 4294901760
    %v5427 = vsub.f32 %v5425, %v5426
    %v5428 = vand.u32 %v5427, 4294901760
    %5429 = vmatpush1.msra.mxu0 %v5428
    %5430 = vmatprep.subr.mxu0 0.0
    %v5431 = vand.u32 %v5298, 4294901760
    %v5432 = vsub.f32 %v5298, %v5431
    %v5433 = vand.u32 %v5432, 4294901760
    %v5434 = vsub.f32 %v5432, %v5433
    %v5435 = vand.u32 %v5434, 4294901760
    %5436 = vmatpush1.msra.mxu0 %v5435
    %5437 = vmatprep.subr.mxu0 0.0
    %v5438 = vand.u32 %v5297, 4294901760
    %v5439 = vsub.f32 %v5297, %v5438
    %v5440 = vand.u32 %v5439, 4294901760
    %v5441 = vsub.f32 %v5439, %v5440
    %v5442 = vand.u32 %v5441, 4294901760
    %5443 = vmatpush1.msra.mxu0 %v5442
    %5444 = vmatprep.subr.mxu0 0.0
    %v5445 = vand.u32 %v5296, 4294901760
    %v5446 = vsub.f32 %v5296, %v5445
    %v5447 = vand.u32 %v5446, 4294901760
    %v5448 = vsub.f32 %v5446, %v5447
    %v5449 = vand.u32 %v5448, 4294901760
    %5450 = vmatpush1.msra.mxu0 %v5449
    %5451 = vmatprep.subr.mxu0 0.0
    %v5452 = vand.u32 %v5295, 4294901760
    %v5453 = vsub.f32 %v5295, %v5452
    %v5454 = vand.u32 %v5453, 4294901760
    %v5455 = vsub.f32 %v5453, %v5454
    %v5456 = vand.u32 %v5455, 4294901760
    %5457 = vmatpush1.msra.mxu0 %v5456
    %5458 = vmatprep.subr.mxu0 0.0
    %5459 = vmatpush2.msra.mxu0 0.0
    %5460 = vmatprep.subr.mxu0 0.0
    %5461 = vmatpush2.msra.mxu0 0.0
    %5462 = vmatprep.subr.mxu0 0.0
    %5463 = vmatpush2.msra.mxu0 0.0
    %5464 = vmatprep.subr.mxu0 0.0
    %5465 = vmatpush2.msra.mxu0 0.0
    %5466 = vmatprep.subr.mxu0 0.0
    %5467 = vmatpush2.msra.mxu0 0.0
    %5468 = vmatprep.subr.mxu0 0.0
    %5469 = vmatpush2.msra.mxu0 0.0
    %5470 = vmatprep.subr.mxu0 0.0
    %5471 = vmatpush2.msra.mxu0 0.0
    %5472 = vmatprep.subr.mxu0 0.0
    %5473 = vmatpush2.msra.mxu0 0.0
    %5474 = vmatprep.subr.mxu0 0.0
    %5475 = vmatpush2.msra.mxu0 0.0
    %5476 = vmatprep.subr.mxu0 0.0
    %5477 = vmatpush2.msra.mxu0 0.0
    %5478 = vmatprep.subr.mxu0 0.0
    %5479 = vmatpush2.msra.mxu0 0.0
    %5480 = vmatprep.subr.mxu0 0.0
    %5481 = vmatpush2.msra.mxu0 0.0
    %5482 = vmatprep.subr.mxu0 0.0
    %5483 = vmatpush2.msra.mxu0 0.0
    %5484 = vmatprep.subr.mxu0 0.0
    %5485 = vmatpush2.msra.mxu0 0.0
    %5486 = vmatprep.subr.mxu0 0.0
    %5487 = vmatpush2.msra.mxu0 0.0
    %5488 = vmatprep.subr.mxu0 0.0
    %5489 = vmatpush2.msra.mxu0 0.0
    %5490 = vmatprep.mubr.f32.mxu0 0.0
    %v5491 = vand.u32 %v180, 4294901760
    %5492 = vmatmul.mubr.f32.gmra.mxu0 %v5491
    %v5493 = vpop.f32.mrf.mxu0
    %v5494 = vadd.f32 %v5383, %v5493
    %v5495 = vpop.f32.mrf.mxu0
    %5496 = vdwg.mxu0
    %5497 = vmatprep.subr.mxu0 0.0
    %5498 = vmatpush1.msra.mxu0 0.0
    %5499 = vmatprep.subr.mxu0 0.0
    %5500 = vmatpush1.msra.mxu0 0.0
    %5501 = vmatprep.subr.mxu0 0.0
    %5502 = vmatpush1.msra.mxu0 0.0
    %5503 = vmatprep.subr.mxu0 0.0
    %5504 = vmatpush1.msra.mxu0 0.0
    %5505 = vmatprep.subr.mxu0 0.0
    %5506 = vmatpush1.msra.mxu0 0.0
    %5507 = vmatprep.subr.mxu0 0.0
    %5508 = vmatpush1.msra.mxu0 0.0
    %5509 = vmatprep.subr.mxu0 0.0
    %5510 = vmatpush1.msra.mxu0 0.0
    %5511 = vmatprep.subr.mxu0 0.0
    %5512 = vmatpush1.msra.mxu0 0.0
    %5513 = vmatprep.subr.mxu0 0.0
    %v5514 = vand.u32 %v5302, 4294901760
    %v5515 = vsub.f32 %v5302, %v5514
    %5516 = vmatpush1.msra.mxu0 %v5515
    %5517 = vmatprep.subr.mxu0 0.0
    %v5518 = vand.u32 %v5301, 4294901760
    %v5519 = vsub.f32 %v5301, %v5518
    %5520 = vmatpush1.msra.mxu0 %v5519
    %5521 = vmatprep.subr.mxu0 0.0
    %v5522 = vand.u32 %v5300, 4294901760
    %v5523 = vsub.f32 %v5300, %v5522
    %5524 = vmatpush1.msra.mxu0 %v5523
    %5525 = vmatprep.subr.mxu0 0.0
    %v5526 = vand.u32 %v5299, 4294901760
    %v5527 = vsub.f32 %v5299, %v5526
    %5528 = vmatpush1.msra.mxu0 %v5527
    %5529 = vmatprep.subr.mxu0 0.0
    %v5530 = vand.u32 %v5298, 4294901760
    %v5531 = vsub.f32 %v5298, %v5530
    %5532 = vmatpush1.msra.mxu0 %v5531
    %5533 = vmatprep.subr.mxu0 0.0
    %v5534 = vand.u32 %v5297, 4294901760
    %v5535 = vsub.f32 %v5297, %v5534
    %5536 = vmatpush1.msra.mxu0 %v5535
    %5537 = vmatprep.subr.mxu0 0.0
    %v5538 = vand.u32 %v5296, 4294901760
    %v5539 = vsub.f32 %v5296, %v5538
    %5540 = vmatpush1.msra.mxu0 %v5539
    %5541 = vmatprep.subr.mxu0 0.0
    %v5542 = vand.u32 %v5295, 4294901760
    %v5543 = vsub.f32 %v5295, %v5542
    %5544 = vmatpush1.msra.mxu0 %v5543
    %5545 = vmatprep.subr.mxu0 0.0
    %5546 = vmatpush2.msra.mxu0 0.0
    %5547 = vmatprep.subr.mxu0 0.0
    %5548 = vmatpush2.msra.mxu0 0.0
    %5549 = vmatprep.subr.mxu0 0.0
    %5550 = vmatpush2.msra.mxu0 0.0
    %5551 = vmatprep.subr.mxu0 0.0
    %5552 = vmatpush2.msra.mxu0 0.0
    %5553 = vmatprep.subr.mxu0 0.0
    %5554 = vmatpush2.msra.mxu0 0.0
    %5555 = vmatprep.subr.mxu0 0.0
    %5556 = vmatpush2.msra.mxu0 0.0
    %5557 = vmatprep.subr.mxu0 0.0
    %5558 = vmatpush2.msra.mxu0 0.0
    %5559 = vmatprep.subr.mxu0 0.0
    %5560 = vmatpush2.msra.mxu0 0.0
    %5561 = vmatprep.subr.mxu0 0.0
    %5562 = vmatpush2.msra.mxu0 0.0
    %5563 = vmatprep.subr.mxu0 0.0
    %5564 = vmatpush2.msra.mxu0 0.0
    %5565 = vmatprep.subr.mxu0 0.0
    %5566 = vmatpush2.msra.mxu0 0.0
    %5567 = vmatprep.subr.mxu0 0.0
    %5568 = vmatpush2.msra.mxu0 0.0
    %5569 = vmatprep.subr.mxu0 0.0
    %5570 = vmatpush2.msra.mxu0 0.0
    %5571 = vmatprep.subr.mxu0 0.0
    %5572 = vmatpush2.msra.mxu0 0.0
    %5573 = vmatprep.subr.mxu0 0.0
    %5574 = vmatpush2.msra.mxu0 0.0
    %5575 = vmatprep.subr.mxu0 0.0
    %5576 = vmatpush2.msra.mxu0 0.0
    %5577 = vmatprep.mubr.f32.mxu0 0.0
    %v5578 = vand.u32 %v180, 4294901760
    %v5579 = vsub.f32 %v180, %v5578
    %5580 = vmatmul.mubr.f32.gmra.mxu0 %v5579
    %v5581 = vpop.f32.mrf.mxu0
    %v5582 = vadd.f32 %v5494, %v5581
    %v5583 = vpop.f32.mrf.mxu0
    %5584 = vdwg.mxu0
    %5585 = vmatprep.subr.mxu0 0.0
    %5586 = vmatpush1.msra.mxu0 0.0
    %5587 = vmatprep.subr.mxu0 0.0
    %5588 = vmatpush1.msra.mxu0 0.0
    %5589 = vmatprep.subr.mxu0 0.0
    %5590 = vmatpush1.msra.mxu0 0.0
    %5591 = vmatprep.subr.mxu0 0.0
    %5592 = vmatpush1.msra.mxu0 0.0
    %5593 = vmatprep.subr.mxu0 0.0
    %5594 = vmatpush1.msra.mxu0 0.0
    %5595 = vmatprep.subr.mxu0 0.0
    %5596 = vmatpush1.msra.mxu0 0.0
    %5597 = vmatprep.subr.mxu0 0.0
    %5598 = vmatpush1.msra.mxu0 0.0
    %5599 = vmatprep.subr.mxu0 0.0
    %5600 = vmatpush1.msra.mxu0 0.0
    %5601 = vmatprep.subr.mxu0 0.0
    %v5602 = vand.u32 %v5302, 4294901760
    %5603 = vmatpush1.msra.mxu0 %v5602
    %5604 = vmatprep.subr.mxu0 0.0
    %v5605 = vand.u32 %v5301, 4294901760
    %5606 = vmatpush1.msra.mxu0 %v5605
    %5607 = vmatprep.subr.mxu0 0.0
    %v5608 = vand.u32 %v5300, 4294901760
    %5609 = vmatpush1.msra.mxu0 %v5608
    %5610 = vmatprep.subr.mxu0 0.0
    %v5611 = vand.u32 %v5299, 4294901760
    %5612 = vmatpush1.msra.mxu0 %v5611
    %5613 = vmatprep.subr.mxu0 0.0
    %v5614 = vand.u32 %v5298, 4294901760
    %5615 = vmatpush1.msra.mxu0 %v5614
    %5616 = vmatprep.subr.mxu0 0.0
    %v5617 = vand.u32 %v5297, 4294901760
    %5618 = vmatpush1.msra.mxu0 %v5617
    %5619 = vmatprep.subr.mxu0 0.0
    %v5620 = vand.u32 %v5296, 4294901760
    %5621 = vmatpush1.msra.mxu0 %v5620
    %5622 = vmatprep.subr.mxu0 0.0
    %v5623 = vand.u32 %v5295, 4294901760
    %5624 = vmatpush1.msra.mxu0 %v5623
    %5625 = vmatprep.subr.mxu0 0.0
    %5626 = vmatpush2.msra.mxu0 0.0
    %5627 = vmatprep.subr.mxu0 0.0
    %5628 = vmatpush2.msra.mxu0 0.0
    %5629 = vmatprep.subr.mxu0 0.0
    %5630 = vmatpush2.msra.mxu0 0.0
    %5631 = vmatprep.subr.mxu0 0.0
    %5632 = vmatpush2.msra.mxu0 0.0
    %5633 = vmatprep.subr.mxu0 0.0
    %5634 = vmatpush2.msra.mxu0 0.0
    %5635 = vmatprep.subr.mxu0 0.0
    %5636 = vmatpush2.msra.mxu0 0.0
    %5637 = vmatprep.subr.mxu0 0.0
    %5638 = vmatpush2.msra.mxu0 0.0
    %5639 = vmatprep.subr.mxu0 0.0
    %5640 = vmatpush2.msra.mxu0 0.0
    %5641 = vmatprep.subr.mxu0 0.0
    %5642 = vmatpush2.msra.mxu0 0.0
    %5643 = vmatprep.subr.mxu0 0.0
    %5644 = vmatpush2.msra.mxu0 0.0
    %5645 = vmatprep.subr.mxu0 0.0
    %5646 = vmatpush2.msra.mxu0 0.0
    %5647 = vmatprep.subr.mxu0 0.0
    %5648 = vmatpush2.msra.mxu0 0.0
    %5649 = vmatprep.subr.mxu0 0.0
    %5650 = vmatpush2.msra.mxu0 0.0
    %5651 = vmatprep.subr.mxu0 0.0
    %5652 = vmatpush2.msra.mxu0 0.0
    %5653 = vmatprep.subr.mxu0 0.0
    %5654 = vmatpush2.msra.mxu0 0.0
    %5655 = vmatprep.subr.mxu0 0.0
    %5656 = vmatpush2.msra.mxu0 0.0
    %5657 = vmatprep.mubr.f32.mxu0 0.0
    %v5658 = vand.u32 %v180, 4294901760
    %v5659 = vsub.f32 %v180, %v5658
    %v5660 = vand.u32 %v5659, 4294901760
    %5661 = vmatmul.mubr.f32.gmra.mxu0 %v5660
    %v5662 = vpop.f32.mrf.mxu0
    %v5663 = vadd.f32 %v5582, %v5662
    %v5664 = vpop.f32.mrf.mxu0
    %5665 = vdwg.mxu0
    %5666 = vmatprep.subr.mxu0 0.0
    %5667 = vmatpush1.msra.mxu0 0.0
    %5668 = vmatprep.subr.mxu0 0.0
    %5669 = vmatpush1.msra.mxu0 0.0
    %5670 = vmatprep.subr.mxu0 0.0
    %5671 = vmatpush1.msra.mxu0 0.0
    %5672 = vmatprep.subr.mxu0 0.0
    %5673 = vmatpush1.msra.mxu0 0.0
    %5674 = vmatprep.subr.mxu0 0.0
    %5675 = vmatpush1.msra.mxu0 0.0
    %5676 = vmatprep.subr.mxu0 0.0
    %5677 = vmatpush1.msra.mxu0 0.0
    %5678 = vmatprep.subr.mxu0 0.0
    %5679 = vmatpush1.msra.mxu0 0.0
    %5680 = vmatprep.subr.mxu0 0.0
    %5681 = vmatpush1.msra.mxu0 0.0
    %5682 = vmatprep.subr.mxu0 0.0
    %v5683 = vand.u32 %v5302, 4294901760
    %v5684 = vsub.f32 %v5302, %v5683
    %v5685 = vand.u32 %v5684, 4294901760
    %5686 = vmatpush1.msra.mxu0 %v5685
    %5687 = vmatprep.subr.mxu0 0.0
    %v5688 = vand.u32 %v5301, 4294901760
    %v5689 = vsub.f32 %v5301, %v5688
    %v5690 = vand.u32 %v5689, 4294901760
    %5691 = vmatpush1.msra.mxu0 %v5690
    %5692 = vmatprep.subr.mxu0 0.0
    %v5693 = vand.u32 %v5300, 4294901760
    %v5694 = vsub.f32 %v5300, %v5693
    %v5695 = vand.u32 %v5694, 4294901760
    %5696 = vmatpush1.msra.mxu0 %v5695
    %5697 = vmatprep.subr.mxu0 0.0
    %v5698 = vand.u32 %v5299, 4294901760
    %v5699 = vsub.f32 %v5299, %v5698
    %v5700 = vand.u32 %v5699, 4294901760
    %5701 = vmatpush1.msra.mxu0 %v5700
    %5702 = vmatprep.subr.mxu0 0.0
    %v5703 = vand.u32 %v5298, 4294901760
    %v5704 = vsub.f32 %v5298, %v5703
    %v5705 = vand.u32 %v5704, 4294901760
    %5706 = vmatpush1.msra.mxu0 %v5705
    %5707 = vmatprep.subr.mxu0 0.0
    %v5708 = vand.u32 %v5297, 4294901760
    %v5709 = vsub.f32 %v5297, %v5708
    %v5710 = vand.u32 %v5709, 4294901760
    %5711 = vmatpush1.msra.mxu0 %v5710
    %5712 = vmatprep.subr.mxu0 0.0
    %v5713 = vand.u32 %v5296, 4294901760
    %v5714 = vsub.f32 %v5296, %v5713
    %v5715 = vand.u32 %v5714, 4294901760
    %5716 = vmatpush1.msra.mxu0 %v5715
    %5717 = vmatprep.subr.mxu0 0.0
    %v5718 = vand.u32 %v5295, 4294901760
    %v5719 = vsub.f32 %v5295, %v5718
    %v5720 = vand.u32 %v5719, 4294901760
    %5721 = vmatpush1.msra.mxu0 %v5720
    %5722 = vmatprep.subr.mxu0 0.0
    %5723 = vmatpush2.msra.mxu0 0.0
    %5724 = vmatprep.subr.mxu0 0.0
    %5725 = vmatpush2.msra.mxu0 0.0
    %5726 = vmatprep.subr.mxu0 0.0
    %5727 = vmatpush2.msra.mxu0 0.0
    %5728 = vmatprep.subr.mxu0 0.0
    %5729 = vmatpush2.msra.mxu0 0.0
    %5730 = vmatprep.subr.mxu0 0.0
    %5731 = vmatpush2.msra.mxu0 0.0
    %5732 = vmatprep.subr.mxu0 0.0
    %5733 = vmatpush2.msra.mxu0 0.0
    %5734 = vmatprep.subr.mxu0 0.0
    %5735 = vmatpush2.msra.mxu0 0.0
    %5736 = vmatprep.subr.mxu0 0.0
    %5737 = vmatpush2.msra.mxu0 0.0
    %5738 = vmatprep.subr.mxu0 0.0
    %5739 = vmatpush2.msra.mxu0 0.0
    %5740 = vmatprep.subr.mxu0 0.0
    %5741 = vmatpush2.msra.mxu0 0.0
    %5742 = vmatprep.subr.mxu0 0.0
    %5743 = vmatpush2.msra.mxu0 0.0
    %5744 = vmatprep.subr.mxu0 0.0
    %5745 = vmatpush2.msra.mxu0 0.0
    %5746 = vmatprep.subr.mxu0 0.0
    %5747 = vmatpush2.msra.mxu0 0.0
    %5748 = vmatprep.subr.mxu0 0.0
    %5749 = vmatpush2.msra.mxu0 0.0
    %5750 = vmatprep.subr.mxu0 0.0
    %5751 = vmatpush2.msra.mxu0 0.0
    %5752 = vmatprep.subr.mxu0 0.0
    %5753 = vmatpush2.msra.mxu0 0.0
    %5754 = vmatprep.mubr.f32.mxu0 0.0
    %v5755 = vand.u32 %v180, 4294901760
    %5756 = vmatmul.mubr.f32.gmra.mxu0 %v5755
    %v5757 = vpop.f32.mrf.mxu0
    %v5758 = vadd.f32 %v5663, %v5757
    %v5759 = vpop.f32.mrf.mxu0
    %5760 = vdwg.mxu0
    %5761 = vmatprep.subr.mxu0 0.0
    %5762 = vmatpush1.msra.mxu0 0.0
    %5763 = vmatprep.subr.mxu0 0.0
    %5764 = vmatpush1.msra.mxu0 0.0
    %5765 = vmatprep.subr.mxu0 0.0
    %5766 = vmatpush1.msra.mxu0 0.0
    %5767 = vmatprep.subr.mxu0 0.0
    %5768 = vmatpush1.msra.mxu0 0.0
    %5769 = vmatprep.subr.mxu0 0.0
    %5770 = vmatpush1.msra.mxu0 0.0
    %5771 = vmatprep.subr.mxu0 0.0
    %5772 = vmatpush1.msra.mxu0 0.0
    %5773 = vmatprep.subr.mxu0 0.0
    %5774 = vmatpush1.msra.mxu0 0.0
    %5775 = vmatprep.subr.mxu0 0.0
    %5776 = vmatpush1.msra.mxu0 0.0
    %5777 = vmatprep.subr.mxu0 0.0
    %v5778 = vand.u32 %v5302, 4294901760
    %5779 = vmatpush1.msra.mxu0 %v5778
    %5780 = vmatprep.subr.mxu0 0.0
    %v5781 = vand.u32 %v5301, 4294901760
    %5782 = vmatpush1.msra.mxu0 %v5781
    %5783 = vmatprep.subr.mxu0 0.0
    %v5784 = vand.u32 %v5300, 4294901760
    %5785 = vmatpush1.msra.mxu0 %v5784
    %5786 = vmatprep.subr.mxu0 0.0
    %v5787 = vand.u32 %v5299, 4294901760
    %5788 = vmatpush1.msra.mxu0 %v5787
    %5789 = vmatprep.subr.mxu0 0.0
    %v5790 = vand.u32 %v5298, 4294901760
    %5791 = vmatpush1.msra.mxu0 %v5790
    %5792 = vmatprep.subr.mxu0 0.0
    %v5793 = vand.u32 %v5297, 4294901760
    %5794 = vmatpush1.msra.mxu0 %v5793
    %5795 = vmatprep.subr.mxu0 0.0
    %v5796 = vand.u32 %v5296, 4294901760
    %5797 = vmatpush1.msra.mxu0 %v5796
    %5798 = vmatprep.subr.mxu0 0.0
    %v5799 = vand.u32 %v5295, 4294901760
    %5800 = vmatpush1.msra.mxu0 %v5799
    %5801 = vmatprep.subr.mxu0 0.0
    %5802 = vmatpush2.msra.mxu0 0.0
    %5803 = vmatprep.subr.mxu0 0.0
    %5804 = vmatpush2.msra.mxu0 0.0
    %5805 = vmatprep.subr.mxu0 0.0
    %5806 = vmatpush2.msra.mxu0 0.0
    %5807 = vmatprep.subr.mxu0 0.0
    %5808 = vmatpush2.msra.mxu0 0.0
    %5809 = vmatprep.subr.mxu0 0.0
    %5810 = vmatpush2.msra.mxu0 0.0
    %5811 = vmatprep.subr.mxu0 0.0
    %5812 = vmatpush2.msra.mxu0 0.0
    %5813 = vmatprep.subr.mxu0 0.0
    %5814 = vmatpush2.msra.mxu0 0.0
    %5815 = vmatprep.subr.mxu0 0.0
    %5816 = vmatpush2.msra.mxu0 0.0
    %5817 = vmatprep.subr.mxu0 0.0
    %5818 = vmatpush2.msra.mxu0 0.0
    %5819 = vmatprep.subr.mxu0 0.0
    %5820 = vmatpush2.msra.mxu0 0.0
    %5821 = vmatprep.subr.mxu0 0.0
    %5822 = vmatpush2.msra.mxu0 0.0
    %5823 = vmatprep.subr.mxu0 0.0
    %5824 = vmatpush2.msra.mxu0 0.0
    %5825 = vmatprep.subr.mxu0 0.0
    %5826 = vmatpush2.msra.mxu0 0.0
    %5827 = vmatprep.subr.mxu0 0.0
    %5828 = vmatpush2.msra.mxu0 0.0
    %5829 = vmatprep.subr.mxu0 0.0
    %5830 = vmatpush2.msra.mxu0 0.0
    %5831 = vmatprep.subr.mxu0 0.0
    %5832 = vmatpush2.msra.mxu0 0.0
    %5833 = vmatprep.mubr.f32.mxu0 0.0
    %v5834 = vand.u32 %v180, 4294901760
    %5835 = vmatmul.mubr.f32.gmra.mxu0 %v5834
    %v5836 = vpop.f32.mrf.mxu0
    %v5837 = vadd.f32 %v5758, %v5836
    %v5838 = vpop.f32.mrf.mxu0
    %5839 = vdwg.mxu0
    %v5840 = vsub.f32 %v114, 10.0
    %v5841 = vsub.f32 %v115, 10.0
    %v5842 = vsub.f32 %v116, 10.0
    %v5843 = vsub.f32 %v117, 10.0
    %v5844 = vsub.f32 %v118, 10.0
    %v5845 = vsub.f32 %v119, 10.0
    %v5846 = vsub.f32 %v120, 10.0
    %v5847 = vsub.f32 %v121, 10.0
    %v5848 = vand.u32 2147483647, %v5840
    %v5849 = vand.u32 2147483647, %v5841
    %v5850 = vand.u32 2147483647, %v5842
    %v5851 = vand.u32 2147483647, %v5843
    %v5852 = vand.u32 2147483647, %v5844
    %v5853 = vand.u32 2147483647, %v5845
    %v5854 = vand.u32 2147483647, %v5846
    %v5855 = vand.u32 2147483647, %v5847
    %v5856 = vsub.f32 %v146, %v5848
    %v5857 = vsub.f32 %v147, %v5849
    %v5858 = vsub.f32 %v148, %v5850
    %v5859 = vsub.f32 %v149, %v5851
    %v5860 = vsub.f32 %v150, %v5852
    %v5861 = vsub.f32 %v151, %v5853
    %v5862 = vsub.f32 %v152, %v5854
    %v5863 = vsub.f32 %v153, %v5855
    %v5864 = vmax.f32 %v5856, 0.0
    %v5865 = vmax.f32 %v5857, 0.0
    %v5866 = vmax.f32 %v5858, 0.0
    %v5867 = vmax.f32 %v5859, 0.0
    %v5868 = vmax.f32 %v5860, 0.0
    %v5869 = vmax.f32 %v5861, 0.0
    %v5870 = vmax.f32 %v5862, 0.0
    %v5871 = vmax.f32 %v5863, 0.0
    %5872 = vmatprep.subr.mxu0 0.0
    %5873 = vmatpush1.msra.mxu0 0.0
    %5874 = vmatprep.subr.mxu0 0.0
    %5875 = vmatpush1.msra.mxu0 0.0
    %5876 = vmatprep.subr.mxu0 0.0
    %5877 = vmatpush1.msra.mxu0 0.0
    %5878 = vmatprep.subr.mxu0 0.0
    %5879 = vmatpush1.msra.mxu0 0.0
    %5880 = vmatprep.subr.mxu0 0.0
    %5881 = vmatpush1.msra.mxu0 0.0
    %5882 = vmatprep.subr.mxu0 0.0
    %5883 = vmatpush1.msra.mxu0 0.0
    %5884 = vmatprep.subr.mxu0 0.0
    %5885 = vmatpush1.msra.mxu0 0.0
    %5886 = vmatprep.subr.mxu0 0.0
    %5887 = vmatpush1.msra.mxu0 0.0
    %5888 = vmatprep.subr.mxu0 0.0
    %v5889 = vand.u32 %v5871, 4294901760
    %5890 = vmatpush1.msra.mxu0 %v5889
    %5891 = vmatprep.subr.mxu0 0.0
    %v5892 = vand.u32 %v5870, 4294901760
    %5893 = vmatpush1.msra.mxu0 %v5892
    %5894 = vmatprep.subr.mxu0 0.0
    %v5895 = vand.u32 %v5869, 4294901760
    %5896 = vmatpush1.msra.mxu0 %v5895
    %5897 = vmatprep.subr.mxu0 0.0
    %v5898 = vand.u32 %v5868, 4294901760
    %5899 = vmatpush1.msra.mxu0 %v5898
    %5900 = vmatprep.subr.mxu0 0.0
    %v5901 = vand.u32 %v5867, 4294901760
    %5902 = vmatpush1.msra.mxu0 %v5901
    %5903 = vmatprep.subr.mxu0 0.0
    %v5904 = vand.u32 %v5866, 4294901760
    %5905 = vmatpush1.msra.mxu0 %v5904
    %5906 = vmatprep.subr.mxu0 0.0
    %v5907 = vand.u32 %v5865, 4294901760
    %5908 = vmatpush1.msra.mxu0 %v5907
    %5909 = vmatprep.subr.mxu0 0.0
    %v5910 = vand.u32 %v5864, 4294901760
    %5911 = vmatpush1.msra.mxu0 %v5910
    %5912 = vmatprep.subr.mxu0 0.0
    %5913 = vmatpush2.msra.mxu0 0.0
    %5914 = vmatprep.subr.mxu0 0.0
    %5915 = vmatpush2.msra.mxu0 0.0
    %5916 = vmatprep.subr.mxu0 0.0
    %5917 = vmatpush2.msra.mxu0 0.0
    %5918 = vmatprep.subr.mxu0 0.0
    %5919 = vmatpush2.msra.mxu0 0.0
    %5920 = vmatprep.subr.mxu0 0.0
    %5921 = vmatpush2.msra.mxu0 0.0
    %5922 = vmatprep.subr.mxu0 0.0
    %5923 = vmatpush2.msra.mxu0 0.0
    %5924 = vmatprep.subr.mxu0 0.0
    %5925 = vmatpush2.msra.mxu0 0.0
    %5926 = vmatprep.subr.mxu0 0.0
    %5927 = vmatpush2.msra.mxu0 0.0
    %5928 = vmatprep.subr.mxu0 0.0
    %5929 = vmatpush2.msra.mxu0 0.0
    %5930 = vmatprep.subr.mxu0 0.0
    %5931 = vmatpush2.msra.mxu0 0.0
    %5932 = vmatprep.subr.mxu0 0.0
    %5933 = vmatpush2.msra.mxu0 0.0
    %5934 = vmatprep.subr.mxu0 0.0
    %5935 = vmatpush2.msra.mxu0 0.0
    %5936 = vmatprep.subr.mxu0 0.0
    %5937 = vmatpush2.msra.mxu0 0.0
    %5938 = vmatprep.subr.mxu0 0.0
    %5939 = vmatpush2.msra.mxu0 0.0
    %5940 = vmatprep.subr.mxu0 0.0
    %5941 = vmatpush2.msra.mxu0 0.0
    %5942 = vmatprep.subr.mxu0 0.0
    %5943 = vmatpush2.msra.mxu0 0.0
    %5944 = vmatprep.mubr.f32.mxu0 0.0
    %v5945 = vand.u32 %v180, 4294901760
    %v5946 = vsub.f32 %v180, %v5945
    %v5947 = vand.u32 %v5946, 4294901760
    %v5948 = vsub.f32 %v5946, %v5947
    %v5949 = vand.u32 %v5948, 4294901760
    %5950 = vmatmul.mubr.f32.gmra.mxu0 %v5949
    %v5951 = vpop.f32.mrf.mxu0
    %v5952 = vadd.f32 0.0, %v5951
    %v5953 = vpop.f32.mrf.mxu0
    %5954 = vdwg.mxu0
    %5955 = vmatprep.subr.mxu0 0.0
    %5956 = vmatpush1.msra.mxu0 0.0
    %5957 = vmatprep.subr.mxu0 0.0
    %5958 = vmatpush1.msra.mxu0 0.0
    %5959 = vmatprep.subr.mxu0 0.0
    %5960 = vmatpush1.msra.mxu0 0.0
    %5961 = vmatprep.subr.mxu0 0.0
    %5962 = vmatpush1.msra.mxu0 0.0
    %5963 = vmatprep.subr.mxu0 0.0
    %5964 = vmatpush1.msra.mxu0 0.0
    %5965 = vmatprep.subr.mxu0 0.0
    %5966 = vmatpush1.msra.mxu0 0.0
    %5967 = vmatprep.subr.mxu0 0.0
    %5968 = vmatpush1.msra.mxu0 0.0
    %5969 = vmatprep.subr.mxu0 0.0
    %5970 = vmatpush1.msra.mxu0 0.0
    %5971 = vmatprep.subr.mxu0 0.0
    %v5972 = vand.u32 %v5871, 4294901760
    %v5973 = vsub.f32 %v5871, %v5972
    %v5974 = vand.u32 %v5973, 4294901760
    %v5975 = vsub.f32 %v5973, %v5974
    %v5976 = vand.u32 %v5975, 4294901760
    %5977 = vmatpush1.msra.mxu0 %v5976
    %5978 = vmatprep.subr.mxu0 0.0
    %v5979 = vand.u32 %v5870, 4294901760
    %v5980 = vsub.f32 %v5870, %v5979
    %v5981 = vand.u32 %v5980, 4294901760
    %v5982 = vsub.f32 %v5980, %v5981
    %v5983 = vand.u32 %v5982, 4294901760
    %5984 = vmatpush1.msra.mxu0 %v5983
    %5985 = vmatprep.subr.mxu0 0.0
    %v5986 = vand.u32 %v5869, 4294901760
    %v5987 = vsub.f32 %v5869, %v5986
    %v5988 = vand.u32 %v5987, 4294901760
    %v5989 = vsub.f32 %v5987, %v5988
    %v5990 = vand.u32 %v5989, 4294901760
    %5991 = vmatpush1.msra.mxu0 %v5990
    %5992 = vmatprep.subr.mxu0 0.0
    %v5993 = vand.u32 %v5868, 4294901760
    %v5994 = vsub.f32 %v5868, %v5993
    %v5995 = vand.u32 %v5994, 4294901760
    %v5996 = vsub.f32 %v5994, %v5995
    %v5997 = vand.u32 %v5996, 4294901760
    %5998 = vmatpush1.msra.mxu0 %v5997
    %5999 = vmatprep.subr.mxu0 0.0
    %v6000 = vand.u32 %v5867, 4294901760
    %v6001 = vsub.f32 %v5867, %v6000
    %v6002 = vand.u32 %v6001, 4294901760
    %v6003 = vsub.f32 %v6001, %v6002
    %v6004 = vand.u32 %v6003, 4294901760
    %6005 = vmatpush1.msra.mxu0 %v6004
    %6006 = vmatprep.subr.mxu0 0.0
    %v6007 = vand.u32 %v5866, 4294901760
    %v6008 = vsub.f32 %v5866, %v6007
    %v6009 = vand.u32 %v6008, 4294901760
    %v6010 = vsub.f32 %v6008, %v6009
    %v6011 = vand.u32 %v6010, 4294901760
    %6012 = vmatpush1.msra.mxu0 %v6011
    %6013 = vmatprep.subr.mxu0 0.0
    %v6014 = vand.u32 %v5865, 4294901760
    %v6015 = vsub.f32 %v5865, %v6014
    %v6016 = vand.u32 %v6015, 4294901760
    %v6017 = vsub.f32 %v6015, %v6016
    %v6018 = vand.u32 %v6017, 4294901760
    %6019 = vmatpush1.msra.mxu0 %v6018
    %6020 = vmatprep.subr.mxu0 0.0
    %v6021 = vand.u32 %v5864, 4294901760
    %v6022 = vsub.f32 %v5864, %v6021
    %v6023 = vand.u32 %v6022, 4294901760
    %v6024 = vsub.f32 %v6022, %v6023
    %v6025 = vand.u32 %v6024, 4294901760
    %6026 = vmatpush1.msra.mxu0 %v6025
    %6027 = vmatprep.subr.mxu0 0.0
    %6028 = vmatpush2.msra.mxu0 0.0
    %6029 = vmatprep.subr.mxu0 0.0
    %6030 = vmatpush2.msra.mxu0 0.0
    %6031 = vmatprep.subr.mxu0 0.0
    %6032 = vmatpush2.msra.mxu0 0.0
    %6033 = vmatprep.subr.mxu0 0.0
    %6034 = vmatpush2.msra.mxu0 0.0
    %6035 = vmatprep.subr.mxu0 0.0
    %6036 = vmatpush2.msra.mxu0 0.0
    %6037 = vmatprep.subr.mxu0 0.0
    %6038 = vmatpush2.msra.mxu0 0.0
    %6039 = vmatprep.subr.mxu0 0.0
    %6040 = vmatpush2.msra.mxu0 0.0
    %6041 = vmatprep.subr.mxu0 0.0
    %6042 = vmatpush2.msra.mxu0 0.0
    %6043 = vmatprep.subr.mxu0 0.0
    %6044 = vmatpush2.msra.mxu0 0.0
    %6045 = vmatprep.subr.mxu0 0.0
    %6046 = vmatpush2.msra.mxu0 0.0
    %6047 = vmatprep.subr.mxu0 0.0
    %6048 = vmatpush2.msra.mxu0 0.0
    %6049 = vmatprep.subr.mxu0 0.0
    %6050 = vmatpush2.msra.mxu0 0.0
    %6051 = vmatprep.subr.mxu0 0.0
    %6052 = vmatpush2.msra.mxu0 0.0
    %6053 = vmatprep.subr.mxu0 0.0
    %6054 = vmatpush2.msra.mxu0 0.0
    %6055 = vmatprep.subr.mxu0 0.0
    %6056 = vmatpush2.msra.mxu0 0.0
    %6057 = vmatprep.subr.mxu0 0.0
    %6058 = vmatpush2.msra.mxu0 0.0
    %6059 = vmatprep.mubr.f32.mxu0 0.0
    %v6060 = vand.u32 %v180, 4294901760
    %6061 = vmatmul.mubr.f32.gmra.mxu0 %v6060
    %v6062 = vpop.f32.mrf.mxu0
    %v6063 = vadd.f32 %v5952, %v6062
    %v6064 = vpop.f32.mrf.mxu0
    %6065 = vdwg.mxu0
    %6066 = vmatprep.subr.mxu0 0.0
    %6067 = vmatpush1.msra.mxu0 0.0
    %6068 = vmatprep.subr.mxu0 0.0
    %6069 = vmatpush1.msra.mxu0 0.0
    %6070 = vmatprep.subr.mxu0 0.0
    %6071 = vmatpush1.msra.mxu0 0.0
    %6072 = vmatprep.subr.mxu0 0.0
    %6073 = vmatpush1.msra.mxu0 0.0
    %6074 = vmatprep.subr.mxu0 0.0
    %6075 = vmatpush1.msra.mxu0 0.0
    %6076 = vmatprep.subr.mxu0 0.0
    %6077 = vmatpush1.msra.mxu0 0.0
    %6078 = vmatprep.subr.mxu0 0.0
    %6079 = vmatpush1.msra.mxu0 0.0
    %6080 = vmatprep.subr.mxu0 0.0
    %6081 = vmatpush1.msra.mxu0 0.0
    %6082 = vmatprep.subr.mxu0 0.0
    %v6083 = vand.u32 %v5871, 4294901760
    %v6084 = vsub.f32 %v5871, %v6083
    %6085 = vmatpush1.msra.mxu0 %v6084
    %6086 = vmatprep.subr.mxu0 0.0
    %v6087 = vand.u32 %v5870, 4294901760
    %v6088 = vsub.f32 %v5870, %v6087
    %6089 = vmatpush1.msra.mxu0 %v6088
    %6090 = vmatprep.subr.mxu0 0.0
    %v6091 = vand.u32 %v5869, 4294901760
    %v6092 = vsub.f32 %v5869, %v6091
    %6093 = vmatpush1.msra.mxu0 %v6092
    %6094 = vmatprep.subr.mxu0 0.0
    %v6095 = vand.u32 %v5868, 4294901760
    %v6096 = vsub.f32 %v5868, %v6095
    %6097 = vmatpush1.msra.mxu0 %v6096
    %6098 = vmatprep.subr.mxu0 0.0
    %v6099 = vand.u32 %v5867, 4294901760
    %v6100 = vsub.f32 %v5867, %v6099
    %6101 = vmatpush1.msra.mxu0 %v6100
    %6102 = vmatprep.subr.mxu0 0.0
    %v6103 = vand.u32 %v5866, 4294901760
    %v6104 = vsub.f32 %v5866, %v6103
    %6105 = vmatpush1.msra.mxu0 %v6104
    %6106 = vmatprep.subr.mxu0 0.0
    %v6107 = vand.u32 %v5865, 4294901760
    %v6108 = vsub.f32 %v5865, %v6107
    %6109 = vmatpush1.msra.mxu0 %v6108
    %6110 = vmatprep.subr.mxu0 0.0
    %v6111 = vand.u32 %v5864, 4294901760
    %v6112 = vsub.f32 %v5864, %v6111
    %6113 = vmatpush1.msra.mxu0 %v6112
    %6114 = vmatprep.subr.mxu0 0.0
    %6115 = vmatpush2.msra.mxu0 0.0
    %6116 = vmatprep.subr.mxu0 0.0
    %6117 = vmatpush2.msra.mxu0 0.0
    %6118 = vmatprep.subr.mxu0 0.0
    %6119 = vmatpush2.msra.mxu0 0.0
    %6120 = vmatprep.subr.mxu0 0.0
    %6121 = vmatpush2.msra.mxu0 0.0
    %6122 = vmatprep.subr.mxu0 0.0
    %6123 = vmatpush2.msra.mxu0 0.0
    %6124 = vmatprep.subr.mxu0 0.0
    %6125 = vmatpush2.msra.mxu0 0.0
    %6126 = vmatprep.subr.mxu0 0.0
    %6127 = vmatpush2.msra.mxu0 0.0
    %6128 = vmatprep.subr.mxu0 0.0
    %6129 = vmatpush2.msra.mxu0 0.0
    %6130 = vmatprep.subr.mxu0 0.0
    %6131 = vmatpush2.msra.mxu0 0.0
    %6132 = vmatprep.subr.mxu0 0.0
    %6133 = vmatpush2.msra.mxu0 0.0
    %6134 = vmatprep.subr.mxu0 0.0
    %6135 = vmatpush2.msra.mxu0 0.0
    %6136 = vmatprep.subr.mxu0 0.0
    %6137 = vmatpush2.msra.mxu0 0.0
    %6138 = vmatprep.subr.mxu0 0.0
    %6139 = vmatpush2.msra.mxu0 0.0
    %6140 = vmatprep.subr.mxu0 0.0
    %6141 = vmatpush2.msra.mxu0 0.0
    %6142 = vmatprep.subr.mxu0 0.0
    %6143 = vmatpush2.msra.mxu0 0.0
    %6144 = vmatprep.subr.mxu0 0.0
    %6145 = vmatpush2.msra.mxu0 0.0
    %6146 = vmatprep.mubr.f32.mxu0 0.0
    %v6147 = vand.u32 %v180, 4294901760
    %v6148 = vsub.f32 %v180, %v6147
    %6149 = vmatmul.mubr.f32.gmra.mxu0 %v6148
    %v6150 = vpop.f32.mrf.mxu0
    %v6151 = vadd.f32 %v6063, %v6150
    %v6152 = vpop.f32.mrf.mxu0
    %6153 = vdwg.mxu0
    %6154 = vmatprep.subr.mxu0 0.0
    %6155 = vmatpush1.msra.mxu0 0.0
    %6156 = vmatprep.subr.mxu0 0.0
    %6157 = vmatpush1.msra.mxu0 0.0
    %6158 = vmatprep.subr.mxu0 0.0
    %6159 = vmatpush1.msra.mxu0 0.0
    %6160 = vmatprep.subr.mxu0 0.0
    %6161 = vmatpush1.msra.mxu0 0.0
    %6162 = vmatprep.subr.mxu0 0.0
    %6163 = vmatpush1.msra.mxu0 0.0
    %6164 = vmatprep.subr.mxu0 0.0
    %6165 = vmatpush1.msra.mxu0 0.0
    %6166 = vmatprep.subr.mxu0 0.0
    %6167 = vmatpush1.msra.mxu0 0.0
    %6168 = vmatprep.subr.mxu0 0.0
    %6169 = vmatpush1.msra.mxu0 0.0
    %6170 = vmatprep.subr.mxu0 0.0
    %v6171 = vand.u32 %v5871, 4294901760
    %6172 = vmatpush1.msra.mxu0 %v6171
    %6173 = vmatprep.subr.mxu0 0.0
    %v6174 = vand.u32 %v5870, 4294901760
    %6175 = vmatpush1.msra.mxu0 %v6174
    %6176 = vmatprep.subr.mxu0 0.0
    %v6177 = vand.u32 %v5869, 4294901760
    %6178 = vmatpush1.msra.mxu0 %v6177
    %6179 = vmatprep.subr.mxu0 0.0
    %v6180 = vand.u32 %v5868, 4294901760
    %6181 = vmatpush1.msra.mxu0 %v6180
    %6182 = vmatprep.subr.mxu0 0.0
    %v6183 = vand.u32 %v5867, 4294901760
    %6184 = vmatpush1.msra.mxu0 %v6183
    %6185 = vmatprep.subr.mxu0 0.0
    %v6186 = vand.u32 %v5866, 4294901760
    %6187 = vmatpush1.msra.mxu0 %v6186
    %6188 = vmatprep.subr.mxu0 0.0
    %v6189 = vand.u32 %v5865, 4294901760
    %6190 = vmatpush1.msra.mxu0 %v6189
    %6191 = vmatprep.subr.mxu0 0.0
    %v6192 = vand.u32 %v5864, 4294901760
    %6193 = vmatpush1.msra.mxu0 %v6192
    %6194 = vmatprep.subr.mxu0 0.0
    %6195 = vmatpush2.msra.mxu0 0.0
    %6196 = vmatprep.subr.mxu0 0.0
    %6197 = vmatpush2.msra.mxu0 0.0
    %6198 = vmatprep.subr.mxu0 0.0
    %6199 = vmatpush2.msra.mxu0 0.0
    %6200 = vmatprep.subr.mxu0 0.0
    %6201 = vmatpush2.msra.mxu0 0.0
    %6202 = vmatprep.subr.mxu0 0.0
    %6203 = vmatpush2.msra.mxu0 0.0
    %6204 = vmatprep.subr.mxu0 0.0
    %6205 = vmatpush2.msra.mxu0 0.0
    %6206 = vmatprep.subr.mxu0 0.0
    %6207 = vmatpush2.msra.mxu0 0.0
    %6208 = vmatprep.subr.mxu0 0.0
    %6209 = vmatpush2.msra.mxu0 0.0
    %6210 = vmatprep.subr.mxu0 0.0
    %6211 = vmatpush2.msra.mxu0 0.0
    %6212 = vmatprep.subr.mxu0 0.0
    %6213 = vmatpush2.msra.mxu0 0.0
    %6214 = vmatprep.subr.mxu0 0.0
    %6215 = vmatpush2.msra.mxu0 0.0
    %6216 = vmatprep.subr.mxu0 0.0
    %6217 = vmatpush2.msra.mxu0 0.0
    %6218 = vmatprep.subr.mxu0 0.0
    %6219 = vmatpush2.msra.mxu0 0.0
    %6220 = vmatprep.subr.mxu0 0.0
    %6221 = vmatpush2.msra.mxu0 0.0
    %6222 = vmatprep.subr.mxu0 0.0
    %6223 = vmatpush2.msra.mxu0 0.0
    %6224 = vmatprep.subr.mxu0 0.0
    %6225 = vmatpush2.msra.mxu0 0.0
    %6226 = vmatprep.mubr.f32.mxu0 0.0
    %v6227 = vand.u32 %v180, 4294901760
    %v6228 = vsub.f32 %v180, %v6227
    %v6229 = vand.u32 %v6228, 4294901760
    %6230 = vmatmul.mubr.f32.gmra.mxu0 %v6229
    %v6231 = vpop.f32.mrf.mxu0
    %v6232 = vadd.f32 %v6151, %v6231
    %v6233 = vpop.f32.mrf.mxu0
    %6234 = vdwg.mxu0
    %6235 = vmatprep.subr.mxu0 0.0
    %6236 = vmatpush1.msra.mxu0 0.0
    %6237 = vmatprep.subr.mxu0 0.0
    %6238 = vmatpush1.msra.mxu0 0.0
    %6239 = vmatprep.subr.mxu0 0.0
    %6240 = vmatpush1.msra.mxu0 0.0
    %6241 = vmatprep.subr.mxu0 0.0
    %6242 = vmatpush1.msra.mxu0 0.0
    %6243 = vmatprep.subr.mxu0 0.0
    %6244 = vmatpush1.msra.mxu0 0.0
    %6245 = vmatprep.subr.mxu0 0.0
    %6246 = vmatpush1.msra.mxu0 0.0
    %6247 = vmatprep.subr.mxu0 0.0
    %6248 = vmatpush1.msra.mxu0 0.0
    %6249 = vmatprep.subr.mxu0 0.0
    %6250 = vmatpush1.msra.mxu0 0.0
    %6251 = vmatprep.subr.mxu0 0.0
    %v6252 = vand.u32 %v5871, 4294901760
    %v6253 = vsub.f32 %v5871, %v6252
    %v6254 = vand.u32 %v6253, 4294901760
    %6255 = vmatpush1.msra.mxu0 %v6254
    %6256 = vmatprep.subr.mxu0 0.0
    %v6257 = vand.u32 %v5870, 4294901760
    %v6258 = vsub.f32 %v5870, %v6257
    %v6259 = vand.u32 %v6258, 4294901760
    %6260 = vmatpush1.msra.mxu0 %v6259
    %6261 = vmatprep.subr.mxu0 0.0
    %v6262 = vand.u32 %v5869, 4294901760
    %v6263 = vsub.f32 %v5869, %v6262
    %v6264 = vand.u32 %v6263, 4294901760
    %6265 = vmatpush1.msra.mxu0 %v6264
    %6266 = vmatprep.subr.mxu0 0.0
    %v6267 = vand.u32 %v5868, 4294901760
    %v6268 = vsub.f32 %v5868, %v6267
    %v6269 = vand.u32 %v6268, 4294901760
    %6270 = vmatpush1.msra.mxu0 %v6269
    %6271 = vmatprep.subr.mxu0 0.0
    %v6272 = vand.u32 %v5867, 4294901760
    %v6273 = vsub.f32 %v5867, %v6272
    %v6274 = vand.u32 %v6273, 4294901760
    %6275 = vmatpush1.msra.mxu0 %v6274
    %6276 = vmatprep.subr.mxu0 0.0
    %v6277 = vand.u32 %v5866, 4294901760
    %v6278 = vsub.f32 %v5866, %v6277
    %v6279 = vand.u32 %v6278, 4294901760
    %6280 = vmatpush1.msra.mxu0 %v6279
    %6281 = vmatprep.subr.mxu0 0.0
    %v6282 = vand.u32 %v5865, 4294901760
    %v6283 = vsub.f32 %v5865, %v6282
    %v6284 = vand.u32 %v6283, 4294901760
    %6285 = vmatpush1.msra.mxu0 %v6284
    %6286 = vmatprep.subr.mxu0 0.0
    %v6287 = vand.u32 %v5864, 4294901760
    %v6288 = vsub.f32 %v5864, %v6287
    %v6289 = vand.u32 %v6288, 4294901760
    %6290 = vmatpush1.msra.mxu0 %v6289
    %6291 = vmatprep.subr.mxu0 0.0
    %6292 = vmatpush2.msra.mxu0 0.0
    %6293 = vmatprep.subr.mxu0 0.0
    %6294 = vmatpush2.msra.mxu0 0.0
    %6295 = vmatprep.subr.mxu0 0.0
    %6296 = vmatpush2.msra.mxu0 0.0
    %6297 = vmatprep.subr.mxu0 0.0
    %6298 = vmatpush2.msra.mxu0 0.0
    %6299 = vmatprep.subr.mxu0 0.0
    %6300 = vmatpush2.msra.mxu0 0.0
    %6301 = vmatprep.subr.mxu0 0.0
    %6302 = vmatpush2.msra.mxu0 0.0
    %6303 = vmatprep.subr.mxu0 0.0
    %6304 = vmatpush2.msra.mxu0 0.0
    %6305 = vmatprep.subr.mxu0 0.0
    %6306 = vmatpush2.msra.mxu0 0.0
    %6307 = vmatprep.subr.mxu0 0.0
    %6308 = vmatpush2.msra.mxu0 0.0
    %6309 = vmatprep.subr.mxu0 0.0
    %6310 = vmatpush2.msra.mxu0 0.0
    %6311 = vmatprep.subr.mxu0 0.0
    %6312 = vmatpush2.msra.mxu0 0.0
    %6313 = vmatprep.subr.mxu0 0.0
    %6314 = vmatpush2.msra.mxu0 0.0
    %6315 = vmatprep.subr.mxu0 0.0
    %6316 = vmatpush2.msra.mxu0 0.0
    %6317 = vmatprep.subr.mxu0 0.0
    %6318 = vmatpush2.msra.mxu0 0.0
    %6319 = vmatprep.subr.mxu0 0.0
    %6320 = vmatpush2.msra.mxu0 0.0
    %6321 = vmatprep.subr.mxu0 0.0
    %6322 = vmatpush2.msra.mxu0 0.0
    %6323 = vmatprep.mubr.f32.mxu0 0.0
    %v6324 = vand.u32 %v180, 4294901760
    %6325 = vmatmul.mubr.f32.gmra.mxu0 %v6324
    %v6326 = vpop.f32.mrf.mxu0
    %v6327 = vadd.f32 %v6232, %v6326
    %v6328 = vpop.f32.mrf.mxu0
    %6329 = vdwg.mxu0
    %6330 = vmatprep.subr.mxu0 0.0
    %6331 = vmatpush1.msra.mxu0 0.0
    %6332 = vmatprep.subr.mxu0 0.0
    %6333 = vmatpush1.msra.mxu0 0.0
    %6334 = vmatprep.subr.mxu0 0.0
    %6335 = vmatpush1.msra.mxu0 0.0
    %6336 = vmatprep.subr.mxu0 0.0
    %6337 = vmatpush1.msra.mxu0 0.0
    %6338 = vmatprep.subr.mxu0 0.0
    %6339 = vmatpush1.msra.mxu0 0.0
    %6340 = vmatprep.subr.mxu0 0.0
    %6341 = vmatpush1.msra.mxu0 0.0
    %6342 = vmatprep.subr.mxu0 0.0
    %6343 = vmatpush1.msra.mxu0 0.0
    %6344 = vmatprep.subr.mxu0 0.0
    %6345 = vmatpush1.msra.mxu0 0.0
    %6346 = vmatprep.subr.mxu0 0.0
    %v6347 = vand.u32 %v5871, 4294901760
    %6348 = vmatpush1.msra.mxu0 %v6347
    %6349 = vmatprep.subr.mxu0 0.0
    %v6350 = vand.u32 %v5870, 4294901760
    %6351 = vmatpush1.msra.mxu0 %v6350
    %6352 = vmatprep.subr.mxu0 0.0
    %v6353 = vand.u32 %v5869, 4294901760
    %6354 = vmatpush1.msra.mxu0 %v6353
    %6355 = vmatprep.subr.mxu0 0.0
    %v6356 = vand.u32 %v5868, 4294901760
    %6357 = vmatpush1.msra.mxu0 %v6356
    %6358 = vmatprep.subr.mxu0 0.0
    %v6359 = vand.u32 %v5867, 4294901760
    %6360 = vmatpush1.msra.mxu0 %v6359
    %6361 = vmatprep.subr.mxu0 0.0
    %v6362 = vand.u32 %v5866, 4294901760
    %6363 = vmatpush1.msra.mxu0 %v6362
    %6364 = vmatprep.subr.mxu0 0.0
    %v6365 = vand.u32 %v5865, 4294901760
    %6366 = vmatpush1.msra.mxu0 %v6365
    %6367 = vmatprep.subr.mxu0 0.0
    %v6368 = vand.u32 %v5864, 4294901760
    %6369 = vmatpush1.msra.mxu0 %v6368
    %6370 = vmatprep.subr.mxu0 0.0
    %6371 = vmatpush2.msra.mxu0 0.0
    %6372 = vmatprep.subr.mxu0 0.0
    %6373 = vmatpush2.msra.mxu0 0.0
    %6374 = vmatprep.subr.mxu0 0.0
    %6375 = vmatpush2.msra.mxu0 0.0
    %6376 = vmatprep.subr.mxu0 0.0
    %6377 = vmatpush2.msra.mxu0 0.0
    %6378 = vmatprep.subr.mxu0 0.0
    %6379 = vmatpush2.msra.mxu0 0.0
    %6380 = vmatprep.subr.mxu0 0.0
    %6381 = vmatpush2.msra.mxu0 0.0
    %6382 = vmatprep.subr.mxu0 0.0
    %6383 = vmatpush2.msra.mxu0 0.0
    %6384 = vmatprep.subr.mxu0 0.0
    %6385 = vmatpush2.msra.mxu0 0.0
    %6386 = vmatprep.subr.mxu0 0.0
    %6387 = vmatpush2.msra.mxu0 0.0
    %6388 = vmatprep.subr.mxu0 0.0
    %6389 = vmatpush2.msra.mxu0 0.0
    %6390 = vmatprep.subr.mxu0 0.0
    %6391 = vmatpush2.msra.mxu0 0.0
    %6392 = vmatprep.subr.mxu0 0.0
    %6393 = vmatpush2.msra.mxu0 0.0
    %6394 = vmatprep.subr.mxu0 0.0
    %6395 = vmatpush2.msra.mxu0 0.0
    %6396 = vmatprep.subr.mxu0 0.0
    %6397 = vmatpush2.msra.mxu0 0.0
    %6398 = vmatprep.subr.mxu0 0.0
    %6399 = vmatpush2.msra.mxu0 0.0
    %6400 = vmatprep.subr.mxu0 0.0
    %6401 = vmatpush2.msra.mxu0 0.0
    %6402 = vmatprep.mubr.f32.mxu0 0.0
    %v6403 = vand.u32 %v180, 4294901760
    %6404 = vmatmul.mubr.f32.gmra.mxu0 %v6403
    %v6405 = vpop.f32.mrf.mxu0
    %v6406 = vadd.f32 %v6327, %v6405
    %v6407 = vpop.f32.mrf.mxu0
    %6408 = vdwg.mxu0
    %v6409 = vsub.f32 %v114, 11.0
    %v6410 = vsub.f32 %v115, 11.0
    %v6411 = vsub.f32 %v116, 11.0
    %v6412 = vsub.f32 %v117, 11.0
    %v6413 = vsub.f32 %v118, 11.0
    %v6414 = vsub.f32 %v119, 11.0
    %v6415 = vsub.f32 %v120, 11.0
    %v6416 = vsub.f32 %v121, 11.0
    %v6417 = vand.u32 2147483647, %v6409
    %v6418 = vand.u32 2147483647, %v6410
    %v6419 = vand.u32 2147483647, %v6411
    %v6420 = vand.u32 2147483647, %v6412
    %v6421 = vand.u32 2147483647, %v6413
    %v6422 = vand.u32 2147483647, %v6414
    %v6423 = vand.u32 2147483647, %v6415
    %v6424 = vand.u32 2147483647, %v6416
    %v6425 = vsub.f32 %v146, %v6417
    %v6426 = vsub.f32 %v147, %v6418
    %v6427 = vsub.f32 %v148, %v6419
    %v6428 = vsub.f32 %v149, %v6420
    %v6429 = vsub.f32 %v150, %v6421
    %v6430 = vsub.f32 %v151, %v6422
    %v6431 = vsub.f32 %v152, %v6423
    %v6432 = vsub.f32 %v153, %v6424
    %v6433 = vmax.f32 %v6425, 0.0
    %v6434 = vmax.f32 %v6426, 0.0
    %v6435 = vmax.f32 %v6427, 0.0
    %v6436 = vmax.f32 %v6428, 0.0
    %v6437 = vmax.f32 %v6429, 0.0
    %v6438 = vmax.f32 %v6430, 0.0
    %v6439 = vmax.f32 %v6431, 0.0
    %v6440 = vmax.f32 %v6432, 0.0
    %6441 = vmatprep.subr.mxu0 0.0
    %6442 = vmatpush1.msra.mxu0 0.0
    %6443 = vmatprep.subr.mxu0 0.0
    %6444 = vmatpush1.msra.mxu0 0.0
    %6445 = vmatprep.subr.mxu0 0.0
    %6446 = vmatpush1.msra.mxu0 0.0
    %6447 = vmatprep.subr.mxu0 0.0
    %6448 = vmatpush1.msra.mxu0 0.0
    %6449 = vmatprep.subr.mxu0 0.0
    %6450 = vmatpush1.msra.mxu0 0.0
    %6451 = vmatprep.subr.mxu0 0.0
    %6452 = vmatpush1.msra.mxu0 0.0
    %6453 = vmatprep.subr.mxu0 0.0
    %6454 = vmatpush1.msra.mxu0 0.0
    %6455 = vmatprep.subr.mxu0 0.0
    %6456 = vmatpush1.msra.mxu0 0.0
    %6457 = vmatprep.subr.mxu0 0.0
    %v6458 = vand.u32 %v6440, 4294901760
    %6459 = vmatpush1.msra.mxu0 %v6458
    %6460 = vmatprep.subr.mxu0 0.0
    %v6461 = vand.u32 %v6439, 4294901760
    %6462 = vmatpush1.msra.mxu0 %v6461
    %6463 = vmatprep.subr.mxu0 0.0
    %v6464 = vand.u32 %v6438, 4294901760
    %6465 = vmatpush1.msra.mxu0 %v6464
    %6466 = vmatprep.subr.mxu0 0.0
    %v6467 = vand.u32 %v6437, 4294901760
    %6468 = vmatpush1.msra.mxu0 %v6467
    %6469 = vmatprep.subr.mxu0 0.0
    %v6470 = vand.u32 %v6436, 4294901760
    %6471 = vmatpush1.msra.mxu0 %v6470
    %6472 = vmatprep.subr.mxu0 0.0
    %v6473 = vand.u32 %v6435, 4294901760
    %6474 = vmatpush1.msra.mxu0 %v6473
    %6475 = vmatprep.subr.mxu0 0.0
    %v6476 = vand.u32 %v6434, 4294901760
    %6477 = vmatpush1.msra.mxu0 %v6476
    %6478 = vmatprep.subr.mxu0 0.0
    %v6479 = vand.u32 %v6433, 4294901760
    %6480 = vmatpush1.msra.mxu0 %v6479
    %6481 = vmatprep.subr.mxu0 0.0
    %6482 = vmatpush2.msra.mxu0 0.0
    %6483 = vmatprep.subr.mxu0 0.0
    %6484 = vmatpush2.msra.mxu0 0.0
    %6485 = vmatprep.subr.mxu0 0.0
    %6486 = vmatpush2.msra.mxu0 0.0
    %6487 = vmatprep.subr.mxu0 0.0
    %6488 = vmatpush2.msra.mxu0 0.0
    %6489 = vmatprep.subr.mxu0 0.0
    %6490 = vmatpush2.msra.mxu0 0.0
    %6491 = vmatprep.subr.mxu0 0.0
    %6492 = vmatpush2.msra.mxu0 0.0
    %6493 = vmatprep.subr.mxu0 0.0
    %6494 = vmatpush2.msra.mxu0 0.0
    %6495 = vmatprep.subr.mxu0 0.0
    %6496 = vmatpush2.msra.mxu0 0.0
    %6497 = vmatprep.subr.mxu0 0.0
    %6498 = vmatpush2.msra.mxu0 0.0
    %6499 = vmatprep.subr.mxu0 0.0
    %6500 = vmatpush2.msra.mxu0 0.0
    %6501 = vmatprep.subr.mxu0 0.0
    %6502 = vmatpush2.msra.mxu0 0.0
    %6503 = vmatprep.subr.mxu0 0.0
    %6504 = vmatpush2.msra.mxu0 0.0
    %6505 = vmatprep.subr.mxu0 0.0
    %6506 = vmatpush2.msra.mxu0 0.0
    %6507 = vmatprep.subr.mxu0 0.0
    %6508 = vmatpush2.msra.mxu0 0.0
    %6509 = vmatprep.subr.mxu0 0.0
    %6510 = vmatpush2.msra.mxu0 0.0
    %6511 = vmatprep.subr.mxu0 0.0
    %6512 = vmatpush2.msra.mxu0 0.0
    %6513 = vmatprep.mubr.f32.mxu0 0.0
    %v6514 = vand.u32 %v180, 4294901760
    %v6515 = vsub.f32 %v180, %v6514
    %v6516 = vand.u32 %v6515, 4294901760
    %v6517 = vsub.f32 %v6515, %v6516
    %v6518 = vand.u32 %v6517, 4294901760
    %6519 = vmatmul.mubr.f32.gmra.mxu0 %v6518
    %v6520 = vpop.f32.mrf.mxu0
    %v6521 = vadd.f32 0.0, %v6520
    %v6522 = vpop.f32.mrf.mxu0
    %6523 = vdwg.mxu0
    %6524 = vmatprep.subr.mxu0 0.0
    %6525 = vmatpush1.msra.mxu0 0.0
    %6526 = vmatprep.subr.mxu0 0.0
    %6527 = vmatpush1.msra.mxu0 0.0
    %6528 = vmatprep.subr.mxu0 0.0
    %6529 = vmatpush1.msra.mxu0 0.0
    %6530 = vmatprep.subr.mxu0 0.0
    %6531 = vmatpush1.msra.mxu0 0.0
    %6532 = vmatprep.subr.mxu0 0.0
    %6533 = vmatpush1.msra.mxu0 0.0
    %6534 = vmatprep.subr.mxu0 0.0
    %6535 = vmatpush1.msra.mxu0 0.0
    %6536 = vmatprep.subr.mxu0 0.0
    %6537 = vmatpush1.msra.mxu0 0.0
    %6538 = vmatprep.subr.mxu0 0.0
    %6539 = vmatpush1.msra.mxu0 0.0
    %6540 = vmatprep.subr.mxu0 0.0
    %v6541 = vand.u32 %v6440, 4294901760
    %v6542 = vsub.f32 %v6440, %v6541
    %v6543 = vand.u32 %v6542, 4294901760
    %v6544 = vsub.f32 %v6542, %v6543
    %v6545 = vand.u32 %v6544, 4294901760
    %6546 = vmatpush1.msra.mxu0 %v6545
    %6547 = vmatprep.subr.mxu0 0.0
    %v6548 = vand.u32 %v6439, 4294901760
    %v6549 = vsub.f32 %v6439, %v6548
    %v6550 = vand.u32 %v6549, 4294901760
    %v6551 = vsub.f32 %v6549, %v6550
    %v6552 = vand.u32 %v6551, 4294901760
    %6553 = vmatpush1.msra.mxu0 %v6552
    %6554 = vmatprep.subr.mxu0 0.0
    %v6555 = vand.u32 %v6438, 4294901760
    %v6556 = vsub.f32 %v6438, %v6555
    %v6557 = vand.u32 %v6556, 4294901760
    %v6558 = vsub.f32 %v6556, %v6557
    %v6559 = vand.u32 %v6558, 4294901760
    %6560 = vmatpush1.msra.mxu0 %v6559
    %6561 = vmatprep.subr.mxu0 0.0
    %v6562 = vand.u32 %v6437, 4294901760
    %v6563 = vsub.f32 %v6437, %v6562
    %v6564 = vand.u32 %v6563, 4294901760
    %v6565 = vsub.f32 %v6563, %v6564
    %v6566 = vand.u32 %v6565, 4294901760
    %6567 = vmatpush1.msra.mxu0 %v6566
    %6568 = vmatprep.subr.mxu0 0.0
    %v6569 = vand.u32 %v6436, 4294901760
    %v6570 = vsub.f32 %v6436, %v6569
    %v6571 = vand.u32 %v6570, 4294901760
    %v6572 = vsub.f32 %v6570, %v6571
    %v6573 = vand.u32 %v6572, 4294901760
    %6574 = vmatpush1.msra.mxu0 %v6573
    %6575 = vmatprep.subr.mxu0 0.0
    %v6576 = vand.u32 %v6435, 4294901760
    %v6577 = vsub.f32 %v6435, %v6576
    %v6578 = vand.u32 %v6577, 4294901760
    %v6579 = vsub.f32 %v6577, %v6578
    %v6580 = vand.u32 %v6579, 4294901760
    %6581 = vmatpush1.msra.mxu0 %v6580
    %6582 = vmatprep.subr.mxu0 0.0
    %v6583 = vand.u32 %v6434, 4294901760
    %v6584 = vsub.f32 %v6434, %v6583
    %v6585 = vand.u32 %v6584, 4294901760
    %v6586 = vsub.f32 %v6584, %v6585
    %v6587 = vand.u32 %v6586, 4294901760
    %6588 = vmatpush1.msra.mxu0 %v6587
    %6589 = vmatprep.subr.mxu0 0.0
    %v6590 = vand.u32 %v6433, 4294901760
    %v6591 = vsub.f32 %v6433, %v6590
    %v6592 = vand.u32 %v6591, 4294901760
    %v6593 = vsub.f32 %v6591, %v6592
    %v6594 = vand.u32 %v6593, 4294901760
    %6595 = vmatpush1.msra.mxu0 %v6594
    %6596 = vmatprep.subr.mxu0 0.0
    %6597 = vmatpush2.msra.mxu0 0.0
    %6598 = vmatprep.subr.mxu0 0.0
    %6599 = vmatpush2.msra.mxu0 0.0
    %6600 = vmatprep.subr.mxu0 0.0
    %6601 = vmatpush2.msra.mxu0 0.0
    %6602 = vmatprep.subr.mxu0 0.0
    %6603 = vmatpush2.msra.mxu0 0.0
    %6604 = vmatprep.subr.mxu0 0.0
    %6605 = vmatpush2.msra.mxu0 0.0
    %6606 = vmatprep.subr.mxu0 0.0
    %6607 = vmatpush2.msra.mxu0 0.0
    %6608 = vmatprep.subr.mxu0 0.0
    %6609 = vmatpush2.msra.mxu0 0.0
    %6610 = vmatprep.subr.mxu0 0.0
    %6611 = vmatpush2.msra.mxu0 0.0
    %6612 = vmatprep.subr.mxu0 0.0
    %6613 = vmatpush2.msra.mxu0 0.0
    %6614 = vmatprep.subr.mxu0 0.0
    %6615 = vmatpush2.msra.mxu0 0.0
    %6616 = vmatprep.subr.mxu0 0.0
    %6617 = vmatpush2.msra.mxu0 0.0
    %6618 = vmatprep.subr.mxu0 0.0
    %6619 = vmatpush2.msra.mxu0 0.0
    %6620 = vmatprep.subr.mxu0 0.0
    %6621 = vmatpush2.msra.mxu0 0.0
    %6622 = vmatprep.subr.mxu0 0.0
    %6623 = vmatpush2.msra.mxu0 0.0
    %6624 = vmatprep.subr.mxu0 0.0
    %6625 = vmatpush2.msra.mxu0 0.0
    %6626 = vmatprep.subr.mxu0 0.0
    %6627 = vmatpush2.msra.mxu0 0.0
    %6628 = vmatprep.mubr.f32.mxu0 0.0
    %v6629 = vand.u32 %v180, 4294901760
    %6630 = vmatmul.mubr.f32.gmra.mxu0 %v6629
    %v6631 = vpop.f32.mrf.mxu0
    %v6632 = vadd.f32 %v6521, %v6631
    %v6633 = vpop.f32.mrf.mxu0
    %6634 = vdwg.mxu0
    %6635 = vmatprep.subr.mxu0 0.0
    %6636 = vmatpush1.msra.mxu0 0.0
    %6637 = vmatprep.subr.mxu0 0.0
    %6638 = vmatpush1.msra.mxu0 0.0
    %6639 = vmatprep.subr.mxu0 0.0
    %6640 = vmatpush1.msra.mxu0 0.0
    %6641 = vmatprep.subr.mxu0 0.0
    %6642 = vmatpush1.msra.mxu0 0.0
    %6643 = vmatprep.subr.mxu0 0.0
    %6644 = vmatpush1.msra.mxu0 0.0
    %6645 = vmatprep.subr.mxu0 0.0
    %6646 = vmatpush1.msra.mxu0 0.0
    %6647 = vmatprep.subr.mxu0 0.0
    %6648 = vmatpush1.msra.mxu0 0.0
    %6649 = vmatprep.subr.mxu0 0.0
    %6650 = vmatpush1.msra.mxu0 0.0
    %6651 = vmatprep.subr.mxu0 0.0
    %v6652 = vand.u32 %v6440, 4294901760
    %v6653 = vsub.f32 %v6440, %v6652
    %6654 = vmatpush1.msra.mxu0 %v6653
    %6655 = vmatprep.subr.mxu0 0.0
    %v6656 = vand.u32 %v6439, 4294901760
    %v6657 = vsub.f32 %v6439, %v6656
    %6658 = vmatpush1.msra.mxu0 %v6657
    %6659 = vmatprep.subr.mxu0 0.0
    %v6660 = vand.u32 %v6438, 4294901760
    %v6661 = vsub.f32 %v6438, %v6660
    %6662 = vmatpush1.msra.mxu0 %v6661
    %6663 = vmatprep.subr.mxu0 0.0
    %v6664 = vand.u32 %v6437, 4294901760
    %v6665 = vsub.f32 %v6437, %v6664
    %6666 = vmatpush1.msra.mxu0 %v6665
    %6667 = vmatprep.subr.mxu0 0.0
    %v6668 = vand.u32 %v6436, 4294901760
    %v6669 = vsub.f32 %v6436, %v6668
    %6670 = vmatpush1.msra.mxu0 %v6669
    %6671 = vmatprep.subr.mxu0 0.0
    %v6672 = vand.u32 %v6435, 4294901760
    %v6673 = vsub.f32 %v6435, %v6672
    %6674 = vmatpush1.msra.mxu0 %v6673
    %6675 = vmatprep.subr.mxu0 0.0
    %v6676 = vand.u32 %v6434, 4294901760
    %v6677 = vsub.f32 %v6434, %v6676
    %6678 = vmatpush1.msra.mxu0 %v6677
    %6679 = vmatprep.subr.mxu0 0.0
    %v6680 = vand.u32 %v6433, 4294901760
    %v6681 = vsub.f32 %v6433, %v6680
    %6682 = vmatpush1.msra.mxu0 %v6681
    %6683 = vmatprep.subr.mxu0 0.0
    %6684 = vmatpush2.msra.mxu0 0.0
    %6685 = vmatprep.subr.mxu0 0.0
    %6686 = vmatpush2.msra.mxu0 0.0
    %6687 = vmatprep.subr.mxu0 0.0
    %6688 = vmatpush2.msra.mxu0 0.0
    %6689 = vmatprep.subr.mxu0 0.0
    %6690 = vmatpush2.msra.mxu0 0.0
    %6691 = vmatprep.subr.mxu0 0.0
    %6692 = vmatpush2.msra.mxu0 0.0
    %6693 = vmatprep.subr.mxu0 0.0
    %6694 = vmatpush2.msra.mxu0 0.0
    %6695 = vmatprep.subr.mxu0 0.0
    %6696 = vmatpush2.msra.mxu0 0.0
    %6697 = vmatprep.subr.mxu0 0.0
    %6698 = vmatpush2.msra.mxu0 0.0
    %6699 = vmatprep.subr.mxu0 0.0
    %6700 = vmatpush2.msra.mxu0 0.0
    %6701 = vmatprep.subr.mxu0 0.0
    %6702 = vmatpush2.msra.mxu0 0.0
    %6703 = vmatprep.subr.mxu0 0.0
    %6704 = vmatpush2.msra.mxu0 0.0
    %6705 = vmatprep.subr.mxu0 0.0
    %6706 = vmatpush2.msra.mxu0 0.0
    %6707 = vmatprep.subr.mxu0 0.0
    %6708 = vmatpush2.msra.mxu0 0.0
    %6709 = vmatprep.subr.mxu0 0.0
    %6710 = vmatpush2.msra.mxu0 0.0
    %6711 = vmatprep.subr.mxu0 0.0
    %6712 = vmatpush2.msra.mxu0 0.0
    %6713 = vmatprep.subr.mxu0 0.0
    %6714 = vmatpush2.msra.mxu0 0.0
    %6715 = vmatprep.mubr.f32.mxu0 0.0
    %v6716 = vand.u32 %v180, 4294901760
    %v6717 = vsub.f32 %v180, %v6716
    %6718 = vmatmul.mubr.f32.gmra.mxu0 %v6717
    %v6719 = vpop.f32.mrf.mxu0
    %v6720 = vadd.f32 %v6632, %v6719
    %v6721 = vpop.f32.mrf.mxu0
    %6722 = vdwg.mxu0
    %6723 = vmatprep.subr.mxu0 0.0
    %6724 = vmatpush1.msra.mxu0 0.0
    %6725 = vmatprep.subr.mxu0 0.0
    %6726 = vmatpush1.msra.mxu0 0.0
    %6727 = vmatprep.subr.mxu0 0.0
    %6728 = vmatpush1.msra.mxu0 0.0
    %6729 = vmatprep.subr.mxu0 0.0
    %6730 = vmatpush1.msra.mxu0 0.0
    %6731 = vmatprep.subr.mxu0 0.0
    %6732 = vmatpush1.msra.mxu0 0.0
    %6733 = vmatprep.subr.mxu0 0.0
    %6734 = vmatpush1.msra.mxu0 0.0
    %6735 = vmatprep.subr.mxu0 0.0
    %6736 = vmatpush1.msra.mxu0 0.0
    %6737 = vmatprep.subr.mxu0 0.0
    %6738 = vmatpush1.msra.mxu0 0.0
    %6739 = vmatprep.subr.mxu0 0.0
    %v6740 = vand.u32 %v6440, 4294901760
    %6741 = vmatpush1.msra.mxu0 %v6740
    %6742 = vmatprep.subr.mxu0 0.0
    %v6743 = vand.u32 %v6439, 4294901760
    %6744 = vmatpush1.msra.mxu0 %v6743
    %6745 = vmatprep.subr.mxu0 0.0
    %v6746 = vand.u32 %v6438, 4294901760
    %6747 = vmatpush1.msra.mxu0 %v6746
    %6748 = vmatprep.subr.mxu0 0.0
    %v6749 = vand.u32 %v6437, 4294901760
    %6750 = vmatpush1.msra.mxu0 %v6749
    %6751 = vmatprep.subr.mxu0 0.0
    %v6752 = vand.u32 %v6436, 4294901760
    %6753 = vmatpush1.msra.mxu0 %v6752
    %6754 = vmatprep.subr.mxu0 0.0
    %v6755 = vand.u32 %v6435, 4294901760
    %6756 = vmatpush1.msra.mxu0 %v6755
    %6757 = vmatprep.subr.mxu0 0.0
    %v6758 = vand.u32 %v6434, 4294901760
    %6759 = vmatpush1.msra.mxu0 %v6758
    %6760 = vmatprep.subr.mxu0 0.0
    %v6761 = vand.u32 %v6433, 4294901760
    %6762 = vmatpush1.msra.mxu0 %v6761
    %6763 = vmatprep.subr.mxu0 0.0
    %6764 = vmatpush2.msra.mxu0 0.0
    %6765 = vmatprep.subr.mxu0 0.0
    %6766 = vmatpush2.msra.mxu0 0.0
    %6767 = vmatprep.subr.mxu0 0.0
    %6768 = vmatpush2.msra.mxu0 0.0
    %6769 = vmatprep.subr.mxu0 0.0
    %6770 = vmatpush2.msra.mxu0 0.0
    %6771 = vmatprep.subr.mxu0 0.0
    %6772 = vmatpush2.msra.mxu0 0.0
    %6773 = vmatprep.subr.mxu0 0.0
    %6774 = vmatpush2.msra.mxu0 0.0
    %6775 = vmatprep.subr.mxu0 0.0
    %6776 = vmatpush2.msra.mxu0 0.0
    %6777 = vmatprep.subr.mxu0 0.0
    %6778 = vmatpush2.msra.mxu0 0.0
    %6779 = vmatprep.subr.mxu0 0.0
    %6780 = vmatpush2.msra.mxu0 0.0
    %6781 = vmatprep.subr.mxu0 0.0
    %6782 = vmatpush2.msra.mxu0 0.0
    %6783 = vmatprep.subr.mxu0 0.0
    %6784 = vmatpush2.msra.mxu0 0.0
    %6785 = vmatprep.subr.mxu0 0.0
    %6786 = vmatpush2.msra.mxu0 0.0
    %6787 = vmatprep.subr.mxu0 0.0
    %6788 = vmatpush2.msra.mxu0 0.0
    %6789 = vmatprep.subr.mxu0 0.0
    %6790 = vmatpush2.msra.mxu0 0.0
    %6791 = vmatprep.subr.mxu0 0.0
    %6792 = vmatpush2.msra.mxu0 0.0
    %6793 = vmatprep.subr.mxu0 0.0
    %6794 = vmatpush2.msra.mxu0 0.0
    %6795 = vmatprep.mubr.f32.mxu0 0.0
    %v6796 = vand.u32 %v180, 4294901760
    %v6797 = vsub.f32 %v180, %v6796
    %v6798 = vand.u32 %v6797, 4294901760
    %6799 = vmatmul.mubr.f32.gmra.mxu0 %v6798
    %v6800 = vpop.f32.mrf.mxu0
    %v6801 = vadd.f32 %v6720, %v6800
    %v6802 = vpop.f32.mrf.mxu0
    %6803 = vdwg.mxu0
    %6804 = vmatprep.subr.mxu0 0.0
    %6805 = vmatpush1.msra.mxu0 0.0
    %6806 = vmatprep.subr.mxu0 0.0
    %6807 = vmatpush1.msra.mxu0 0.0
    %6808 = vmatprep.subr.mxu0 0.0
    %6809 = vmatpush1.msra.mxu0 0.0
    %6810 = vmatprep.subr.mxu0 0.0
    %6811 = vmatpush1.msra.mxu0 0.0
    %6812 = vmatprep.subr.mxu0 0.0
    %6813 = vmatpush1.msra.mxu0 0.0
    %6814 = vmatprep.subr.mxu0 0.0
    %6815 = vmatpush1.msra.mxu0 0.0
    %6816 = vmatprep.subr.mxu0 0.0
    %6817 = vmatpush1.msra.mxu0 0.0
    %6818 = vmatprep.subr.mxu0 0.0
    %6819 = vmatpush1.msra.mxu0 0.0
    %6820 = vmatprep.subr.mxu0 0.0
    %v6821 = vand.u32 %v6440, 4294901760
    %v6822 = vsub.f32 %v6440, %v6821
    %v6823 = vand.u32 %v6822, 4294901760
    %6824 = vmatpush1.msra.mxu0 %v6823
    %6825 = vmatprep.subr.mxu0 0.0
    %v6826 = vand.u32 %v6439, 4294901760
    %v6827 = vsub.f32 %v6439, %v6826
    %v6828 = vand.u32 %v6827, 4294901760
    %6829 = vmatpush1.msra.mxu0 %v6828
    %6830 = vmatprep.subr.mxu0 0.0
    %v6831 = vand.u32 %v6438, 4294901760
    %v6832 = vsub.f32 %v6438, %v6831
    %v6833 = vand.u32 %v6832, 4294901760
    %6834 = vmatpush1.msra.mxu0 %v6833
    %6835 = vmatprep.subr.mxu0 0.0
    %v6836 = vand.u32 %v6437, 4294901760
    %v6837 = vsub.f32 %v6437, %v6836
    %v6838 = vand.u32 %v6837, 4294901760
    %6839 = vmatpush1.msra.mxu0 %v6838
    %6840 = vmatprep.subr.mxu0 0.0
    %v6841 = vand.u32 %v6436, 4294901760
    %v6842 = vsub.f32 %v6436, %v6841
    %v6843 = vand.u32 %v6842, 4294901760
    %6844 = vmatpush1.msra.mxu0 %v6843
    %6845 = vmatprep.subr.mxu0 0.0
    %v6846 = vand.u32 %v6435, 4294901760
    %v6847 = vsub.f32 %v6435, %v6846
    %v6848 = vand.u32 %v6847, 4294901760
    %6849 = vmatpush1.msra.mxu0 %v6848
    %6850 = vmatprep.subr.mxu0 0.0
    %v6851 = vand.u32 %v6434, 4294901760
    %v6852 = vsub.f32 %v6434, %v6851
    %v6853 = vand.u32 %v6852, 4294901760
    %6854 = vmatpush1.msra.mxu0 %v6853
    %6855 = vmatprep.subr.mxu0 0.0
    %v6856 = vand.u32 %v6433, 4294901760
    %v6857 = vsub.f32 %v6433, %v6856
    %v6858 = vand.u32 %v6857, 4294901760
    %6859 = vmatpush1.msra.mxu0 %v6858
    %6860 = vmatprep.subr.mxu0 0.0
    %6861 = vmatpush2.msra.mxu0 0.0
    %6862 = vmatprep.subr.mxu0 0.0
    %6863 = vmatpush2.msra.mxu0 0.0
    %6864 = vmatprep.subr.mxu0 0.0
    %6865 = vmatpush2.msra.mxu0 0.0
    %6866 = vmatprep.subr.mxu0 0.0
    %6867 = vmatpush2.msra.mxu0 0.0
    %6868 = vmatprep.subr.mxu0 0.0
    %6869 = vmatpush2.msra.mxu0 0.0
    %6870 = vmatprep.subr.mxu0 0.0
    %6871 = vmatpush2.msra.mxu0 0.0
    %6872 = vmatprep.subr.mxu0 0.0
    %6873 = vmatpush2.msra.mxu0 0.0
    %6874 = vmatprep.subr.mxu0 0.0
    %6875 = vmatpush2.msra.mxu0 0.0
    %6876 = vmatprep.subr.mxu0 0.0
    %6877 = vmatpush2.msra.mxu0 0.0
    %6878 = vmatprep.subr.mxu0 0.0
    %6879 = vmatpush2.msra.mxu0 0.0
    %6880 = vmatprep.subr.mxu0 0.0
    %6881 = vmatpush2.msra.mxu0 0.0
    %6882 = vmatprep.subr.mxu0 0.0
    %6883 = vmatpush2.msra.mxu0 0.0
    %6884 = vmatprep.subr.mxu0 0.0
    %6885 = vmatpush2.msra.mxu0 0.0
    %6886 = vmatprep.subr.mxu0 0.0
    %6887 = vmatpush2.msra.mxu0 0.0
    %6888 = vmatprep.subr.mxu0 0.0
    %6889 = vmatpush2.msra.mxu0 0.0
    %6890 = vmatprep.subr.mxu0 0.0
    %6891 = vmatpush2.msra.mxu0 0.0
    %6892 = vmatprep.mubr.f32.mxu0 0.0
    %v6893 = vand.u32 %v180, 4294901760
    %6894 = vmatmul.mubr.f32.gmra.mxu0 %v6893
    %v6895 = vpop.f32.mrf.mxu0
    %v6896 = vadd.f32 %v6801, %v6895
    %v6897 = vpop.f32.mrf.mxu0
    %6898 = vdwg.mxu0
    %6899 = vmatprep.subr.mxu0 0.0
    %6900 = vmatpush1.msra.mxu0 0.0
    %6901 = vmatprep.subr.mxu0 0.0
    %6902 = vmatpush1.msra.mxu0 0.0
    %6903 = vmatprep.subr.mxu0 0.0
    %6904 = vmatpush1.msra.mxu0 0.0
    %6905 = vmatprep.subr.mxu0 0.0
    %6906 = vmatpush1.msra.mxu0 0.0
    %6907 = vmatprep.subr.mxu0 0.0
    %6908 = vmatpush1.msra.mxu0 0.0
    %6909 = vmatprep.subr.mxu0 0.0
    %6910 = vmatpush1.msra.mxu0 0.0
    %6911 = vmatprep.subr.mxu0 0.0
    %6912 = vmatpush1.msra.mxu0 0.0
    %6913 = vmatprep.subr.mxu0 0.0
    %6914 = vmatpush1.msra.mxu0 0.0
    %6915 = vmatprep.subr.mxu0 0.0
    %v6916 = vand.u32 %v6440, 4294901760
    %6917 = vmatpush1.msra.mxu0 %v6916
    %6918 = vmatprep.subr.mxu0 0.0
    %v6919 = vand.u32 %v6439, 4294901760
    %6920 = vmatpush1.msra.mxu0 %v6919
    %6921 = vmatprep.subr.mxu0 0.0
    %v6922 = vand.u32 %v6438, 4294901760
    %6923 = vmatpush1.msra.mxu0 %v6922
    %6924 = vmatprep.subr.mxu0 0.0
    %v6925 = vand.u32 %v6437, 4294901760
    %6926 = vmatpush1.msra.mxu0 %v6925
    %6927 = vmatprep.subr.mxu0 0.0
    %v6928 = vand.u32 %v6436, 4294901760
    %6929 = vmatpush1.msra.mxu0 %v6928
    %6930 = vmatprep.subr.mxu0 0.0
    %v6931 = vand.u32 %v6435, 4294901760
    %6932 = vmatpush1.msra.mxu0 %v6931
    %6933 = vmatprep.subr.mxu0 0.0
    %v6934 = vand.u32 %v6434, 4294901760
    %6935 = vmatpush1.msra.mxu0 %v6934
    %6936 = vmatprep.subr.mxu0 0.0
    %v6937 = vand.u32 %v6433, 4294901760
    %6938 = vmatpush1.msra.mxu0 %v6937
    %6939 = vmatprep.subr.mxu0 0.0
    %6940 = vmatpush2.msra.mxu0 0.0
    %6941 = vmatprep.subr.mxu0 0.0
    %6942 = vmatpush2.msra.mxu0 0.0
    %6943 = vmatprep.subr.mxu0 0.0
    %6944 = vmatpush2.msra.mxu0 0.0
    %6945 = vmatprep.subr.mxu0 0.0
    %6946 = vmatpush2.msra.mxu0 0.0
    %6947 = vmatprep.subr.mxu0 0.0
    %6948 = vmatpush2.msra.mxu0 0.0
    %6949 = vmatprep.subr.mxu0 0.0
    %6950 = vmatpush2.msra.mxu0 0.0
    %6951 = vmatprep.subr.mxu0 0.0
    %6952 = vmatpush2.msra.mxu0 0.0
    %6953 = vmatprep.subr.mxu0 0.0
    %6954 = vmatpush2.msra.mxu0 0.0
    %6955 = vmatprep.subr.mxu0 0.0
    %6956 = vmatpush2.msra.mxu0 0.0
    %6957 = vmatprep.subr.mxu0 0.0
    %6958 = vmatpush2.msra.mxu0 0.0
    %6959 = vmatprep.subr.mxu0 0.0
    %6960 = vmatpush2.msra.mxu0 0.0
    %6961 = vmatprep.subr.mxu0 0.0
    %6962 = vmatpush2.msra.mxu0 0.0
    %6963 = vmatprep.subr.mxu0 0.0
    %6964 = vmatpush2.msra.mxu0 0.0
    %6965 = vmatprep.subr.mxu0 0.0
    %6966 = vmatpush2.msra.mxu0 0.0
    %6967 = vmatprep.subr.mxu0 0.0
    %6968 = vmatpush2.msra.mxu0 0.0
    %6969 = vmatprep.subr.mxu0 0.0
    %6970 = vmatpush2.msra.mxu0 0.0
    %6971 = vmatprep.mubr.f32.mxu0 0.0
    %v6972 = vand.u32 %v180, 4294901760
    %6973 = vmatmul.mubr.f32.gmra.mxu0 %v6972
    %v6974 = vpop.f32.mrf.mxu0
    %v6975 = vadd.f32 %v6896, %v6974
    %v6976 = vpop.f32.mrf.mxu0
    %6977 = vdwg.mxu0
    %v6978 = vsub.f32 %v114, 12.0
    %v6979 = vsub.f32 %v115, 12.0
    %v6980 = vsub.f32 %v116, 12.0
    %v6981 = vsub.f32 %v117, 12.0
    %v6982 = vsub.f32 %v118, 12.0
    %v6983 = vsub.f32 %v119, 12.0
    %v6984 = vsub.f32 %v120, 12.0
    %v6985 = vsub.f32 %v121, 12.0
    %v6986 = vand.u32 2147483647, %v6978
    %v6987 = vand.u32 2147483647, %v6979
    %v6988 = vand.u32 2147483647, %v6980
    %v6989 = vand.u32 2147483647, %v6981
    %v6990 = vand.u32 2147483647, %v6982
    %v6991 = vand.u32 2147483647, %v6983
    %v6992 = vand.u32 2147483647, %v6984
    %v6993 = vand.u32 2147483647, %v6985
    %v6994 = vsub.f32 %v146, %v6986
    %v6995 = vsub.f32 %v147, %v6987
    %v6996 = vsub.f32 %v148, %v6988
    %v6997 = vsub.f32 %v149, %v6989
    %v6998 = vsub.f32 %v150, %v6990
    %v6999 = vsub.f32 %v151, %v6991
    %v7000 = vsub.f32 %v152, %v6992
    %v7001 = vsub.f32 %v153, %v6993
    %v7002 = vmax.f32 %v6994, 0.0
    %v7003 = vmax.f32 %v6995, 0.0
    %v7004 = vmax.f32 %v6996, 0.0
    %v7005 = vmax.f32 %v6997, 0.0
    %v7006 = vmax.f32 %v6998, 0.0
    %v7007 = vmax.f32 %v6999, 0.0
    %v7008 = vmax.f32 %v7000, 0.0
    %v7009 = vmax.f32 %v7001, 0.0
    %7010 = vmatprep.subr.mxu0 0.0
    %7011 = vmatpush1.msra.mxu0 0.0
    %7012 = vmatprep.subr.mxu0 0.0
    %7013 = vmatpush1.msra.mxu0 0.0
    %7014 = vmatprep.subr.mxu0 0.0
    %7015 = vmatpush1.msra.mxu0 0.0
    %7016 = vmatprep.subr.mxu0 0.0
    %7017 = vmatpush1.msra.mxu0 0.0
    %7018 = vmatprep.subr.mxu0 0.0
    %7019 = vmatpush1.msra.mxu0 0.0
    %7020 = vmatprep.subr.mxu0 0.0
    %7021 = vmatpush1.msra.mxu0 0.0
    %7022 = vmatprep.subr.mxu0 0.0
    %7023 = vmatpush1.msra.mxu0 0.0
    %7024 = vmatprep.subr.mxu0 0.0
    %7025 = vmatpush1.msra.mxu0 0.0
    %7026 = vmatprep.subr.mxu0 0.0
    %v7027 = vand.u32 %v7009, 4294901760
    %7028 = vmatpush1.msra.mxu0 %v7027
    %7029 = vmatprep.subr.mxu0 0.0
    %v7030 = vand.u32 %v7008, 4294901760
    %7031 = vmatpush1.msra.mxu0 %v7030
    %7032 = vmatprep.subr.mxu0 0.0
    %v7033 = vand.u32 %v7007, 4294901760
    %7034 = vmatpush1.msra.mxu0 %v7033
    %7035 = vmatprep.subr.mxu0 0.0
    %v7036 = vand.u32 %v7006, 4294901760
    %7037 = vmatpush1.msra.mxu0 %v7036
    %7038 = vmatprep.subr.mxu0 0.0
    %v7039 = vand.u32 %v7005, 4294901760
    %7040 = vmatpush1.msra.mxu0 %v7039
    %7041 = vmatprep.subr.mxu0 0.0
    %v7042 = vand.u32 %v7004, 4294901760
    %7043 = vmatpush1.msra.mxu0 %v7042
    %7044 = vmatprep.subr.mxu0 0.0
    %v7045 = vand.u32 %v7003, 4294901760
    %7046 = vmatpush1.msra.mxu0 %v7045
    %7047 = vmatprep.subr.mxu0 0.0
    %v7048 = vand.u32 %v7002, 4294901760
    %7049 = vmatpush1.msra.mxu0 %v7048
    %7050 = vmatprep.subr.mxu0 0.0
    %7051 = vmatpush2.msra.mxu0 0.0
    %7052 = vmatprep.subr.mxu0 0.0
    %7053 = vmatpush2.msra.mxu0 0.0
    %7054 = vmatprep.subr.mxu0 0.0
    %7055 = vmatpush2.msra.mxu0 0.0
    %7056 = vmatprep.subr.mxu0 0.0
    %7057 = vmatpush2.msra.mxu0 0.0
    %7058 = vmatprep.subr.mxu0 0.0
    %7059 = vmatpush2.msra.mxu0 0.0
    %7060 = vmatprep.subr.mxu0 0.0
    %7061 = vmatpush2.msra.mxu0 0.0
    %7062 = vmatprep.subr.mxu0 0.0
    %7063 = vmatpush2.msra.mxu0 0.0
    %7064 = vmatprep.subr.mxu0 0.0
    %7065 = vmatpush2.msra.mxu0 0.0
    %7066 = vmatprep.subr.mxu0 0.0
    %7067 = vmatpush2.msra.mxu0 0.0
    %7068 = vmatprep.subr.mxu0 0.0
    %7069 = vmatpush2.msra.mxu0 0.0
    %7070 = vmatprep.subr.mxu0 0.0
    %7071 = vmatpush2.msra.mxu0 0.0
    %7072 = vmatprep.subr.mxu0 0.0
    %7073 = vmatpush2.msra.mxu0 0.0
    %7074 = vmatprep.subr.mxu0 0.0
    %7075 = vmatpush2.msra.mxu0 0.0
    %7076 = vmatprep.subr.mxu0 0.0
    %7077 = vmatpush2.msra.mxu0 0.0
    %7078 = vmatprep.subr.mxu0 0.0
    %7079 = vmatpush2.msra.mxu0 0.0
    %7080 = vmatprep.subr.mxu0 0.0
    %7081 = vmatpush2.msra.mxu0 0.0
    %7082 = vmatprep.mubr.f32.mxu0 0.0
    %v7083 = vand.u32 %v180, 4294901760
    %v7084 = vsub.f32 %v180, %v7083
    %v7085 = vand.u32 %v7084, 4294901760
    %v7086 = vsub.f32 %v7084, %v7085
    %v7087 = vand.u32 %v7086, 4294901760
    %7088 = vmatmul.mubr.f32.gmra.mxu0 %v7087
    %v7089 = vpop.f32.mrf.mxu0
    %v7090 = vadd.f32 0.0, %v7089
    %v7091 = vpop.f32.mrf.mxu0
    %7092 = vdwg.mxu0
    %7093 = vmatprep.subr.mxu0 0.0
    %7094 = vmatpush1.msra.mxu0 0.0
    %7095 = vmatprep.subr.mxu0 0.0
    %7096 = vmatpush1.msra.mxu0 0.0
    %7097 = vmatprep.subr.mxu0 0.0
    %7098 = vmatpush1.msra.mxu0 0.0
    %7099 = vmatprep.subr.mxu0 0.0
    %7100 = vmatpush1.msra.mxu0 0.0
    %7101 = vmatprep.subr.mxu0 0.0
    %7102 = vmatpush1.msra.mxu0 0.0
    %7103 = vmatprep.subr.mxu0 0.0
    %7104 = vmatpush1.msra.mxu0 0.0
    %7105 = vmatprep.subr.mxu0 0.0
    %7106 = vmatpush1.msra.mxu0 0.0
    %7107 = vmatprep.subr.mxu0 0.0
    %7108 = vmatpush1.msra.mxu0 0.0
    %7109 = vmatprep.subr.mxu0 0.0
    %v7110 = vand.u32 %v7009, 4294901760
    %v7111 = vsub.f32 %v7009, %v7110
    %v7112 = vand.u32 %v7111, 4294901760
    %v7113 = vsub.f32 %v7111, %v7112
    %v7114 = vand.u32 %v7113, 4294901760
    %7115 = vmatpush1.msra.mxu0 %v7114
    %7116 = vmatprep.subr.mxu0 0.0
    %v7117 = vand.u32 %v7008, 4294901760
    %v7118 = vsub.f32 %v7008, %v7117
    %v7119 = vand.u32 %v7118, 4294901760
    %v7120 = vsub.f32 %v7118, %v7119
    %v7121 = vand.u32 %v7120, 4294901760
    %7122 = vmatpush1.msra.mxu0 %v7121
    %7123 = vmatprep.subr.mxu0 0.0
    %v7124 = vand.u32 %v7007, 4294901760
    %v7125 = vsub.f32 %v7007, %v7124
    %v7126 = vand.u32 %v7125, 4294901760
    %v7127 = vsub.f32 %v7125, %v7126
    %v7128 = vand.u32 %v7127, 4294901760
    %7129 = vmatpush1.msra.mxu0 %v7128
    %7130 = vmatprep.subr.mxu0 0.0
    %v7131 = vand.u32 %v7006, 4294901760
    %v7132 = vsub.f32 %v7006, %v7131
    %v7133 = vand.u32 %v7132, 4294901760
    %v7134 = vsub.f32 %v7132, %v7133
    %v7135 = vand.u32 %v7134, 4294901760
    %7136 = vmatpush1.msra.mxu0 %v7135
    %7137 = vmatprep.subr.mxu0 0.0
    %v7138 = vand.u32 %v7005, 4294901760
    %v7139 = vsub.f32 %v7005, %v7138
    %v7140 = vand.u32 %v7139, 4294901760
    %v7141 = vsub.f32 %v7139, %v7140
    %v7142 = vand.u32 %v7141, 4294901760
    %7143 = vmatpush1.msra.mxu0 %v7142
    %7144 = vmatprep.subr.mxu0 0.0
    %v7145 = vand.u32 %v7004, 4294901760
    %v7146 = vsub.f32 %v7004, %v7145
    %v7147 = vand.u32 %v7146, 4294901760
    %v7148 = vsub.f32 %v7146, %v7147
    %v7149 = vand.u32 %v7148, 4294901760
    %7150 = vmatpush1.msra.mxu0 %v7149
    %7151 = vmatprep.subr.mxu0 0.0
    %v7152 = vand.u32 %v7003, 4294901760
    %v7153 = vsub.f32 %v7003, %v7152
    %v7154 = vand.u32 %v7153, 4294901760
    %v7155 = vsub.f32 %v7153, %v7154
    %v7156 = vand.u32 %v7155, 4294901760
    %7157 = vmatpush1.msra.mxu0 %v7156
    %7158 = vmatprep.subr.mxu0 0.0
    %v7159 = vand.u32 %v7002, 4294901760
    %v7160 = vsub.f32 %v7002, %v7159
    %v7161 = vand.u32 %v7160, 4294901760
    %v7162 = vsub.f32 %v7160, %v7161
    %v7163 = vand.u32 %v7162, 4294901760
    %7164 = vmatpush1.msra.mxu0 %v7163
    %7165 = vmatprep.subr.mxu0 0.0
    %7166 = vmatpush2.msra.mxu0 0.0
    %7167 = vmatprep.subr.mxu0 0.0
    %7168 = vmatpush2.msra.mxu0 0.0
    %7169 = vmatprep.subr.mxu0 0.0
    %7170 = vmatpush2.msra.mxu0 0.0
    %7171 = vmatprep.subr.mxu0 0.0
    %7172 = vmatpush2.msra.mxu0 0.0
    %7173 = vmatprep.subr.mxu0 0.0
    %7174 = vmatpush2.msra.mxu0 0.0
    %7175 = vmatprep.subr.mxu0 0.0
    %7176 = vmatpush2.msra.mxu0 0.0
    %7177 = vmatprep.subr.mxu0 0.0
    %7178 = vmatpush2.msra.mxu0 0.0
    %7179 = vmatprep.subr.mxu0 0.0
    %7180 = vmatpush2.msra.mxu0 0.0
    %7181 = vmatprep.subr.mxu0 0.0
    %7182 = vmatpush2.msra.mxu0 0.0
    %7183 = vmatprep.subr.mxu0 0.0
    %7184 = vmatpush2.msra.mxu0 0.0
    %7185 = vmatprep.subr.mxu0 0.0
    %7186 = vmatpush2.msra.mxu0 0.0
    %7187 = vmatprep.subr.mxu0 0.0
    %7188 = vmatpush2.msra.mxu0 0.0
    %7189 = vmatprep.subr.mxu0 0.0
    %7190 = vmatpush2.msra.mxu0 0.0
    %7191 = vmatprep.subr.mxu0 0.0
    %7192 = vmatpush2.msra.mxu0 0.0
    %7193 = vmatprep.subr.mxu0 0.0
    %7194 = vmatpush2.msra.mxu0 0.0
    %7195 = vmatprep.subr.mxu0 0.0
    %7196 = vmatpush2.msra.mxu0 0.0
    %7197 = vmatprep.mubr.f32.mxu0 0.0
    %v7198 = vand.u32 %v180, 4294901760
    %7199 = vmatmul.mubr.f32.gmra.mxu0 %v7198
    %v7200 = vpop.f32.mrf.mxu0
    %v7201 = vadd.f32 %v7090, %v7200
    %v7202 = vpop.f32.mrf.mxu0
    %7203 = vdwg.mxu0
    %7204 = vmatprep.subr.mxu0 0.0
    %7205 = vmatpush1.msra.mxu0 0.0
    %7206 = vmatprep.subr.mxu0 0.0
    %7207 = vmatpush1.msra.mxu0 0.0
    %7208 = vmatprep.subr.mxu0 0.0
    %7209 = vmatpush1.msra.mxu0 0.0
    %7210 = vmatprep.subr.mxu0 0.0
    %7211 = vmatpush1.msra.mxu0 0.0
    %7212 = vmatprep.subr.mxu0 0.0
    %7213 = vmatpush1.msra.mxu0 0.0
    %7214 = vmatprep.subr.mxu0 0.0
    %7215 = vmatpush1.msra.mxu0 0.0
    %7216 = vmatprep.subr.mxu0 0.0
    %7217 = vmatpush1.msra.mxu0 0.0
    %7218 = vmatprep.subr.mxu0 0.0
    %7219 = vmatpush1.msra.mxu0 0.0
    %7220 = vmatprep.subr.mxu0 0.0
    %v7221 = vand.u32 %v7009, 4294901760
    %v7222 = vsub.f32 %v7009, %v7221
    %7223 = vmatpush1.msra.mxu0 %v7222
    %7224 = vmatprep.subr.mxu0 0.0
    %v7225 = vand.u32 %v7008, 4294901760
    %v7226 = vsub.f32 %v7008, %v7225
    %7227 = vmatpush1.msra.mxu0 %v7226
    %7228 = vmatprep.subr.mxu0 0.0
    %v7229 = vand.u32 %v7007, 4294901760
    %v7230 = vsub.f32 %v7007, %v7229
    %7231 = vmatpush1.msra.mxu0 %v7230
    %7232 = vmatprep.subr.mxu0 0.0
    %v7233 = vand.u32 %v7006, 4294901760
    %v7234 = vsub.f32 %v7006, %v7233
    %7235 = vmatpush1.msra.mxu0 %v7234
    %7236 = vmatprep.subr.mxu0 0.0
    %v7237 = vand.u32 %v7005, 4294901760
    %v7238 = vsub.f32 %v7005, %v7237
    %7239 = vmatpush1.msra.mxu0 %v7238
    %7240 = vmatprep.subr.mxu0 0.0
    %v7241 = vand.u32 %v7004, 4294901760
    %v7242 = vsub.f32 %v7004, %v7241
    %7243 = vmatpush1.msra.mxu0 %v7242
    %7244 = vmatprep.subr.mxu0 0.0
    %v7245 = vand.u32 %v7003, 4294901760
    %v7246 = vsub.f32 %v7003, %v7245
    %7247 = vmatpush1.msra.mxu0 %v7246
    %7248 = vmatprep.subr.mxu0 0.0
    %v7249 = vand.u32 %v7002, 4294901760
    %v7250 = vsub.f32 %v7002, %v7249
    %7251 = vmatpush1.msra.mxu0 %v7250
    %7252 = vmatprep.subr.mxu0 0.0
    %7253 = vmatpush2.msra.mxu0 0.0
    %7254 = vmatprep.subr.mxu0 0.0
    %7255 = vmatpush2.msra.mxu0 0.0
    %7256 = vmatprep.subr.mxu0 0.0
    %7257 = vmatpush2.msra.mxu0 0.0
    %7258 = vmatprep.subr.mxu0 0.0
    %7259 = vmatpush2.msra.mxu0 0.0
    %7260 = vmatprep.subr.mxu0 0.0
    %7261 = vmatpush2.msra.mxu0 0.0
    %7262 = vmatprep.subr.mxu0 0.0
    %7263 = vmatpush2.msra.mxu0 0.0
    %7264 = vmatprep.subr.mxu0 0.0
    %7265 = vmatpush2.msra.mxu0 0.0
    %7266 = vmatprep.subr.mxu0 0.0
    %7267 = vmatpush2.msra.mxu0 0.0
    %7268 = vmatprep.subr.mxu0 0.0
    %7269 = vmatpush2.msra.mxu0 0.0
    %7270 = vmatprep.subr.mxu0 0.0
    %7271 = vmatpush2.msra.mxu0 0.0
    %7272 = vmatprep.subr.mxu0 0.0
    %7273 = vmatpush2.msra.mxu0 0.0
    %7274 = vmatprep.subr.mxu0 0.0
    %7275 = vmatpush2.msra.mxu0 0.0
    %7276 = vmatprep.subr.mxu0 0.0
    %7277 = vmatpush2.msra.mxu0 0.0
    %7278 = vmatprep.subr.mxu0 0.0
    %7279 = vmatpush2.msra.mxu0 0.0
    %7280 = vmatprep.subr.mxu0 0.0
    %7281 = vmatpush2.msra.mxu0 0.0
    %7282 = vmatprep.subr.mxu0 0.0
    %7283 = vmatpush2.msra.mxu0 0.0
    %7284 = vmatprep.mubr.f32.mxu0 0.0
    %v7285 = vand.u32 %v180, 4294901760
    %v7286 = vsub.f32 %v180, %v7285
    %7287 = vmatmul.mubr.f32.gmra.mxu0 %v7286
    %v7288 = vpop.f32.mrf.mxu0
    %v7289 = vadd.f32 %v7201, %v7288
    %v7290 = vpop.f32.mrf.mxu0
    %7291 = vdwg.mxu0
    %7292 = vmatprep.subr.mxu0 0.0
    %7293 = vmatpush1.msra.mxu0 0.0
    %7294 = vmatprep.subr.mxu0 0.0
    %7295 = vmatpush1.msra.mxu0 0.0
    %7296 = vmatprep.subr.mxu0 0.0
    %7297 = vmatpush1.msra.mxu0 0.0
    %7298 = vmatprep.subr.mxu0 0.0
    %7299 = vmatpush1.msra.mxu0 0.0
    %7300 = vmatprep.subr.mxu0 0.0
    %7301 = vmatpush1.msra.mxu0 0.0
    %7302 = vmatprep.subr.mxu0 0.0
    %7303 = vmatpush1.msra.mxu0 0.0
    %7304 = vmatprep.subr.mxu0 0.0
    %7305 = vmatpush1.msra.mxu0 0.0
    %7306 = vmatprep.subr.mxu0 0.0
    %7307 = vmatpush1.msra.mxu0 0.0
    %7308 = vmatprep.subr.mxu0 0.0
    %v7309 = vand.u32 %v7009, 4294901760
    %7310 = vmatpush1.msra.mxu0 %v7309
    %7311 = vmatprep.subr.mxu0 0.0
    %v7312 = vand.u32 %v7008, 4294901760
    %7313 = vmatpush1.msra.mxu0 %v7312
    %7314 = vmatprep.subr.mxu0 0.0
    %v7315 = vand.u32 %v7007, 4294901760
    %7316 = vmatpush1.msra.mxu0 %v7315
    %7317 = vmatprep.subr.mxu0 0.0
    %v7318 = vand.u32 %v7006, 4294901760
    %7319 = vmatpush1.msra.mxu0 %v7318
    %7320 = vmatprep.subr.mxu0 0.0
    %v7321 = vand.u32 %v7005, 4294901760
    %7322 = vmatpush1.msra.mxu0 %v7321
    %7323 = vmatprep.subr.mxu0 0.0
    %v7324 = vand.u32 %v7004, 4294901760
    %7325 = vmatpush1.msra.mxu0 %v7324
    %7326 = vmatprep.subr.mxu0 0.0
    %v7327 = vand.u32 %v7003, 4294901760
    %7328 = vmatpush1.msra.mxu0 %v7327
    %7329 = vmatprep.subr.mxu0 0.0
    %v7330 = vand.u32 %v7002, 4294901760
    %7331 = vmatpush1.msra.mxu0 %v7330
    %7332 = vmatprep.subr.mxu0 0.0
    %7333 = vmatpush2.msra.mxu0 0.0
    %7334 = vmatprep.subr.mxu0 0.0
    %7335 = vmatpush2.msra.mxu0 0.0
    %7336 = vmatprep.subr.mxu0 0.0
    %7337 = vmatpush2.msra.mxu0 0.0
    %7338 = vmatprep.subr.mxu0 0.0
    %7339 = vmatpush2.msra.mxu0 0.0
    %7340 = vmatprep.subr.mxu0 0.0
    %7341 = vmatpush2.msra.mxu0 0.0
    %7342 = vmatprep.subr.mxu0 0.0
    %7343 = vmatpush2.msra.mxu0 0.0
    %7344 = vmatprep.subr.mxu0 0.0
    %7345 = vmatpush2.msra.mxu0 0.0
    %7346 = vmatprep.subr.mxu0 0.0
    %7347 = vmatpush2.msra.mxu0 0.0
    %7348 = vmatprep.subr.mxu0 0.0
    %7349 = vmatpush2.msra.mxu0 0.0
    %7350 = vmatprep.subr.mxu0 0.0
    %7351 = vmatpush2.msra.mxu0 0.0
    %7352 = vmatprep.subr.mxu0 0.0
    %7353 = vmatpush2.msra.mxu0 0.0
    %7354 = vmatprep.subr.mxu0 0.0
    %7355 = vmatpush2.msra.mxu0 0.0
    %7356 = vmatprep.subr.mxu0 0.0
    %7357 = vmatpush2.msra.mxu0 0.0
    %7358 = vmatprep.subr.mxu0 0.0
    %7359 = vmatpush2.msra.mxu0 0.0
    %7360 = vmatprep.subr.mxu0 0.0
    %7361 = vmatpush2.msra.mxu0 0.0
    %7362 = vmatprep.subr.mxu0 0.0
    %7363 = vmatpush2.msra.mxu0 0.0
    %7364 = vmatprep.mubr.f32.mxu0 0.0
    %v7365 = vand.u32 %v180, 4294901760
    %v7366 = vsub.f32 %v180, %v7365
    %v7367 = vand.u32 %v7366, 4294901760
    %7368 = vmatmul.mubr.f32.gmra.mxu0 %v7367
    %v7369 = vpop.f32.mrf.mxu0
    %v7370 = vadd.f32 %v7289, %v7369
    %v7371 = vpop.f32.mrf.mxu0
    %7372 = vdwg.mxu0
    %7373 = vmatprep.subr.mxu0 0.0
    %7374 = vmatpush1.msra.mxu0 0.0
    %7375 = vmatprep.subr.mxu0 0.0
    %7376 = vmatpush1.msra.mxu0 0.0
    %7377 = vmatprep.subr.mxu0 0.0
    %7378 = vmatpush1.msra.mxu0 0.0
    %7379 = vmatprep.subr.mxu0 0.0
    %7380 = vmatpush1.msra.mxu0 0.0
    %7381 = vmatprep.subr.mxu0 0.0
    %7382 = vmatpush1.msra.mxu0 0.0
    %7383 = vmatprep.subr.mxu0 0.0
    %7384 = vmatpush1.msra.mxu0 0.0
    %7385 = vmatprep.subr.mxu0 0.0
    %7386 = vmatpush1.msra.mxu0 0.0
    %7387 = vmatprep.subr.mxu0 0.0
    %7388 = vmatpush1.msra.mxu0 0.0
    %7389 = vmatprep.subr.mxu0 0.0
    %v7390 = vand.u32 %v7009, 4294901760
    %v7391 = vsub.f32 %v7009, %v7390
    %v7392 = vand.u32 %v7391, 4294901760
    %7393 = vmatpush1.msra.mxu0 %v7392
    %7394 = vmatprep.subr.mxu0 0.0
    %v7395 = vand.u32 %v7008, 4294901760
    %v7396 = vsub.f32 %v7008, %v7395
    %v7397 = vand.u32 %v7396, 4294901760
    %7398 = vmatpush1.msra.mxu0 %v7397
    %7399 = vmatprep.subr.mxu0 0.0
    %v7400 = vand.u32 %v7007, 4294901760
    %v7401 = vsub.f32 %v7007, %v7400
    %v7402 = vand.u32 %v7401, 4294901760
    %7403 = vmatpush1.msra.mxu0 %v7402
    %7404 = vmatprep.subr.mxu0 0.0
    %v7405 = vand.u32 %v7006, 4294901760
    %v7406 = vsub.f32 %v7006, %v7405
    %v7407 = vand.u32 %v7406, 4294901760
    %7408 = vmatpush1.msra.mxu0 %v7407
    %7409 = vmatprep.subr.mxu0 0.0
    %v7410 = vand.u32 %v7005, 4294901760
    %v7411 = vsub.f32 %v7005, %v7410
    %v7412 = vand.u32 %v7411, 4294901760
    %7413 = vmatpush1.msra.mxu0 %v7412
    %7414 = vmatprep.subr.mxu0 0.0
    %v7415 = vand.u32 %v7004, 4294901760
    %v7416 = vsub.f32 %v7004, %v7415
    %v7417 = vand.u32 %v7416, 4294901760
    %7418 = vmatpush1.msra.mxu0 %v7417
    %7419 = vmatprep.subr.mxu0 0.0
    %v7420 = vand.u32 %v7003, 4294901760
    %v7421 = vsub.f32 %v7003, %v7420
    %v7422 = vand.u32 %v7421, 4294901760
    %7423 = vmatpush1.msra.mxu0 %v7422
    %7424 = vmatprep.subr.mxu0 0.0
    %v7425 = vand.u32 %v7002, 4294901760
    %v7426 = vsub.f32 %v7002, %v7425
    %v7427 = vand.u32 %v7426, 4294901760
    %7428 = vmatpush1.msra.mxu0 %v7427
    %7429 = vmatprep.subr.mxu0 0.0
    %7430 = vmatpush2.msra.mxu0 0.0
    %7431 = vmatprep.subr.mxu0 0.0
    %7432 = vmatpush2.msra.mxu0 0.0
    %7433 = vmatprep.subr.mxu0 0.0
    %7434 = vmatpush2.msra.mxu0 0.0
    %7435 = vmatprep.subr.mxu0 0.0
    %7436 = vmatpush2.msra.mxu0 0.0
    %7437 = vmatprep.subr.mxu0 0.0
    %7438 = vmatpush2.msra.mxu0 0.0
    %7439 = vmatprep.subr.mxu0 0.0
    %7440 = vmatpush2.msra.mxu0 0.0
    %7441 = vmatprep.subr.mxu0 0.0
    %7442 = vmatpush2.msra.mxu0 0.0
    %7443 = vmatprep.subr.mxu0 0.0
    %7444 = vmatpush2.msra.mxu0 0.0
    %7445 = vmatprep.subr.mxu0 0.0
    %7446 = vmatpush2.msra.mxu0 0.0
    %7447 = vmatprep.subr.mxu0 0.0
    %7448 = vmatpush2.msra.mxu0 0.0
    %7449 = vmatprep.subr.mxu0 0.0
    %7450 = vmatpush2.msra.mxu0 0.0
    %7451 = vmatprep.subr.mxu0 0.0
    %7452 = vmatpush2.msra.mxu0 0.0
    %7453 = vmatprep.subr.mxu0 0.0
    %7454 = vmatpush2.msra.mxu0 0.0
    %7455 = vmatprep.subr.mxu0 0.0
    %7456 = vmatpush2.msra.mxu0 0.0
    %7457 = vmatprep.subr.mxu0 0.0
    %7458 = vmatpush2.msra.mxu0 0.0
    %7459 = vmatprep.subr.mxu0 0.0
    %7460 = vmatpush2.msra.mxu0 0.0
    %7461 = vmatprep.mubr.f32.mxu0 0.0
    %v7462 = vand.u32 %v180, 4294901760
    %7463 = vmatmul.mubr.f32.gmra.mxu0 %v7462
    %v7464 = vpop.f32.mrf.mxu0
    %v7465 = vadd.f32 %v7370, %v7464
    %v7466 = vpop.f32.mrf.mxu0
    %7467 = vdwg.mxu0
    %7468 = vmatprep.subr.mxu0 0.0
    %7469 = vmatpush1.msra.mxu0 0.0
    %7470 = vmatprep.subr.mxu0 0.0
    %7471 = vmatpush1.msra.mxu0 0.0
    %7472 = vmatprep.subr.mxu0 0.0
    %7473 = vmatpush1.msra.mxu0 0.0
    %7474 = vmatprep.subr.mxu0 0.0
    %7475 = vmatpush1.msra.mxu0 0.0
    %7476 = vmatprep.subr.mxu0 0.0
    %7477 = vmatpush1.msra.mxu0 0.0
    %7478 = vmatprep.subr.mxu0 0.0
    %7479 = vmatpush1.msra.mxu0 0.0
    %7480 = vmatprep.subr.mxu0 0.0
    %7481 = vmatpush1.msra.mxu0 0.0
    %7482 = vmatprep.subr.mxu0 0.0
    %7483 = vmatpush1.msra.mxu0 0.0
    %7484 = vmatprep.subr.mxu0 0.0
    %v7485 = vand.u32 %v7009, 4294901760
    %7486 = vmatpush1.msra.mxu0 %v7485
    %7487 = vmatprep.subr.mxu0 0.0
    %v7488 = vand.u32 %v7008, 4294901760
    %7489 = vmatpush1.msra.mxu0 %v7488
    %7490 = vmatprep.subr.mxu0 0.0
    %v7491 = vand.u32 %v7007, 4294901760
    %7492 = vmatpush1.msra.mxu0 %v7491
    %7493 = vmatprep.subr.mxu0 0.0
    %v7494 = vand.u32 %v7006, 4294901760
    %7495 = vmatpush1.msra.mxu0 %v7494
    %7496 = vmatprep.subr.mxu0 0.0
    %v7497 = vand.u32 %v7005, 4294901760
    %7498 = vmatpush1.msra.mxu0 %v7497
    %7499 = vmatprep.subr.mxu0 0.0
    %v7500 = vand.u32 %v7004, 4294901760
    %7501 = vmatpush1.msra.mxu0 %v7500
    %7502 = vmatprep.subr.mxu0 0.0
    %v7503 = vand.u32 %v7003, 4294901760
    %7504 = vmatpush1.msra.mxu0 %v7503
    %7505 = vmatprep.subr.mxu0 0.0
    %v7506 = vand.u32 %v7002, 4294901760
    %7507 = vmatpush1.msra.mxu0 %v7506
    %7508 = vmatprep.subr.mxu0 0.0
    %7509 = vmatpush2.msra.mxu0 0.0
    %7510 = vmatprep.subr.mxu0 0.0
    %7511 = vmatpush2.msra.mxu0 0.0
    %7512 = vmatprep.subr.mxu0 0.0
    %7513 = vmatpush2.msra.mxu0 0.0
    %7514 = vmatprep.subr.mxu0 0.0
    %7515 = vmatpush2.msra.mxu0 0.0
    %7516 = vmatprep.subr.mxu0 0.0
    %7517 = vmatpush2.msra.mxu0 0.0
    %7518 = vmatprep.subr.mxu0 0.0
    %7519 = vmatpush2.msra.mxu0 0.0
    %7520 = vmatprep.subr.mxu0 0.0
    %7521 = vmatpush2.msra.mxu0 0.0
    %7522 = vmatprep.subr.mxu0 0.0
    %7523 = vmatpush2.msra.mxu0 0.0
    %7524 = vmatprep.subr.mxu0 0.0
    %7525 = vmatpush2.msra.mxu0 0.0
    %7526 = vmatprep.subr.mxu0 0.0
    %7527 = vmatpush2.msra.mxu0 0.0
    %7528 = vmatprep.subr.mxu0 0.0
    %7529 = vmatpush2.msra.mxu0 0.0
    %7530 = vmatprep.subr.mxu0 0.0
    %7531 = vmatpush2.msra.mxu0 0.0
    %7532 = vmatprep.subr.mxu0 0.0
    %7533 = vmatpush2.msra.mxu0 0.0
    %7534 = vmatprep.subr.mxu0 0.0
    %7535 = vmatpush2.msra.mxu0 0.0
    %7536 = vmatprep.subr.mxu0 0.0
    %7537 = vmatpush2.msra.mxu0 0.0
    %7538 = vmatprep.subr.mxu0 0.0
    %7539 = vmatpush2.msra.mxu0 0.0
    %7540 = vmatprep.mubr.f32.mxu0 0.0
    %v7541 = vand.u32 %v180, 4294901760
    %7542 = vmatmul.mubr.f32.gmra.mxu0 %v7541
    %v7543 = vpop.f32.mrf.mxu0
    %v7544 = vadd.f32 %v7465, %v7543
    %v7545 = vpop.f32.mrf.mxu0
    %7546 = vdwg.mxu0
    %v7547 = vsub.f32 %v114, 13.0
    %v7548 = vsub.f32 %v115, 13.0
    %v7549 = vsub.f32 %v116, 13.0
    %v7550 = vsub.f32 %v117, 13.0
    %v7551 = vsub.f32 %v118, 13.0
    %v7552 = vsub.f32 %v119, 13.0
    %v7553 = vsub.f32 %v120, 13.0
    %v7554 = vsub.f32 %v121, 13.0
    %v7555 = vand.u32 2147483647, %v7547
    %v7556 = vand.u32 2147483647, %v7548
    %v7557 = vand.u32 2147483647, %v7549
    %v7558 = vand.u32 2147483647, %v7550
    %v7559 = vand.u32 2147483647, %v7551
    %v7560 = vand.u32 2147483647, %v7552
    %v7561 = vand.u32 2147483647, %v7553
    %v7562 = vand.u32 2147483647, %v7554
    %v7563 = vsub.f32 %v146, %v7555
    %v7564 = vsub.f32 %v147, %v7556
    %v7565 = vsub.f32 %v148, %v7557
    %v7566 = vsub.f32 %v149, %v7558
    %v7567 = vsub.f32 %v150, %v7559
    %v7568 = vsub.f32 %v151, %v7560
    %v7569 = vsub.f32 %v152, %v7561
    %v7570 = vsub.f32 %v153, %v7562
    %v7571 = vmax.f32 %v7563, 0.0
    %v7572 = vmax.f32 %v7564, 0.0
    %v7573 = vmax.f32 %v7565, 0.0
    %v7574 = vmax.f32 %v7566, 0.0
    %v7575 = vmax.f32 %v7567, 0.0
    %v7576 = vmax.f32 %v7568, 0.0
    %v7577 = vmax.f32 %v7569, 0.0
    %v7578 = vmax.f32 %v7570, 0.0
    %7579 = vmatprep.subr.mxu0 0.0
    %7580 = vmatpush1.msra.mxu0 0.0
    %7581 = vmatprep.subr.mxu0 0.0
    %7582 = vmatpush1.msra.mxu0 0.0
    %7583 = vmatprep.subr.mxu0 0.0
    %7584 = vmatpush1.msra.mxu0 0.0
    %7585 = vmatprep.subr.mxu0 0.0
    %7586 = vmatpush1.msra.mxu0 0.0
    %7587 = vmatprep.subr.mxu0 0.0
    %7588 = vmatpush1.msra.mxu0 0.0
    %7589 = vmatprep.subr.mxu0 0.0
    %7590 = vmatpush1.msra.mxu0 0.0
    %7591 = vmatprep.subr.mxu0 0.0
    %7592 = vmatpush1.msra.mxu0 0.0
    %7593 = vmatprep.subr.mxu0 0.0
    %7594 = vmatpush1.msra.mxu0 0.0
    %7595 = vmatprep.subr.mxu0 0.0
    %v7596 = vand.u32 %v7578, 4294901760
    %7597 = vmatpush1.msra.mxu0 %v7596
    %7598 = vmatprep.subr.mxu0 0.0
    %v7599 = vand.u32 %v7577, 4294901760
    %7600 = vmatpush1.msra.mxu0 %v7599
    %7601 = vmatprep.subr.mxu0 0.0
    %v7602 = vand.u32 %v7576, 4294901760
    %7603 = vmatpush1.msra.mxu0 %v7602
    %7604 = vmatprep.subr.mxu0 0.0
    %v7605 = vand.u32 %v7575, 4294901760
    %7606 = vmatpush1.msra.mxu0 %v7605
    %7607 = vmatprep.subr.mxu0 0.0
    %v7608 = vand.u32 %v7574, 4294901760
    %7609 = vmatpush1.msra.mxu0 %v7608
    %7610 = vmatprep.subr.mxu0 0.0
    %v7611 = vand.u32 %v7573, 4294901760
    %7612 = vmatpush1.msra.mxu0 %v7611
    %7613 = vmatprep.subr.mxu0 0.0
    %v7614 = vand.u32 %v7572, 4294901760
    %7615 = vmatpush1.msra.mxu0 %v7614
    %7616 = vmatprep.subr.mxu0 0.0
    %v7617 = vand.u32 %v7571, 4294901760
    %7618 = vmatpush1.msra.mxu0 %v7617
    %7619 = vmatprep.subr.mxu0 0.0
    %7620 = vmatpush2.msra.mxu0 0.0
    %7621 = vmatprep.subr.mxu0 0.0
    %7622 = vmatpush2.msra.mxu0 0.0
    %7623 = vmatprep.subr.mxu0 0.0
    %7624 = vmatpush2.msra.mxu0 0.0
    %7625 = vmatprep.subr.mxu0 0.0
    %7626 = vmatpush2.msra.mxu0 0.0
    %7627 = vmatprep.subr.mxu0 0.0
    %7628 = vmatpush2.msra.mxu0 0.0
    %7629 = vmatprep.subr.mxu0 0.0
    %7630 = vmatpush2.msra.mxu0 0.0
    %7631 = vmatprep.subr.mxu0 0.0
    %7632 = vmatpush2.msra.mxu0 0.0
    %7633 = vmatprep.subr.mxu0 0.0
    %7634 = vmatpush2.msra.mxu0 0.0
    %7635 = vmatprep.subr.mxu0 0.0
    %7636 = vmatpush2.msra.mxu0 0.0
    %7637 = vmatprep.subr.mxu0 0.0
    %7638 = vmatpush2.msra.mxu0 0.0
    %7639 = vmatprep.subr.mxu0 0.0
    %7640 = vmatpush2.msra.mxu0 0.0
    %7641 = vmatprep.subr.mxu0 0.0
    %7642 = vmatpush2.msra.mxu0 0.0
    %7643 = vmatprep.subr.mxu0 0.0
    %7644 = vmatpush2.msra.mxu0 0.0
    %7645 = vmatprep.subr.mxu0 0.0
    %7646 = vmatpush2.msra.mxu0 0.0
    %7647 = vmatprep.subr.mxu0 0.0
    %7648 = vmatpush2.msra.mxu0 0.0
    %7649 = vmatprep.subr.mxu0 0.0
    %7650 = vmatpush2.msra.mxu0 0.0
    %7651 = vmatprep.mubr.f32.mxu0 0.0
    %v7652 = vand.u32 %v180, 4294901760
    %v7653 = vsub.f32 %v180, %v7652
    %v7654 = vand.u32 %v7653, 4294901760
    %v7655 = vsub.f32 %v7653, %v7654
    %v7656 = vand.u32 %v7655, 4294901760
    %7657 = vmatmul.mubr.f32.gmra.mxu0 %v7656
    %v7658 = vpop.f32.mrf.mxu0
    %v7659 = vadd.f32 0.0, %v7658
    %v7660 = vpop.f32.mrf.mxu0
    %7661 = vdwg.mxu0
    %7662 = vmatprep.subr.mxu0 0.0
    %7663 = vmatpush1.msra.mxu0 0.0
    %7664 = vmatprep.subr.mxu0 0.0
    %7665 = vmatpush1.msra.mxu0 0.0
    %7666 = vmatprep.subr.mxu0 0.0
    %7667 = vmatpush1.msra.mxu0 0.0
    %7668 = vmatprep.subr.mxu0 0.0
    %7669 = vmatpush1.msra.mxu0 0.0
    %7670 = vmatprep.subr.mxu0 0.0
    %7671 = vmatpush1.msra.mxu0 0.0
    %7672 = vmatprep.subr.mxu0 0.0
    %7673 = vmatpush1.msra.mxu0 0.0
    %7674 = vmatprep.subr.mxu0 0.0
    %7675 = vmatpush1.msra.mxu0 0.0
    %7676 = vmatprep.subr.mxu0 0.0
    %7677 = vmatpush1.msra.mxu0 0.0
    %7678 = vmatprep.subr.mxu0 0.0
    %v7679 = vand.u32 %v7578, 4294901760
    %v7680 = vsub.f32 %v7578, %v7679
    %v7681 = vand.u32 %v7680, 4294901760
    %v7682 = vsub.f32 %v7680, %v7681
    %v7683 = vand.u32 %v7682, 4294901760
    %7684 = vmatpush1.msra.mxu0 %v7683
    %7685 = vmatprep.subr.mxu0 0.0
    %v7686 = vand.u32 %v7577, 4294901760
    %v7687 = vsub.f32 %v7577, %v7686
    %v7688 = vand.u32 %v7687, 4294901760
    %v7689 = vsub.f32 %v7687, %v7688
    %v7690 = vand.u32 %v7689, 4294901760
    %7691 = vmatpush1.msra.mxu0 %v7690
    %7692 = vmatprep.subr.mxu0 0.0
    %v7693 = vand.u32 %v7576, 4294901760
    %v7694 = vsub.f32 %v7576, %v7693
    %v7695 = vand.u32 %v7694, 4294901760
    %v7696 = vsub.f32 %v7694, %v7695
    %v7697 = vand.u32 %v7696, 4294901760
    %7698 = vmatpush1.msra.mxu0 %v7697
    %7699 = vmatprep.subr.mxu0 0.0
    %v7700 = vand.u32 %v7575, 4294901760
    %v7701 = vsub.f32 %v7575, %v7700
    %v7702 = vand.u32 %v7701, 4294901760
    %v7703 = vsub.f32 %v7701, %v7702
    %v7704 = vand.u32 %v7703, 4294901760
    %7705 = vmatpush1.msra.mxu0 %v7704
    %7706 = vmatprep.subr.mxu0 0.0
    %v7707 = vand.u32 %v7574, 4294901760
    %v7708 = vsub.f32 %v7574, %v7707
    %v7709 = vand.u32 %v7708, 4294901760
    %v7710 = vsub.f32 %v7708, %v7709
    %v7711 = vand.u32 %v7710, 4294901760
    %7712 = vmatpush1.msra.mxu0 %v7711
    %7713 = vmatprep.subr.mxu0 0.0
    %v7714 = vand.u32 %v7573, 4294901760
    %v7715 = vsub.f32 %v7573, %v7714
    %v7716 = vand.u32 %v7715, 4294901760
    %v7717 = vsub.f32 %v7715, %v7716
    %v7718 = vand.u32 %v7717, 4294901760
    %7719 = vmatpush1.msra.mxu0 %v7718
    %7720 = vmatprep.subr.mxu0 0.0
    %v7721 = vand.u32 %v7572, 4294901760
    %v7722 = vsub.f32 %v7572, %v7721
    %v7723 = vand.u32 %v7722, 4294901760
    %v7724 = vsub.f32 %v7722, %v7723
    %v7725 = vand.u32 %v7724, 4294901760
    %7726 = vmatpush1.msra.mxu0 %v7725
    %7727 = vmatprep.subr.mxu0 0.0
    %v7728 = vand.u32 %v7571, 4294901760
    %v7729 = vsub.f32 %v7571, %v7728
    %v7730 = vand.u32 %v7729, 4294901760
    %v7731 = vsub.f32 %v7729, %v7730
    %v7732 = vand.u32 %v7731, 4294901760
    %7733 = vmatpush1.msra.mxu0 %v7732
    %7734 = vmatprep.subr.mxu0 0.0
    %7735 = vmatpush2.msra.mxu0 0.0
    %7736 = vmatprep.subr.mxu0 0.0
    %7737 = vmatpush2.msra.mxu0 0.0
    %7738 = vmatprep.subr.mxu0 0.0
    %7739 = vmatpush2.msra.mxu0 0.0
    %7740 = vmatprep.subr.mxu0 0.0
    %7741 = vmatpush2.msra.mxu0 0.0
    %7742 = vmatprep.subr.mxu0 0.0
    %7743 = vmatpush2.msra.mxu0 0.0
    %7744 = vmatprep.subr.mxu0 0.0
    %7745 = vmatpush2.msra.mxu0 0.0
    %7746 = vmatprep.subr.mxu0 0.0
    %7747 = vmatpush2.msra.mxu0 0.0
    %7748 = vmatprep.subr.mxu0 0.0
    %7749 = vmatpush2.msra.mxu0 0.0
    %7750 = vmatprep.subr.mxu0 0.0
    %7751 = vmatpush2.msra.mxu0 0.0
    %7752 = vmatprep.subr.mxu0 0.0
    %7753 = vmatpush2.msra.mxu0 0.0
    %7754 = vmatprep.subr.mxu0 0.0
    %7755 = vmatpush2.msra.mxu0 0.0
    %7756 = vmatprep.subr.mxu0 0.0
    %7757 = vmatpush2.msra.mxu0 0.0
    %7758 = vmatprep.subr.mxu0 0.0
    %7759 = vmatpush2.msra.mxu0 0.0
    %7760 = vmatprep.subr.mxu0 0.0
    %7761 = vmatpush2.msra.mxu0 0.0
    %7762 = vmatprep.subr.mxu0 0.0
    %7763 = vmatpush2.msra.mxu0 0.0
    %7764 = vmatprep.subr.mxu0 0.0
    %7765 = vmatpush2.msra.mxu0 0.0
    %7766 = vmatprep.mubr.f32.mxu0 0.0
    %v7767 = vand.u32 %v180, 4294901760
    %7768 = vmatmul.mubr.f32.gmra.mxu0 %v7767
    %v7769 = vpop.f32.mrf.mxu0
    %v7770 = vadd.f32 %v7659, %v7769
    %v7771 = vpop.f32.mrf.mxu0
    %7772 = vdwg.mxu0
    %7773 = vmatprep.subr.mxu0 0.0
    %7774 = vmatpush1.msra.mxu0 0.0
    %7775 = vmatprep.subr.mxu0 0.0
    %7776 = vmatpush1.msra.mxu0 0.0
    %7777 = vmatprep.subr.mxu0 0.0
    %7778 = vmatpush1.msra.mxu0 0.0
    %7779 = vmatprep.subr.mxu0 0.0
    %7780 = vmatpush1.msra.mxu0 0.0
    %7781 = vmatprep.subr.mxu0 0.0
    %7782 = vmatpush1.msra.mxu0 0.0
    %7783 = vmatprep.subr.mxu0 0.0
    %7784 = vmatpush1.msra.mxu0 0.0
    %7785 = vmatprep.subr.mxu0 0.0
    %7786 = vmatpush1.msra.mxu0 0.0
    %7787 = vmatprep.subr.mxu0 0.0
    %7788 = vmatpush1.msra.mxu0 0.0
    %7789 = vmatprep.subr.mxu0 0.0
    %v7790 = vand.u32 %v7578, 4294901760
    %v7791 = vsub.f32 %v7578, %v7790
    %7792 = vmatpush1.msra.mxu0 %v7791
    %7793 = vmatprep.subr.mxu0 0.0
    %v7794 = vand.u32 %v7577, 4294901760
    %v7795 = vsub.f32 %v7577, %v7794
    %7796 = vmatpush1.msra.mxu0 %v7795
    %7797 = vmatprep.subr.mxu0 0.0
    %v7798 = vand.u32 %v7576, 4294901760
    %v7799 = vsub.f32 %v7576, %v7798
    %7800 = vmatpush1.msra.mxu0 %v7799
    %7801 = vmatprep.subr.mxu0 0.0
    %v7802 = vand.u32 %v7575, 4294901760
    %v7803 = vsub.f32 %v7575, %v7802
    %7804 = vmatpush1.msra.mxu0 %v7803
    %7805 = vmatprep.subr.mxu0 0.0
    %v7806 = vand.u32 %v7574, 4294901760
    %v7807 = vsub.f32 %v7574, %v7806
    %7808 = vmatpush1.msra.mxu0 %v7807
    %7809 = vmatprep.subr.mxu0 0.0
    %v7810 = vand.u32 %v7573, 4294901760
    %v7811 = vsub.f32 %v7573, %v7810
    %7812 = vmatpush1.msra.mxu0 %v7811
    %7813 = vmatprep.subr.mxu0 0.0
    %v7814 = vand.u32 %v7572, 4294901760
    %v7815 = vsub.f32 %v7572, %v7814
    %7816 = vmatpush1.msra.mxu0 %v7815
    %7817 = vmatprep.subr.mxu0 0.0
    %v7818 = vand.u32 %v7571, 4294901760
    %v7819 = vsub.f32 %v7571, %v7818
    %7820 = vmatpush1.msra.mxu0 %v7819
    %7821 = vmatprep.subr.mxu0 0.0
    %7822 = vmatpush2.msra.mxu0 0.0
    %7823 = vmatprep.subr.mxu0 0.0
    %7824 = vmatpush2.msra.mxu0 0.0
    %7825 = vmatprep.subr.mxu0 0.0
    %7826 = vmatpush2.msra.mxu0 0.0
    %7827 = vmatprep.subr.mxu0 0.0
    %7828 = vmatpush2.msra.mxu0 0.0
    %7829 = vmatprep.subr.mxu0 0.0
    %7830 = vmatpush2.msra.mxu0 0.0
    %7831 = vmatprep.subr.mxu0 0.0
    %7832 = vmatpush2.msra.mxu0 0.0
    %7833 = vmatprep.subr.mxu0 0.0
    %7834 = vmatpush2.msra.mxu0 0.0
    %7835 = vmatprep.subr.mxu0 0.0
    %7836 = vmatpush2.msra.mxu0 0.0
    %7837 = vmatprep.subr.mxu0 0.0
    %7838 = vmatpush2.msra.mxu0 0.0
    %7839 = vmatprep.subr.mxu0 0.0
    %7840 = vmatpush2.msra.mxu0 0.0
    %7841 = vmatprep.subr.mxu0 0.0
    %7842 = vmatpush2.msra.mxu0 0.0
    %7843 = vmatprep.subr.mxu0 0.0
    %7844 = vmatpush2.msra.mxu0 0.0
    %7845 = vmatprep.subr.mxu0 0.0
    %7846 = vmatpush2.msra.mxu0 0.0
    %7847 = vmatprep.subr.mxu0 0.0
    %7848 = vmatpush2.msra.mxu0 0.0
    %7849 = vmatprep.subr.mxu0 0.0
    %7850 = vmatpush2.msra.mxu0 0.0
    %7851 = vmatprep.subr.mxu0 0.0
    %7852 = vmatpush2.msra.mxu0 0.0
    %7853 = vmatprep.mubr.f32.mxu0 0.0
    %v7854 = vand.u32 %v180, 4294901760
    %v7855 = vsub.f32 %v180, %v7854
    %7856 = vmatmul.mubr.f32.gmra.mxu0 %v7855
    %v7857 = vpop.f32.mrf.mxu0
    %v7858 = vadd.f32 %v7770, %v7857
    %v7859 = vpop.f32.mrf.mxu0
    %7860 = vdwg.mxu0
    %7861 = vmatprep.subr.mxu0 0.0
    %7862 = vmatpush1.msra.mxu0 0.0
    %7863 = vmatprep.subr.mxu0 0.0
    %7864 = vmatpush1.msra.mxu0 0.0
    %7865 = vmatprep.subr.mxu0 0.0
    %7866 = vmatpush1.msra.mxu0 0.0
    %7867 = vmatprep.subr.mxu0 0.0
    %7868 = vmatpush1.msra.mxu0 0.0
    %7869 = vmatprep.subr.mxu0 0.0
    %7870 = vmatpush1.msra.mxu0 0.0
    %7871 = vmatprep.subr.mxu0 0.0
    %7872 = vmatpush1.msra.mxu0 0.0
    %7873 = vmatprep.subr.mxu0 0.0
    %7874 = vmatpush1.msra.mxu0 0.0
    %7875 = vmatprep.subr.mxu0 0.0
    %7876 = vmatpush1.msra.mxu0 0.0
    %7877 = vmatprep.subr.mxu0 0.0
    %v7878 = vand.u32 %v7578, 4294901760
    %7879 = vmatpush1.msra.mxu0 %v7878
    %7880 = vmatprep.subr.mxu0 0.0
    %v7881 = vand.u32 %v7577, 4294901760
    %7882 = vmatpush1.msra.mxu0 %v7881
    %7883 = vmatprep.subr.mxu0 0.0
    %v7884 = vand.u32 %v7576, 4294901760
    %7885 = vmatpush1.msra.mxu0 %v7884
    %7886 = vmatprep.subr.mxu0 0.0
    %v7887 = vand.u32 %v7575, 4294901760
    %7888 = vmatpush1.msra.mxu0 %v7887
    %7889 = vmatprep.subr.mxu0 0.0
    %v7890 = vand.u32 %v7574, 4294901760
    %7891 = vmatpush1.msra.mxu0 %v7890
    %7892 = vmatprep.subr.mxu0 0.0
    %v7893 = vand.u32 %v7573, 4294901760
    %7894 = vmatpush1.msra.mxu0 %v7893
    %7895 = vmatprep.subr.mxu0 0.0
    %v7896 = vand.u32 %v7572, 4294901760
    %7897 = vmatpush1.msra.mxu0 %v7896
    %7898 = vmatprep.subr.mxu0 0.0
    %v7899 = vand.u32 %v7571, 4294901760
    %7900 = vmatpush1.msra.mxu0 %v7899
    %7901 = vmatprep.subr.mxu0 0.0
    %7902 = vmatpush2.msra.mxu0 0.0
    %7903 = vmatprep.subr.mxu0 0.0
    %7904 = vmatpush2.msra.mxu0 0.0
    %7905 = vmatprep.subr.mxu0 0.0
    %7906 = vmatpush2.msra.mxu0 0.0
    %7907 = vmatprep.subr.mxu0 0.0
    %7908 = vmatpush2.msra.mxu0 0.0
    %7909 = vmatprep.subr.mxu0 0.0
    %7910 = vmatpush2.msra.mxu0 0.0
    %7911 = vmatprep.subr.mxu0 0.0
    %7912 = vmatpush2.msra.mxu0 0.0
    %7913 = vmatprep.subr.mxu0 0.0
    %7914 = vmatpush2.msra.mxu0 0.0
    %7915 = vmatprep.subr.mxu0 0.0
    %7916 = vmatpush2.msra.mxu0 0.0
    %7917 = vmatprep.subr.mxu0 0.0
    %7918 = vmatpush2.msra.mxu0 0.0
    %7919 = vmatprep.subr.mxu0 0.0
    %7920 = vmatpush2.msra.mxu0 0.0
    %7921 = vmatprep.subr.mxu0 0.0
    %7922 = vmatpush2.msra.mxu0 0.0
    %7923 = vmatprep.subr.mxu0 0.0
    %7924 = vmatpush2.msra.mxu0 0.0
    %7925 = vmatprep.subr.mxu0 0.0
    %7926 = vmatpush2.msra.mxu0 0.0
    %7927 = vmatprep.subr.mxu0 0.0
    %7928 = vmatpush2.msra.mxu0 0.0
    %7929 = vmatprep.subr.mxu0 0.0
    %7930 = vmatpush2.msra.mxu0 0.0
    %7931 = vmatprep.subr.mxu0 0.0
    %7932 = vmatpush2.msra.mxu0 0.0
    %7933 = vmatprep.mubr.f32.mxu0 0.0
    %v7934 = vand.u32 %v180, 4294901760
    %v7935 = vsub.f32 %v180, %v7934
    %v7936 = vand.u32 %v7935, 4294901760
    %7937 = vmatmul.mubr.f32.gmra.mxu0 %v7936
    %v7938 = vpop.f32.mrf.mxu0
    %v7939 = vadd.f32 %v7858, %v7938
    %v7940 = vpop.f32.mrf.mxu0
    %7941 = vdwg.mxu0
    %7942 = vmatprep.subr.mxu0 0.0
    %7943 = vmatpush1.msra.mxu0 0.0
    %7944 = vmatprep.subr.mxu0 0.0
    %7945 = vmatpush1.msra.mxu0 0.0
    %7946 = vmatprep.subr.mxu0 0.0
    %7947 = vmatpush1.msra.mxu0 0.0
    %7948 = vmatprep.subr.mxu0 0.0
    %7949 = vmatpush1.msra.mxu0 0.0
    %7950 = vmatprep.subr.mxu0 0.0
    %7951 = vmatpush1.msra.mxu0 0.0
    %7952 = vmatprep.subr.mxu0 0.0
    %7953 = vmatpush1.msra.mxu0 0.0
    %7954 = vmatprep.subr.mxu0 0.0
    %7955 = vmatpush1.msra.mxu0 0.0
    %7956 = vmatprep.subr.mxu0 0.0
    %7957 = vmatpush1.msra.mxu0 0.0
    %7958 = vmatprep.subr.mxu0 0.0
    %v7959 = vand.u32 %v7578, 4294901760
    %v7960 = vsub.f32 %v7578, %v7959
    %v7961 = vand.u32 %v7960, 4294901760
    %7962 = vmatpush1.msra.mxu0 %v7961
    %7963 = vmatprep.subr.mxu0 0.0
    %v7964 = vand.u32 %v7577, 4294901760
    %v7965 = vsub.f32 %v7577, %v7964
    %v7966 = vand.u32 %v7965, 4294901760
    %7967 = vmatpush1.msra.mxu0 %v7966
    %7968 = vmatprep.subr.mxu0 0.0
    %v7969 = vand.u32 %v7576, 4294901760
    %v7970 = vsub.f32 %v7576, %v7969
    %v7971 = vand.u32 %v7970, 4294901760
    %7972 = vmatpush1.msra.mxu0 %v7971
    %7973 = vmatprep.subr.mxu0 0.0
    %v7974 = vand.u32 %v7575, 4294901760
    %v7975 = vsub.f32 %v7575, %v7974
    %v7976 = vand.u32 %v7975, 4294901760
    %7977 = vmatpush1.msra.mxu0 %v7976
    %7978 = vmatprep.subr.mxu0 0.0
    %v7979 = vand.u32 %v7574, 4294901760
    %v7980 = vsub.f32 %v7574, %v7979
    %v7981 = vand.u32 %v7980, 4294901760
    %7982 = vmatpush1.msra.mxu0 %v7981
    %7983 = vmatprep.subr.mxu0 0.0
    %v7984 = vand.u32 %v7573, 4294901760
    %v7985 = vsub.f32 %v7573, %v7984
    %v7986 = vand.u32 %v7985, 4294901760
    %7987 = vmatpush1.msra.mxu0 %v7986
    %7988 = vmatprep.subr.mxu0 0.0
    %v7989 = vand.u32 %v7572, 4294901760
    %v7990 = vsub.f32 %v7572, %v7989
    %v7991 = vand.u32 %v7990, 4294901760
    %7992 = vmatpush1.msra.mxu0 %v7991
    %7993 = vmatprep.subr.mxu0 0.0
    %v7994 = vand.u32 %v7571, 4294901760
    %v7995 = vsub.f32 %v7571, %v7994
    %v7996 = vand.u32 %v7995, 4294901760
    %7997 = vmatpush1.msra.mxu0 %v7996
    %7998 = vmatprep.subr.mxu0 0.0
    %7999 = vmatpush2.msra.mxu0 0.0
    %8000 = vmatprep.subr.mxu0 0.0
    %8001 = vmatpush2.msra.mxu0 0.0
    %8002 = vmatprep.subr.mxu0 0.0
    %8003 = vmatpush2.msra.mxu0 0.0
    %8004 = vmatprep.subr.mxu0 0.0
    %8005 = vmatpush2.msra.mxu0 0.0
    %8006 = vmatprep.subr.mxu0 0.0
    %8007 = vmatpush2.msra.mxu0 0.0
    %8008 = vmatprep.subr.mxu0 0.0
    %8009 = vmatpush2.msra.mxu0 0.0
    %8010 = vmatprep.subr.mxu0 0.0
    %8011 = vmatpush2.msra.mxu0 0.0
    %8012 = vmatprep.subr.mxu0 0.0
    %8013 = vmatpush2.msra.mxu0 0.0
    %8014 = vmatprep.subr.mxu0 0.0
    %8015 = vmatpush2.msra.mxu0 0.0
    %8016 = vmatprep.subr.mxu0 0.0
    %8017 = vmatpush2.msra.mxu0 0.0
    %8018 = vmatprep.subr.mxu0 0.0
    %8019 = vmatpush2.msra.mxu0 0.0
    %8020 = vmatprep.subr.mxu0 0.0
    %8021 = vmatpush2.msra.mxu0 0.0
    %8022 = vmatprep.subr.mxu0 0.0
    %8023 = vmatpush2.msra.mxu0 0.0
    %8024 = vmatprep.subr.mxu0 0.0
    %8025 = vmatpush2.msra.mxu0 0.0
    %8026 = vmatprep.subr.mxu0 0.0
    %8027 = vmatpush2.msra.mxu0 0.0
    %8028 = vmatprep.subr.mxu0 0.0
    %8029 = vmatpush2.msra.mxu0 0.0
    %8030 = vmatprep.mubr.f32.mxu0 0.0
    %v8031 = vand.u32 %v180, 4294901760
    %8032 = vmatmul.mubr.f32.gmra.mxu0 %v8031
    %v8033 = vpop.f32.mrf.mxu0
    %v8034 = vadd.f32 %v7939, %v8033
    %v8035 = vpop.f32.mrf.mxu0
    %8036 = vdwg.mxu0
    %8037 = vmatprep.subr.mxu0 0.0
    %8038 = vmatpush1.msra.mxu0 0.0
    %8039 = vmatprep.subr.mxu0 0.0
    %8040 = vmatpush1.msra.mxu0 0.0
    %8041 = vmatprep.subr.mxu0 0.0
    %8042 = vmatpush1.msra.mxu0 0.0
    %8043 = vmatprep.subr.mxu0 0.0
    %8044 = vmatpush1.msra.mxu0 0.0
    %8045 = vmatprep.subr.mxu0 0.0
    %8046 = vmatpush1.msra.mxu0 0.0
    %8047 = vmatprep.subr.mxu0 0.0
    %8048 = vmatpush1.msra.mxu0 0.0
    %8049 = vmatprep.subr.mxu0 0.0
    %8050 = vmatpush1.msra.mxu0 0.0
    %8051 = vmatprep.subr.mxu0 0.0
    %8052 = vmatpush1.msra.mxu0 0.0
    %8053 = vmatprep.subr.mxu0 0.0
    %v8054 = vand.u32 %v7578, 4294901760
    %8055 = vmatpush1.msra.mxu0 %v8054
    %8056 = vmatprep.subr.mxu0 0.0
    %v8057 = vand.u32 %v7577, 4294901760
    %8058 = vmatpush1.msra.mxu0 %v8057
    %8059 = vmatprep.subr.mxu0 0.0
    %v8060 = vand.u32 %v7576, 4294901760
    %8061 = vmatpush1.msra.mxu0 %v8060
    %8062 = vmatprep.subr.mxu0 0.0
    %v8063 = vand.u32 %v7575, 4294901760
    %8064 = vmatpush1.msra.mxu0 %v8063
    %8065 = vmatprep.subr.mxu0 0.0
    %v8066 = vand.u32 %v7574, 4294901760
    %8067 = vmatpush1.msra.mxu0 %v8066
    %8068 = vmatprep.subr.mxu0 0.0
    %v8069 = vand.u32 %v7573, 4294901760
    %8070 = vmatpush1.msra.mxu0 %v8069
    %8071 = vmatprep.subr.mxu0 0.0
    %v8072 = vand.u32 %v7572, 4294901760
    %8073 = vmatpush1.msra.mxu0 %v8072
    %8074 = vmatprep.subr.mxu0 0.0
    %v8075 = vand.u32 %v7571, 4294901760
    %8076 = vmatpush1.msra.mxu0 %v8075
    %8077 = vmatprep.subr.mxu0 0.0
    %8078 = vmatpush2.msra.mxu0 0.0
    %8079 = vmatprep.subr.mxu0 0.0
    %8080 = vmatpush2.msra.mxu0 0.0
    %8081 = vmatprep.subr.mxu0 0.0
    %8082 = vmatpush2.msra.mxu0 0.0
    %8083 = vmatprep.subr.mxu0 0.0
    %8084 = vmatpush2.msra.mxu0 0.0
    %8085 = vmatprep.subr.mxu0 0.0
    %8086 = vmatpush2.msra.mxu0 0.0
    %8087 = vmatprep.subr.mxu0 0.0
    %8088 = vmatpush2.msra.mxu0 0.0
    %8089 = vmatprep.subr.mxu0 0.0
    %8090 = vmatpush2.msra.mxu0 0.0
    %8091 = vmatprep.subr.mxu0 0.0
    %8092 = vmatpush2.msra.mxu0 0.0
    %8093 = vmatprep.subr.mxu0 0.0
    %8094 = vmatpush2.msra.mxu0 0.0
    %8095 = vmatprep.subr.mxu0 0.0
    %8096 = vmatpush2.msra.mxu0 0.0
    %8097 = vmatprep.subr.mxu0 0.0
    %8098 = vmatpush2.msra.mxu0 0.0
    %8099 = vmatprep.subr.mxu0 0.0
    %8100 = vmatpush2.msra.mxu0 0.0
    %8101 = vmatprep.subr.mxu0 0.0
    %8102 = vmatpush2.msra.mxu0 0.0
    %8103 = vmatprep.subr.mxu0 0.0
    %8104 = vmatpush2.msra.mxu0 0.0
    %8105 = vmatprep.subr.mxu0 0.0
    %8106 = vmatpush2.msra.mxu0 0.0
    %8107 = vmatprep.subr.mxu0 0.0
    %8108 = vmatpush2.msra.mxu0 0.0
    %8109 = vmatprep.mubr.f32.mxu0 0.0
    %v8110 = vand.u32 %v180, 4294901760
    %8111 = vmatmul.mubr.f32.gmra.mxu0 %v8110
    %v8112 = vpop.f32.mrf.mxu0
    %v8113 = vadd.f32 %v8034, %v8112
    %v8114 = vpop.f32.mrf.mxu0
    %8115 = vdwg.mxu0
    %v8116 = vsub.f32 %v114, 14.0
    %v8117 = vsub.f32 %v115, 14.0
    %v8118 = vsub.f32 %v116, 14.0
    %v8119 = vsub.f32 %v117, 14.0
    %v8120 = vsub.f32 %v118, 14.0
    %v8121 = vsub.f32 %v119, 14.0
    %v8122 = vsub.f32 %v120, 14.0
    %v8123 = vsub.f32 %v121, 14.0
    %v8124 = vand.u32 2147483647, %v8116
    %v8125 = vand.u32 2147483647, %v8117
    %v8126 = vand.u32 2147483647, %v8118
    %v8127 = vand.u32 2147483647, %v8119
    %v8128 = vand.u32 2147483647, %v8120
    %v8129 = vand.u32 2147483647, %v8121
    %v8130 = vand.u32 2147483647, %v8122
    %v8131 = vand.u32 2147483647, %v8123
    %v8132 = vsub.f32 %v146, %v8124
    %v8133 = vsub.f32 %v147, %v8125
    %v8134 = vsub.f32 %v148, %v8126
    %v8135 = vsub.f32 %v149, %v8127
    %v8136 = vsub.f32 %v150, %v8128
    %v8137 = vsub.f32 %v151, %v8129
    %v8138 = vsub.f32 %v152, %v8130
    %v8139 = vsub.f32 %v153, %v8131
    %v8140 = vmax.f32 %v8132, 0.0
    %v8141 = vmax.f32 %v8133, 0.0
    %v8142 = vmax.f32 %v8134, 0.0
    %v8143 = vmax.f32 %v8135, 0.0
    %v8144 = vmax.f32 %v8136, 0.0
    %v8145 = vmax.f32 %v8137, 0.0
    %v8146 = vmax.f32 %v8138, 0.0
    %v8147 = vmax.f32 %v8139, 0.0
    %8148 = vmatprep.subr.mxu0 0.0
    %8149 = vmatpush1.msra.mxu0 0.0
    %8150 = vmatprep.subr.mxu0 0.0
    %8151 = vmatpush1.msra.mxu0 0.0
    %8152 = vmatprep.subr.mxu0 0.0
    %8153 = vmatpush1.msra.mxu0 0.0
    %8154 = vmatprep.subr.mxu0 0.0
    %8155 = vmatpush1.msra.mxu0 0.0
    %8156 = vmatprep.subr.mxu0 0.0
    %8157 = vmatpush1.msra.mxu0 0.0
    %8158 = vmatprep.subr.mxu0 0.0
    %8159 = vmatpush1.msra.mxu0 0.0
    %8160 = vmatprep.subr.mxu0 0.0
    %8161 = vmatpush1.msra.mxu0 0.0
    %8162 = vmatprep.subr.mxu0 0.0
    %8163 = vmatpush1.msra.mxu0 0.0
    %8164 = vmatprep.subr.mxu0 0.0
    %v8165 = vand.u32 %v8147, 4294901760
    %8166 = vmatpush1.msra.mxu0 %v8165
    %8167 = vmatprep.subr.mxu0 0.0
    %v8168 = vand.u32 %v8146, 4294901760
    %8169 = vmatpush1.msra.mxu0 %v8168
    %8170 = vmatprep.subr.mxu0 0.0
    %v8171 = vand.u32 %v8145, 4294901760
    %8172 = vmatpush1.msra.mxu0 %v8171
    %8173 = vmatprep.subr.mxu0 0.0
    %v8174 = vand.u32 %v8144, 4294901760
    %8175 = vmatpush1.msra.mxu0 %v8174
    %8176 = vmatprep.subr.mxu0 0.0
    %v8177 = vand.u32 %v8143, 4294901760
    %8178 = vmatpush1.msra.mxu0 %v8177
    %8179 = vmatprep.subr.mxu0 0.0
    %v8180 = vand.u32 %v8142, 4294901760
    %8181 = vmatpush1.msra.mxu0 %v8180
    %8182 = vmatprep.subr.mxu0 0.0
    %v8183 = vand.u32 %v8141, 4294901760
    %8184 = vmatpush1.msra.mxu0 %v8183
    %8185 = vmatprep.subr.mxu0 0.0
    %v8186 = vand.u32 %v8140, 4294901760
    %8187 = vmatpush1.msra.mxu0 %v8186
    %8188 = vmatprep.subr.mxu0 0.0
    %8189 = vmatpush2.msra.mxu0 0.0
    %8190 = vmatprep.subr.mxu0 0.0
    %8191 = vmatpush2.msra.mxu0 0.0
    %8192 = vmatprep.subr.mxu0 0.0
    %8193 = vmatpush2.msra.mxu0 0.0
    %8194 = vmatprep.subr.mxu0 0.0
    %8195 = vmatpush2.msra.mxu0 0.0
    %8196 = vmatprep.subr.mxu0 0.0
    %8197 = vmatpush2.msra.mxu0 0.0
    %8198 = vmatprep.subr.mxu0 0.0
    %8199 = vmatpush2.msra.mxu0 0.0
    %8200 = vmatprep.subr.mxu0 0.0
    %8201 = vmatpush2.msra.mxu0 0.0
    %8202 = vmatprep.subr.mxu0 0.0
    %8203 = vmatpush2.msra.mxu0 0.0
    %8204 = vmatprep.subr.mxu0 0.0
    %8205 = vmatpush2.msra.mxu0 0.0
    %8206 = vmatprep.subr.mxu0 0.0
    %8207 = vmatpush2.msra.mxu0 0.0
    %8208 = vmatprep.subr.mxu0 0.0
    %8209 = vmatpush2.msra.mxu0 0.0
    %8210 = vmatprep.subr.mxu0 0.0
    %8211 = vmatpush2.msra.mxu0 0.0
    %8212 = vmatprep.subr.mxu0 0.0
    %8213 = vmatpush2.msra.mxu0 0.0
    %8214 = vmatprep.subr.mxu0 0.0
    %8215 = vmatpush2.msra.mxu0 0.0
    %8216 = vmatprep.subr.mxu0 0.0
    %8217 = vmatpush2.msra.mxu0 0.0
    %8218 = vmatprep.subr.mxu0 0.0
    %8219 = vmatpush2.msra.mxu0 0.0
    %8220 = vmatprep.mubr.f32.mxu0 0.0
    %v8221 = vand.u32 %v180, 4294901760
    %v8222 = vsub.f32 %v180, %v8221
    %v8223 = vand.u32 %v8222, 4294901760
    %v8224 = vsub.f32 %v8222, %v8223
    %v8225 = vand.u32 %v8224, 4294901760
    %8226 = vmatmul.mubr.f32.gmra.mxu0 %v8225
    %v8227 = vpop.f32.mrf.mxu0
    %v8228 = vadd.f32 0.0, %v8227
    %v8229 = vpop.f32.mrf.mxu0
    %8230 = vdwg.mxu0
    %8231 = vmatprep.subr.mxu0 0.0
    %8232 = vmatpush1.msra.mxu0 0.0
    %8233 = vmatprep.subr.mxu0 0.0
    %8234 = vmatpush1.msra.mxu0 0.0
    %8235 = vmatprep.subr.mxu0 0.0
    %8236 = vmatpush1.msra.mxu0 0.0
    %8237 = vmatprep.subr.mxu0 0.0
    %8238 = vmatpush1.msra.mxu0 0.0
    %8239 = vmatprep.subr.mxu0 0.0
    %8240 = vmatpush1.msra.mxu0 0.0
    %8241 = vmatprep.subr.mxu0 0.0
    %8242 = vmatpush1.msra.mxu0 0.0
    %8243 = vmatprep.subr.mxu0 0.0
    %8244 = vmatpush1.msra.mxu0 0.0
    %8245 = vmatprep.subr.mxu0 0.0
    %8246 = vmatpush1.msra.mxu0 0.0
    %8247 = vmatprep.subr.mxu0 0.0
    %v8248 = vand.u32 %v8147, 4294901760
    %v8249 = vsub.f32 %v8147, %v8248
    %v8250 = vand.u32 %v8249, 4294901760
    %v8251 = vsub.f32 %v8249, %v8250
    %v8252 = vand.u32 %v8251, 4294901760
    %8253 = vmatpush1.msra.mxu0 %v8252
    %8254 = vmatprep.subr.mxu0 0.0
    %v8255 = vand.u32 %v8146, 4294901760
    %v8256 = vsub.f32 %v8146, %v8255
    %v8257 = vand.u32 %v8256, 4294901760
    %v8258 = vsub.f32 %v8256, %v8257
    %v8259 = vand.u32 %v8258, 4294901760
    %8260 = vmatpush1.msra.mxu0 %v8259
    %8261 = vmatprep.subr.mxu0 0.0
    %v8262 = vand.u32 %v8145, 4294901760
    %v8263 = vsub.f32 %v8145, %v8262
    %v8264 = vand.u32 %v8263, 4294901760
    %v8265 = vsub.f32 %v8263, %v8264
    %v8266 = vand.u32 %v8265, 4294901760
    %8267 = vmatpush1.msra.mxu0 %v8266
    %8268 = vmatprep.subr.mxu0 0.0
    %v8269 = vand.u32 %v8144, 4294901760
    %v8270 = vsub.f32 %v8144, %v8269
    %v8271 = vand.u32 %v8270, 4294901760
    %v8272 = vsub.f32 %v8270, %v8271
    %v8273 = vand.u32 %v8272, 4294901760
    %8274 = vmatpush1.msra.mxu0 %v8273
    %8275 = vmatprep.subr.mxu0 0.0
    %v8276 = vand.u32 %v8143, 4294901760
    %v8277 = vsub.f32 %v8143, %v8276
    %v8278 = vand.u32 %v8277, 4294901760
    %v8279 = vsub.f32 %v8277, %v8278
    %v8280 = vand.u32 %v8279, 4294901760
    %8281 = vmatpush1.msra.mxu0 %v8280
    %8282 = vmatprep.subr.mxu0 0.0
    %v8283 = vand.u32 %v8142, 4294901760
    %v8284 = vsub.f32 %v8142, %v8283
    %v8285 = vand.u32 %v8284, 4294901760
    %v8286 = vsub.f32 %v8284, %v8285
    %v8287 = vand.u32 %v8286, 4294901760
    %8288 = vmatpush1.msra.mxu0 %v8287
    %8289 = vmatprep.subr.mxu0 0.0
    %v8290 = vand.u32 %v8141, 4294901760
    %v8291 = vsub.f32 %v8141, %v8290
    %v8292 = vand.u32 %v8291, 4294901760
    %v8293 = vsub.f32 %v8291, %v8292
    %v8294 = vand.u32 %v8293, 4294901760
    %8295 = vmatpush1.msra.mxu0 %v8294
    %8296 = vmatprep.subr.mxu0 0.0
    %v8297 = vand.u32 %v8140, 4294901760
    %v8298 = vsub.f32 %v8140, %v8297
    %v8299 = vand.u32 %v8298, 4294901760
    %v8300 = vsub.f32 %v8298, %v8299
    %v8301 = vand.u32 %v8300, 4294901760
    %8302 = vmatpush1.msra.mxu0 %v8301
    %8303 = vmatprep.subr.mxu0 0.0
    %8304 = vmatpush2.msra.mxu0 0.0
    %8305 = vmatprep.subr.mxu0 0.0
    %8306 = vmatpush2.msra.mxu0 0.0
    %8307 = vmatprep.subr.mxu0 0.0
    %8308 = vmatpush2.msra.mxu0 0.0
    %8309 = vmatprep.subr.mxu0 0.0
    %8310 = vmatpush2.msra.mxu0 0.0
    %8311 = vmatprep.subr.mxu0 0.0
    %8312 = vmatpush2.msra.mxu0 0.0
    %8313 = vmatprep.subr.mxu0 0.0
    %8314 = vmatpush2.msra.mxu0 0.0
    %8315 = vmatprep.subr.mxu0 0.0
    %8316 = vmatpush2.msra.mxu0 0.0
    %8317 = vmatprep.subr.mxu0 0.0
    %8318 = vmatpush2.msra.mxu0 0.0
    %8319 = vmatprep.subr.mxu0 0.0
    %8320 = vmatpush2.msra.mxu0 0.0
    %8321 = vmatprep.subr.mxu0 0.0
    %8322 = vmatpush2.msra.mxu0 0.0
    %8323 = vmatprep.subr.mxu0 0.0
    %8324 = vmatpush2.msra.mxu0 0.0
    %8325 = vmatprep.subr.mxu0 0.0
    %8326 = vmatpush2.msra.mxu0 0.0
    %8327 = vmatprep.subr.mxu0 0.0
    %8328 = vmatpush2.msra.mxu0 0.0
    %8329 = vmatprep.subr.mxu0 0.0
    %8330 = vmatpush2.msra.mxu0 0.0
    %8331 = vmatprep.subr.mxu0 0.0
    %8332 = vmatpush2.msra.mxu0 0.0
    %8333 = vmatprep.subr.mxu0 0.0
    %8334 = vmatpush2.msra.mxu0 0.0
    %8335 = vmatprep.mubr.f32.mxu0 0.0
    %v8336 = vand.u32 %v180, 4294901760
    %8337 = vmatmul.mubr.f32.gmra.mxu0 %v8336
    %v8338 = vpop.f32.mrf.mxu0
    %v8339 = vadd.f32 %v8228, %v8338
    %v8340 = vpop.f32.mrf.mxu0
    %8341 = vdwg.mxu0
    %8342 = vmatprep.subr.mxu0 0.0
    %8343 = vmatpush1.msra.mxu0 0.0
    %8344 = vmatprep.subr.mxu0 0.0
    %8345 = vmatpush1.msra.mxu0 0.0
    %8346 = vmatprep.subr.mxu0 0.0
    %8347 = vmatpush1.msra.mxu0 0.0
    %8348 = vmatprep.subr.mxu0 0.0
    %8349 = vmatpush1.msra.mxu0 0.0
    %8350 = vmatprep.subr.mxu0 0.0
    %8351 = vmatpush1.msra.mxu0 0.0
    %8352 = vmatprep.subr.mxu0 0.0
    %8353 = vmatpush1.msra.mxu0 0.0
    %8354 = vmatprep.subr.mxu0 0.0
    %8355 = vmatpush1.msra.mxu0 0.0
    %8356 = vmatprep.subr.mxu0 0.0
    %8357 = vmatpush1.msra.mxu0 0.0
    %8358 = vmatprep.subr.mxu0 0.0
    %v8359 = vand.u32 %v8147, 4294901760
    %v8360 = vsub.f32 %v8147, %v8359
    %8361 = vmatpush1.msra.mxu0 %v8360
    %8362 = vmatprep.subr.mxu0 0.0
    %v8363 = vand.u32 %v8146, 4294901760
    %v8364 = vsub.f32 %v8146, %v8363
    %8365 = vmatpush1.msra.mxu0 %v8364
    %8366 = vmatprep.subr.mxu0 0.0
    %v8367 = vand.u32 %v8145, 4294901760
    %v8368 = vsub.f32 %v8145, %v8367
    %8369 = vmatpush1.msra.mxu0 %v8368
    %8370 = vmatprep.subr.mxu0 0.0
    %v8371 = vand.u32 %v8144, 4294901760
    %v8372 = vsub.f32 %v8144, %v8371
    %8373 = vmatpush1.msra.mxu0 %v8372
    %8374 = vmatprep.subr.mxu0 0.0
    %v8375 = vand.u32 %v8143, 4294901760
    %v8376 = vsub.f32 %v8143, %v8375
    %8377 = vmatpush1.msra.mxu0 %v8376
    %8378 = vmatprep.subr.mxu0 0.0
    %v8379 = vand.u32 %v8142, 4294901760
    %v8380 = vsub.f32 %v8142, %v8379
    %8381 = vmatpush1.msra.mxu0 %v8380
    %8382 = vmatprep.subr.mxu0 0.0
    %v8383 = vand.u32 %v8141, 4294901760
    %v8384 = vsub.f32 %v8141, %v8383
    %8385 = vmatpush1.msra.mxu0 %v8384
    %8386 = vmatprep.subr.mxu0 0.0
    %v8387 = vand.u32 %v8140, 4294901760
    %v8388 = vsub.f32 %v8140, %v8387
    %8389 = vmatpush1.msra.mxu0 %v8388
    %8390 = vmatprep.subr.mxu0 0.0
    %8391 = vmatpush2.msra.mxu0 0.0
    %8392 = vmatprep.subr.mxu0 0.0
    %8393 = vmatpush2.msra.mxu0 0.0
    %8394 = vmatprep.subr.mxu0 0.0
    %8395 = vmatpush2.msra.mxu0 0.0
    %8396 = vmatprep.subr.mxu0 0.0
    %8397 = vmatpush2.msra.mxu0 0.0
    %8398 = vmatprep.subr.mxu0 0.0
    %8399 = vmatpush2.msra.mxu0 0.0
    %8400 = vmatprep.subr.mxu0 0.0
    %8401 = vmatpush2.msra.mxu0 0.0
    %8402 = vmatprep.subr.mxu0 0.0
    %8403 = vmatpush2.msra.mxu0 0.0
    %8404 = vmatprep.subr.mxu0 0.0
    %8405 = vmatpush2.msra.mxu0 0.0
    %8406 = vmatprep.subr.mxu0 0.0
    %8407 = vmatpush2.msra.mxu0 0.0
    %8408 = vmatprep.subr.mxu0 0.0
    %8409 = vmatpush2.msra.mxu0 0.0
    %8410 = vmatprep.subr.mxu0 0.0
    %8411 = vmatpush2.msra.mxu0 0.0
    %8412 = vmatprep.subr.mxu0 0.0
    %8413 = vmatpush2.msra.mxu0 0.0
    %8414 = vmatprep.subr.mxu0 0.0
    %8415 = vmatpush2.msra.mxu0 0.0
    %8416 = vmatprep.subr.mxu0 0.0
    %8417 = vmatpush2.msra.mxu0 0.0
    %8418 = vmatprep.subr.mxu0 0.0
    %8419 = vmatpush2.msra.mxu0 0.0
    %8420 = vmatprep.subr.mxu0 0.0
    %8421 = vmatpush2.msra.mxu0 0.0
    %8422 = vmatprep.mubr.f32.mxu0 0.0
    %v8423 = vand.u32 %v180, 4294901760
    %v8424 = vsub.f32 %v180, %v8423
    %8425 = vmatmul.mubr.f32.gmra.mxu0 %v8424
    %v8426 = vpop.f32.mrf.mxu0
    %v8427 = vadd.f32 %v8339, %v8426
    %v8428 = vpop.f32.mrf.mxu0
    %8429 = vdwg.mxu0
    %8430 = vmatprep.subr.mxu0 0.0
    %8431 = vmatpush1.msra.mxu0 0.0
    %8432 = vmatprep.subr.mxu0 0.0
    %8433 = vmatpush1.msra.mxu0 0.0
    %8434 = vmatprep.subr.mxu0 0.0
    %8435 = vmatpush1.msra.mxu0 0.0
    %8436 = vmatprep.subr.mxu0 0.0
    %8437 = vmatpush1.msra.mxu0 0.0
    %8438 = vmatprep.subr.mxu0 0.0
    %8439 = vmatpush1.msra.mxu0 0.0
    %8440 = vmatprep.subr.mxu0 0.0
    %8441 = vmatpush1.msra.mxu0 0.0
    %8442 = vmatprep.subr.mxu0 0.0
    %8443 = vmatpush1.msra.mxu0 0.0
    %8444 = vmatprep.subr.mxu0 0.0
    %8445 = vmatpush1.msra.mxu0 0.0
    %8446 = vmatprep.subr.mxu0 0.0
    %v8447 = vand.u32 %v8147, 4294901760
    %8448 = vmatpush1.msra.mxu0 %v8447
    %8449 = vmatprep.subr.mxu0 0.0
    %v8450 = vand.u32 %v8146, 4294901760
    %8451 = vmatpush1.msra.mxu0 %v8450
    %8452 = vmatprep.subr.mxu0 0.0
    %v8453 = vand.u32 %v8145, 4294901760
    %8454 = vmatpush1.msra.mxu0 %v8453
    %8455 = vmatprep.subr.mxu0 0.0
    %v8456 = vand.u32 %v8144, 4294901760
    %8457 = vmatpush1.msra.mxu0 %v8456
    %8458 = vmatprep.subr.mxu0 0.0
    %v8459 = vand.u32 %v8143, 4294901760
    %8460 = vmatpush1.msra.mxu0 %v8459
    %8461 = vmatprep.subr.mxu0 0.0
    %v8462 = vand.u32 %v8142, 4294901760
    %8463 = vmatpush1.msra.mxu0 %v8462
    %8464 = vmatprep.subr.mxu0 0.0
    %v8465 = vand.u32 %v8141, 4294901760
    %8466 = vmatpush1.msra.mxu0 %v8465
    %8467 = vmatprep.subr.mxu0 0.0
    %v8468 = vand.u32 %v8140, 4294901760
    %8469 = vmatpush1.msra.mxu0 %v8468
    %8470 = vmatprep.subr.mxu0 0.0
    %8471 = vmatpush2.msra.mxu0 0.0
    %8472 = vmatprep.subr.mxu0 0.0
    %8473 = vmatpush2.msra.mxu0 0.0
    %8474 = vmatprep.subr.mxu0 0.0
    %8475 = vmatpush2.msra.mxu0 0.0
    %8476 = vmatprep.subr.mxu0 0.0
    %8477 = vmatpush2.msra.mxu0 0.0
    %8478 = vmatprep.subr.mxu0 0.0
    %8479 = vmatpush2.msra.mxu0 0.0
    %8480 = vmatprep.subr.mxu0 0.0
    %8481 = vmatpush2.msra.mxu0 0.0
    %8482 = vmatprep.subr.mxu0 0.0
    %8483 = vmatpush2.msra.mxu0 0.0
    %8484 = vmatprep.subr.mxu0 0.0
    %8485 = vmatpush2.msra.mxu0 0.0
    %8486 = vmatprep.subr.mxu0 0.0
    %8487 = vmatpush2.msra.mxu0 0.0
    %8488 = vmatprep.subr.mxu0 0.0
    %8489 = vmatpush2.msra.mxu0 0.0
    %8490 = vmatprep.subr.mxu0 0.0
    %8491 = vmatpush2.msra.mxu0 0.0
    %8492 = vmatprep.subr.mxu0 0.0
    %8493 = vmatpush2.msra.mxu0 0.0
    %8494 = vmatprep.subr.mxu0 0.0
    %8495 = vmatpush2.msra.mxu0 0.0
    %8496 = vmatprep.subr.mxu0 0.0
    %8497 = vmatpush2.msra.mxu0 0.0
    %8498 = vmatprep.subr.mxu0 0.0
    %8499 = vmatpush2.msra.mxu0 0.0
    %8500 = vmatprep.subr.mxu0 0.0
    %8501 = vmatpush2.msra.mxu0 0.0
    %8502 = vmatprep.mubr.f32.mxu0 0.0
    %v8503 = vand.u32 %v180, 4294901760
    %v8504 = vsub.f32 %v180, %v8503
    %v8505 = vand.u32 %v8504, 4294901760
    %8506 = vmatmul.mubr.f32.gmra.mxu0 %v8505
    %v8507 = vpop.f32.mrf.mxu0
    %v8508 = vadd.f32 %v8427, %v8507
    %v8509 = vpop.f32.mrf.mxu0
    %8510 = vdwg.mxu0
    %8511 = vmatprep.subr.mxu0 0.0
    %8512 = vmatpush1.msra.mxu0 0.0
    %8513 = vmatprep.subr.mxu0 0.0
    %8514 = vmatpush1.msra.mxu0 0.0
    %8515 = vmatprep.subr.mxu0 0.0
    %8516 = vmatpush1.msra.mxu0 0.0
    %8517 = vmatprep.subr.mxu0 0.0
    %8518 = vmatpush1.msra.mxu0 0.0
    %8519 = vmatprep.subr.mxu0 0.0
    %8520 = vmatpush1.msra.mxu0 0.0
    %8521 = vmatprep.subr.mxu0 0.0
    %8522 = vmatpush1.msra.mxu0 0.0
    %8523 = vmatprep.subr.mxu0 0.0
    %8524 = vmatpush1.msra.mxu0 0.0
    %8525 = vmatprep.subr.mxu0 0.0
    %8526 = vmatpush1.msra.mxu0 0.0
    %8527 = vmatprep.subr.mxu0 0.0
    %v8528 = vand.u32 %v8147, 4294901760
    %v8529 = vsub.f32 %v8147, %v8528
    %v8530 = vand.u32 %v8529, 4294901760
    %8531 = vmatpush1.msra.mxu0 %v8530
    %8532 = vmatprep.subr.mxu0 0.0
    %v8533 = vand.u32 %v8146, 4294901760
    %v8534 = vsub.f32 %v8146, %v8533
    %v8535 = vand.u32 %v8534, 4294901760
    %8536 = vmatpush1.msra.mxu0 %v8535
    %8537 = vmatprep.subr.mxu0 0.0
    %v8538 = vand.u32 %v8145, 4294901760
    %v8539 = vsub.f32 %v8145, %v8538
    %v8540 = vand.u32 %v8539, 4294901760
    %8541 = vmatpush1.msra.mxu0 %v8540
    %8542 = vmatprep.subr.mxu0 0.0
    %v8543 = vand.u32 %v8144, 4294901760
    %v8544 = vsub.f32 %v8144, %v8543
    %v8545 = vand.u32 %v8544, 4294901760
    %8546 = vmatpush1.msra.mxu0 %v8545
    %8547 = vmatprep.subr.mxu0 0.0
    %v8548 = vand.u32 %v8143, 4294901760
    %v8549 = vsub.f32 %v8143, %v8548
    %v8550 = vand.u32 %v8549, 4294901760
    %8551 = vmatpush1.msra.mxu0 %v8550
    %8552 = vmatprep.subr.mxu0 0.0
    %v8553 = vand.u32 %v8142, 4294901760
    %v8554 = vsub.f32 %v8142, %v8553
    %v8555 = vand.u32 %v8554, 4294901760
    %8556 = vmatpush1.msra.mxu0 %v8555
    %8557 = vmatprep.subr.mxu0 0.0
    %v8558 = vand.u32 %v8141, 4294901760
    %v8559 = vsub.f32 %v8141, %v8558
    %v8560 = vand.u32 %v8559, 4294901760
    %8561 = vmatpush1.msra.mxu0 %v8560
    %8562 = vmatprep.subr.mxu0 0.0
    %v8563 = vand.u32 %v8140, 4294901760
    %v8564 = vsub.f32 %v8140, %v8563
    %v8565 = vand.u32 %v8564, 4294901760
    %8566 = vmatpush1.msra.mxu0 %v8565
    %8567 = vmatprep.subr.mxu0 0.0
    %8568 = vmatpush2.msra.mxu0 0.0
    %8569 = vmatprep.subr.mxu0 0.0
    %8570 = vmatpush2.msra.mxu0 0.0
    %8571 = vmatprep.subr.mxu0 0.0
    %8572 = vmatpush2.msra.mxu0 0.0
    %8573 = vmatprep.subr.mxu0 0.0
    %8574 = vmatpush2.msra.mxu0 0.0
    %8575 = vmatprep.subr.mxu0 0.0
    %8576 = vmatpush2.msra.mxu0 0.0
    %8577 = vmatprep.subr.mxu0 0.0
    %8578 = vmatpush2.msra.mxu0 0.0
    %8579 = vmatprep.subr.mxu0 0.0
    %8580 = vmatpush2.msra.mxu0 0.0
    %8581 = vmatprep.subr.mxu0 0.0
    %8582 = vmatpush2.msra.mxu0 0.0
    %8583 = vmatprep.subr.mxu0 0.0
    %8584 = vmatpush2.msra.mxu0 0.0
    %8585 = vmatprep.subr.mxu0 0.0
    %8586 = vmatpush2.msra.mxu0 0.0
    %8587 = vmatprep.subr.mxu0 0.0
    %8588 = vmatpush2.msra.mxu0 0.0
    %8589 = vmatprep.subr.mxu0 0.0
    %8590 = vmatpush2.msra.mxu0 0.0
    %8591 = vmatprep.subr.mxu0 0.0
    %8592 = vmatpush2.msra.mxu0 0.0
    %8593 = vmatprep.subr.mxu0 0.0
    %8594 = vmatpush2.msra.mxu0 0.0
    %8595 = vmatprep.subr.mxu0 0.0
    %8596 = vmatpush2.msra.mxu0 0.0
    %8597 = vmatprep.subr.mxu0 0.0
    %8598 = vmatpush2.msra.mxu0 0.0
    %8599 = vmatprep.mubr.f32.mxu0 0.0
    %v8600 = vand.u32 %v180, 4294901760
    %8601 = vmatmul.mubr.f32.gmra.mxu0 %v8600
    %v8602 = vpop.f32.mrf.mxu0
    %v8603 = vadd.f32 %v8508, %v8602
    %v8604 = vpop.f32.mrf.mxu0
    %8605 = vdwg.mxu0
    %8606 = vmatprep.subr.mxu0 0.0
    %8607 = vmatpush1.msra.mxu0 0.0
    %8608 = vmatprep.subr.mxu0 0.0
    %8609 = vmatpush1.msra.mxu0 0.0
    %8610 = vmatprep.subr.mxu0 0.0
    %8611 = vmatpush1.msra.mxu0 0.0
    %8612 = vmatprep.subr.mxu0 0.0
    %8613 = vmatpush1.msra.mxu0 0.0
    %8614 = vmatprep.subr.mxu0 0.0
    %8615 = vmatpush1.msra.mxu0 0.0
    %8616 = vmatprep.subr.mxu0 0.0
    %8617 = vmatpush1.msra.mxu0 0.0
    %8618 = vmatprep.subr.mxu0 0.0
    %8619 = vmatpush1.msra.mxu0 0.0
    %8620 = vmatprep.subr.mxu0 0.0
    %8621 = vmatpush1.msra.mxu0 0.0
    %8622 = vmatprep.subr.mxu0 0.0
    %v8623 = vand.u32 %v8147, 4294901760
    %8624 = vmatpush1.msra.mxu0 %v8623
    %8625 = vmatprep.subr.mxu0 0.0
    %v8626 = vand.u32 %v8146, 4294901760
    %8627 = vmatpush1.msra.mxu0 %v8626
    %8628 = vmatprep.subr.mxu0 0.0
    %v8629 = vand.u32 %v8145, 4294901760
    %8630 = vmatpush1.msra.mxu0 %v8629
    %8631 = vmatprep.subr.mxu0 0.0
    %v8632 = vand.u32 %v8144, 4294901760
    %8633 = vmatpush1.msra.mxu0 %v8632
    %8634 = vmatprep.subr.mxu0 0.0
    %v8635 = vand.u32 %v8143, 4294901760
    %8636 = vmatpush1.msra.mxu0 %v8635
    %8637 = vmatprep.subr.mxu0 0.0
    %v8638 = vand.u32 %v8142, 4294901760
    %8639 = vmatpush1.msra.mxu0 %v8638
    %8640 = vmatprep.subr.mxu0 0.0
    %v8641 = vand.u32 %v8141, 4294901760
    %8642 = vmatpush1.msra.mxu0 %v8641
    %8643 = vmatprep.subr.mxu0 0.0
    %v8644 = vand.u32 %v8140, 4294901760
    %8645 = vmatpush1.msra.mxu0 %v8644
    %8646 = vmatprep.subr.mxu0 0.0
    %8647 = vmatpush2.msra.mxu0 0.0
    %8648 = vmatprep.subr.mxu0 0.0
    %8649 = vmatpush2.msra.mxu0 0.0
    %8650 = vmatprep.subr.mxu0 0.0
    %8651 = vmatpush2.msra.mxu0 0.0
    %8652 = vmatprep.subr.mxu0 0.0
    %8653 = vmatpush2.msra.mxu0 0.0
    %8654 = vmatprep.subr.mxu0 0.0
    %8655 = vmatpush2.msra.mxu0 0.0
    %8656 = vmatprep.subr.mxu0 0.0
    %8657 = vmatpush2.msra.mxu0 0.0
    %8658 = vmatprep.subr.mxu0 0.0
    %8659 = vmatpush2.msra.mxu0 0.0
    %8660 = vmatprep.subr.mxu0 0.0
    %8661 = vmatpush2.msra.mxu0 0.0
    %8662 = vmatprep.subr.mxu0 0.0
    %8663 = vmatpush2.msra.mxu0 0.0
    %8664 = vmatprep.subr.mxu0 0.0
    %8665 = vmatpush2.msra.mxu0 0.0
    %8666 = vmatprep.subr.mxu0 0.0
    %8667 = vmatpush2.msra.mxu0 0.0
    %8668 = vmatprep.subr.mxu0 0.0
    %8669 = vmatpush2.msra.mxu0 0.0
    %8670 = vmatprep.subr.mxu0 0.0
    %8671 = vmatpush2.msra.mxu0 0.0
    %8672 = vmatprep.subr.mxu0 0.0
    %8673 = vmatpush2.msra.mxu0 0.0
    %8674 = vmatprep.subr.mxu0 0.0
    %8675 = vmatpush2.msra.mxu0 0.0
    %8676 = vmatprep.subr.mxu0 0.0
    %8677 = vmatpush2.msra.mxu0 0.0
    %8678 = vmatprep.mubr.f32.mxu0 0.0
    %v8679 = vand.u32 %v180, 4294901760
    %8680 = vmatmul.mubr.f32.gmra.mxu0 %v8679
    %v8681 = vpop.f32.mrf.mxu0
    %v8682 = vadd.f32 %v8603, %v8681
    %v8683 = vpop.f32.mrf.mxu0
    %8684 = vdwg.mxu0
    %v8685 = vsub.f32 %v114, 15.0
    %v8686 = vsub.f32 %v115, 15.0
    %v8687 = vsub.f32 %v116, 15.0
    %v8688 = vsub.f32 %v117, 15.0
    %v8689 = vsub.f32 %v118, 15.0
    %v8690 = vsub.f32 %v119, 15.0
    %v8691 = vsub.f32 %v120, 15.0
    %v8692 = vsub.f32 %v121, 15.0
    %v8693 = vand.u32 2147483647, %v8685
    %v8694 = vand.u32 2147483647, %v8686
    %v8695 = vand.u32 2147483647, %v8687
    %v8696 = vand.u32 2147483647, %v8688
    %v8697 = vand.u32 2147483647, %v8689
    %v8698 = vand.u32 2147483647, %v8690
    %v8699 = vand.u32 2147483647, %v8691
    %v8700 = vand.u32 2147483647, %v8692
    %v8701 = vsub.f32 %v146, %v8693
    %v8702 = vsub.f32 %v147, %v8694
    %v8703 = vsub.f32 %v148, %v8695
    %v8704 = vsub.f32 %v149, %v8696
    %v8705 = vsub.f32 %v150, %v8697
    %v8706 = vsub.f32 %v151, %v8698
    %v8707 = vsub.f32 %v152, %v8699
    %v8708 = vsub.f32 %v153, %v8700
    %v8709 = vmax.f32 %v8701, 0.0
    %v8710 = vmax.f32 %v8702, 0.0
    %v8711 = vmax.f32 %v8703, 0.0
    %v8712 = vmax.f32 %v8704, 0.0
    %v8713 = vmax.f32 %v8705, 0.0
    %v8714 = vmax.f32 %v8706, 0.0
    %v8715 = vmax.f32 %v8707, 0.0
    %v8716 = vmax.f32 %v8708, 0.0
    %8717 = vmatprep.subr.mxu0 0.0
    %8718 = vmatpush1.msra.mxu0 0.0
    %8719 = vmatprep.subr.mxu0 0.0
    %8720 = vmatpush1.msra.mxu0 0.0
    %8721 = vmatprep.subr.mxu0 0.0
    %8722 = vmatpush1.msra.mxu0 0.0
    %8723 = vmatprep.subr.mxu0 0.0
    %8724 = vmatpush1.msra.mxu0 0.0
    %8725 = vmatprep.subr.mxu0 0.0
    %8726 = vmatpush1.msra.mxu0 0.0
    %8727 = vmatprep.subr.mxu0 0.0
    %8728 = vmatpush1.msra.mxu0 0.0
    %8729 = vmatprep.subr.mxu0 0.0
    %8730 = vmatpush1.msra.mxu0 0.0
    %8731 = vmatprep.subr.mxu0 0.0
    %8732 = vmatpush1.msra.mxu0 0.0
    %8733 = vmatprep.subr.mxu0 0.0
    %v8734 = vand.u32 %v8716, 4294901760
    %8735 = vmatpush1.msra.mxu0 %v8734
    %8736 = vmatprep.subr.mxu0 0.0
    %v8737 = vand.u32 %v8715, 4294901760
    %8738 = vmatpush1.msra.mxu0 %v8737
    %8739 = vmatprep.subr.mxu0 0.0
    %v8740 = vand.u32 %v8714, 4294901760
    %8741 = vmatpush1.msra.mxu0 %v8740
    %8742 = vmatprep.subr.mxu0 0.0
    %v8743 = vand.u32 %v8713, 4294901760
    %8744 = vmatpush1.msra.mxu0 %v8743
    %8745 = vmatprep.subr.mxu0 0.0
    %v8746 = vand.u32 %v8712, 4294901760
    %8747 = vmatpush1.msra.mxu0 %v8746
    %8748 = vmatprep.subr.mxu0 0.0
    %v8749 = vand.u32 %v8711, 4294901760
    %8750 = vmatpush1.msra.mxu0 %v8749
    %8751 = vmatprep.subr.mxu0 0.0
    %v8752 = vand.u32 %v8710, 4294901760
    %8753 = vmatpush1.msra.mxu0 %v8752
    %8754 = vmatprep.subr.mxu0 0.0
    %v8755 = vand.u32 %v8709, 4294901760
    %8756 = vmatpush1.msra.mxu0 %v8755
    %8757 = vmatprep.subr.mxu0 0.0
    %8758 = vmatpush2.msra.mxu0 0.0
    %8759 = vmatprep.subr.mxu0 0.0
    %8760 = vmatpush2.msra.mxu0 0.0
    %8761 = vmatprep.subr.mxu0 0.0
    %8762 = vmatpush2.msra.mxu0 0.0
    %8763 = vmatprep.subr.mxu0 0.0
    %8764 = vmatpush2.msra.mxu0 0.0
    %8765 = vmatprep.subr.mxu0 0.0
    %8766 = vmatpush2.msra.mxu0 0.0
    %8767 = vmatprep.subr.mxu0 0.0
    %8768 = vmatpush2.msra.mxu0 0.0
    %8769 = vmatprep.subr.mxu0 0.0
    %8770 = vmatpush2.msra.mxu0 0.0
    %8771 = vmatprep.subr.mxu0 0.0
    %8772 = vmatpush2.msra.mxu0 0.0
    %8773 = vmatprep.subr.mxu0 0.0
    %8774 = vmatpush2.msra.mxu0 0.0
    %8775 = vmatprep.subr.mxu0 0.0
    %8776 = vmatpush2.msra.mxu0 0.0
    %8777 = vmatprep.subr.mxu0 0.0
    %8778 = vmatpush2.msra.mxu0 0.0
    %8779 = vmatprep.subr.mxu0 0.0
    %8780 = vmatpush2.msra.mxu0 0.0
    %8781 = vmatprep.subr.mxu0 0.0
    %8782 = vmatpush2.msra.mxu0 0.0
    %8783 = vmatprep.subr.mxu0 0.0
    %8784 = vmatpush2.msra.mxu0 0.0
    %8785 = vmatprep.subr.mxu0 0.0
    %8786 = vmatpush2.msra.mxu0 0.0
    %8787 = vmatprep.subr.mxu0 0.0
    %8788 = vmatpush2.msra.mxu0 0.0
    %8789 = vmatprep.mubr.f32.mxu0 0.0
    %v8790 = vand.u32 %v180, 4294901760
    %v8791 = vsub.f32 %v180, %v8790
    %v8792 = vand.u32 %v8791, 4294901760
    %v8793 = vsub.f32 %v8791, %v8792
    %v8794 = vand.u32 %v8793, 4294901760
    %8795 = vmatmul.mubr.f32.gmra.mxu0 %v8794
    %v8796 = vpop.f32.mrf.mxu0
    %v8797 = vadd.f32 0.0, %v8796
    %v8798 = vpop.f32.mrf.mxu0
    %8799 = vdwg.mxu0
    %8800 = vmatprep.subr.mxu0 0.0
    %8801 = vmatpush1.msra.mxu0 0.0
    %8802 = vmatprep.subr.mxu0 0.0
    %8803 = vmatpush1.msra.mxu0 0.0
    %8804 = vmatprep.subr.mxu0 0.0
    %8805 = vmatpush1.msra.mxu0 0.0
    %8806 = vmatprep.subr.mxu0 0.0
    %8807 = vmatpush1.msra.mxu0 0.0
    %8808 = vmatprep.subr.mxu0 0.0
    %8809 = vmatpush1.msra.mxu0 0.0
    %8810 = vmatprep.subr.mxu0 0.0
    %8811 = vmatpush1.msra.mxu0 0.0
    %8812 = vmatprep.subr.mxu0 0.0
    %8813 = vmatpush1.msra.mxu0 0.0
    %8814 = vmatprep.subr.mxu0 0.0
    %8815 = vmatpush1.msra.mxu0 0.0
    %8816 = vmatprep.subr.mxu0 0.0
    %v8817 = vand.u32 %v8716, 4294901760
    %v8818 = vsub.f32 %v8716, %v8817
    %v8819 = vand.u32 %v8818, 4294901760
    %v8820 = vsub.f32 %v8818, %v8819
    %v8821 = vand.u32 %v8820, 4294901760
    %8822 = vmatpush1.msra.mxu0 %v8821
    %8823 = vmatprep.subr.mxu0 0.0
    %v8824 = vand.u32 %v8715, 4294901760
    %v8825 = vsub.f32 %v8715, %v8824
    %v8826 = vand.u32 %v8825, 4294901760
    %v8827 = vsub.f32 %v8825, %v8826
    %v8828 = vand.u32 %v8827, 4294901760
    %8829 = vmatpush1.msra.mxu0 %v8828
    %8830 = vmatprep.subr.mxu0 0.0
    %v8831 = vand.u32 %v8714, 4294901760
    %v8832 = vsub.f32 %v8714, %v8831
    %v8833 = vand.u32 %v8832, 4294901760
    %v8834 = vsub.f32 %v8832, %v8833
    %v8835 = vand.u32 %v8834, 4294901760
    %8836 = vmatpush1.msra.mxu0 %v8835
    %8837 = vmatprep.subr.mxu0 0.0
    %v8838 = vand.u32 %v8713, 4294901760
    %v8839 = vsub.f32 %v8713, %v8838
    %v8840 = vand.u32 %v8839, 4294901760
    %v8841 = vsub.f32 %v8839, %v8840
    %v8842 = vand.u32 %v8841, 4294901760
    %8843 = vmatpush1.msra.mxu0 %v8842
    %8844 = vmatprep.subr.mxu0 0.0
    %v8845 = vand.u32 %v8712, 4294901760
    %v8846 = vsub.f32 %v8712, %v8845
    %v8847 = vand.u32 %v8846, 4294901760
    %v8848 = vsub.f32 %v8846, %v8847
    %v8849 = vand.u32 %v8848, 4294901760
    %8850 = vmatpush1.msra.mxu0 %v8849
    %8851 = vmatprep.subr.mxu0 0.0
    %v8852 = vand.u32 %v8711, 4294901760
    %v8853 = vsub.f32 %v8711, %v8852
    %v8854 = vand.u32 %v8853, 4294901760
    %v8855 = vsub.f32 %v8853, %v8854
    %v8856 = vand.u32 %v8855, 4294901760
    %8857 = vmatpush1.msra.mxu0 %v8856
    %8858 = vmatprep.subr.mxu0 0.0
    %v8859 = vand.u32 %v8710, 4294901760
    %v8860 = vsub.f32 %v8710, %v8859
    %v8861 = vand.u32 %v8860, 4294901760
    %v8862 = vsub.f32 %v8860, %v8861
    %v8863 = vand.u32 %v8862, 4294901760
    %8864 = vmatpush1.msra.mxu0 %v8863
    %8865 = vmatprep.subr.mxu0 0.0
    %v8866 = vand.u32 %v8709, 4294901760
    %v8867 = vsub.f32 %v8709, %v8866
    %v8868 = vand.u32 %v8867, 4294901760
    %v8869 = vsub.f32 %v8867, %v8868
    %v8870 = vand.u32 %v8869, 4294901760
    %8871 = vmatpush1.msra.mxu0 %v8870
    %8872 = vmatprep.subr.mxu0 0.0
    %8873 = vmatpush2.msra.mxu0 0.0
    %8874 = vmatprep.subr.mxu0 0.0
    %8875 = vmatpush2.msra.mxu0 0.0
    %8876 = vmatprep.subr.mxu0 0.0
    %8877 = vmatpush2.msra.mxu0 0.0
    %8878 = vmatprep.subr.mxu0 0.0
    %8879 = vmatpush2.msra.mxu0 0.0
    %8880 = vmatprep.subr.mxu0 0.0
    %8881 = vmatpush2.msra.mxu0 0.0
    %8882 = vmatprep.subr.mxu0 0.0
    %8883 = vmatpush2.msra.mxu0 0.0
    %8884 = vmatprep.subr.mxu0 0.0
    %8885 = vmatpush2.msra.mxu0 0.0
    %8886 = vmatprep.subr.mxu0 0.0
    %8887 = vmatpush2.msra.mxu0 0.0
    %8888 = vmatprep.subr.mxu0 0.0
    %8889 = vmatpush2.msra.mxu0 0.0
    %8890 = vmatprep.subr.mxu0 0.0
    %8891 = vmatpush2.msra.mxu0 0.0
    %8892 = vmatprep.subr.mxu0 0.0
    %8893 = vmatpush2.msra.mxu0 0.0
    %8894 = vmatprep.subr.mxu0 0.0
    %8895 = vmatpush2.msra.mxu0 0.0
    %8896 = vmatprep.subr.mxu0 0.0
    %8897 = vmatpush2.msra.mxu0 0.0
    %8898 = vmatprep.subr.mxu0 0.0
    %8899 = vmatpush2.msra.mxu0 0.0
    %8900 = vmatprep.subr.mxu0 0.0
    %8901 = vmatpush2.msra.mxu0 0.0
    %8902 = vmatprep.subr.mxu0 0.0
    %8903 = vmatpush2.msra.mxu0 0.0
    %8904 = vmatprep.mubr.f32.mxu0 0.0
    %v8905 = vand.u32 %v180, 4294901760
    %8906 = vmatmul.mubr.f32.gmra.mxu0 %v8905
    %v8907 = vpop.f32.mrf.mxu0
    %v8908 = vadd.f32 %v8797, %v8907
    %v8909 = vpop.f32.mrf.mxu0
    %8910 = vdwg.mxu0
    %8911 = vmatprep.subr.mxu0 0.0
    %8912 = vmatpush1.msra.mxu0 0.0
    %8913 = vmatprep.subr.mxu0 0.0
    %8914 = vmatpush1.msra.mxu0 0.0
    %8915 = vmatprep.subr.mxu0 0.0
    %8916 = vmatpush1.msra.mxu0 0.0
    %8917 = vmatprep.subr.mxu0 0.0
    %8918 = vmatpush1.msra.mxu0 0.0
    %8919 = vmatprep.subr.mxu0 0.0
    %8920 = vmatpush1.msra.mxu0 0.0
    %8921 = vmatprep.subr.mxu0 0.0
    %8922 = vmatpush1.msra.mxu0 0.0
    %8923 = vmatprep.subr.mxu0 0.0
    %8924 = vmatpush1.msra.mxu0 0.0
    %8925 = vmatprep.subr.mxu0 0.0
    %8926 = vmatpush1.msra.mxu0 0.0
    %8927 = vmatprep.subr.mxu0 0.0
    %v8928 = vand.u32 %v8716, 4294901760
    %v8929 = vsub.f32 %v8716, %v8928
    %8930 = vmatpush1.msra.mxu0 %v8929
    %8931 = vmatprep.subr.mxu0 0.0
    %v8932 = vand.u32 %v8715, 4294901760
    %v8933 = vsub.f32 %v8715, %v8932
    %8934 = vmatpush1.msra.mxu0 %v8933
    %8935 = vmatprep.subr.mxu0 0.0
    %v8936 = vand.u32 %v8714, 4294901760
    %v8937 = vsub.f32 %v8714, %v8936
    %8938 = vmatpush1.msra.mxu0 %v8937
    %8939 = vmatprep.subr.mxu0 0.0
    %v8940 = vand.u32 %v8713, 4294901760
    %v8941 = vsub.f32 %v8713, %v8940
    %8942 = vmatpush1.msra.mxu0 %v8941
    %8943 = vmatprep.subr.mxu0 0.0
    %v8944 = vand.u32 %v8712, 4294901760
    %v8945 = vsub.f32 %v8712, %v8944
    %8946 = vmatpush1.msra.mxu0 %v8945
    %8947 = vmatprep.subr.mxu0 0.0
    %v8948 = vand.u32 %v8711, 4294901760
    %v8949 = vsub.f32 %v8711, %v8948
    %8950 = vmatpush1.msra.mxu0 %v8949
    %8951 = vmatprep.subr.mxu0 0.0
    %v8952 = vand.u32 %v8710, 4294901760
    %v8953 = vsub.f32 %v8710, %v8952
    %8954 = vmatpush1.msra.mxu0 %v8953
    %8955 = vmatprep.subr.mxu0 0.0
    %v8956 = vand.u32 %v8709, 4294901760
    %v8957 = vsub.f32 %v8709, %v8956
    %8958 = vmatpush1.msra.mxu0 %v8957
    %8959 = vmatprep.subr.mxu0 0.0
    %8960 = vmatpush2.msra.mxu0 0.0
    %8961 = vmatprep.subr.mxu0 0.0
    %8962 = vmatpush2.msra.mxu0 0.0
    %8963 = vmatprep.subr.mxu0 0.0
    %8964 = vmatpush2.msra.mxu0 0.0
    %8965 = vmatprep.subr.mxu0 0.0
    %8966 = vmatpush2.msra.mxu0 0.0
    %8967 = vmatprep.subr.mxu0 0.0
    %8968 = vmatpush2.msra.mxu0 0.0
    %8969 = vmatprep.subr.mxu0 0.0
    %8970 = vmatpush2.msra.mxu0 0.0
    %8971 = vmatprep.subr.mxu0 0.0
    %8972 = vmatpush2.msra.mxu0 0.0
    %8973 = vmatprep.subr.mxu0 0.0
    %8974 = vmatpush2.msra.mxu0 0.0
    %8975 = vmatprep.subr.mxu0 0.0
    %8976 = vmatpush2.msra.mxu0 0.0
    %8977 = vmatprep.subr.mxu0 0.0
    %8978 = vmatpush2.msra.mxu0 0.0
    %8979 = vmatprep.subr.mxu0 0.0
    %8980 = vmatpush2.msra.mxu0 0.0
    %8981 = vmatprep.subr.mxu0 0.0
    %8982 = vmatpush2.msra.mxu0 0.0
    %8983 = vmatprep.subr.mxu0 0.0
    %8984 = vmatpush2.msra.mxu0 0.0
    %8985 = vmatprep.subr.mxu0 0.0
    %8986 = vmatpush2.msra.mxu0 0.0
    %8987 = vmatprep.subr.mxu0 0.0
    %8988 = vmatpush2.msra.mxu0 0.0
    %8989 = vmatprep.subr.mxu0 0.0
    %8990 = vmatpush2.msra.mxu0 0.0
    %8991 = vmatprep.mubr.f32.mxu0 0.0
    %v8992 = vand.u32 %v180, 4294901760
    %v8993 = vsub.f32 %v180, %v8992
    %8994 = vmatmul.mubr.f32.gmra.mxu0 %v8993
    %v8995 = vpop.f32.mrf.mxu0
    %v8996 = vadd.f32 %v8908, %v8995
    %v8997 = vpop.f32.mrf.mxu0
    %8998 = vdwg.mxu0
    %8999 = vmatprep.subr.mxu0 0.0
    %9000 = vmatpush1.msra.mxu0 0.0
    %9001 = vmatprep.subr.mxu0 0.0
    %9002 = vmatpush1.msra.mxu0 0.0
    %9003 = vmatprep.subr.mxu0 0.0
    %9004 = vmatpush1.msra.mxu0 0.0
    %9005 = vmatprep.subr.mxu0 0.0
    %9006 = vmatpush1.msra.mxu0 0.0
    %9007 = vmatprep.subr.mxu0 0.0
    %9008 = vmatpush1.msra.mxu0 0.0
    %9009 = vmatprep.subr.mxu0 0.0
    %9010 = vmatpush1.msra.mxu0 0.0
    %9011 = vmatprep.subr.mxu0 0.0
    %9012 = vmatpush1.msra.mxu0 0.0
    %9013 = vmatprep.subr.mxu0 0.0
    %9014 = vmatpush1.msra.mxu0 0.0
    %9015 = vmatprep.subr.mxu0 0.0
    %v9016 = vand.u32 %v8716, 4294901760
    %9017 = vmatpush1.msra.mxu0 %v9016
    %9018 = vmatprep.subr.mxu0 0.0
    %v9019 = vand.u32 %v8715, 4294901760
    %9020 = vmatpush1.msra.mxu0 %v9019
    %9021 = vmatprep.subr.mxu0 0.0
    %v9022 = vand.u32 %v8714, 4294901760
    %9023 = vmatpush1.msra.mxu0 %v9022
    %9024 = vmatprep.subr.mxu0 0.0
    %v9025 = vand.u32 %v8713, 4294901760
    %9026 = vmatpush1.msra.mxu0 %v9025
    %9027 = vmatprep.subr.mxu0 0.0
    %v9028 = vand.u32 %v8712, 4294901760
    %9029 = vmatpush1.msra.mxu0 %v9028
    %9030 = vmatprep.subr.mxu0 0.0
    %v9031 = vand.u32 %v8711, 4294901760
    %9032 = vmatpush1.msra.mxu0 %v9031
    %9033 = vmatprep.subr.mxu0 0.0
    %v9034 = vand.u32 %v8710, 4294901760
    %9035 = vmatpush1.msra.mxu0 %v9034
    %9036 = vmatprep.subr.mxu0 0.0
    %v9037 = vand.u32 %v8709, 4294901760
    %9038 = vmatpush1.msra.mxu0 %v9037
    %9039 = vmatprep.subr.mxu0 0.0
    %9040 = vmatpush2.msra.mxu0 0.0
    %9041 = vmatprep.subr.mxu0 0.0
    %9042 = vmatpush2.msra.mxu0 0.0
    %9043 = vmatprep.subr.mxu0 0.0
    %9044 = vmatpush2.msra.mxu0 0.0
    %9045 = vmatprep.subr.mxu0 0.0
    %9046 = vmatpush2.msra.mxu0 0.0
    %9047 = vmatprep.subr.mxu0 0.0
    %9048 = vmatpush2.msra.mxu0 0.0
    %9049 = vmatprep.subr.mxu0 0.0
    %9050 = vmatpush2.msra.mxu0 0.0
    %9051 = vmatprep.subr.mxu0 0.0
    %9052 = vmatpush2.msra.mxu0 0.0
    %9053 = vmatprep.subr.mxu0 0.0
    %9054 = vmatpush2.msra.mxu0 0.0
    %9055 = vmatprep.subr.mxu0 0.0
    %9056 = vmatpush2.msra.mxu0 0.0
    %9057 = vmatprep.subr.mxu0 0.0
    %9058 = vmatpush2.msra.mxu0 0.0
    %9059 = vmatprep.subr.mxu0 0.0
    %9060 = vmatpush2.msra.mxu0 0.0
    %9061 = vmatprep.subr.mxu0 0.0
    %9062 = vmatpush2.msra.mxu0 0.0
    %9063 = vmatprep.subr.mxu0 0.0
    %9064 = vmatpush2.msra.mxu0 0.0
    %9065 = vmatprep.subr.mxu0 0.0
    %9066 = vmatpush2.msra.mxu0 0.0
    %9067 = vmatprep.subr.mxu0 0.0
    %9068 = vmatpush2.msra.mxu0 0.0
    %9069 = vmatprep.subr.mxu0 0.0
    %9070 = vmatpush2.msra.mxu0 0.0
    %9071 = vmatprep.mubr.f32.mxu0 0.0
    %v9072 = vand.u32 %v180, 4294901760
    %v9073 = vsub.f32 %v180, %v9072
    %v9074 = vand.u32 %v9073, 4294901760
    %9075 = vmatmul.mubr.f32.gmra.mxu0 %v9074
    %v9076 = vpop.f32.mrf.mxu0
    %v9077 = vadd.f32 %v8996, %v9076
    %v9078 = vpop.f32.mrf.mxu0
    %9079 = vdwg.mxu0
    %9080 = vmatprep.subr.mxu0 0.0
    %9081 = vmatpush1.msra.mxu0 0.0
    %9082 = vmatprep.subr.mxu0 0.0
    %9083 = vmatpush1.msra.mxu0 0.0
    %9084 = vmatprep.subr.mxu0 0.0
    %9085 = vmatpush1.msra.mxu0 0.0
    %9086 = vmatprep.subr.mxu0 0.0
    %9087 = vmatpush1.msra.mxu0 0.0
    %9088 = vmatprep.subr.mxu0 0.0
    %9089 = vmatpush1.msra.mxu0 0.0
    %9090 = vmatprep.subr.mxu0 0.0
    %9091 = vmatpush1.msra.mxu0 0.0
    %9092 = vmatprep.subr.mxu0 0.0
    %9093 = vmatpush1.msra.mxu0 0.0
    %9094 = vmatprep.subr.mxu0 0.0
    %9095 = vmatpush1.msra.mxu0 0.0
    %9096 = vmatprep.subr.mxu0 0.0
    %v9097 = vand.u32 %v8716, 4294901760
    %v9098 = vsub.f32 %v8716, %v9097
    %v9099 = vand.u32 %v9098, 4294901760
    %9100 = vmatpush1.msra.mxu0 %v9099
    %9101 = vmatprep.subr.mxu0 0.0
    %v9102 = vand.u32 %v8715, 4294901760
    %v9103 = vsub.f32 %v8715, %v9102
    %v9104 = vand.u32 %v9103, 4294901760
    %9105 = vmatpush1.msra.mxu0 %v9104
    %9106 = vmatprep.subr.mxu0 0.0
    %v9107 = vand.u32 %v8714, 4294901760
    %v9108 = vsub.f32 %v8714, %v9107
    %v9109 = vand.u32 %v9108, 4294901760
    %9110 = vmatpush1.msra.mxu0 %v9109
    %9111 = vmatprep.subr.mxu0 0.0
    %v9112 = vand.u32 %v8713, 4294901760
    %v9113 = vsub.f32 %v8713, %v9112
    %v9114 = vand.u32 %v9113, 4294901760
    %9115 = vmatpush1.msra.mxu0 %v9114
    %9116 = vmatprep.subr.mxu0 0.0
    %v9117 = vand.u32 %v8712, 4294901760
    %v9118 = vsub.f32 %v8712, %v9117
    %v9119 = vand.u32 %v9118, 4294901760
    %9120 = vmatpush1.msra.mxu0 %v9119
    %9121 = vmatprep.subr.mxu0 0.0
    %v9122 = vand.u32 %v8711, 4294901760
    %v9123 = vsub.f32 %v8711, %v9122
    %v9124 = vand.u32 %v9123, 4294901760
    %9125 = vmatpush1.msra.mxu0 %v9124
    %9126 = vmatprep.subr.mxu0 0.0
    %v9127 = vand.u32 %v8710, 4294901760
    %v9128 = vsub.f32 %v8710, %v9127
    %v9129 = vand.u32 %v9128, 4294901760
    %9130 = vmatpush1.msra.mxu0 %v9129
    %9131 = vmatprep.subr.mxu0 0.0
    %v9132 = vand.u32 %v8709, 4294901760
    %v9133 = vsub.f32 %v8709, %v9132
    %v9134 = vand.u32 %v9133, 4294901760
    %9135 = vmatpush1.msra.mxu0 %v9134
    %9136 = vmatprep.subr.mxu0 0.0
    %9137 = vmatpush2.msra.mxu0 0.0
    %9138 = vmatprep.subr.mxu0 0.0
    %9139 = vmatpush2.msra.mxu0 0.0
    %9140 = vmatprep.subr.mxu0 0.0
    %9141 = vmatpush2.msra.mxu0 0.0
    %9142 = vmatprep.subr.mxu0 0.0
    %9143 = vmatpush2.msra.mxu0 0.0
    %9144 = vmatprep.subr.mxu0 0.0
    %9145 = vmatpush2.msra.mxu0 0.0
    %9146 = vmatprep.subr.mxu0 0.0
    %9147 = vmatpush2.msra.mxu0 0.0
    %9148 = vmatprep.subr.mxu0 0.0
    %9149 = vmatpush2.msra.mxu0 0.0
    %9150 = vmatprep.subr.mxu0 0.0
    %9151 = vmatpush2.msra.mxu0 0.0
    %9152 = vmatprep.subr.mxu0 0.0
    %9153 = vmatpush2.msra.mxu0 0.0
    %9154 = vmatprep.subr.mxu0 0.0
    %9155 = vmatpush2.msra.mxu0 0.0
    %9156 = vmatprep.subr.mxu0 0.0
    %9157 = vmatpush2.msra.mxu0 0.0
    %9158 = vmatprep.subr.mxu0 0.0
    %9159 = vmatpush2.msra.mxu0 0.0
    %9160 = vmatprep.subr.mxu0 0.0
    %9161 = vmatpush2.msra.mxu0 0.0
    %9162 = vmatprep.subr.mxu0 0.0
    %9163 = vmatpush2.msra.mxu0 0.0
    %9164 = vmatprep.subr.mxu0 0.0
    %9165 = vmatpush2.msra.mxu0 0.0
    %9166 = vmatprep.subr.mxu0 0.0
    %9167 = vmatpush2.msra.mxu0 0.0
    %9168 = vmatprep.mubr.f32.mxu0 0.0
    %v9169 = vand.u32 %v180, 4294901760
    %9170 = vmatmul.mubr.f32.gmra.mxu0 %v9169
    %v9171 = vpop.f32.mrf.mxu0
    %v9172 = vadd.f32 %v9077, %v9171
    %v9173 = vpop.f32.mrf.mxu0
    %9174 = vdwg.mxu0
    %9175 = vmatprep.subr.mxu0 0.0
    %9176 = vmatpush1.msra.mxu0 0.0
    %9177 = vmatprep.subr.mxu0 0.0
    %9178 = vmatpush1.msra.mxu0 0.0
    %9179 = vmatprep.subr.mxu0 0.0
    %9180 = vmatpush1.msra.mxu0 0.0
    %9181 = vmatprep.subr.mxu0 0.0
    %9182 = vmatpush1.msra.mxu0 0.0
    %9183 = vmatprep.subr.mxu0 0.0
    %9184 = vmatpush1.msra.mxu0 0.0
    %9185 = vmatprep.subr.mxu0 0.0
    %9186 = vmatpush1.msra.mxu0 0.0
    %9187 = vmatprep.subr.mxu0 0.0
    %9188 = vmatpush1.msra.mxu0 0.0
    %9189 = vmatprep.subr.mxu0 0.0
    %9190 = vmatpush1.msra.mxu0 0.0
    %9191 = vmatprep.subr.mxu0 0.0
    %v9192 = vand.u32 %v8716, 4294901760
    %9193 = vmatpush1.msra.mxu0 %v9192
    %9194 = vmatprep.subr.mxu0 0.0
    %v9195 = vand.u32 %v8715, 4294901760
    %9196 = vmatpush1.msra.mxu0 %v9195
    %9197 = vmatprep.subr.mxu0 0.0
    %v9198 = vand.u32 %v8714, 4294901760
    %9199 = vmatpush1.msra.mxu0 %v9198
    %9200 = vmatprep.subr.mxu0 0.0
    %v9201 = vand.u32 %v8713, 4294901760
    %9202 = vmatpush1.msra.mxu0 %v9201
    %9203 = vmatprep.subr.mxu0 0.0
    %v9204 = vand.u32 %v8712, 4294901760
    %9205 = vmatpush1.msra.mxu0 %v9204
    %9206 = vmatprep.subr.mxu0 0.0
    %v9207 = vand.u32 %v8711, 4294901760
    %9208 = vmatpush1.msra.mxu0 %v9207
    %9209 = vmatprep.subr.mxu0 0.0
    %v9210 = vand.u32 %v8710, 4294901760
    %9211 = vmatpush1.msra.mxu0 %v9210
    %9212 = vmatprep.subr.mxu0 0.0
    %v9213 = vand.u32 %v8709, 4294901760
    %9214 = vmatpush1.msra.mxu0 %v9213
    %9215 = vmatprep.subr.mxu0 0.0
    %9216 = vmatpush2.msra.mxu0 0.0
    %9217 = vmatprep.subr.mxu0 0.0
    %9218 = vmatpush2.msra.mxu0 0.0
    %9219 = vmatprep.subr.mxu0 0.0
    %9220 = vmatpush2.msra.mxu0 0.0
    %9221 = vmatprep.subr.mxu0 0.0
    %9222 = vmatpush2.msra.mxu0 0.0
    %9223 = vmatprep.subr.mxu0 0.0
    %9224 = vmatpush2.msra.mxu0 0.0
    %9225 = vmatprep.subr.mxu0 0.0
    %9226 = vmatpush2.msra.mxu0 0.0
    %9227 = vmatprep.subr.mxu0 0.0
    %9228 = vmatpush2.msra.mxu0 0.0
    %9229 = vmatprep.subr.mxu0 0.0
    %9230 = vmatpush2.msra.mxu0 0.0
    %9231 = vmatprep.subr.mxu0 0.0
    %9232 = vmatpush2.msra.mxu0 0.0
    %9233 = vmatprep.subr.mxu0 0.0
    %9234 = vmatpush2.msra.mxu0 0.0
    %9235 = vmatprep.subr.mxu0 0.0
    %9236 = vmatpush2.msra.mxu0 0.0
    %9237 = vmatprep.subr.mxu0 0.0
    %9238 = vmatpush2.msra.mxu0 0.0
    %9239 = vmatprep.subr.mxu0 0.0
    %9240 = vmatpush2.msra.mxu0 0.0
    %9241 = vmatprep.subr.mxu0 0.0
    %9242 = vmatpush2.msra.mxu0 0.0
    %9243 = vmatprep.subr.mxu0 0.0
    %9244 = vmatpush2.msra.mxu0 0.0
    %9245 = vmatprep.subr.mxu0 0.0
    %9246 = vmatpush2.msra.mxu0 0.0
    %9247 = vmatprep.mubr.f32.mxu0 0.0
    %v9248 = vand.u32 %v180, 4294901760
    %9249 = vmatmul.mubr.f32.gmra.mxu0 %v9248
    %v9250 = vpop.f32.mrf.mxu0
    %v9251 = vadd.f32 %v9172, %v9250
    %v9252 = vpop.f32.mrf.mxu0
    %9253 = vdwg.mxu0
    %v9254 = vsub.f32 %v114, 16.0
    %v9255 = vsub.f32 %v115, 16.0
    %v9256 = vsub.f32 %v116, 16.0
    %v9257 = vsub.f32 %v117, 16.0
    %v9258 = vsub.f32 %v118, 16.0
    %v9259 = vsub.f32 %v119, 16.0
    %v9260 = vsub.f32 %v120, 16.0
    %v9261 = vsub.f32 %v121, 16.0
    %v9262 = vand.u32 2147483647, %v9254
    %v9263 = vand.u32 2147483647, %v9255
    %v9264 = vand.u32 2147483647, %v9256
    %v9265 = vand.u32 2147483647, %v9257
    %v9266 = vand.u32 2147483647, %v9258
    %v9267 = vand.u32 2147483647, %v9259
    %v9268 = vand.u32 2147483647, %v9260
    %v9269 = vand.u32 2147483647, %v9261
    %v9270 = vsub.f32 %v146, %v9262
    %v9271 = vsub.f32 %v147, %v9263
    %v9272 = vsub.f32 %v148, %v9264
    %v9273 = vsub.f32 %v149, %v9265
    %v9274 = vsub.f32 %v150, %v9266
    %v9275 = vsub.f32 %v151, %v9267
    %v9276 = vsub.f32 %v152, %v9268
    %v9277 = vsub.f32 %v153, %v9269
    %v9278 = vmax.f32 %v9270, 0.0
    %v9279 = vmax.f32 %v9271, 0.0
    %v9280 = vmax.f32 %v9272, 0.0
    %v9281 = vmax.f32 %v9273, 0.0
    %v9282 = vmax.f32 %v9274, 0.0
    %v9283 = vmax.f32 %v9275, 0.0
    %v9284 = vmax.f32 %v9276, 0.0
    %v9285 = vmax.f32 %v9277, 0.0
    %9286 = vmatprep.subr.mxu0 0.0
    %9287 = vmatpush1.msra.mxu0 0.0
    %9288 = vmatprep.subr.mxu0 0.0
    %9289 = vmatpush1.msra.mxu0 0.0
    %9290 = vmatprep.subr.mxu0 0.0
    %9291 = vmatpush1.msra.mxu0 0.0
    %9292 = vmatprep.subr.mxu0 0.0
    %9293 = vmatpush1.msra.mxu0 0.0
    %9294 = vmatprep.subr.mxu0 0.0
    %9295 = vmatpush1.msra.mxu0 0.0
    %9296 = vmatprep.subr.mxu0 0.0
    %9297 = vmatpush1.msra.mxu0 0.0
    %9298 = vmatprep.subr.mxu0 0.0
    %9299 = vmatpush1.msra.mxu0 0.0
    %9300 = vmatprep.subr.mxu0 0.0
    %9301 = vmatpush1.msra.mxu0 0.0
    %9302 = vmatprep.subr.mxu0 0.0
    %v9303 = vand.u32 %v9285, 4294901760
    %9304 = vmatpush1.msra.mxu0 %v9303
    %9305 = vmatprep.subr.mxu0 0.0
    %v9306 = vand.u32 %v9284, 4294901760
    %9307 = vmatpush1.msra.mxu0 %v9306
    %9308 = vmatprep.subr.mxu0 0.0
    %v9309 = vand.u32 %v9283, 4294901760
    %9310 = vmatpush1.msra.mxu0 %v9309
    %9311 = vmatprep.subr.mxu0 0.0
    %v9312 = vand.u32 %v9282, 4294901760
    %9313 = vmatpush1.msra.mxu0 %v9312
    %9314 = vmatprep.subr.mxu0 0.0
    %v9315 = vand.u32 %v9281, 4294901760
    %9316 = vmatpush1.msra.mxu0 %v9315
    %9317 = vmatprep.subr.mxu0 0.0
    %v9318 = vand.u32 %v9280, 4294901760
    %9319 = vmatpush1.msra.mxu0 %v9318
    %9320 = vmatprep.subr.mxu0 0.0
    %v9321 = vand.u32 %v9279, 4294901760
    %9322 = vmatpush1.msra.mxu0 %v9321
    %9323 = vmatprep.subr.mxu0 0.0
    %v9324 = vand.u32 %v9278, 4294901760
    %9325 = vmatpush1.msra.mxu0 %v9324
    %9326 = vmatprep.subr.mxu0 0.0
    %9327 = vmatpush2.msra.mxu0 0.0
    %9328 = vmatprep.subr.mxu0 0.0
    %9329 = vmatpush2.msra.mxu0 0.0
    %9330 = vmatprep.subr.mxu0 0.0
    %9331 = vmatpush2.msra.mxu0 0.0
    %9332 = vmatprep.subr.mxu0 0.0
    %9333 = vmatpush2.msra.mxu0 0.0
    %9334 = vmatprep.subr.mxu0 0.0
    %9335 = vmatpush2.msra.mxu0 0.0
    %9336 = vmatprep.subr.mxu0 0.0
    %9337 = vmatpush2.msra.mxu0 0.0
    %9338 = vmatprep.subr.mxu0 0.0
    %9339 = vmatpush2.msra.mxu0 0.0
    %9340 = vmatprep.subr.mxu0 0.0
    %9341 = vmatpush2.msra.mxu0 0.0
    %9342 = vmatprep.subr.mxu0 0.0
    %9343 = vmatpush2.msra.mxu0 0.0
    %9344 = vmatprep.subr.mxu0 0.0
    %9345 = vmatpush2.msra.mxu0 0.0
    %9346 = vmatprep.subr.mxu0 0.0
    %9347 = vmatpush2.msra.mxu0 0.0
    %9348 = vmatprep.subr.mxu0 0.0
    %9349 = vmatpush2.msra.mxu0 0.0
    %9350 = vmatprep.subr.mxu0 0.0
    %9351 = vmatpush2.msra.mxu0 0.0
    %9352 = vmatprep.subr.mxu0 0.0
    %9353 = vmatpush2.msra.mxu0 0.0
    %9354 = vmatprep.subr.mxu0 0.0
    %9355 = vmatpush2.msra.mxu0 0.0
    %9356 = vmatprep.subr.mxu0 0.0
    %9357 = vmatpush2.msra.mxu0 0.0
    %9358 = vmatprep.mubr.f32.mxu0 0.0
    %v9359 = vand.u32 %v180, 4294901760
    %v9360 = vsub.f32 %v180, %v9359
    %v9361 = vand.u32 %v9360, 4294901760
    %v9362 = vsub.f32 %v9360, %v9361
    %v9363 = vand.u32 %v9362, 4294901760
    %9364 = vmatmul.mubr.f32.gmra.mxu0 %v9363
    %v9365 = vpop.f32.mrf.mxu0
    %v9366 = vadd.f32 0.0, %v9365
    %v9367 = vpop.f32.mrf.mxu0
    %9368 = vdwg.mxu0
    %9369 = vmatprep.subr.mxu0 0.0
    %9370 = vmatpush1.msra.mxu0 0.0
    %9371 = vmatprep.subr.mxu0 0.0
    %9372 = vmatpush1.msra.mxu0 0.0
    %9373 = vmatprep.subr.mxu0 0.0
    %9374 = vmatpush1.msra.mxu0 0.0
    %9375 = vmatprep.subr.mxu0 0.0
    %9376 = vmatpush1.msra.mxu0 0.0
    %9377 = vmatprep.subr.mxu0 0.0
    %9378 = vmatpush1.msra.mxu0 0.0
    %9379 = vmatprep.subr.mxu0 0.0
    %9380 = vmatpush1.msra.mxu0 0.0
    %9381 = vmatprep.subr.mxu0 0.0
    %9382 = vmatpush1.msra.mxu0 0.0
    %9383 = vmatprep.subr.mxu0 0.0
    %9384 = vmatpush1.msra.mxu0 0.0
    %9385 = vmatprep.subr.mxu0 0.0
    %v9386 = vand.u32 %v9285, 4294901760
    %v9387 = vsub.f32 %v9285, %v9386
    %v9388 = vand.u32 %v9387, 4294901760
    %v9389 = vsub.f32 %v9387, %v9388
    %v9390 = vand.u32 %v9389, 4294901760
    %9391 = vmatpush1.msra.mxu0 %v9390
    %9392 = vmatprep.subr.mxu0 0.0
    %v9393 = vand.u32 %v9284, 4294901760
    %v9394 = vsub.f32 %v9284, %v9393
    %v9395 = vand.u32 %v9394, 4294901760
    %v9396 = vsub.f32 %v9394, %v9395
    %v9397 = vand.u32 %v9396, 4294901760
    %9398 = vmatpush1.msra.mxu0 %v9397
    %9399 = vmatprep.subr.mxu0 0.0
    %v9400 = vand.u32 %v9283, 4294901760
    %v9401 = vsub.f32 %v9283, %v9400
    %v9402 = vand.u32 %v9401, 4294901760
    %v9403 = vsub.f32 %v9401, %v9402
    %v9404 = vand.u32 %v9403, 4294901760
    %9405 = vmatpush1.msra.mxu0 %v9404
    %9406 = vmatprep.subr.mxu0 0.0
    %v9407 = vand.u32 %v9282, 4294901760
    %v9408 = vsub.f32 %v9282, %v9407
    %v9409 = vand.u32 %v9408, 4294901760
    %v9410 = vsub.f32 %v9408, %v9409
    %v9411 = vand.u32 %v9410, 4294901760
    %9412 = vmatpush1.msra.mxu0 %v9411
    %9413 = vmatprep.subr.mxu0 0.0
    %v9414 = vand.u32 %v9281, 4294901760
    %v9415 = vsub.f32 %v9281, %v9414
    %v9416 = vand.u32 %v9415, 4294901760
    %v9417 = vsub.f32 %v9415, %v9416
    %v9418 = vand.u32 %v9417, 4294901760
    %9419 = vmatpush1.msra.mxu0 %v9418
    %9420 = vmatprep.subr.mxu0 0.0
    %v9421 = vand.u32 %v9280, 4294901760
    %v9422 = vsub.f32 %v9280, %v9421
    %v9423 = vand.u32 %v9422, 4294901760
    %v9424 = vsub.f32 %v9422, %v9423
    %v9425 = vand.u32 %v9424, 4294901760
    %9426 = vmatpush1.msra.mxu0 %v9425
    %9427 = vmatprep.subr.mxu0 0.0
    %v9428 = vand.u32 %v9279, 4294901760
    %v9429 = vsub.f32 %v9279, %v9428
    %v9430 = vand.u32 %v9429, 4294901760
    %v9431 = vsub.f32 %v9429, %v9430
    %v9432 = vand.u32 %v9431, 4294901760
    %9433 = vmatpush1.msra.mxu0 %v9432
    %9434 = vmatprep.subr.mxu0 0.0
    %v9435 = vand.u32 %v9278, 4294901760
    %v9436 = vsub.f32 %v9278, %v9435
    %v9437 = vand.u32 %v9436, 4294901760
    %v9438 = vsub.f32 %v9436, %v9437
    %v9439 = vand.u32 %v9438, 4294901760
    %9440 = vmatpush1.msra.mxu0 %v9439
    %9441 = vmatprep.subr.mxu0 0.0
    %9442 = vmatpush2.msra.mxu0 0.0
    %9443 = vmatprep.subr.mxu0 0.0
    %9444 = vmatpush2.msra.mxu0 0.0
    %9445 = vmatprep.subr.mxu0 0.0
    %9446 = vmatpush2.msra.mxu0 0.0
    %9447 = vmatprep.subr.mxu0 0.0
    %9448 = vmatpush2.msra.mxu0 0.0
    %9449 = vmatprep.subr.mxu0 0.0
    %9450 = vmatpush2.msra.mxu0 0.0
    %9451 = vmatprep.subr.mxu0 0.0
    %9452 = vmatpush2.msra.mxu0 0.0
    %9453 = vmatprep.subr.mxu0 0.0
    %9454 = vmatpush2.msra.mxu0 0.0
    %9455 = vmatprep.subr.mxu0 0.0
    %9456 = vmatpush2.msra.mxu0 0.0
    %9457 = vmatprep.subr.mxu0 0.0
    %9458 = vmatpush2.msra.mxu0 0.0
    %9459 = vmatprep.subr.mxu0 0.0
    %9460 = vmatpush2.msra.mxu0 0.0
    %9461 = vmatprep.subr.mxu0 0.0
    %9462 = vmatpush2.msra.mxu0 0.0
    %9463 = vmatprep.subr.mxu0 0.0
    %9464 = vmatpush2.msra.mxu0 0.0
    %9465 = vmatprep.subr.mxu0 0.0
    %9466 = vmatpush2.msra.mxu0 0.0
    %9467 = vmatprep.subr.mxu0 0.0
    %9468 = vmatpush2.msra.mxu0 0.0
    %9469 = vmatprep.subr.mxu0 0.0
    %9470 = vmatpush2.msra.mxu0 0.0
    %9471 = vmatprep.subr.mxu0 0.0
    %9472 = vmatpush2.msra.mxu0 0.0
    %9473 = vmatprep.mubr.f32.mxu0 0.0
    %v9474 = vand.u32 %v180, 4294901760
    %9475 = vmatmul.mubr.f32.gmra.mxu0 %v9474
    %v9476 = vpop.f32.mrf.mxu0
    %v9477 = vadd.f32 %v9366, %v9476
    %v9478 = vpop.f32.mrf.mxu0
    %9479 = vdwg.mxu0
    %9480 = vmatprep.subr.mxu0 0.0
    %9481 = vmatpush1.msra.mxu0 0.0
    %9482 = vmatprep.subr.mxu0 0.0
    %9483 = vmatpush1.msra.mxu0 0.0
    %9484 = vmatprep.subr.mxu0 0.0
    %9485 = vmatpush1.msra.mxu0 0.0
    %9486 = vmatprep.subr.mxu0 0.0
    %9487 = vmatpush1.msra.mxu0 0.0
    %9488 = vmatprep.subr.mxu0 0.0
    %9489 = vmatpush1.msra.mxu0 0.0
    %9490 = vmatprep.subr.mxu0 0.0
    %9491 = vmatpush1.msra.mxu0 0.0
    %9492 = vmatprep.subr.mxu0 0.0
    %9493 = vmatpush1.msra.mxu0 0.0
    %9494 = vmatprep.subr.mxu0 0.0
    %9495 = vmatpush1.msra.mxu0 0.0
    %9496 = vmatprep.subr.mxu0 0.0
    %v9497 = vand.u32 %v9285, 4294901760
    %v9498 = vsub.f32 %v9285, %v9497
    %9499 = vmatpush1.msra.mxu0 %v9498
    %9500 = vmatprep.subr.mxu0 0.0
    %v9501 = vand.u32 %v9284, 4294901760
    %v9502 = vsub.f32 %v9284, %v9501
    %9503 = vmatpush1.msra.mxu0 %v9502
    %9504 = vmatprep.subr.mxu0 0.0
    %v9505 = vand.u32 %v9283, 4294901760
    %v9506 = vsub.f32 %v9283, %v9505
    %9507 = vmatpush1.msra.mxu0 %v9506
    %9508 = vmatprep.subr.mxu0 0.0
    %v9509 = vand.u32 %v9282, 4294901760
    %v9510 = vsub.f32 %v9282, %v9509
    %9511 = vmatpush1.msra.mxu0 %v9510
    %9512 = vmatprep.subr.mxu0 0.0
    %v9513 = vand.u32 %v9281, 4294901760
    %v9514 = vsub.f32 %v9281, %v9513
    %9515 = vmatpush1.msra.mxu0 %v9514
    %9516 = vmatprep.subr.mxu0 0.0
    %v9517 = vand.u32 %v9280, 4294901760
    %v9518 = vsub.f32 %v9280, %v9517
    %9519 = vmatpush1.msra.mxu0 %v9518
    %9520 = vmatprep.subr.mxu0 0.0
    %v9521 = vand.u32 %v9279, 4294901760
    %v9522 = vsub.f32 %v9279, %v9521
    %9523 = vmatpush1.msra.mxu0 %v9522
    %9524 = vmatprep.subr.mxu0 0.0
    %v9525 = vand.u32 %v9278, 4294901760
    %v9526 = vsub.f32 %v9278, %v9525
    %9527 = vmatpush1.msra.mxu0 %v9526
    %9528 = vmatprep.subr.mxu0 0.0
    %9529 = vmatpush2.msra.mxu0 0.0
    %9530 = vmatprep.subr.mxu0 0.0
    %9531 = vmatpush2.msra.mxu0 0.0
    %9532 = vmatprep.subr.mxu0 0.0
    %9533 = vmatpush2.msra.mxu0 0.0
    %9534 = vmatprep.subr.mxu0 0.0
    %9535 = vmatpush2.msra.mxu0 0.0
    %9536 = vmatprep.subr.mxu0 0.0
    %9537 = vmatpush2.msra.mxu0 0.0
    %9538 = vmatprep.subr.mxu0 0.0
    %9539 = vmatpush2.msra.mxu0 0.0
    %9540 = vmatprep.subr.mxu0 0.0
    %9541 = vmatpush2.msra.mxu0 0.0
    %9542 = vmatprep.subr.mxu0 0.0
    %9543 = vmatpush2.msra.mxu0 0.0
    %9544 = vmatprep.subr.mxu0 0.0
    %9545 = vmatpush2.msra.mxu0 0.0
    %9546 = vmatprep.subr.mxu0 0.0
    %9547 = vmatpush2.msra.mxu0 0.0
    %9548 = vmatprep.subr.mxu0 0.0
    %9549 = vmatpush2.msra.mxu0 0.0
    %9550 = vmatprep.subr.mxu0 0.0
    %9551 = vmatpush2.msra.mxu0 0.0
    %9552 = vmatprep.subr.mxu0 0.0
    %9553 = vmatpush2.msra.mxu0 0.0
    %9554 = vmatprep.subr.mxu0 0.0
    %9555 = vmatpush2.msra.mxu0 0.0
    %9556 = vmatprep.subr.mxu0 0.0
    %9557 = vmatpush2.msra.mxu0 0.0
    %9558 = vmatprep.subr.mxu0 0.0
    %9559 = vmatpush2.msra.mxu0 0.0
    %9560 = vmatprep.mubr.f32.mxu0 0.0
    %v9561 = vand.u32 %v180, 4294901760
    %v9562 = vsub.f32 %v180, %v9561
    %9563 = vmatmul.mubr.f32.gmra.mxu0 %v9562
    %v9564 = vpop.f32.mrf.mxu0
    %v9565 = vadd.f32 %v9477, %v9564
    %v9566 = vpop.f32.mrf.mxu0
    %9567 = vdwg.mxu0
    %9568 = vmatprep.subr.mxu0 0.0
    %9569 = vmatpush1.msra.mxu0 0.0
    %9570 = vmatprep.subr.mxu0 0.0
    %9571 = vmatpush1.msra.mxu0 0.0
    %9572 = vmatprep.subr.mxu0 0.0
    %9573 = vmatpush1.msra.mxu0 0.0
    %9574 = vmatprep.subr.mxu0 0.0
    %9575 = vmatpush1.msra.mxu0 0.0
    %9576 = vmatprep.subr.mxu0 0.0
    %9577 = vmatpush1.msra.mxu0 0.0
    %9578 = vmatprep.subr.mxu0 0.0
    %9579 = vmatpush1.msra.mxu0 0.0
    %9580 = vmatprep.subr.mxu0 0.0
    %9581 = vmatpush1.msra.mxu0 0.0
    %9582 = vmatprep.subr.mxu0 0.0
    %9583 = vmatpush1.msra.mxu0 0.0
    %9584 = vmatprep.subr.mxu0 0.0
    %v9585 = vand.u32 %v9285, 4294901760
    %9586 = vmatpush1.msra.mxu0 %v9585
    %9587 = vmatprep.subr.mxu0 0.0
    %v9588 = vand.u32 %v9284, 4294901760
    %9589 = vmatpush1.msra.mxu0 %v9588
    %9590 = vmatprep.subr.mxu0 0.0
    %v9591 = vand.u32 %v9283, 4294901760
    %9592 = vmatpush1.msra.mxu0 %v9591
    %9593 = vmatprep.subr.mxu0 0.0
    %v9594 = vand.u32 %v9282, 4294901760
    %9595 = vmatpush1.msra.mxu0 %v9594
    %9596 = vmatprep.subr.mxu0 0.0
    %v9597 = vand.u32 %v9281, 4294901760
    %9598 = vmatpush1.msra.mxu0 %v9597
    %9599 = vmatprep.subr.mxu0 0.0
    %v9600 = vand.u32 %v9280, 4294901760
    %9601 = vmatpush1.msra.mxu0 %v9600
    %9602 = vmatprep.subr.mxu0 0.0
    %v9603 = vand.u32 %v9279, 4294901760
    %9604 = vmatpush1.msra.mxu0 %v9603
    %9605 = vmatprep.subr.mxu0 0.0
    %v9606 = vand.u32 %v9278, 4294901760
    %9607 = vmatpush1.msra.mxu0 %v9606
    %9608 = vmatprep.subr.mxu0 0.0
    %9609 = vmatpush2.msra.mxu0 0.0
    %9610 = vmatprep.subr.mxu0 0.0
    %9611 = vmatpush2.msra.mxu0 0.0
    %9612 = vmatprep.subr.mxu0 0.0
    %9613 = vmatpush2.msra.mxu0 0.0
    %9614 = vmatprep.subr.mxu0 0.0
    %9615 = vmatpush2.msra.mxu0 0.0
    %9616 = vmatprep.subr.mxu0 0.0
    %9617 = vmatpush2.msra.mxu0 0.0
    %9618 = vmatprep.subr.mxu0 0.0
    %9619 = vmatpush2.msra.mxu0 0.0
    %9620 = vmatprep.subr.mxu0 0.0
    %9621 = vmatpush2.msra.mxu0 0.0
    %9622 = vmatprep.subr.mxu0 0.0
    %9623 = vmatpush2.msra.mxu0 0.0
    %9624 = vmatprep.subr.mxu0 0.0
    %9625 = vmatpush2.msra.mxu0 0.0
    %9626 = vmatprep.subr.mxu0 0.0
    %9627 = vmatpush2.msra.mxu0 0.0
    %9628 = vmatprep.subr.mxu0 0.0
    %9629 = vmatpush2.msra.mxu0 0.0
    %9630 = vmatprep.subr.mxu0 0.0
    %9631 = vmatpush2.msra.mxu0 0.0
    %9632 = vmatprep.subr.mxu0 0.0
    %9633 = vmatpush2.msra.mxu0 0.0
    %9634 = vmatprep.subr.mxu0 0.0
    %9635 = vmatpush2.msra.mxu0 0.0
    %9636 = vmatprep.subr.mxu0 0.0
    %9637 = vmatpush2.msra.mxu0 0.0
    %9638 = vmatprep.subr.mxu0 0.0
    %9639 = vmatpush2.msra.mxu0 0.0
    %9640 = vmatprep.mubr.f32.mxu0 0.0
    %v9641 = vand.u32 %v180, 4294901760
    %v9642 = vsub.f32 %v180, %v9641
    %v9643 = vand.u32 %v9642, 4294901760
    %9644 = vmatmul.mubr.f32.gmra.mxu0 %v9643
    %v9645 = vpop.f32.mrf.mxu0
    %v9646 = vadd.f32 %v9565, %v9645
    %v9647 = vpop.f32.mrf.mxu0
    %9648 = vdwg.mxu0
    %9649 = vmatprep.subr.mxu0 0.0
    %9650 = vmatpush1.msra.mxu0 0.0
    %9651 = vmatprep.subr.mxu0 0.0
    %9652 = vmatpush1.msra.mxu0 0.0
    %9653 = vmatprep.subr.mxu0 0.0
    %9654 = vmatpush1.msra.mxu0 0.0
    %9655 = vmatprep.subr.mxu0 0.0
    %9656 = vmatpush1.msra.mxu0 0.0
    %9657 = vmatprep.subr.mxu0 0.0
    %9658 = vmatpush1.msra.mxu0 0.0
    %9659 = vmatprep.subr.mxu0 0.0
    %9660 = vmatpush1.msra.mxu0 0.0
    %9661 = vmatprep.subr.mxu0 0.0
    %9662 = vmatpush1.msra.mxu0 0.0
    %9663 = vmatprep.subr.mxu0 0.0
    %9664 = vmatpush1.msra.mxu0 0.0
    %9665 = vmatprep.subr.mxu0 0.0
    %v9666 = vand.u32 %v9285, 4294901760
    %v9667 = vsub.f32 %v9285, %v9666
    %v9668 = vand.u32 %v9667, 4294901760
    %9669 = vmatpush1.msra.mxu0 %v9668
    %9670 = vmatprep.subr.mxu0 0.0
    %v9671 = vand.u32 %v9284, 4294901760
    %v9672 = vsub.f32 %v9284, %v9671
    %v9673 = vand.u32 %v9672, 4294901760
    %9674 = vmatpush1.msra.mxu0 %v9673
    %9675 = vmatprep.subr.mxu0 0.0
    %v9676 = vand.u32 %v9283, 4294901760
    %v9677 = vsub.f32 %v9283, %v9676
    %v9678 = vand.u32 %v9677, 4294901760
    %9679 = vmatpush1.msra.mxu0 %v9678
    %9680 = vmatprep.subr.mxu0 0.0
    %v9681 = vand.u32 %v9282, 4294901760
    %v9682 = vsub.f32 %v9282, %v9681
    %v9683 = vand.u32 %v9682, 4294901760
    %9684 = vmatpush1.msra.mxu0 %v9683
    %9685 = vmatprep.subr.mxu0 0.0
    %v9686 = vand.u32 %v9281, 4294901760
    %v9687 = vsub.f32 %v9281, %v9686
    %v9688 = vand.u32 %v9687, 4294901760
    %9689 = vmatpush1.msra.mxu0 %v9688
    %9690 = vmatprep.subr.mxu0 0.0
    %v9691 = vand.u32 %v9280, 4294901760
    %v9692 = vsub.f32 %v9280, %v9691
    %v9693 = vand.u32 %v9692, 4294901760
    %9694 = vmatpush1.msra.mxu0 %v9693
    %9695 = vmatprep.subr.mxu0 0.0
    %v9696 = vand.u32 %v9279, 4294901760
    %v9697 = vsub.f32 %v9279, %v9696
    %v9698 = vand.u32 %v9697, 4294901760
    %9699 = vmatpush1.msra.mxu0 %v9698
    %9700 = vmatprep.subr.mxu0 0.0
    %v9701 = vand.u32 %v9278, 4294901760
    %v9702 = vsub.f32 %v9278, %v9701
    %v9703 = vand.u32 %v9702, 4294901760
    %9704 = vmatpush1.msra.mxu0 %v9703
    %9705 = vmatprep.subr.mxu0 0.0
    %9706 = vmatpush2.msra.mxu0 0.0
    %9707 = vmatprep.subr.mxu0 0.0
    %9708 = vmatpush2.msra.mxu0 0.0
    %9709 = vmatprep.subr.mxu0 0.0
    %9710 = vmatpush2.msra.mxu0 0.0
    %9711 = vmatprep.subr.mxu0 0.0
    %9712 = vmatpush2.msra.mxu0 0.0
    %9713 = vmatprep.subr.mxu0 0.0
    %9714 = vmatpush2.msra.mxu0 0.0
    %9715 = vmatprep.subr.mxu0 0.0
    %9716 = vmatpush2.msra.mxu0 0.0
    %9717 = vmatprep.subr.mxu0 0.0
    %9718 = vmatpush2.msra.mxu0 0.0
    %9719 = vmatprep.subr.mxu0 0.0
    %9720 = vmatpush2.msra.mxu0 0.0
    %9721 = vmatprep.subr.mxu0 0.0
    %9722 = vmatpush2.msra.mxu0 0.0
    %9723 = vmatprep.subr.mxu0 0.0
    %9724 = vmatpush2.msra.mxu0 0.0
    %9725 = vmatprep.subr.mxu0 0.0
    %9726 = vmatpush2.msra.mxu0 0.0
    %9727 = vmatprep.subr.mxu0 0.0
    %9728 = vmatpush2.msra.mxu0 0.0
    %9729 = vmatprep.subr.mxu0 0.0
    %9730 = vmatpush2.msra.mxu0 0.0
    %9731 = vmatprep.subr.mxu0 0.0
    %9732 = vmatpush2.msra.mxu0 0.0
    %9733 = vmatprep.subr.mxu0 0.0
    %9734 = vmatpush2.msra.mxu0 0.0
    %9735 = vmatprep.subr.mxu0 0.0
    %9736 = vmatpush2.msra.mxu0 0.0
    %9737 = vmatprep.mubr.f32.mxu0 0.0
    %v9738 = vand.u32 %v180, 4294901760
    %9739 = vmatmul.mubr.f32.gmra.mxu0 %v9738
    %v9740 = vpop.f32.mrf.mxu0
    %v9741 = vadd.f32 %v9646, %v9740
    %v9742 = vpop.f32.mrf.mxu0
    %9743 = vdwg.mxu0
    %9744 = vmatprep.subr.mxu0 0.0
    %9745 = vmatpush1.msra.mxu0 0.0
    %9746 = vmatprep.subr.mxu0 0.0
    %9747 = vmatpush1.msra.mxu0 0.0
    %9748 = vmatprep.subr.mxu0 0.0
    %9749 = vmatpush1.msra.mxu0 0.0
    %9750 = vmatprep.subr.mxu0 0.0
    %9751 = vmatpush1.msra.mxu0 0.0
    %9752 = vmatprep.subr.mxu0 0.0
    %9753 = vmatpush1.msra.mxu0 0.0
    %9754 = vmatprep.subr.mxu0 0.0
    %9755 = vmatpush1.msra.mxu0 0.0
    %9756 = vmatprep.subr.mxu0 0.0
    %9757 = vmatpush1.msra.mxu0 0.0
    %9758 = vmatprep.subr.mxu0 0.0
    %9759 = vmatpush1.msra.mxu0 0.0
    %9760 = vmatprep.subr.mxu0 0.0
    %v9761 = vand.u32 %v9285, 4294901760
    %9762 = vmatpush1.msra.mxu0 %v9761
    %9763 = vmatprep.subr.mxu0 0.0
    %v9764 = vand.u32 %v9284, 4294901760
    %9765 = vmatpush1.msra.mxu0 %v9764
    %9766 = vmatprep.subr.mxu0 0.0
    %v9767 = vand.u32 %v9283, 4294901760
    %9768 = vmatpush1.msra.mxu0 %v9767
    %9769 = vmatprep.subr.mxu0 0.0
    %v9770 = vand.u32 %v9282, 4294901760
    %9771 = vmatpush1.msra.mxu0 %v9770
    %9772 = vmatprep.subr.mxu0 0.0
    %v9773 = vand.u32 %v9281, 4294901760
    %9774 = vmatpush1.msra.mxu0 %v9773
    %9775 = vmatprep.subr.mxu0 0.0
    %v9776 = vand.u32 %v9280, 4294901760
    %9777 = vmatpush1.msra.mxu0 %v9776
    %9778 = vmatprep.subr.mxu0 0.0
    %v9779 = vand.u32 %v9279, 4294901760
    %9780 = vmatpush1.msra.mxu0 %v9779
    %9781 = vmatprep.subr.mxu0 0.0
    %v9782 = vand.u32 %v9278, 4294901760
    %9783 = vmatpush1.msra.mxu0 %v9782
    %9784 = vmatprep.subr.mxu0 0.0
    %9785 = vmatpush2.msra.mxu0 0.0
    %9786 = vmatprep.subr.mxu0 0.0
    %9787 = vmatpush2.msra.mxu0 0.0
    %9788 = vmatprep.subr.mxu0 0.0
    %9789 = vmatpush2.msra.mxu0 0.0
    %9790 = vmatprep.subr.mxu0 0.0
    %9791 = vmatpush2.msra.mxu0 0.0
    %9792 = vmatprep.subr.mxu0 0.0
    %9793 = vmatpush2.msra.mxu0 0.0
    %9794 = vmatprep.subr.mxu0 0.0
    %9795 = vmatpush2.msra.mxu0 0.0
    %9796 = vmatprep.subr.mxu0 0.0
    %9797 = vmatpush2.msra.mxu0 0.0
    %9798 = vmatprep.subr.mxu0 0.0
    %9799 = vmatpush2.msra.mxu0 0.0
    %9800 = vmatprep.subr.mxu0 0.0
    %9801 = vmatpush2.msra.mxu0 0.0
    %9802 = vmatprep.subr.mxu0 0.0
    %9803 = vmatpush2.msra.mxu0 0.0
    %9804 = vmatprep.subr.mxu0 0.0
    %9805 = vmatpush2.msra.mxu0 0.0
    %9806 = vmatprep.subr.mxu0 0.0
    %9807 = vmatpush2.msra.mxu0 0.0
    %9808 = vmatprep.subr.mxu0 0.0
    %9809 = vmatpush2.msra.mxu0 0.0
    %9810 = vmatprep.subr.mxu0 0.0
    %9811 = vmatpush2.msra.mxu0 0.0
    %9812 = vmatprep.subr.mxu0 0.0
    %9813 = vmatpush2.msra.mxu0 0.0
    %9814 = vmatprep.subr.mxu0 0.0
    %9815 = vmatpush2.msra.mxu0 0.0
    %9816 = vmatprep.mubr.f32.mxu0 0.0
    %v9817 = vand.u32 %v180, 4294901760
    %9818 = vmatmul.mubr.f32.gmra.mxu0 %v9817
    %v9819 = vpop.f32.mrf.mxu0
    %v9820 = vadd.f32 %v9741, %v9819
    %v9821 = vpop.f32.mrf.mxu0
    %9822 = vdwg.mxu0
    %v9823 = vld [vmem:[#allocation7] sm:$0xff]
    %v9824 = vld [vmem:[#allocation7 + $0x8] sm:$0xff]
    %v9825 = vld [vmem:[#allocation7 + $0x10] sm:$0xff]
    %v9826 = vld [vmem:[#allocation7 + $0x18] sm:$0xff]
    %v9827 = vld [vmem:[#allocation7 + $0x20] sm:$0xff]
    %v9828 = vld [vmem:[#allocation7 + $0x28] sm:$0xff]
    %v9829 = vld [vmem:[#allocation7 + $0x30] sm:$0xff]
    %v9830 = vld [vmem:[#allocation7 + $0x38] sm:$0xff]
    %v9831 = vld [vmem:[#allocation7 + $0x40] sm:$0xff]
    %v9832 = vld [vmem:[#allocation7 + $0x48] sm:$0xff]
    %v9833 = vld [vmem:[#allocation7 + $0x50] sm:$0xff]
    %v9834 = vld [vmem:[#allocation7 + $0x58] sm:$0xff]
    %v9835 = vld [vmem:[#allocation7 + $0x60] sm:$0xff]
    %v9836 = vld [vmem:[#allocation7 + $0x68] sm:$0xff]
    %v9837 = vld [vmem:[#allocation7 + $0x70] sm:$0xff]
    %v9838 = vld [vmem:[#allocation7 + $0x78] sm:$0xff]
    %v9839 = vld [vmem:[#allocation7 + $0x80] sm:$0xff]
    %v9840 = vadd.f32 %v9823, %v716
    %v9841 = vadd.f32 %v9824, %v1285
    %v9842 = vadd.f32 %v9825, %v1854
    %v9843 = vadd.f32 %v9826, %v2423
    %v9844 = vadd.f32 %v9827, %v2992
    %v9845 = vadd.f32 %v9828, %v3561
    %v9846 = vadd.f32 %v9829, %v4130
    %v9847 = vadd.f32 %v9830, %v4699
    %v9848 = vadd.f32 %v9831, %v5268
    %v9849 = vadd.f32 %v9832, %v5837
    %v9850 = vadd.f32 %v9833, %v6406
    %v9851 = vadd.f32 %v9834, %v6975
    %v9852 = vadd.f32 %v9835, %v7544
    %v9853 = vadd.f32 %v9836, %v8113
    %v9854 = vadd.f32 %v9837, %v8682
    %v9855 = vadd.f32 %v9838, %v9251
    %v9856 = vadd.f32 %v9839, %v9820
    %9857 = vst [vmem:[#allocation7] sm:$0xff] %v9840
    %9858 = vst [vmem:[#allocation7 + $0x8] sm:$0xff] %v9841
    %9859 = vst [vmem:[#allocation7 + $0x10] sm:$0xff] %v9842
    %9860 = vst [vmem:[#allocation7 + $0x18] sm:$0xff] %v9843
    %9861 = vst [vmem:[#allocation7 + $0x20] sm:$0xff] %v9844
    %9862 = vst [vmem:[#allocation7 + $0x28] sm:$0xff] %v9845
    %9863 = vst [vmem:[#allocation7 + $0x30] sm:$0xff] %v9846
    %9864 = vst [vmem:[#allocation7 + $0x38] sm:$0xff] %v9847
    %9865 = vst [vmem:[#allocation7 + $0x40] sm:$0xff] %v9848
    %9866 = vst [vmem:[#allocation7 + $0x48] sm:$0xff] %v9849
    %9867 = vst [vmem:[#allocation7 + $0x50] sm:$0xff] %v9850
    %9868 = vst [vmem:[#allocation7 + $0x58] sm:$0xff] %v9851
    %9869 = vst [vmem:[#allocation7 + $0x60] sm:$0xff] %v9852
    %9870 = vst [vmem:[#allocation7 + $0x68] sm:$0xff] %v9853
    %9871 = vst [vmem:[#allocation7 + $0x70] sm:$0xff] %v9854
    %9872 = vst [vmem:[#allocation7 + $0x78] sm:$0xff] %v9855
    %9873 = vst [vmem:[#allocation7 + $0x80] sm:$0xff] %v9856
    // Predicated region
    $region14: #{tpu_custom_call.1} parent=1 // pred_check
      _
    $region15: #{tpu_custom_call.1} parent=1 // pred_check_branch
      %9875 = sbr.rel (0) target = $region17
    $region16: #{tpu_custom_call.1} parent=1 // pred_region
      %s9877 = ssub.s32 2176, 2176
      %9878 = vsyncadd [#allocation6], %s9877
      %s9879 = sshll.u32 [#allocation7], 4
      %s9880 = int_to_ptr.vmem [resolvable:$true] %s9879
      %9885 = dma.vmem_to_hbm [thread:$0]  %s9880, 2176, %s2, [#allocation6], 128, 128, 8
    $region17: #{tpu_custom_call.1} parent=1 // pred_fallthru
      _
    // Predicated region
    $region18: #{tpu_custom_call.1} parent=1 // pred_check
      _
    $region19: #{tpu_custom_call.1} parent=1 // pred_check_branch
      %9887 = sbr.rel (0) target = $region21
    $region20: #{tpu_custom_call.1} parent=1 // pred_region
      %9888 = dma.done [#allocation6], 2176
    $region21: #{tpu_custom_call.1} parent=1 // pred_fallthru
      _
    %9889 = vsyncpa [#allocation5], 1
    %9890 = vsyncpa [#allocation6], 1

</llo_original>
